<compile_context>
chip_gen: v7x
topology: tpu7x:2x2x1
jax: 0.10.0
libtpu: 0.0.40
codegen_flags: <defaults>
</compile_context>

<pallas_src>
import numpy as np
import jax
import jax.numpy as jnp
from jax.experimental import pallas as pl
from jax.experimental.pallas import tpu as pltpu

INPUT_SIZE = 1
HIDDEN = 50
HPAD = 128              # each gate padded to one full lane group
FC1_OUT = HIDDEN // 2   # 25
OUT_SIZE = 1
NUM_LAYERS = 2

# PyTorch gate order [i, f, g, o]  ->  kernel order [i, f, o, g]
GATE_PERM = (0, 1, 3, 2)


def lstm_kernel(x_ref, wih0_ref, whh0_ref, b0_ref, wih1_hbm, whh1_hbm,
                b1_ref, w12_ref, b12_ref, out_ref,
                wih1_vmem, whh1_vmem, dma_sem):
    Bp, T = x_ref.shape
    HP = w12_ref.shape[1]

    # Kick off the layer-1 weight DMAs immediately; they overlap the first
    # layer-0 cell (waits are placed right before each weight's first use).
    cp_wih1 = pltpu.make_async_copy(wih1_hbm, wih1_vmem, dma_sem.at[0])
    cp_whh1 = pltpu.make_async_copy(whh1_hbm, whh1_vmem, dma_sem.at[1])
    cp_wih1.start()
    cp_whh1.start()

    x = x_ref[...]           # (Bp, T)      lane-dense time axis
    wih0 = wih0_ref[...]     # (1, 4*HP)    layer-0 input weights (I=1 row)
    b0 = b0_ref[...]         # (1, 4*HP)
    b1 = b1_ref[...]         # (1, 4*HP)
    w12 = w12_ref[...]       # (1, HP)      folded fc1@fc2 weight row
    b12 = b12_ref[...]       # (1, 1)       folded fc1@fc2 bias

    # Recurrence-independent layer-0 input term, off the serial chain.
    xw = [x[:, t:t + 1] * wih0 + b0 for t in range(T)]   # each (Bp, 4*HP)

    def gate_split(g):
        # [i | f | o] occupy the first 3*HP lanes -> single sigmoid dispatch.
        sig = jax.nn.sigmoid(g[:, :3 * HP])
        gg = jnp.tanh(g[:, 3 * HP:4 * HP])
        return sig[:, 0:HP], sig[:, HP:2 * HP], sig[:, 2 * HP:3 * HP], gg

    h0 = c0 = h1 = c1 = None

    for t in range(T):  # T is static -> fully unrolled, single invocation
        # ---------------- layer 0 ----------------
        if t == 0:
            g0 = xw[t]                                    # h0_prev == 0
        else:
            g0 = jnp.dot(h0, whh0_ref[...],
                         preferred_element_type=jnp.float32) + xw[t]
        i0, f0, o0, gg0 = gate_split(g0)
        c0 = i0 * gg0 if t == 0 else f0 * c0 + i0 * gg0
        h0 = o0 * jnp.tanh(c0)

        # ---------------- layer 1 ----------------
        if t == 0:
            cp_wih1.wait()                                # first use of wih1
            g1 = jnp.dot(h0, wih1_vmem[...],
                         preferred_element_type=jnp.float32) + b1
        else:
            if t == 1:
                cp_whh1.wait()                            # first use of whh1
            g1 = (jnp.dot(h0, wih1_vmem[...],
                          preferred_element_type=jnp.float32)
                  + jnp.dot(h1, whh1_vmem[...],
                            preferred_element_type=jnp.float32)
                  + b1)
        i1, f1, o1, gg1 = gate_split(g1)
        c1 = i1 * gg1 if t == 0 else f1 * c1 + i1 * gg1
        h1 = o1 * jnp.tanh(c1)

        # Folded fc1->fc2 head: VPU multiply + lane reduction (padded lanes of
        # h1 and w12 are zero -> exact).  Store straight into the output slab.
        y_t = jnp.sum(h1 * w12, axis=-1, keepdims=True) + b12   # (Bp, 1)
        out_ref[:, t:t + 1] = y_t.astype(out_ref.dtype)

    if T < 2:  # safety: never leave an outstanding DMA
        cp_whh1.wait()


def _pad_gate_cols(w, h, hp):
    """(K, 4*h) [i,f,g,o] -> (K, 4*hp) [i,f,o,g], each gate zero-padded."""
    k = w.shape[0]
    w4 = jnp.take(w.reshape(k, 4, h), jnp.array(GATE_PERM), axis=1)
    return jnp.pad(w4, ((0, 0), (0, 0), (0, hp - h))).reshape(k, 4 * hp)


def _pad_rows(w, h, hp):
    """(h, N) -> (hp, N): zero-pad the contracting dimension."""
    return jnp.pad(w, ((0, hp - h), (0, 0)))


def lstm_model_forward(x, p):
    """x: (B, T, 1) float32, batch_first like PyTorch. Returns (B, T, 1)."""
    B, T, I = x.shape
    assert I == INPUT_SIZE
    H, HP = HIDDEN, HPAD
    Bp = max(8, ((B + 7) // 8) * 8)          # full sublane group

    # Layer 0 weights (lane-aligned, [i,f,o,g] gate layout).
    wih0 = _pad_gate_cols(p["wih0"].T, H, HP)                       # (1, 4*HP)
    whh0 = _pad_gate_cols(_pad_rows(p["whh0"].T, H, HP), H, HP)     # (HP, 4*HP)
    b0 = _pad_gate_cols((p["bih0"] + p["bhh0"])[None, :], H, HP)    # (1, 4*HP)

    # Layer 1 weights (kept separate -> no per-step concat in the kernel).
    wih1 = _pad_gate_cols(_pad_rows(p["wih1"].T, H, HP), H, HP)     # (HP, 4*HP)
    whh1 = _pad_gate_cols(_pad_rows(p["whh1"].T, H, HP), H, HP)     # (HP, 4*HP)
    b1 = _pad_gate_cols((p["bih1"] + p["bhh1"])[None, :], H, HP)    # (1, 4*HP)

    # Fold fc2 into fc1 (exact: no activation between them).
    w12 = (p["w1"].T @ p["w2"].T).reshape(H)                        # (H,)
    w12 = jnp.pad(w12, (0, HP - H))[None, :]                        # (1, HP)
    b12 = (p["b1"] @ p["w2"].T + p["b2"]).reshape(1, 1)             # (1, 1)

    x2d = jnp.pad(x[:, :, 0], ((0, Bp - B), (0, 0)))                # (Bp, T)

    vmem = pl.BlockSpec(memory_space=pltpu.MemorySpace.VMEM)
    hbm = pl.BlockSpec(memory_space=pl.ANY)   # layer-1 weights: manual DMA

    out2d = pl.pallas_call(
        lstm_kernel,
        out_shape=jax.ShapeDtypeStruct((Bp, T), jnp.float32),
        in_specs=[vmem, vmem, vmem, vmem, hbm, hbm, vmem, vmem, vmem],
        out_specs=vmem,
        scratch_shapes=[
            pltpu.VMEM((HP, 4 * HP), jnp.float32),   # wih1 landing buffer
            pltpu.VMEM((HP, 4 * HP), jnp.float32),   # whh1 landing buffer
            pltpu.SemaphoreType.DMA((2,)),
        ],
    )(x2d, wih0, whh0, b0, wih1, whh1, b1, w12, b12)

    return out2d[:B, :, None]                                        # (B, T, 1)


def init_params(key):
    """Deterministic parameter init matching the PyTorch module's shapes."""
    H, I, F1, O = HIDDEN, INPUT_SIZE, FC1_OUT, OUT_SIZE
    ks = jax.random.split(key, 12)
    s_lstm = 1.0 / np.sqrt(H)
    s_fc1 = 1.0 / np.sqrt(H)
    s_fc2 = 1.0 / np.sqrt(F1)
    u = lambda k, shape, s: jax.random.uniform(
        k, shape, jnp.float32, minval=-s, maxval=s)
    return {
        # LSTM layer 0
        "wih0": u(ks[0], (4 * H, I), s_lstm),
        "whh0": u(ks[1], (4 * H, H), s_lstm),
        "bih0": u(ks[2], (4 * H,), s_lstm),
        "bhh0": u(ks[3], (4 * H,), s_lstm),
        # LSTM layer 1
        "wih1": u(ks[4], (4 * H, H), s_lstm),
        "whh1": u(ks[5], (4 * H, H), s_lstm),
        "bih1": u(ks[6], (4 * H,), s_lstm),
        "bhh1": u(ks[7], (4 * H,), s_lstm),
        # fc1 / fc2
        "w1": u(ks[8], (F1, H), s_fc1),
        "b1": u(ks[9], (F1,), s_fc1),
        "w2": u(ks[10], (O, F1), s_fc2),
        "b2": u(ks[11], (O,), s_fc2),
    }


def ref_forward(x, p):
    """Pure-JAX reference of the PyTorch forward pass."""
    B, T, I = x.shape
    H = HIDDEN

    def cell(inp, h, c, wih, whh, bih, bhh):
        g = inp @ wih.T + h @ whh.T + bih + bhh
        i, f, gg, o = jnp.split(g, 4, axis=-1)
        c = jax.nn.sigmoid(f) * c + jax.nn.sigmoid(i) * jnp.tanh(gg)
        h = jax.nn.sigmoid(o) * jnp.tanh(c)
        return h, c

    def step(carry, x_t):
        h0, c0, h1, c1 = carry
        h0, c0 = cell(x_t, h0, c0, p["wih0"], p["whh0"], p["bih0"], p["bhh0"])
        h1, c1 = cell(h0, h1, c1, p["wih1"], p["whh1"], p["bih1"], p["bhh1"])
        y = (h1 @ p["w1"].T + p["b1"]) @ p["w2"].T + p["b2"]
        return (h0, c0, h1, c1), y

    init = tuple(jnp.zeros((B, H), jnp.float32) for _ in range(4))
    _, ys = jax.lax.scan(step, init, jnp.transpose(x, (1, 0, 2)))
    return jnp.transpose(ys, (1, 0, 2))


if __name__ == "__main__":
    key = jax.random.PRNGKey(0)
    k_x, k_p = jax.random.split(key)

    B, T = 2, 8
    x = jax.random.normal(k_x, (B, T, INPUT_SIZE), dtype=jnp.float32)
    params = init_params(k_p)

    out = jax.block_until_ready(lstm_model_forward(x, params))
    ref = jax.block_until_ready(ref_forward(x, params))

    assert out.shape == (B, T, OUT_SIZE)
    np.testing.assert_allclose(np.asarray(out), np.asarray(ref),
                               rtol=1e-4, atol=1e-5)
    print("KERNEL_OK")
</pallas_src>

<mosaic_0001>
module attributes {stable_mosaic.version = 11 : i64} {
  func.func @lstm_kernel(%arg0: memref<8x8xf32, #tpu.memory_space<vmem>>, %arg1: memref<1x512xf32, #tpu.memory_space<vmem>>, %arg2: memref<128x512xf32, #tpu.memory_space<vmem>>, %arg3: memref<1x512xf32, #tpu.memory_space<vmem>>, %arg4: memref<128x512xf32, #tpu.memory_space<any>>, %arg5: memref<128x512xf32, #tpu.memory_space<any>>, %arg6: memref<1x512xf32, #tpu.memory_space<vmem>>, %arg7: memref<1x128xf32, #tpu.memory_space<vmem>>, %arg8: memref<1x1xf32, #tpu.memory_space<vmem>>, %arg9: memref<8x8xf32, #tpu.memory_space<vmem>>, %arg10: memref<128x512xf32, #tpu.memory_space<vmem>>, %arg11: memref<128x512xf32, #tpu.memory_space<vmem>>, %arg12: memref<2x!tpu.dma_semaphore, #tpu.memory_space<semaphore_mem>>) attributes {dimension_semantics = [], scalar_prefetch = 0 : i64, scratch_operands = 3 : i64, tpu.core_type = #tpu.core_type<tc>} {
    %c0_i32 = arith.constant 0 : i32
    %0 = tpu.memref_slice %arg12[%c0_i32] : memref<2x!tpu.dma_semaphore, #tpu.memory_space<semaphore_mem>> -> memref<1x!tpu.dma_semaphore, #tpu.memory_space<semaphore_mem>>
    %1 = tpu.memref_squeeze %0 : memref<1x!tpu.dma_semaphore, #tpu.memory_space<semaphore_mem>> -> memref<!tpu.dma_semaphore, #tpu.memory_space<semaphore_mem>>
    tpu.enqueue_dma source(%arg4 : memref<128x512xf32, #tpu.memory_space<any>>) target(%arg10 : memref<128x512xf32, #tpu.memory_space<vmem>>) target_semaphore(%1 : memref<!tpu.dma_semaphore, #tpu.memory_space<semaphore_mem>>)
    %c1_i32 = arith.constant 1 : i32
    %2 = tpu.memref_slice %arg12[%c1_i32] : memref<2x!tpu.dma_semaphore, #tpu.memory_space<semaphore_mem>> -> memref<1x!tpu.dma_semaphore, #tpu.memory_space<semaphore_mem>>
    %3 = tpu.memref_squeeze %2 : memref<1x!tpu.dma_semaphore, #tpu.memory_space<semaphore_mem>> -> memref<!tpu.dma_semaphore, #tpu.memory_space<semaphore_mem>>
    tpu.enqueue_dma source(%arg5 : memref<128x512xf32, #tpu.memory_space<any>>) target(%arg11 : memref<128x512xf32, #tpu.memory_space<vmem>>) target_semaphore(%3 : memref<!tpu.dma_semaphore, #tpu.memory_space<semaphore_mem>>)
    %c0 = arith.constant 0 : index
    %c0_0 = arith.constant 0 : index
    %4 = vector.load %arg0[%c0, %c0_0] : memref<8x8xf32, #tpu.memory_space<vmem>>, vector<8x8xf32>
    %c0_1 = arith.constant 0 : index
    %c0_2 = arith.constant 0 : index
    %5 = vector.load %arg1[%c0_1, %c0_2] : memref<1x512xf32, #tpu.memory_space<vmem>>, vector<1x512xf32>
    %c0_3 = arith.constant 0 : index
    %c0_4 = arith.constant 0 : index
    %6 = vector.load %arg3[%c0_3, %c0_4] : memref<1x512xf32, #tpu.memory_space<vmem>>, vector<1x512xf32>
    %c0_5 = arith.constant 0 : index
    %c0_6 = arith.constant 0 : index
    %7 = vector.load %arg6[%c0_5, %c0_6] : memref<1x512xf32, #tpu.memory_space<vmem>>, vector<1x512xf32>
    %c0_7 = arith.constant 0 : index
    %c0_8 = arith.constant 0 : index
    %8 = vector.load %arg7[%c0_7, %c0_8] : memref<1x128xf32, #tpu.memory_space<vmem>>, vector<1x128xf32>
    %c0_9 = arith.constant 0 : index
    %c0_10 = arith.constant 0 : index
    %9 = vector.load %arg8[%c0_9, %c0_10] : memref<1x1xf32, #tpu.memory_space<vmem>>, vector<1x1xf32>
    %10 = vector.extract_strided_slice %4 {offsets = [0, 0], sizes = [8, 1], strides = [1, 1]} : vector<8x8xf32> to vector<8x1xf32>
    %11 = vector.broadcast %10 : vector<8x1xf32> to vector<8x512xf32>
    %12 = vector.broadcast %5 : vector<1x512xf32> to vector<8x512xf32>
    %13 = arith.mulf %11, %12 : vector<8x512xf32>
    %14 = vector.broadcast %6 : vector<1x512xf32> to vector<8x512xf32>
    %15 = arith.addf %13, %14 : vector<8x512xf32>
    %16 = vector.extract_strided_slice %4 {offsets = [0, 1], sizes = [8, 1], strides = [1, 1]} : vector<8x8xf32> to vector<8x1xf32>
    %17 = vector.broadcast %16 : vector<8x1xf32> to vector<8x512xf32>
    %18 = vector.broadcast %5 : vector<1x512xf32> to vector<8x512xf32>
    %19 = arith.mulf %17, %18 : vector<8x512xf32>
    %20 = vector.broadcast %6 : vector<1x512xf32> to vector<8x512xf32>
    %21 = arith.addf %19, %20 : vector<8x512xf32>
    %22 = vector.extract_strided_slice %4 {offsets = [0, 2], sizes = [8, 1], strides = [1, 1]} : vector<8x8xf32> to vector<8x1xf32>
    %23 = vector.broadcast %22 : vector<8x1xf32> to vector<8x512xf32>
    %24 = vector.broadcast %5 : vector<1x512xf32> to vector<8x512xf32>
    %25 = arith.mulf %23, %24 : vector<8x512xf32>
    %26 = vector.broadcast %6 : vector<1x512xf32> to vector<8x512xf32>
    %27 = arith.addf %25, %26 : vector<8x512xf32>
    %28 = vector.extract_strided_slice %4 {offsets = [0, 3], sizes = [8, 1], strides = [1, 1]} : vector<8x8xf32> to vector<8x1xf32>
    %29 = vector.broadcast %28 : vector<8x1xf32> to vector<8x512xf32>
    %30 = vector.broadcast %5 : vector<1x512xf32> to vector<8x512xf32>
    %31 = arith.mulf %29, %30 : vector<8x512xf32>
    %32 = vector.broadcast %6 : vector<1x512xf32> to vector<8x512xf32>
    %33 = arith.addf %31, %32 : vector<8x512xf32>
    %34 = vector.extract_strided_slice %4 {offsets = [0, 4], sizes = [8, 1], strides = [1, 1]} : vector<8x8xf32> to vector<8x1xf32>
    %35 = vector.broadcast %34 : vector<8x1xf32> to vector<8x512xf32>
    %36 = vector.broadcast %5 : vector<1x512xf32> to vector<8x512xf32>
    %37 = arith.mulf %35, %36 : vector<8x512xf32>
    %38 = vector.broadcast %6 : vector<1x512xf32> to vector<8x512xf32>
    %39 = arith.addf %37, %38 : vector<8x512xf32>
    %40 = vector.extract_strided_slice %4 {offsets = [0, 5], sizes = [8, 1], strides = [1, 1]} : vector<8x8xf32> to vector<8x1xf32>
    %41 = vector.broadcast %40 : vector<8x1xf32> to vector<8x512xf32>
    %42 = vector.broadcast %5 : vector<1x512xf32> to vector<8x512xf32>
    %43 = arith.mulf %41, %42 : vector<8x512xf32>
    %44 = vector.broadcast %6 : vector<1x512xf32> to vector<8x512xf32>
    %45 = arith.addf %43, %44 : vector<8x512xf32>
    %46 = vector.extract_strided_slice %4 {offsets = [0, 6], sizes = [8, 1], strides = [1, 1]} : vector<8x8xf32> to vector<8x1xf32>
    %47 = vector.broadcast %46 : vector<8x1xf32> to vector<8x512xf32>
    %48 = vector.broadcast %5 : vector<1x512xf32> to vector<8x512xf32>
    %49 = arith.mulf %47, %48 : vector<8x512xf32>
    %50 = vector.broadcast %6 : vector<1x512xf32> to vector<8x512xf32>
    %51 = arith.addf %49, %50 : vector<8x512xf32>
    %52 = vector.extract_strided_slice %4 {offsets = [0, 7], sizes = [8, 1], strides = [1, 1]} : vector<8x8xf32> to vector<8x1xf32>
    %53 = vector.broadcast %52 : vector<8x1xf32> to vector<8x512xf32>
    %54 = vector.broadcast %5 : vector<1x512xf32> to vector<8x512xf32>
    %55 = arith.mulf %53, %54 : vector<8x512xf32>
    %56 = vector.broadcast %6 : vector<1x512xf32> to vector<8x512xf32>
    %57 = arith.addf %55, %56 : vector<8x512xf32>
    %58 = vector.extract_strided_slice %15 {offsets = [0, 0], sizes = [8, 384], strides = [1, 1]} : vector<8x512xf32> to vector<8x384xf32>
    %59 = arith.negf %58 : vector<8x384xf32>
    %60 = math.exp %59 : vector<8x384xf32>
    %cst = arith.constant 1.000000e+00 : f32
    %61 = vector.broadcast %cst : f32 to vector<8x384xf32>
    %62 = arith.addf %61, %60 : vector<8x384xf32>
    %63 = arith.divf %61, %62 : vector<8x384xf32>
    %64 = vector.extract_strided_slice %15 {offsets = [0, 384], sizes = [8, 128], strides = [1, 1]} : vector<8x512xf32> to vector<8x128xf32>
    %65 = math.tanh %64 : vector<8x128xf32>
    %66 = vector.extract_strided_slice %63 {offsets = [0, 0], sizes = [8, 128], strides = [1, 1]} : vector<8x384xf32> to vector<8x128xf32>
    %67 = vector.extract_strided_slice %63 {offsets = [0, 256], sizes = [8, 128], strides = [1, 1]} : vector<8x384xf32> to vector<8x128xf32>
    %68 = arith.mulf %66, %65 : vector<8x128xf32>
    %69 = math.tanh %68 : vector<8x128xf32>
    %70 = arith.mulf %67, %69 : vector<8x128xf32>
    %c0_i32_11 = arith.constant 0 : i32
    %71 = tpu.memref_slice %arg12[%c0_i32_11] : memref<2x!tpu.dma_semaphore, #tpu.memory_space<semaphore_mem>> -> memref<1x!tpu.dma_semaphore, #tpu.memory_space<semaphore_mem>>
    %72 = tpu.memref_squeeze %71 : memref<1x!tpu.dma_semaphore, #tpu.memory_space<semaphore_mem>> -> memref<!tpu.dma_semaphore, #tpu.memory_space<semaphore_mem>>
    tpu.wait_dma2 semaphore(%72 : memref<!tpu.dma_semaphore, #tpu.memory_space<semaphore_mem>>) src(%arg4 : memref<128x512xf32, #tpu.memory_space<any>>) dst(%arg10 : memref<128x512xf32, #tpu.memory_space<vmem>>)
    %c0_12 = arith.constant 0 : index
    %c0_13 = arith.constant 0 : index
    %73 = vector.load %arg10[%c0_12, %c0_13] : memref<128x512xf32, #tpu.memory_space<vmem>>, vector<128x512xf32>
    %cst_14 = arith.constant dense<0.000000e+00> : vector<8x512xf32>
    %74 = tpu.matmul %70, %73, %cst_14 {dimension_numbers = #tpu.dot_dimension_numbers<[1], [0], [0], [1], [0, 0, 1, 1], [], []>} : vector<8x128xf32>, vector<128x512xf32>, vector<8x512xf32> -> vector<8x512xf32>
    %75 = vector.broadcast %7 : vector<1x512xf32> to vector<8x512xf32>
    %76 = arith.addf %74, %75 : vector<8x512xf32>
    %77 = vector.extract_strided_slice %76 {offsets = [0, 0], sizes = [8, 384], strides = [1, 1]} : vector<8x512xf32> to vector<8x384xf32>
    %78 = arith.negf %77 : vector<8x384xf32>
    %79 = math.exp %78 : vector<8x384xf32>
    %cst_15 = arith.constant 1.000000e+00 : f32
    %80 = vector.broadcast %cst_15 : f32 to vector<8x384xf32>
    %81 = arith.addf %80, %79 : vector<8x384xf32>
    %82 = arith.divf %80, %81 : vector<8x384xf32>
    %83 = vector.extract_strided_slice %76 {offsets = [0, 384], sizes = [8, 128], strides = [1, 1]} : vector<8x512xf32> to vector<8x128xf32>
    %84 = math.tanh %83 : vector<8x128xf32>
    %85 = vector.extract_strided_slice %82 {offsets = [0, 0], sizes = [8, 128], strides = [1, 1]} : vector<8x384xf32> to vector<8x128xf32>
    %86 = vector.extract_strided_slice %82 {offsets = [0, 256], sizes = [8, 128], strides = [1, 1]} : vector<8x384xf32> to vector<8x128xf32>
    %87 = arith.mulf %85, %84 : vector<8x128xf32>
    %88 = math.tanh %87 : vector<8x128xf32>
    %89 = arith.mulf %86, %88 : vector<8x128xf32>
    %90 = vector.broadcast %8 : vector<1x128xf32> to vector<8x128xf32>
    %91 = arith.mulf %89, %90 : vector<8x128xf32>
    %cst_16 = arith.constant dense<0.000000e+00> : vector<8xf32>
    %92 = vector.multi_reduction <add>, %91, %cst_16 [1] : vector<8x128xf32> to vector<8xf32>
    %93 = vector.shape_cast %92 : vector<8xf32> to vector<8x1xf32>
    %94 = vector.broadcast %9 : vector<1x1xf32> to vector<8x1xf32>
    %95 = arith.addf %93, %94 : vector<8x1xf32>
    %c0_17 = arith.constant 0 : index
    %c0_18 = arith.constant 0 : index
    %96 = vector.load %arg9[%c0_17, %c0_18] : memref<8x8xf32, #tpu.memory_space<vmem>>, vector<8x1xf32>
    tpu.vector_store %arg9[%c0_17, %c0_18], %95 {strides = array<i32>} : memref<8x8xf32, #tpu.memory_space<vmem>>, vector<8x1xf32>,
    %c0_19 = arith.constant 0 : index
    %c0_20 = arith.constant 0 : index
    %97 = vector.load %arg2[%c0_19, %c0_20] : memref<128x512xf32, #tpu.memory_space<vmem>>, vector<128x512xf32>
    %cst_21 = arith.constant dense<0.000000e+00> : vector<8x512xf32>
    %98 = tpu.matmul %70, %97, %cst_21 {dimension_numbers = #tpu.dot_dimension_numbers<[1], [0], [0], [1], [0, 0, 1, 1], [], []>} : vector<8x128xf32>, vector<128x512xf32>, vector<8x512xf32> -> vector<8x512xf32>
    %99 = arith.addf %98, %21 : vector<8x512xf32>
    %100 = vector.extract_strided_slice %99 {offsets = [0, 0], sizes = [8, 384], strides = [1, 1]} : vector<8x512xf32> to vector<8x384xf32>
    %101 = arith.negf %100 : vector<8x384xf32>
    %102 = math.exp %101 : vector<8x384xf32>
    %cst_22 = arith.constant 1.000000e+00 : f32
    %103 = vector.broadcast %cst_22 : f32 to vector<8x384xf32>
    %104 = arith.addf %103, %102 : vector<8x384xf32>
    %105 = arith.divf %103, %104 : vector<8x384xf32>
    %106 = vector.extract_strided_slice %99 {offsets = [0, 384], sizes = [8, 128], strides = [1, 1]} : vector<8x512xf32> to vector<8x128xf32>
    %107 = math.tanh %106 : vector<8x128xf32>
    %108 = vector.extract_strided_slice %105 {offsets = [0, 0], sizes = [8, 128], strides = [1, 1]} : vector<8x384xf32> to vector<8x128xf32>
    %109 = vector.extract_strided_slice %105 {offsets = [0, 128], sizes = [8, 128], strides = [1, 1]} : vector<8x384xf32> to vector<8x128xf32>
    %110 = vector.extract_strided_slice %105 {offsets = [0, 256], sizes = [8, 128], strides = [1, 1]} : vector<8x384xf32> to vector<8x128xf32>
    %111 = arith.mulf %109, %68 : vector<8x128xf32>
    %112 = arith.mulf %108, %107 : vector<8x128xf32>
    %113 = arith.addf %111, %112 : vector<8x128xf32>
    %114 = math.tanh %113 : vector<8x128xf32>
    %115 = arith.mulf %110, %114 : vector<8x128xf32>
    %c1_i32_23 = arith.constant 1 : i32
    %116 = tpu.memref_slice %arg12[%c1_i32_23] : memref<2x!tpu.dma_semaphore, #tpu.memory_space<semaphore_mem>> -> memref<1x!tpu.dma_semaphore, #tpu.memory_space<semaphore_mem>>
    %117 = tpu.memref_squeeze %116 : memref<1x!tpu.dma_semaphore, #tpu.memory_space<semaphore_mem>> -> memref<!tpu.dma_semaphore, #tpu.memory_space<semaphore_mem>>
    tpu.wait_dma2 semaphore(%117 : memref<!tpu.dma_semaphore, #tpu.memory_space<semaphore_mem>>) src(%arg5 : memref<128x512xf32, #tpu.memory_space<any>>) dst(%arg11 : memref<128x512xf32, #tpu.memory_space<vmem>>)
    %c0_24 = arith.constant 0 : index
    %c0_25 = arith.constant 0 : index
    %118 = vector.load %arg10[%c0_24, %c0_25] : memref<128x512xf32, #tpu.memory_space<vmem>>, vector<128x512xf32>
    %cst_26 = arith.constant dense<0.000000e+00> : vector<8x512xf32>
    %119 = tpu.matmul %115, %118, %cst_26 {dimension_numbers = #tpu.dot_dimension_numbers<[1], [0], [0], [1], [0, 0, 1, 1], [], []>} : vector<8x128xf32>, vector<128x512xf32>, vector<8x512xf32> -> vector<8x512xf32>
    %c0_27 = arith.constant 0 : index
    %c0_28 = arith.constant 0 : index
    %120 = vector.load %arg11[%c0_27, %c0_28] : memref<128x512xf32, #tpu.memory_space<vmem>>, vector<128x512xf32>
    %cst_29 = arith.constant dense<0.000000e+00> : vector<8x512xf32>
    %121 = tpu.matmul %89, %120, %cst_29 {dimension_numbers = #tpu.dot_dimension_numbers<[1], [0], [0], [1], [0, 0, 1, 1], [], []>} : vector<8x128xf32>, vector<128x512xf32>, vector<8x512xf32> -> vector<8x512xf32>
    %122 = arith.addf %119, %121 : vector<8x512xf32>
    %123 = vector.broadcast %7 : vector<1x512xf32> to vector<8x512xf32>
    %124 = arith.addf %122, %123 : vector<8x512xf32>
    %125 = vector.extract_strided_slice %124 {offsets = [0, 0], sizes = [8, 384], strides = [1, 1]} : vector<8x512xf32> to vector<8x384xf32>
    %126 = arith.negf %125 : vector<8x384xf32>
    %127 = math.exp %126 : vector<8x384xf32>
    %cst_30 = arith.constant 1.000000e+00 : f32
    %128 = vector.broadcast %cst_30 : f32 to vector<8x384xf32>
    %129 = arith.addf %128, %127 : vector<8x384xf32>
    %130 = arith.divf %128, %129 : vector<8x384xf32>
    %131 = vector.extract_strided_slice %124 {offsets = [0, 384], sizes = [8, 128], strides = [1, 1]} : vector<8x512xf32> to vector<8x128xf32>
    %132 = math.tanh %131 : vector<8x128xf32>
    %133 = vector.extract_strided_slice %130 {offsets = [0, 0], sizes = [8, 128], strides = [1, 1]} : vector<8x384xf32> to vector<8x128xf32>
    %134 = vector.extract_strided_slice %130 {offsets = [0, 128], sizes = [8, 128], strides = [1, 1]} : vector<8x384xf32> to vector<8x128xf32>
    %135 = vector.extract_strided_slice %130 {offsets = [0, 256], sizes = [8, 128], strides = [1, 1]} : vector<8x384xf32> to vector<8x128xf32>
    %136 = arith.mulf %134, %87 : vector<8x128xf32>
    %137 = arith.mulf %133, %132 : vector<8x128xf32>
    %138 = arith.addf %136, %137 : vector<8x128xf32>
    %139 = math.tanh %138 : vector<8x128xf32>
    %140 = arith.mulf %135, %139 : vector<8x128xf32>
    %141 = vector.broadcast %8 : vector<1x128xf32> to vector<8x128xf32>
    %142 = arith.mulf %140, %141 : vector<8x128xf32>
    %cst_31 = arith.constant dense<0.000000e+00> : vector<8xf32>
    %143 = vector.multi_reduction <add>, %142, %cst_31 [1] : vector<8x128xf32> to vector<8xf32>
    %144 = vector.shape_cast %143 : vector<8xf32> to vector<8x1xf32>
    %145 = vector.broadcast %9 : vector<1x1xf32> to vector<8x1xf32>
    %146 = arith.addf %144, %145 : vector<8x1xf32>
    %c0_32 = arith.constant 0 : index
    %c1 = arith.constant 1 : index
    %147 = vector.load %arg9[%c0_32, %c1] : memref<8x8xf32, #tpu.memory_space<vmem>>, vector<8x1xf32>
    tpu.vector_store %arg9[%c0_32, %c1], %146 {strides = array<i32>} : memref<8x8xf32, #tpu.memory_space<vmem>>, vector<8x1xf32>,
    %c0_33 = arith.constant 0 : index
    %c0_34 = arith.constant 0 : index
    %148 = vector.load %arg2[%c0_33, %c0_34] : memref<128x512xf32, #tpu.memory_space<vmem>>, vector<128x512xf32>
    %cst_35 = arith.constant dense<0.000000e+00> : vector<8x512xf32>
    %149 = tpu.matmul %115, %148, %cst_35 {dimension_numbers = #tpu.dot_dimension_numbers<[1], [0], [0], [1], [0, 0, 1, 1], [], []>} : vector<8x128xf32>, vector<128x512xf32>, vector<8x512xf32> -> vector<8x512xf32>
    %150 = arith.addf %149, %27 : vector<8x512xf32>
    %151 = vector.extract_strided_slice %150 {offsets = [0, 0], sizes = [8, 384], strides = [1, 1]} : vector<8x512xf32> to vector<8x384xf32>
    %152 = arith.negf %151 : vector<8x384xf32>
    %153 = math.exp %152 : vector<8x384xf32>
    %cst_36 = arith.constant 1.000000e+00 : f32
    %154 = vector.broadcast %cst_36 : f32 to vector<8x384xf32>
    %155 = arith.addf %154, %153 : vector<8x384xf32>
    %156 = arith.divf %154, %155 : vector<8x384xf32>
    %157 = vector.extract_strided_slice %150 {offsets = [0, 384], sizes = [8, 128], strides = [1, 1]} : vector<8x512xf32> to vector<8x128xf32>
    %158 = math.tanh %157 : vector<8x128xf32>
    %159 = vector.extract_strided_slice %156 {offsets = [0, 0], sizes = [8, 128], strides = [1, 1]} : vector<8x384xf32> to vector<8x128xf32>
    %160 = vector.extract_strided_slice %156 {offsets = [0, 128], sizes = [8, 128], strides = [1, 1]} : vector<8x384xf32> to vector<8x128xf32>
    %161 = vector.extract_strided_slice %156 {offsets = [0, 256], sizes = [8, 128], strides = [1, 1]} : vector<8x384xf32> to vector<8x128xf32>
    %162 = arith.mulf %160, %113 : vector<8x128xf32>
    %163 = arith.mulf %159, %158 : vector<8x128xf32>
    %164 = arith.addf %162, %163 : vector<8x128xf32>
    %165 = math.tanh %164 : vector<8x128xf32>
    %166 = arith.mulf %161, %165 : vector<8x128xf32>
    %c0_37 = arith.constant 0 : index
    %c0_38 = arith.constant 0 : index
    %167 = vector.load %arg10[%c0_37, %c0_38] : memref<128x512xf32, #tpu.memory_space<vmem>>, vector<128x512xf32>
    %cst_39 = arith.constant dense<0.000000e+00> : vector<8x512xf32>
    %168 = tpu.matmul %166, %167, %cst_39 {dimension_numbers = #tpu.dot_dimension_numbers<[1], [0], [0], [1], [0, 0, 1, 1], [], []>} : vector<8x128xf32>, vector<128x512xf32>, vector<8x512xf32> -> vector<8x512xf32>
    %c0_40 = arith.constant 0 : index
    %c0_41 = arith.constant 0 : index
    %169 = vector.load %arg11[%c0_40, %c0_41] : memref<128x512xf32, #tpu.memory_space<vmem>>, vector<128x512xf32>
    %cst_42 = arith.constant dense<0.000000e+00> : vector<8x512xf32>
    %170 = tpu.matmul %140, %169, %cst_42 {dimension_numbers = #tpu.dot_dimension_numbers<[1], [0], [0], [1], [0, 0, 1, 1], [], []>} : vector<8x128xf32>, vector<128x512xf32>, vector<8x512xf32> -> vector<8x512xf32>
    %171 = arith.addf %168, %170 : vector<8x512xf32>
    %172 = vector.broadcast %7 : vector<1x512xf32> to vector<8x512xf32>
    %173 = arith.addf %171, %172 : vector<8x512xf32>
    %174 = vector.extract_strided_slice %173 {offsets = [0, 0], sizes = [8, 384], strides = [1, 1]} : vector<8x512xf32> to vector<8x384xf32>
    %175 = arith.negf %174 : vector<8x384xf32>
    %176 = math.exp %175 : vector<8x384xf32>
    %cst_43 = arith.constant 1.000000e+00 : f32
    %177 = vector.broadcast %cst_43 : f32 to vector<8x384xf32>
    %178 = arith.addf %177, %176 : vector<8x384xf32>
    %179 = arith.divf %177, %178 : vector<8x384xf32>
    %180 = vector.extract_strided_slice %173 {offsets = [0, 384], sizes = [8, 128], strides = [1, 1]} : vector<8x512xf32> to vector<8x128xf32>
    %181 = math.tanh %180 : vector<8x128xf32>
    %182 = vector.extract_strided_slice %179 {offsets = [0, 0], sizes = [8, 128], strides = [1, 1]} : vector<8x384xf32> to vector<8x128xf32>
    %183 = vector.extract_strided_slice %179 {offsets = [0, 128], sizes = [8, 128], strides = [1, 1]} : vector<8x384xf32> to vector<8x128xf32>
    %184 = vector.extract_strided_slice %179 {offsets = [0, 256], sizes = [8, 128], strides = [1, 1]} : vector<8x384xf32> to vector<8x128xf32>
    %185 = arith.mulf %183, %138 : vector<8x128xf32>
    %186 = arith.mulf %182, %181 : vector<8x128xf32>
    %187 = arith.addf %185, %186 : vector<8x128xf32>
    %188 = math.tanh %187 : vector<8x128xf32>
    %189 = arith.mulf %184, %188 : vector<8x128xf32>
    %190 = vector.broadcast %8 : vector<1x128xf32> to vector<8x128xf32>
    %191 = arith.mulf %189, %190 : vector<8x128xf32>
    %cst_44 = arith.constant dense<0.000000e+00> : vector<8xf32>
    %192 = vector.multi_reduction <add>, %191, %cst_44 [1] : vector<8x128xf32> to vector<8xf32>
    %193 = vector.shape_cast %192 : vector<8xf32> to vector<8x1xf32>
    %194 = vector.broadcast %9 : vector<1x1xf32> to vector<8x1xf32>
    %195 = arith.addf %193, %194 : vector<8x1xf32>
    %c0_45 = arith.constant 0 : index
    %c2 = arith.constant 2 : index
    %196 = vector.load %arg9[%c0_45, %c2] : memref<8x8xf32, #tpu.memory_space<vmem>>, vector<8x1xf32>
    tpu.vector_store %arg9[%c0_45, %c2], %195 {strides = array<i32>} : memref<8x8xf32, #tpu.memory_space<vmem>>, vector<8x1xf32>,
    %c0_46 = arith.constant 0 : index
    %c0_47 = arith.constant 0 : index
    %197 = vector.load %arg2[%c0_46, %c0_47] : memref<128x512xf32, #tpu.memory_space<vmem>>, vector<128x512xf32>
    %cst_48 = arith.constant dense<0.000000e+00> : vector<8x512xf32>
    %198 = tpu.matmul %166, %197, %cst_48 {dimension_numbers = #tpu.dot_dimension_numbers<[1], [0], [0], [1], [0, 0, 1, 1], [], []>} : vector<8x128xf32>, vector<128x512xf32>, vector<8x512xf32> -> vector<8x512xf32>
    %199 = arith.addf %198, %33 : vector<8x512xf32>
    %200 = vector.extract_strided_slice %199 {offsets = [0, 0], sizes = [8, 384], strides = [1, 1]} : vector<8x512xf32> to vector<8x384xf32>
    %201 = arith.negf %200 : vector<8x384xf32>
    %202 = math.exp %201 : vector<8x384xf32>
    %cst_49 = arith.constant 1.000000e+00 : f32
    %203 = vector.broadcast %cst_49 : f32 to vector<8x384xf32>
    %204 = arith.addf %203, %202 : vector<8x384xf32>
    %205 = arith.divf %203, %204 : vector<8x384xf32>
    %206 = vector.extract_strided_slice %199 {offsets = [0, 384], sizes = [8, 128], strides = [1, 1]} : vector<8x512xf32> to vector<8x128xf32>
    %207 = math.tanh %206 : vector<8x128xf32>
    %208 = vector.extract_strided_slice %205 {offsets = [0, 0], sizes = [8, 128], strides = [1, 1]} : vector<8x384xf32> to vector<8x128xf32>
    %209 = vector.extract_strided_slice %205 {offsets = [0, 128], sizes = [8, 128], strides = [1, 1]} : vector<8x384xf32> to vector<8x128xf32>
    %210 = vector.extract_strided_slice %205 {offsets = [0, 256], sizes = [8, 128], strides = [1, 1]} : vector<8x384xf32> to vector<8x128xf32>
    %211 = arith.mulf %209, %164 : vector<8x128xf32>
    %212 = arith.mulf %208, %207 : vector<8x128xf32>
    %213 = arith.addf %211, %212 : vector<8x128xf32>
    %214 = math.tanh %213 : vector<8x128xf32>
    %215 = arith.mulf %210, %214 : vector<8x128xf32>
    %c0_50 = arith.constant 0 : index
    %c0_51 = arith.constant 0 : index
    %216 = vector.load %arg10[%c0_50, %c0_51] : memref<128x512xf32, #tpu.memory_space<vmem>>, vector<128x512xf32>
    %cst_52 = arith.constant dense<0.000000e+00> : vector<8x512xf32>
    %217 = tpu.matmul %215, %216, %cst_52 {dimension_numbers = #tpu.dot_dimension_numbers<[1], [0], [0], [1], [0, 0, 1, 1], [], []>} : vector<8x128xf32>, vector<128x512xf32>, vector<8x512xf32> -> vector<8x512xf32>
    %c0_53 = arith.constant 0 : index
    %c0_54 = arith.constant 0 : index
    %218 = vector.load %arg11[%c0_53, %c0_54] : memref<128x512xf32, #tpu.memory_space<vmem>>, vector<128x512xf32>
    %cst_55 = arith.constant dense<0.000000e+00> : vector<8x512xf32>
    %219 = tpu.matmul %189, %218, %cst_55 {dimension_numbers = #tpu.dot_dimension_numbers<[1], [0], [0], [1], [0, 0, 1, 1], [], []>} : vector<8x128xf32>, vector<128x512xf32>, vector<8x512xf32> -> vector<8x512xf32>
    %220 = arith.addf %217, %219 : vector<8x512xf32>
    %221 = vector.broadcast %7 : vector<1x512xf32> to vector<8x512xf32>
    %222 = arith.addf %220, %221 : vector<8x512xf32>
    %223 = vector.extract_strided_slice %222 {offsets = [0, 0], sizes = [8, 384], strides = [1, 1]} : vector<8x512xf32> to vector<8x384xf32>
    %224 = arith.negf %223 : vector<8x384xf32>
    %225 = math.exp %224 : vector<8x384xf32>
    %cst_56 = arith.constant 1.000000e+00 : f32
    %226 = vector.broadcast %cst_56 : f32 to vector<8x384xf32>
    %227 = arith.addf %226, %225 : vector<8x384xf32>
    %228 = arith.divf %226, %227 : vector<8x384xf32>
    %229 = vector.extract_strided_slice %222 {offsets = [0, 384], sizes = [8, 128], strides = [1, 1]} : vector<8x512xf32> to vector<8x128xf32>
    %230 = math.tanh %229 : vector<8x128xf32>
    %231 = vector.extract_strided_slice %228 {offsets = [0, 0], sizes = [8, 128], strides = [1, 1]} : vector<8x384xf32> to vector<8x128xf32>
    %232 = vector.extract_strided_slice %228 {offsets = [0, 128], sizes = [8, 128], strides = [1, 1]} : vector<8x384xf32> to vector<8x128xf32>
    %233 = vector.extract_strided_slice %228 {offsets = [0, 256], sizes = [8, 128], strides = [1, 1]} : vector<8x384xf32> to vector<8x128xf32>
    %234 = arith.mulf %232, %187 : vector<8x128xf32>
    %235 = arith.mulf %231, %230 : vector<8x128xf32>
    %236 = arith.addf %234, %235 : vector<8x128xf32>
    %237 = math.tanh %236 : vector<8x128xf32>
    %238 = arith.mulf %233, %237 : vector<8x128xf32>
    %239 = vector.broadcast %8 : vector<1x128xf32> to vector<8x128xf32>
    %240 = arith.mulf %238, %239 : vector<8x128xf32>
    %cst_57 = arith.constant dense<0.000000e+00> : vector<8xf32>
    %241 = vector.multi_reduction <add>, %240, %cst_57 [1] : vector<8x128xf32> to vector<8xf32>
    %242 = vector.shape_cast %241 : vector<8xf32> to vector<8x1xf32>
    %243 = vector.broadcast %9 : vector<1x1xf32> to vector<8x1xf32>
    %244 = arith.addf %242, %243 : vector<8x1xf32>
    %c0_58 = arith.constant 0 : index
    %c3 = arith.constant 3 : index
    %245 = vector.load %arg9[%c0_58, %c3] : memref<8x8xf32, #tpu.memory_space<vmem>>, vector<8x1xf32>
    tpu.vector_store %arg9[%c0_58, %c3], %244 {strides = array<i32>} : memref<8x8xf32, #tpu.memory_space<vmem>>, vector<8x1xf32>,
    %c0_59 = arith.constant 0 : index
    %c0_60 = arith.constant 0 : index
    %246 = vector.load %arg2[%c0_59, %c0_60] : memref<128x512xf32, #tpu.memory_space<vmem>>, vector<128x512xf32>
    %cst_61 = arith.constant dense<0.000000e+00> : vector<8x512xf32>
    %247 = tpu.matmul %215, %246, %cst_61 {dimension_numbers = #tpu.dot_dimension_numbers<[1], [0], [0], [1], [0, 0, 1, 1], [], []>} : vector<8x128xf32>, vector<128x512xf32>, vector<8x512xf32> -> vector<8x512xf32>
    %248 = arith.addf %247, %39 : vector<8x512xf32>
    %249 = vector.extract_strided_slice %248 {offsets = [0, 0], sizes = [8, 384], strides = [1, 1]} : vector<8x512xf32> to vector<8x384xf32>
    %250 = arith.negf %249 : vector<8x384xf32>
    %251 = math.exp %250 : vector<8x384xf32>
    %cst_62 = arith.constant 1.000000e+00 : f32
    %252 = vector.broadcast %cst_62 : f32 to vector<8x384xf32>
    %253 = arith.addf %252, %251 : vector<8x384xf32>
    %254 = arith.divf %252, %253 : vector<8x384xf32>
    %255 = vector.extract_strided_slice %248 {offsets = [0, 384], sizes = [8, 128], strides = [1, 1]} : vector<8x512xf32> to vector<8x128xf32>
    %256 = math.tanh %255 : vector<8x128xf32>
    %257 = vector.extract_strided_slice %254 {offsets = [0, 0], sizes = [8, 128], strides = [1, 1]} : vector<8x384xf32> to vector<8x128xf32>
    %258 = vector.extract_strided_slice %254 {offsets = [0, 128], sizes = [8, 128], strides = [1, 1]} : vector<8x384xf32> to vector<8x128xf32>
    %259 = vector.extract_strided_slice %254 {offsets = [0, 256], sizes = [8, 128], strides = [1, 1]} : vector<8x384xf32> to vector<8x128xf32>
    %260 = arith.mulf %258, %213 : vector<8x128xf32>
    %261 = arith.mulf %257, %256 : vector<8x128xf32>
    %262 = arith.addf %260, %261 : vector<8x128xf32>
    %263 = math.tanh %262 : vector<8x128xf32>
    %264 = arith.mulf %259, %263 : vector<8x128xf32>
    %c0_63 = arith.constant 0 : index
    %c0_64 = arith.constant 0 : index
    %265 = vector.load %arg10[%c0_63, %c0_64] : memref<128x512xf32, #tpu.memory_space<vmem>>, vector<128x512xf32>
    %cst_65 = arith.constant dense<0.000000e+00> : vector<8x512xf32>
    %266 = tpu.matmul %264, %265, %cst_65 {dimension_numbers = #tpu.dot_dimension_numbers<[1], [0], [0], [1], [0, 0, 1, 1], [], []>} : vector<8x128xf32>, vector<128x512xf32>, vector<8x512xf32> -> vector<8x512xf32>
    %c0_66 = arith.constant 0 : index
    %c0_67 = arith.constant 0 : index
    %267 = vector.load %arg11[%c0_66, %c0_67] : memref<128x512xf32, #tpu.memory_space<vmem>>, vector<128x512xf32>
    %cst_68 = arith.constant dense<0.000000e+00> : vector<8x512xf32>
    %268 = tpu.matmul %238, %267, %cst_68 {dimension_numbers = #tpu.dot_dimension_numbers<[1], [0], [0], [1], [0, 0, 1, 1], [], []>} : vector<8x128xf32>, vector<128x512xf32>, vector<8x512xf32> -> vector<8x512xf32>
    %269 = arith.addf %266, %268 : vector<8x512xf32>
    %270 = vector.broadcast %7 : vector<1x512xf32> to vector<8x512xf32>
    %271 = arith.addf %269, %270 : vector<8x512xf32>
    %272 = vector.extract_strided_slice %271 {offsets = [0, 0], sizes = [8, 384], strides = [1, 1]} : vector<8x512xf32> to vector<8x384xf32>
    %273 = arith.negf %272 : vector<8x384xf32>
    %274 = math.exp %273 : vector<8x384xf32>
    %cst_69 = arith.constant 1.000000e+00 : f32
    %275 = vector.broadcast %cst_69 : f32 to vector<8x384xf32>
    %276 = arith.addf %275, %274 : vector<8x384xf32>
    %277 = arith.divf %275, %276 : vector<8x384xf32>
    %278 = vector.extract_strided_slice %271 {offsets = [0, 384], sizes = [8, 128], strides = [1, 1]} : vector<8x512xf32> to vector<8x128xf32>
    %279 = math.tanh %278 : vector<8x128xf32>
    %280 = vector.extract_strided_slice %277 {offsets = [0, 0], sizes = [8, 128], strides = [1, 1]} : vector<8x384xf32> to vector<8x128xf32>
    %281 = vector.extract_strided_slice %277 {offsets = [0, 128], sizes = [8, 128], strides = [1, 1]} : vector<8x384xf32> to vector<8x128xf32>
    %282 = vector.extract_strided_slice %277 {offsets = [0, 256], sizes = [8, 128], strides = [1, 1]} : vector<8x384xf32> to vector<8x128xf32>
    %283 = arith.mulf %281, %236 : vector<8x128xf32>
    %284 = arith.mulf %280, %279 : vector<8x128xf32>
    %285 = arith.addf %283, %284 : vector<8x128xf32>
    %286 = math.tanh %285 : vector<8x128xf32>
    %287 = arith.mulf %282, %286 : vector<8x128xf32>
    %288 = vector.broadcast %8 : vector<1x128xf32> to vector<8x128xf32>
    %289 = arith.mulf %287, %288 : vector<8x128xf32>
    %cst_70 = arith.constant dense<0.000000e+00> : vector<8xf32>
    %290 = vector.multi_reduction <add>, %289, %cst_70 [1] : vector<8x128xf32> to vector<8xf32>
    %291 = vector.shape_cast %290 : vector<8xf32> to vector<8x1xf32>
    %292 = vector.broadcast %9 : vector<1x1xf32> to vector<8x1xf32>
    %293 = arith.addf %291, %292 : vector<8x1xf32>
    %c0_71 = arith.constant 0 : index
    %c4 = arith.constant 4 : index
    %294 = vector.load %arg9[%c0_71, %c4] : memref<8x8xf32, #tpu.memory_space<vmem>>, vector<8x1xf32>
    tpu.vector_store %arg9[%c0_71, %c4], %293 {strides = array<i32>} : memref<8x8xf32, #tpu.memory_space<vmem>>, vector<8x1xf32>,
    %c0_72 = arith.constant 0 : index
    %c0_73 = arith.constant 0 : index
    %295 = vector.load %arg2[%c0_72, %c0_73] : memref<128x512xf32, #tpu.memory_space<vmem>>, vector<128x512xf32>
    %cst_74 = arith.constant dense<0.000000e+00> : vector<8x512xf32>
    %296 = tpu.matmul %264, %295, %cst_74 {dimension_numbers = #tpu.dot_dimension_numbers<[1], [0], [0], [1], [0, 0, 1, 1], [], []>} : vector<8x128xf32>, vector<128x512xf32>, vector<8x512xf32> -> vector<8x512xf32>
    %297 = arith.addf %296, %45 : vector<8x512xf32>
    %298 = vector.extract_strided_slice %297 {offsets = [0, 0], sizes = [8, 384], strides = [1, 1]} : vector<8x512xf32> to vector<8x384xf32>
    %299 = arith.negf %298 : vector<8x384xf32>
    %300 = math.exp %299 : vector<8x384xf32>
    %cst_75 = arith.constant 1.000000e+00 : f32
    %301 = vector.broadcast %cst_75 : f32 to vector<8x384xf32>
    %302 = arith.addf %301, %300 : vector<8x384xf32>
    %303 = arith.divf %301, %302 : vector<8x384xf32>
    %304 = vector.extract_strided_slice %297 {offsets = [0, 384], sizes = [8, 128], strides = [1, 1]} : vector<8x512xf32> to vector<8x128xf32>
    %305 = math.tanh %304 : vector<8x128xf32>
    %306 = vector.extract_strided_slice %303 {offsets = [0, 0], sizes = [8, 128], strides = [1, 1]} : vector<8x384xf32> to vector<8x128xf32>
    %307 = vector.extract_strided_slice %303 {offsets = [0, 128], sizes = [8, 128], strides = [1, 1]} : vector<8x384xf32> to vector<8x128xf32>
    %308 = vector.extract_strided_slice %303 {offsets = [0, 256], sizes = [8, 128], strides = [1, 1]} : vector<8x384xf32> to vector<8x128xf32>
    %309 = arith.mulf %307, %262 : vector<8x128xf32>
    %310 = arith.mulf %306, %305 : vector<8x128xf32>
    %311 = arith.addf %309, %310 : vector<8x128xf32>
    %312 = math.tanh %311 : vector<8x128xf32>
    %313 = arith.mulf %308, %312 : vector<8x128xf32>
    %c0_76 = arith.constant 0 : index
    %c0_77 = arith.constant 0 : index
    %314 = vector.load %arg10[%c0_76, %c0_77] : memref<128x512xf32, #tpu.memory_space<vmem>>, vector<128x512xf32>
    %cst_78 = arith.constant dense<0.000000e+00> : vector<8x512xf32>
    %315 = tpu.matmul %313, %314, %cst_78 {dimension_numbers = #tpu.dot_dimension_numbers<[1], [0], [0], [1], [0, 0, 1, 1], [], []>} : vector<8x128xf32>, vector<128x512xf32>, vector<8x512xf32> -> vector<8x512xf32>
    %c0_79 = arith.constant 0 : index
    %c0_80 = arith.constant 0 : index
    %316 = vector.load %arg11[%c0_79, %c0_80] : memref<128x512xf32, #tpu.memory_space<vmem>>, vector<128x512xf32>
    %cst_81 = arith.constant dense<0.000000e+00> : vector<8x512xf32>
    %317 = tpu.matmul %287, %316, %cst_81 {dimension_numbers = #tpu.dot_dimension_numbers<[1], [0], [0], [1], [0, 0, 1, 1], [], []>} : vector<8x128xf32>, vector<128x512xf32>, vector<8x512xf32> -> vector<8x512xf32>
    %318 = arith.addf %315, %317 : vector<8x512xf32>
    %319 = vector.broadcast %7 : vector<1x512xf32> to vector<8x512xf32>
    %320 = arith.addf %318, %319 : vector<8x512xf32>
    %321 = vector.extract_strided_slice %320 {offsets = [0, 0], sizes = [8, 384], strides = [1, 1]} : vector<8x512xf32> to vector<8x384xf32>
    %322 = arith.negf %321 : vector<8x384xf32>
    %323 = math.exp %322 : vector<8x384xf32>
    %cst_82 = arith.constant 1.000000e+00 : f32
    %324 = vector.broadcast %cst_82 : f32 to vector<8x384xf32>
    %325 = arith.addf %324, %323 : vector<8x384xf32>
    %326 = arith.divf %324, %325 : vector<8x384xf32>
    %327 = vector.extract_strided_slice %320 {offsets = [0, 384], sizes = [8, 128], strides = [1, 1]} : vector<8x512xf32> to vector<8x128xf32>
    %328 = math.tanh %327 : vector<8x128xf32>
    %329 = vector.extract_strided_slice %326 {offsets = [0, 0], sizes = [8, 128], strides = [1, 1]} : vector<8x384xf32> to vector<8x128xf32>
    %330 = vector.extract_strided_slice %326 {offsets = [0, 128], sizes = [8, 128], strides = [1, 1]} : vector<8x384xf32> to vector<8x128xf32>
    %331 = vector.extract_strided_slice %326 {offsets = [0, 256], sizes = [8, 128], strides = [1, 1]} : vector<8x384xf32> to vector<8x128xf32>
    %332 = arith.mulf %330, %285 : vector<8x128xf32>
    %333 = arith.mulf %329, %328 : vector<8x128xf32>
    %334 = arith.addf %332, %333 : vector<8x128xf32>
    %335 = math.tanh %334 : vector<8x128xf32>
    %336 = arith.mulf %331, %335 : vector<8x128xf32>
    %337 = vector.broadcast %8 : vector<1x128xf32> to vector<8x128xf32>
    %338 = arith.mulf %336, %337 : vector<8x128xf32>
    %cst_83 = arith.constant dense<0.000000e+00> : vector<8xf32>
    %339 = vector.multi_reduction <add>, %338, %cst_83 [1] : vector<8x128xf32> to vector<8xf32>
    %340 = vector.shape_cast %339 : vector<8xf32> to vector<8x1xf32>
    %341 = vector.broadcast %9 : vector<1x1xf32> to vector<8x1xf32>
    %342 = arith.addf %340, %341 : vector<8x1xf32>
    %c0_84 = arith.constant 0 : index
    %c5 = arith.constant 5 : index
    %343 = vector.load %arg9[%c0_84, %c5] : memref<8x8xf32, #tpu.memory_space<vmem>>, vector<8x1xf32>
    tpu.vector_store %arg9[%c0_84, %c5], %342 {strides = array<i32>} : memref<8x8xf32, #tpu.memory_space<vmem>>, vector<8x1xf32>,
    %c0_85 = arith.constant 0 : index
    %c0_86 = arith.constant 0 : index
    %344 = vector.load %arg2[%c0_85, %c0_86] : memref<128x512xf32, #tpu.memory_space<vmem>>, vector<128x512xf32>
    %cst_87 = arith.constant dense<0.000000e+00> : vector<8x512xf32>
    %345 = tpu.matmul %313, %344, %cst_87 {dimension_numbers = #tpu.dot_dimension_numbers<[1], [0], [0], [1], [0, 0, 1, 1], [], []>} : vector<8x128xf32>, vector<128x512xf32>, vector<8x512xf32> -> vector<8x512xf32>
    %346 = arith.addf %345, %51 : vector<8x512xf32>
    %347 = vector.extract_strided_slice %346 {offsets = [0, 0], sizes = [8, 384], strides = [1, 1]} : vector<8x512xf32> to vector<8x384xf32>
    %348 = arith.negf %347 : vector<8x384xf32>
    %349 = math.exp %348 : vector<8x384xf32>
    %cst_88 = arith.constant 1.000000e+00 : f32
    %350 = vector.broadcast %cst_88 : f32 to vector<8x384xf32>
    %351 = arith.addf %350, %349 : vector<8x384xf32>
    %352 = arith.divf %350, %351 : vector<8x384xf32>
    %353 = vector.extract_strided_slice %346 {offsets = [0, 384], sizes = [8, 128], strides = [1, 1]} : vector<8x512xf32> to vector<8x128xf32>
    %354 = math.tanh %353 : vector<8x128xf32>
    %355 = vector.extract_strided_slice %352 {offsets = [0, 0], sizes = [8, 128], strides = [1, 1]} : vector<8x384xf32> to vector<8x128xf32>
    %356 = vector.extract_strided_slice %352 {offsets = [0, 128], sizes = [8, 128], strides = [1, 1]} : vector<8x384xf32> to vector<8x128xf32>
    %357 = vector.extract_strided_slice %352 {offsets = [0, 256], sizes = [8, 128], strides = [1, 1]} : vector<8x384xf32> to vector<8x128xf32>
    %358 = arith.mulf %356, %311 : vector<8x128xf32>
    %359 = arith.mulf %355, %354 : vector<8x128xf32>
    %360 = arith.addf %358, %359 : vector<8x128xf32>
    %361 = math.tanh %360 : vector<8x128xf32>
    %362 = arith.mulf %357, %361 : vector<8x128xf32>
    %c0_89 = arith.constant 0 : index
    %c0_90 = arith.constant 0 : index
    %363 = vector.load %arg10[%c0_89, %c0_90] : memref<128x512xf32, #tpu.memory_space<vmem>>, vector<128x512xf32>
    %cst_91 = arith.constant dense<0.000000e+00> : vector<8x512xf32>
    %364 = tpu.matmul %362, %363, %cst_91 {dimension_numbers = #tpu.dot_dimension_numbers<[1], [0], [0], [1], [0, 0, 1, 1], [], []>} : vector<8x128xf32>, vector<128x512xf32>, vector<8x512xf32> -> vector<8x512xf32>
    %c0_92 = arith.constant 0 : index
    %c0_93 = arith.constant 0 : index
    %365 = vector.load %arg11[%c0_92, %c0_93] : memref<128x512xf32, #tpu.memory_space<vmem>>, vector<128x512xf32>
    %cst_94 = arith.constant dense<0.000000e+00> : vector<8x512xf32>
    %366 = tpu.matmul %336, %365, %cst_94 {dimension_numbers = #tpu.dot_dimension_numbers<[1], [0], [0], [1], [0, 0, 1, 1], [], []>} : vector<8x128xf32>, vector<128x512xf32>, vector<8x512xf32> -> vector<8x512xf32>
    %367 = arith.addf %364, %366 : vector<8x512xf32>
    %368 = vector.broadcast %7 : vector<1x512xf32> to vector<8x512xf32>
    %369 = arith.addf %367, %368 : vector<8x512xf32>
    %370 = vector.extract_strided_slice %369 {offsets = [0, 0], sizes = [8, 384], strides = [1, 1]} : vector<8x512xf32> to vector<8x384xf32>
    %371 = arith.negf %370 : vector<8x384xf32>
    %372 = math.exp %371 : vector<8x384xf32>
    %cst_95 = arith.constant 1.000000e+00 : f32
    %373 = vector.broadcast %cst_95 : f32 to vector<8x384xf32>
    %374 = arith.addf %373, %372 : vector<8x384xf32>
    %375 = arith.divf %373, %374 : vector<8x384xf32>
    %376 = vector.extract_strided_slice %369 {offsets = [0, 384], sizes = [8, 128], strides = [1, 1]} : vector<8x512xf32> to vector<8x128xf32>
    %377 = math.tanh %376 : vector<8x128xf32>
    %378 = vector.extract_strided_slice %375 {offsets = [0, 0], sizes = [8, 128], strides = [1, 1]} : vector<8x384xf32> to vector<8x128xf32>
    %379 = vector.extract_strided_slice %375 {offsets = [0, 128], sizes = [8, 128], strides = [1, 1]} : vector<8x384xf32> to vector<8x128xf32>
    %380 = vector.extract_strided_slice %375 {offsets = [0, 256], sizes = [8, 128], strides = [1, 1]} : vector<8x384xf32> to vector<8x128xf32>
    %381 = arith.mulf %379, %334 : vector<8x128xf32>
    %382 = arith.mulf %378, %377 : vector<8x128xf32>
    %383 = arith.addf %381, %382 : vector<8x128xf32>
    %384 = math.tanh %383 : vector<8x128xf32>
    %385 = arith.mulf %380, %384 : vector<8x128xf32>
    %386 = vector.broadcast %8 : vector<1x128xf32> to vector<8x128xf32>
    %387 = arith.mulf %385, %386 : vector<8x128xf32>
    %cst_96 = arith.constant dense<0.000000e+00> : vector<8xf32>
    %388 = vector.multi_reduction <add>, %387, %cst_96 [1] : vector<8x128xf32> to vector<8xf32>
    %389 = vector.shape_cast %388 : vector<8xf32> to vector<8x1xf32>
    %390 = vector.broadcast %9 : vector<1x1xf32> to vector<8x1xf32>
    %391 = arith.addf %389, %390 : vector<8x1xf32>
    %c0_97 = arith.constant 0 : index
    %c6 = arith.constant 6 : index
    %392 = vector.load %arg9[%c0_97, %c6] : memref<8x8xf32, #tpu.memory_space<vmem>>, vector<8x1xf32>
    tpu.vector_store %arg9[%c0_97, %c6], %391 {strides = array<i32>} : memref<8x8xf32, #tpu.memory_space<vmem>>, vector<8x1xf32>,
    %c0_98 = arith.constant 0 : index
    %c0_99 = arith.constant 0 : index
    %393 = vector.load %arg2[%c0_98, %c0_99] : memref<128x512xf32, #tpu.memory_space<vmem>>, vector<128x512xf32>
    %cst_100 = arith.constant dense<0.000000e+00> : vector<8x512xf32>
    %394 = tpu.matmul %362, %393, %cst_100 {dimension_numbers = #tpu.dot_dimension_numbers<[1], [0], [0], [1], [0, 0, 1, 1], [], []>} : vector<8x128xf32>, vector<128x512xf32>, vector<8x512xf32> -> vector<8x512xf32>
    %395 = arith.addf %394, %57 : vector<8x512xf32>
    %396 = vector.extract_strided_slice %395 {offsets = [0, 0], sizes = [8, 384], strides = [1, 1]} : vector<8x512xf32> to vector<8x384xf32>
    %397 = arith.negf %396 : vector<8x384xf32>
    %398 = math.exp %397 : vector<8x384xf32>
    %cst_101 = arith.constant 1.000000e+00 : f32
    %399 = vector.broadcast %cst_101 : f32 to vector<8x384xf32>
    %400 = arith.addf %399, %398 : vector<8x384xf32>
    %401 = arith.divf %399, %400 : vector<8x384xf32>
    %402 = vector.extract_strided_slice %395 {offsets = [0, 384], sizes = [8, 128], strides = [1, 1]} : vector<8x512xf32> to vector<8x128xf32>
    %403 = math.tanh %402 : vector<8x128xf32>
    %404 = vector.extract_strided_slice %401 {offsets = [0, 0], sizes = [8, 128], strides = [1, 1]} : vector<8x384xf32> to vector<8x128xf32>
    %405 = vector.extract_strided_slice %401 {offsets = [0, 128], sizes = [8, 128], strides = [1, 1]} : vector<8x384xf32> to vector<8x128xf32>
    %406 = vector.extract_strided_slice %401 {offsets = [0, 256], sizes = [8, 128], strides = [1, 1]} : vector<8x384xf32> to vector<8x128xf32>
    %407 = arith.mulf %405, %360 : vector<8x128xf32>
    %408 = arith.mulf %404, %403 : vector<8x128xf32>
    %409 = arith.addf %407, %408 : vector<8x128xf32>
    %410 = math.tanh %409 : vector<8x128xf32>
    %411 = arith.mulf %406, %410 : vector<8x128xf32>
    %c0_102 = arith.constant 0 : index
    %c0_103 = arith.constant 0 : index
    %412 = vector.load %arg10[%c0_102, %c0_103] : memref<128x512xf32, #tpu.memory_space<vmem>>, vector<128x512xf32>
    %cst_104 = arith.constant dense<0.000000e+00> : vector<8x512xf32>
    %413 = tpu.matmul %411, %412, %cst_104 {dimension_numbers = #tpu.dot_dimension_numbers<[1], [0], [0], [1], [0, 0, 1, 1], [], []>} : vector<8x128xf32>, vector<128x512xf32>, vector<8x512xf32> -> vector<8x512xf32>
    %c0_105 = arith.constant 0 : index
    %c0_106 = arith.constant 0 : index
    %414 = vector.load %arg11[%c0_105, %c0_106] : memref<128x512xf32, #tpu.memory_space<vmem>>, vector<128x512xf32>
    %cst_107 = arith.constant dense<0.000000e+00> : vector<8x512xf32>
    %415 = tpu.matmul %385, %414, %cst_107 {dimension_numbers = #tpu.dot_dimension_numbers<[1], [0], [0], [1], [0, 0, 1, 1], [], []>} : vector<8x128xf32>, vector<128x512xf32>, vector<8x512xf32> -> vector<8x512xf32>
    %416 = arith.addf %413, %415 : vector<8x512xf32>
    %417 = vector.broadcast %7 : vector<1x512xf32> to vector<8x512xf32>
    %418 = arith.addf %416, %417 : vector<8x512xf32>
    %419 = vector.extract_strided_slice %418 {offsets = [0, 0], sizes = [8, 384], strides = [1, 1]} : vector<8x512xf32> to vector<8x384xf32>
    %420 = arith.negf %419 : vector<8x384xf32>
    %421 = math.exp %420 : vector<8x384xf32>
    %cst_108 = arith.constant 1.000000e+00 : f32
    %422 = vector.broadcast %cst_108 : f32 to vector<8x384xf32>
    %423 = arith.addf %422, %421 : vector<8x384xf32>
    %424 = arith.divf %422, %423 : vector<8x384xf32>
    %425 = vector.extract_strided_slice %418 {offsets = [0, 384], sizes = [8, 128], strides = [1, 1]} : vector<8x512xf32> to vector<8x128xf32>
    %426 = math.tanh %425 : vector<8x128xf32>
    %427 = vector.extract_strided_slice %424 {offsets = [0, 0], sizes = [8, 128], strides = [1, 1]} : vector<8x384xf32> to vector<8x128xf32>
    %428 = vector.extract_strided_slice %424 {offsets = [0, 128], sizes = [8, 128], strides = [1, 1]} : vector<8x384xf32> to vector<8x128xf32>
    %429 = vector.extract_strided_slice %424 {offsets = [0, 256], sizes = [8, 128], strides = [1, 1]} : vector<8x384xf32> to vector<8x128xf32>
    %430 = arith.mulf %428, %383 : vector<8x128xf32>
    %431 = arith.mulf %427, %426 : vector<8x128xf32>
    %432 = arith.addf %430, %431 : vector<8x128xf32>
    %433 = math.tanh %432 : vector<8x128xf32>
    %434 = arith.mulf %429, %433 : vector<8x128xf32>
    %435 = vector.broadcast %8 : vector<1x128xf32> to vector<8x128xf32>
    %436 = arith.mulf %434, %435 : vector<8x128xf32>
    %cst_109 = arith.constant dense<0.000000e+00> : vector<8xf32>
    %437 = vector.multi_reduction <add>, %436, %cst_109 [1] : vector<8x128xf32> to vector<8xf32>
    %438 = vector.shape_cast %437 : vector<8xf32> to vector<8x1xf32>
    %439 = vector.broadcast %9 : vector<1x1xf32> to vector<8x1xf32>
    %440 = arith.addf %438, %439 : vector<8x1xf32>
    %c0_110 = arith.constant 0 : index
    %c7 = arith.constant 7 : index
    %441 = vector.load %arg9[%c0_110, %c7] : memref<8x8xf32, #tpu.memory_space<vmem>>, vector<8x1xf32>
    tpu.vector_store %arg9[%c0_110, %c7], %440 {strides = array<i32>} : memref<8x8xf32, #tpu.memory_space<vmem>>, vector<8x1xf32>,
    return
  }
}

</mosaic_0001>

<llo_original>
// kernel: tpu_custom_call.1
$region0: #{tpu_custom_call.1}
  #allocation0 [shape = 'u32[]', space=smem, size = 0x4, offset = 0x4, fixed_abs, tag = 'smem constant byte address 0x4 - core index']
  #allocation1 [shape = 'u32[144,128]{1,0:T(1,128)}', space=vmem, size = 0x12000, scoped, tag = 'internal scratch']
  #allocation2 [shape = 'f32[128,512]{1,0:T(8,128)}', space=vmem, size = 0x40000, scoped, tag = 'scratch operand']
  #allocation3 [shape = 'f32[128,512]{1,0:T(8,128)}', space=vmem, size = 0x40000, scoped, tag = 'scratch operand']
  #allocation4 [shape = 's32[2]{0}', space=sflag, size = 0x8, scoped, tag = 'scratch operand']
  #allocation5 [shape = 'f32[1,1]{1,0:T(1,128)S(1)}', space=vmem, size = 0x200, scoped, tag = 'scoped memory for tpu_custom_call.1']
  #allocation12 [shape = 's32[]', space=sflag, size = 0x4, offset = 0, fixed_abs, tag = 'sflag constant byte address 0x0 - dummy sync flag']
  #allocation13 [shape = 's32[]', space=sflag, size = 0x4, offset = 0, fixed_abs, tag = 'sflag constant byte address 0x0 - dummy sync flag']
  #allocation14 [shape = 'u32[]', space=smem, size = 0x4, offset = 0x44, fixed_abs, tag = 'smem constant byte address 0x44 - assertion arg 0']
  #allocation15 [shape = 'u32[]', space=smem, size = 0x4, offset = 0x48, fixed_abs, tag = 'smem constant byte address 0x48 - assertion arg 1']
  #allocation16 [shape = 's32[]', space=sflag, size = 0x4, offset = 0, fixed_abs, tag = 'sflag constant byte address 0x0 - dummy sync flag']
  #allocation17 [shape = 's32[]', space=sflag, size = 0x4, offset = 0, fixed_abs, tag = 'sflag constant byte address 0x0 - dummy sync flag']
  %s0 = inlined_call_operand.hbm [shape: f32[8,8], index: 0, kind: input, shape index: {}]
  %s1 = inlined_call_operand.vmem [shape: f32[1,512], index: 1, kind: input, shape index: {}]
  %s2 = inlined_call_operand.hbm [shape: f32[128,512], index: 2, kind: input, shape index: {}]
  %s3 = inlined_call_operand.vmem [shape: f32[1,512], index: 3, kind: input, shape index: {}]
  %s4 = inlined_call_operand.hbm [shape: f32[128,512], index: 4, kind: input, shape index: {}]
  %s5 = inlined_call_operand.hbm [shape: f32[128,512], index: 5, kind: input, shape index: {}]
  %s6 = inlined_call_operand.vmem [shape: f32[1,512], index: 6, kind: input, shape index: {}]
  %s7 = inlined_call_operand.vmem [shape: f32[1,128], index: 7, kind: input, shape index: {}]
  %s8 = inlined_call_operand.<no memory space> [shape: f32[1,1], index: 8, kind: input, shape index: {}]
  %s9 = inlined_call_operand.hbm [shape: f32[8,8], index: 9, kind: output, shape index: {}]
  %s10 = sld [smem:[#allocation0]]
  $region54: #{tpu_custom_call.1} parent=0
    _
  %s12 = ssub.s32 1, %s10
  %s13 = scalar_select 0, %s12, %s10
  %v14 = vstv %s8
  %15 = vst [vmem:[#allocation5] sm:$0x1] %v14
  $region1: #{tpu_custom_call.1} parent=0
    #allocation6 [shape = 'u8[4096]{0}', space=vmem, size = 0x1000, scoped, tag = 'input window, operand 0, single buffered']
    #allocation7 [shape = 's32[1]{0}', space=sflag, size = 0x4, scoped, tag = 'scoped memory for tpu_custom_call.1']
    #allocation8 [shape = 's32[1]{0}', space=sflag, size = 0x4, scoped, tag = 'scoped memory for tpu_custom_call.1']
    #allocation9 [shape = 'u8[262144]{0}', space=vmem, size = 0x40000, scoped, tag = 'input window, operand 2, single buffered']
    #allocation10 [shape = 's32[1]{0}', space=sflag, size = 0x4, scoped, tag = 'scoped memory for tpu_custom_call.1']
    #allocation11 [shape = 'u8[4096]{0}', space=vmem, size = 0x1000, scoped, tag = 'output window, operand 0, single buffered']
    %16 = vsyncpa [#allocation7], 0
    %17 = vsyncpa [#allocation10], 0
    %18 = vsyncpa [#allocation8], 0
    // Predicated region
    $region2: #{tpu_custom_call.1} parent=1 // pred_check
      _
    $region3: #{tpu_custom_call.1} parent=1 // pred_check_branch
      %20 = sbr.rel (0) target = $region5
    $region4: #{tpu_custom_call.1} parent=1 // pred_region
      %s22 = ssub.s32 128, 128
      %23 = vsyncadd [#allocation7], %s22
      %s25 = sshll.u32 [#allocation6], 4
      %s26 = int_to_ptr.vmem [resolvable:$true] %s25
      %28 = dma.hbm_to_vmem [thread:$0]  %s0, 128, %s26, [#allocation7]
    $region5: #{tpu_custom_call.1} parent=1 // pred_fallthru
      _
    // Predicated region
    $region6: #{tpu_custom_call.1} parent=1 // pred_check
      _
    $region7: #{tpu_custom_call.1} parent=1 // pred_check_branch
      %30 = sbr.rel (0) target = $region9
    $region8: #{tpu_custom_call.1} parent=1 // pred_region
      _
    $region9: #{tpu_custom_call.1} parent=1 // pred_fallthru
      _
    // Predicated region
    $region10: #{tpu_custom_call.1} parent=1 // pred_check
      _
    $region11: #{tpu_custom_call.1} parent=1 // pred_check_branch
      %32 = sbr.rel (0) target = $region13
    $region12: #{tpu_custom_call.1} parent=1 // pred_region
      %s34 = ssub.s32 8192, 8192
      %35 = vsyncadd [#allocation10], %s34
      %s36 = sshll.u32 [#allocation9], 4
      %s37 = int_to_ptr.vmem [resolvable:$true] %s36
      %42 = dma.hbm_to_vmem [thread:$0]  %s2, 8192, %s37, [#allocation10], 512, 512, 32
    $region13: #{tpu_custom_call.1} parent=1 // pred_fallthru
      _
    // Predicated region
    $region14: #{tpu_custom_call.1} parent=1 // pred_check
      _
    $region15: #{tpu_custom_call.1} parent=1 // pred_check_branch
      %44 = sbr.rel (0) target = $region17
    $region16: #{tpu_custom_call.1} parent=1 // pred_region
      _
    $region17: #{tpu_custom_call.1} parent=1 // pred_fallthru
      _
    // Predicated region
    $region18: #{tpu_custom_call.1} parent=1 // pred_check
      _
    $region19: #{tpu_custom_call.1} parent=1 // pred_check_branch
      %46 = sbr.rel (0) target = $region21
    $region20: #{tpu_custom_call.1} parent=1 // pred_region
      _
    $region21: #{tpu_custom_call.1} parent=1 // pred_fallthru
      _
    // Predicated region
    $region22: #{tpu_custom_call.1} parent=1 // pred_check
      _
    $region23: #{tpu_custom_call.1} parent=1 // pred_check_branch
      %48 = sbr.rel (0) target = $region25
    $region24: #{tpu_custom_call.1} parent=1 // pred_region
      _
    $region25: #{tpu_custom_call.1} parent=1 // pred_fallthru
      _
    // Predicated region
    $region26: #{tpu_custom_call.1} parent=1 // pred_check
      _
    $region27: #{tpu_custom_call.1} parent=1 // pred_check_branch
      %50 = sbr.rel (0) target = $region29
    $region28: #{tpu_custom_call.1} parent=1 // pred_region
      _
    $region29: #{tpu_custom_call.1} parent=1 // pred_fallthru
      _
    // Predicated region
    $region30: #{tpu_custom_call.1} parent=1 // pred_check
      _
    $region31: #{tpu_custom_call.1} parent=1 // pred_check_branch
      %52 = sbr.rel (0) target = $region33
    $region32: #{tpu_custom_call.1} parent=1 // pred_region
      %53 = dma.done [#allocation7], 128
    $region33: #{tpu_custom_call.1} parent=1 // pred_fallthru
      _
    // Predicated region
    $region34: #{tpu_custom_call.1} parent=1 // pred_check
      _
    $region35: #{tpu_custom_call.1} parent=1 // pred_check_branch
      %55 = sbr.rel (0) target = $region37
    $region36: #{tpu_custom_call.1} parent=1 // pred_region
      %56 = dma.done [#allocation10], 8192
    $region37: #{tpu_custom_call.1} parent=1 // pred_fallthru
      _
    // Predicated region
    $region38: #{tpu_custom_call.1} parent=1 // pred_check
      _
    $region39: #{tpu_custom_call.1} parent=1 // pred_check_branch
      %58 = sbr.rel target = $region41
    $region40: #{tpu_custom_call.1} parent=1 // pred_region
      %59 = sst [smem:[#allocation14]] [#allocation13]
      %60 = sst [smem:[#allocation15]] [#allocation12]
    $region41: #{tpu_custom_call.1} parent=1 // pred_fallthru
      _
    %62 = shalt.err (0)
    %s64 = sshll.u32 [#allocation2], 4
    %s65 = int_to_ptr.vmem [resolvable:$true] %s64
    %67 = dma.hbm_to_vmem [thread:$0]  %s4, 8192, %s65, [#allocation4]
    %s68 = scalar_lea.sflag [#allocation4], 1
    // Predicated region
    $region42: #{tpu_custom_call.1} parent=1 // pred_check
      _
    $region43: #{tpu_custom_call.1} parent=1 // pred_check_branch
      %70 = sbr.rel target = $region45
    $region44: #{tpu_custom_call.1} parent=1 // pred_region
      %71 = sst [smem:[#allocation14]] [#allocation17]
      %72 = sst [smem:[#allocation15]] [#allocation16]
    $region45: #{tpu_custom_call.1} parent=1 // pred_fallthru
      _
    %74 = shalt.err (0)
    %s76 = sshll.u32 [#allocation3], 4
    %s77 = int_to_ptr.vmem [resolvable:$true] %s76
    %79 = dma.hbm_to_vmem [thread:$0]  %s5, 8192, %s77, %s68
    %v80 = vld [vmem:[#allocation6] sm:$0xff]
    %v81 = vld [vmem:[%s1] sm:$0xf]
    %v82 = vld [vmem:[%s3] sm:$0xf]
    %v83 = vld [vmem:[%s6] sm:$0xf]
    %v84 = vld [vmem:[%s7] sm:$0x1]
    %v85 = vld [vmem:[#allocation5] sm:$0x1]
    %87 = vset.pattern.permute.xlu0 0
    %88 = vperm.xlu0 %87, %v80
    %v89 = vpop.permute.xlu0 %88
    %v92 = vlaneseq
    %v93 = vshrl.u32 %v92, 7
    %v94 = vsub.s32 0, %v93
    %v95 = vrot.slane %v81, %v94
    %v96 = vlaneseq
    %v97 = vshrl.u32 %v96, 7
    %v98 = vsub.s32 1, %v97
    %v99 = vrot.slane %v81, %v98
    %v100 = vlaneseq
    %v101 = vshrl.u32 %v100, 7
    %v102 = vsub.s32 2, %v101
    %v103 = vrot.slane %v81, %v102
    %v104 = vlaneseq
    %v105 = vshrl.u32 %v104, 7
    %v106 = vsub.s32 3, %v105
    %v107 = vrot.slane %v81, %v106
    %v112 = vmul.f32 %v89, %v95
    %v113 = vmul.f32 %v89, %v103
    %v114 = vmul.f32 %v89, %v107
    %v116 = vlaneseq
    %v117 = vshrl.u32 %v116, 7
    %v118 = vsub.s32 0, %v117
    %v119 = vrot.slane %v82, %v118
    %v120 = vlaneseq
    %v121 = vshrl.u32 %v120, 7
    %v122 = vsub.s32 1, %v121
    %v123 = vrot.slane %v82, %v122
    %v124 = vlaneseq
    %v125 = vshrl.u32 %v124, 7
    %v126 = vsub.s32 2, %v125
    %v127 = vrot.slane %v82, %v126
    %v128 = vlaneseq
    %v129 = vshrl.u32 %v128, 7
    %v130 = vsub.s32 3, %v129
    %v131 = vrot.slane %v82, %v130
    %v136 = vadd.f32 %v112, %v119
    %v137 = vadd.f32 %v113, %v127
    %v138 = vadd.f32 %v114, %v131
    %139 = vset.pattern.permute.xlu0 1
    %140 = vperm.xlu0 %139, %v80
    %v141 = vpop.permute.xlu0 %140
    %v143 = vmul.f32 %v141, %v95
    %v144 = vmul.f32 %v141, %v99
    %v145 = vmul.f32 %v141, %v103
    %v146 = vmul.f32 %v141, %v107
    %v147 = vadd.f32 %v143, %v119
    %v148 = vadd.f32 %v144, %v123
    %v149 = vadd.f32 %v145, %v127
    %v150 = vadd.f32 %v146, %v131
    %151 = vset.pattern.permute.xlu0 2
    %152 = vperm.xlu0 %151, %v80
    %v153 = vpop.permute.xlu0 %152
    %v155 = vmul.f32 %v153, %v95
    %v156 = vmul.f32 %v153, %v99
    %v157 = vmul.f32 %v153, %v103
    %v158 = vmul.f32 %v153, %v107
    %v159 = vadd.f32 %v155, %v119
    %v160 = vadd.f32 %v156, %v123
    %v161 = vadd.f32 %v157, %v127
    %v162 = vadd.f32 %v158, %v131
    %163 = vset.pattern.permute.xlu0 3
    %164 = vperm.xlu0 %163, %v80
    %v165 = vpop.permute.xlu0 %164
    %v167 = vmul.f32 %v165, %v95
    %v168 = vmul.f32 %v165, %v99
    %v169 = vmul.f32 %v165, %v103
    %v170 = vmul.f32 %v165, %v107
    %v171 = vadd.f32 %v167, %v119
    %v172 = vadd.f32 %v168, %v123
    %v173 = vadd.f32 %v169, %v127
    %v174 = vadd.f32 %v170, %v131
    %175 = vset.pattern.permute.xlu0 4
    %176 = vperm.xlu0 %175, %v80
    %v177 = vpop.permute.xlu0 %176
    %v179 = vmul.f32 %v177, %v95
    %v180 = vmul.f32 %v177, %v99
    %v181 = vmul.f32 %v177, %v103
    %v182 = vmul.f32 %v177, %v107
    %v183 = vadd.f32 %v179, %v119
    %v184 = vadd.f32 %v180, %v123
    %v185 = vadd.f32 %v181, %v127
    %v186 = vadd.f32 %v182, %v131
    %187 = vset.pattern.permute.xlu0 5
    %188 = vperm.xlu0 %187, %v80
    %v189 = vpop.permute.xlu0 %188
    %v191 = vmul.f32 %v189, %v95
    %v192 = vmul.f32 %v189, %v99
    %v193 = vmul.f32 %v189, %v103
    %v194 = vmul.f32 %v189, %v107
    %v195 = vadd.f32 %v191, %v119
    %v196 = vadd.f32 %v192, %v123
    %v197 = vadd.f32 %v193, %v127
    %v198 = vadd.f32 %v194, %v131
    %199 = vset.pattern.permute.xlu0 6
    %200 = vperm.xlu0 %199, %v80
    %v201 = vpop.permute.xlu0 %200
    %v203 = vmul.f32 %v201, %v95
    %v204 = vmul.f32 %v201, %v99
    %v205 = vmul.f32 %v201, %v103
    %v206 = vmul.f32 %v201, %v107
    %v207 = vadd.f32 %v203, %v119
    %v208 = vadd.f32 %v204, %v123
    %v209 = vadd.f32 %v205, %v127
    %v210 = vadd.f32 %v206, %v131
    %211 = vset.pattern.permute.xlu0 7
    %212 = vperm.xlu0 %211, %v80
    %v213 = vpop.permute.xlu0 %212
    %v215 = vmul.f32 %v213, %v95
    %v216 = vmul.f32 %v213, %v99
    %v217 = vmul.f32 %v213, %v103
    %v218 = vmul.f32 %v213, %v107
    %v219 = vadd.f32 %v215, %v119
    %v220 = vadd.f32 %v216, %v123
    %v221 = vadd.f32 %v217, %v127
    %v222 = vadd.f32 %v218, %v131
    %v223 = vxor.u32 %v136, 2147483648
    %v224 = vxor.u32 %v137, 2147483648
    %v225 = vmul.f32 %v223, 1.442695
    %v226 = vpow.pop %v225
    %v227 = vmul.f32 %v224, 1.442695
    %v228 = vpow.pop %v227
    %v229 = vadd.f32 %v226, 1.0
    %v230 = vadd.f32 %v228, 1.0
    %v231 = vrcp.pop %v229
    %v232 = vmul.f32 1.0, %v231
    %v233 = vrcp.pop %v230
    %v234 = vmul.f32 1.0, %v233
    %v235 = vtanh.pop %v138
    %v236 = vmul.f32 %v232, %v235
    %v237 = vtanh.pop %v236
    %v238 = vmul.f32 %v234, %v237
    %s239 = smul.u32 8, 16
    %s240 = smul.u32 %s239, 4
    %s241 = sshll.u32 %s240, 4
    %242 = dma.done [#allocation4], %s241
    %v243 = vld [vmem:[#allocation2] sm:$0xff]
    %v244 = vld [vmem:[#allocation2 + $0x8] sm:$0xff]
    %v245 = vld [vmem:[#allocation2 + $0x10] sm:$0xff]
    %v246 = vld [vmem:[#allocation2 + $0x18] sm:$0xff]
    %v247 = vld [vmem:[#allocation2 + $0x20] sm:$0xff]
    %v248 = vld [vmem:[#allocation2 + $0x28] sm:$0xff]
    %v249 = vld [vmem:[#allocation2 + $0x30] sm:$0xff]
    %v250 = vld [vmem:[#allocation2 + $0x38] sm:$0xff]
    %v251 = vld [vmem:[#allocation2 + $0x40] sm:$0xff]
    %v252 = vld [vmem:[#allocation2 + $0x48] sm:$0xff]
    %v253 = vld [vmem:[#allocation2 + $0x50] sm:$0xff]
    %v254 = vld [vmem:[#allocation2 + $0x58] sm:$0xff]
    %v255 = vld [vmem:[#allocation2 + $0x60] sm:$0xff]
    %v256 = vld [vmem:[#allocation2 + $0x68] sm:$0xff]
    %v257 = vld [vmem:[#allocation2 + $0x70] sm:$0xff]
    %v258 = vld [vmem:[#allocation2 + $0x78] sm:$0xff]
    %v259 = vld [vmem:[#allocation2 + $0x80] sm:$0xff]
    %v260 = vld [vmem:[#allocation2 + $0x88] sm:$0xff]
    %v261 = vld [vmem:[#allocation2 + $0x90] sm:$0xff]
    %v262 = vld [vmem:[#allocation2 + $0x98] sm:$0xff]
    %v263 = vld [vmem:[#allocation2 + $0xa0] sm:$0xff]
    %v264 = vld [vmem:[#allocation2 + $0xa8] sm:$0xff]
    %v265 = vld [vmem:[#allocation2 + $0xb0] sm:$0xff]
    %v266 = vld [vmem:[#allocation2 + $0xb8] sm:$0xff]
    %v267 = vld [vmem:[#allocation2 + $0xc0] sm:$0xff]
    %v268 = vld [vmem:[#allocation2 + $0xc8] sm:$0xff]
    %v269 = vld [vmem:[#allocation2 + $0xd0] sm:$0xff]
    %v270 = vld [vmem:[#allocation2 + $0xd8] sm:$0xff]
    %v271 = vld [vmem:[#allocation2 + $0xe0] sm:$0xff]
    %v272 = vld [vmem:[#allocation2 + $0xe8] sm:$0xff]
    %v273 = vld [vmem:[#allocation2 + $0xf0] sm:$0xff]
    %v274 = vld [vmem:[#allocation2 + $0xf8] sm:$0xff]
    %v275 = vld [vmem:[#allocation2 + $0x100] sm:$0xff]
    %v276 = vld [vmem:[#allocation2 + $0x108] sm:$0xff]
    %v277 = vld [vmem:[#allocation2 + $0x110] sm:$0xff]
    %v278 = vld [vmem:[#allocation2 + $0x118] sm:$0xff]
    %v279 = vld [vmem:[#allocation2 + $0x120] sm:$0xff]
    %v280 = vld [vmem:[#allocation2 + $0x128] sm:$0xff]
    %v281 = vld [vmem:[#allocation2 + $0x130] sm:$0xff]
    %v282 = vld [vmem:[#allocation2 + $0x138] sm:$0xff]
    %v283 = vld [vmem:[#allocation2 + $0x140] sm:$0xff]
    %v284 = vld [vmem:[#allocation2 + $0x148] sm:$0xff]
    %v285 = vld [vmem:[#allocation2 + $0x150] sm:$0xff]
    %v286 = vld [vmem:[#allocation2 + $0x158] sm:$0xff]
    %v287 = vld [vmem:[#allocation2 + $0x160] sm:$0xff]
    %v288 = vld [vmem:[#allocation2 + $0x168] sm:$0xff]
    %v289 = vld [vmem:[#allocation2 + $0x170] sm:$0xff]
    %v290 = vld [vmem:[#allocation2 + $0x178] sm:$0xff]
    %v291 = vld [vmem:[#allocation2 + $0x180] sm:$0xff]
    %v292 = vld [vmem:[#allocation2 + $0x188] sm:$0xff]
    %v293 = vld [vmem:[#allocation2 + $0x190] sm:$0xff]
    %v294 = vld [vmem:[#allocation2 + $0x198] sm:$0xff]
    %v295 = vld [vmem:[#allocation2 + $0x1a0] sm:$0xff]
    %v296 = vld [vmem:[#allocation2 + $0x1a8] sm:$0xff]
    %v297 = vld [vmem:[#allocation2 + $0x1b0] sm:$0xff]
    %v298 = vld [vmem:[#allocation2 + $0x1b8] sm:$0xff]
    %v299 = vld [vmem:[#allocation2 + $0x1c0] sm:$0xff]
    %v300 = vld [vmem:[#allocation2 + $0x1c8] sm:$0xff]
    %v301 = vld [vmem:[#allocation2 + $0x1d0] sm:$0xff]
    %v302 = vld [vmem:[#allocation2 + $0x1d8] sm:$0xff]
    %v303 = vld [vmem:[#allocation2 + $0x1e0] sm:$0xff]
    %v304 = vld [vmem:[#allocation2 + $0x1e8] sm:$0xff]
    %v305 = vld [vmem:[#allocation2 + $0x1f0] sm:$0xff]
    %v306 = vld [vmem:[#allocation2 + $0x1f8] sm:$0xff]
    %v308 = vlaneseq
    %v309 = vshrl.u32 %v308, 7
    %v310 = vsub.s32 0, %v309
    %v311 = vrot.slane %v83, %v310
    %v312 = vlaneseq
    %v313 = vshrl.u32 %v312, 7
    %v314 = vsub.s32 1, %v313
    %v315 = vrot.slane %v83, %v314
    %v316 = vlaneseq
    %v317 = vshrl.u32 %v316, 7
    %v318 = vsub.s32 2, %v317
    %v319 = vrot.slane %v83, %v318
    %v320 = vlaneseq
    %v321 = vshrl.u32 %v320, 7
    %v322 = vsub.s32 3, %v321
    %v323 = vrot.slane %v83, %v322
    %328 = vmatprep.subr.mxu0 %v244
    %329 = vmatpush1.msra.mxu0 %v243
    %330 = vmatprep.subr.mxu0 %v248
    %331 = vmatpush1.msra.mxu0 %v247
    %332 = vmatprep.subr.mxu0 %v252
    %333 = vmatpush1.msra.mxu0 %v251
    %334 = vmatprep.subr.mxu0 %v256
    %335 = vmatpush1.msra.mxu0 %v255
    %336 = vmatprep.subr.mxu0 %v260
    %337 = vmatpush1.msra.mxu0 %v259
    %338 = vmatprep.subr.mxu0 %v264
    %339 = vmatpush1.msra.mxu0 %v263
    %340 = vmatprep.subr.mxu0 %v268
    %341 = vmatpush1.msra.mxu0 %v267
    %342 = vmatprep.subr.mxu0 %v272
    %343 = vmatpush1.msra.mxu0 %v271
    %344 = vmatprep.subr.mxu0 %v276
    %345 = vmatpush1.msra.mxu0 %v275
    %346 = vmatprep.subr.mxu0 %v280
    %347 = vmatpush1.msra.mxu0 %v279
    %348 = vmatprep.subr.mxu0 %v284
    %349 = vmatpush1.msra.mxu0 %v283
    %350 = vmatprep.subr.mxu0 %v288
    %351 = vmatpush1.msra.mxu0 %v287
    %352 = vmatprep.subr.mxu0 %v292
    %353 = vmatpush1.msra.mxu0 %v291
    %354 = vmatprep.subr.mxu0 %v296
    %355 = vmatpush1.msra.mxu0 %v295
    %356 = vmatprep.subr.mxu0 %v300
    %357 = vmatpush1.msra.mxu0 %v299
    %358 = vmatprep.subr.mxu0 %v304
    %359 = vmatpush1.msra.mxu0 %v303
    %360 = vmatprep.subr.mxu0 0.0
    %361 = vmatpush1.msra.mxu0 0.0
    %362 = vmatprep.subr.mxu0 0.0
    %363 = vmatpush1.msra.mxu0 0.0
    %364 = vmatprep.subr.mxu0 0.0
    %365 = vmatpush1.msra.mxu0 0.0
    %366 = vmatprep.subr.mxu0 0.0
    %367 = vmatpush1.msra.mxu0 0.0
    %368 = vmatprep.subr.mxu0 0.0
    %369 = vmatpush1.msra.mxu0 0.0
    %370 = vmatprep.subr.mxu0 0.0
    %371 = vmatpush1.msra.mxu0 0.0
    %372 = vmatprep.subr.mxu0 0.0
    %373 = vmatpush1.msra.mxu0 0.0
    %374 = vmatprep.subr.mxu0 0.0
    %375 = vmatpush1.msra.mxu0 0.0
    %376 = vmatprep.subr.mxu0 0.0
    %377 = vmatpush1.msra.mxu0 0.0
    %378 = vmatprep.subr.mxu0 0.0
    %379 = vmatpush1.msra.mxu0 0.0
    %380 = vmatprep.subr.mxu0 0.0
    %381 = vmatpush1.msra.mxu0 0.0
    %382 = vmatprep.subr.mxu0 0.0
    %383 = vmatpush1.msra.mxu0 0.0
    %384 = vmatprep.subr.mxu0 0.0
    %385 = vmatpush1.msra.mxu0 0.0
    %386 = vmatprep.subr.mxu0 0.0
    %387 = vmatpush1.msra.mxu0 0.0
    %388 = vmatprep.subr.mxu0 0.0
    %389 = vmatpush1.msra.mxu0 0.0
    %390 = vmatprep.subr.mxu0 0.0
    %391 = vmatpush1.msra.mxu0 0.0
    %392 = vmatprep.mubr.f32.mxu0 0.0
    %393 = vmatmul.mubr.f32.gmra.mrb[0].mxu0 %v238
    %v394 = vpop.f32.mrb[0].mxu0
    %v395 = vadd.f32 %v311, %v394
    %v396 = vpop.f32.mrb[0].mxu0
    %397 = vdwg.mxu0
    %398 = vmatprep.subr.mxu0 %v246
    %399 = vmatpush1.msra.mxu0 %v245
    %400 = vmatprep.subr.mxu0 %v250
    %401 = vmatpush1.msra.mxu0 %v249
    %402 = vmatprep.subr.mxu0 %v254
    %403 = vmatpush1.msra.mxu0 %v253
    %404 = vmatprep.subr.mxu0 %v258
    %405 = vmatpush1.msra.mxu0 %v257
    %406 = vmatprep.subr.mxu0 %v262
    %407 = vmatpush1.msra.mxu0 %v261
    %408 = vmatprep.subr.mxu0 %v266
    %409 = vmatpush1.msra.mxu0 %v265
    %410 = vmatprep.subr.mxu0 %v270
    %411 = vmatpush1.msra.mxu0 %v269
    %412 = vmatprep.subr.mxu0 %v274
    %413 = vmatpush1.msra.mxu0 %v273
    %414 = vmatprep.subr.mxu0 %v278
    %415 = vmatpush1.msra.mxu0 %v277
    %416 = vmatprep.subr.mxu0 %v282
    %417 = vmatpush1.msra.mxu0 %v281
    %418 = vmatprep.subr.mxu0 %v286
    %419 = vmatpush1.msra.mxu0 %v285
    %420 = vmatprep.subr.mxu0 %v290
    %421 = vmatpush1.msra.mxu0 %v289
    %422 = vmatprep.subr.mxu0 %v294
    %423 = vmatpush1.msra.mxu0 %v293
    %424 = vmatprep.subr.mxu0 %v298
    %425 = vmatpush1.msra.mxu0 %v297
    %426 = vmatprep.subr.mxu0 %v302
    %427 = vmatpush1.msra.mxu0 %v301
    %428 = vmatprep.subr.mxu0 %v306
    %429 = vmatpush1.msra.mxu0 %v305
    %430 = vmatprep.subr.mxu0 0.0
    %431 = vmatpush1.msra.mxu0 0.0
    %432 = vmatprep.subr.mxu0 0.0
    %433 = vmatpush1.msra.mxu0 0.0
    %434 = vmatprep.subr.mxu0 0.0
    %435 = vmatpush1.msra.mxu0 0.0
    %436 = vmatprep.subr.mxu0 0.0
    %437 = vmatpush1.msra.mxu0 0.0
    %438 = vmatprep.subr.mxu0 0.0
    %439 = vmatpush1.msra.mxu0 0.0
    %440 = vmatprep.subr.mxu0 0.0
    %441 = vmatpush1.msra.mxu0 0.0
    %442 = vmatprep.subr.mxu0 0.0
    %443 = vmatpush1.msra.mxu0 0.0
    %444 = vmatprep.subr.mxu0 0.0
    %445 = vmatpush1.msra.mxu0 0.0
    %446 = vmatprep.subr.mxu0 0.0
    %447 = vmatpush1.msra.mxu0 0.0
    %448 = vmatprep.subr.mxu0 0.0
    %449 = vmatpush1.msra.mxu0 0.0
    %450 = vmatprep.subr.mxu0 0.0
    %451 = vmatpush1.msra.mxu0 0.0
    %452 = vmatprep.subr.mxu0 0.0
    %453 = vmatpush1.msra.mxu0 0.0
    %454 = vmatprep.subr.mxu0 0.0
    %455 = vmatpush1.msra.mxu0 0.0
    %456 = vmatprep.subr.mxu0 0.0
    %457 = vmatpush1.msra.mxu0 0.0
    %458 = vmatprep.subr.mxu0 0.0
    %459 = vmatpush1.msra.mxu0 0.0
    %460 = vmatprep.subr.mxu0 0.0
    %461 = vmatpush1.msra.mxu0 0.0
    %462 = vmatprep.mubr.f32.mxu0 0.0
    %463 = vmatmul.mubr.f32.gmra.mrb[0].mxu0 %v238
    %v464 = vpop.f32.mrb[0].mxu0
    %v465 = vadd.f32 %v319, %v464
    %v466 = vpop.f32.mrb[0].mxu0
    %v467 = vadd.f32 %v323, %v466
    %468 = vdwg.mxu0
    %v469 = vxor.u32 %v395, 2147483648
    %v470 = vxor.u32 %v465, 2147483648
    %v471 = vmul.f32 %v469, 1.442695
    %v472 = vpow.pop %v471
    %v473 = vmul.f32 %v470, 1.442695
    %v474 = vpow.pop %v473
    %v475 = vadd.f32 %v472, 1.0
    %v476 = vadd.f32 %v474, 1.0
    %v477 = vrcp.pop %v475
    %v478 = vmul.f32 1.0, %v477
    %v479 = vrcp.pop %v476
    %v480 = vmul.f32 1.0, %v479
    %v481 = vtanh.pop %v467
    %v482 = vmul.f32 %v478, %v481
    %v483 = vtanh.pop %v482
    %v484 = vmul.f32 %v480, %v483
    %v486 = vlaneseq
    %v487 = vshrl.u32 %v486, 7
    %v488 = vsub.s32 0, %v487
    %v489 = vrot.slane %v84, %v488
    %v491 = vmul.f32 %v484, %v489
    %492 = vadd.xlane.f32.xlu0 %v491
    %v493 = vpop.xlane.xlu0 %492
    %v495 = vlaneseq
    %v496 = vshrl.u32 %v495, 7
    %v497 = vsub.s32 0, %v496
    %v498 = vrot.slane %v85, %v497
    %v500 = vadd.f32 %v493, %v498
    %vm501 = vcmask 7168
    %502 = vst.msk [vmem:[#allocation11] sm:$0xff] %vm501, %v500
    %v503 = vld [vmem:[#allocation9] sm:$0xff]
    %v504 = vld [vmem:[#allocation9 + $0x8] sm:$0xff]
    %v505 = vld [vmem:[#allocation9 + $0x10] sm:$0xff]
    %v506 = vld [vmem:[#allocation9 + $0x18] sm:$0xff]
    %v507 = vld [vmem:[#allocation9 + $0x20] sm:$0xff]
    %v508 = vld [vmem:[#allocation9 + $0x28] sm:$0xff]
    %v509 = vld [vmem:[#allocation9 + $0x30] sm:$0xff]
    %v510 = vld [vmem:[#allocation9 + $0x38] sm:$0xff]
    %v511 = vld [vmem:[#allocation9 + $0x40] sm:$0xff]
    %v512 = vld [vmem:[#allocation9 + $0x48] sm:$0xff]
    %v513 = vld [vmem:[#allocation9 + $0x50] sm:$0xff]
    %v514 = vld [vmem:[#allocation9 + $0x58] sm:$0xff]
    %v515 = vld [vmem:[#allocation9 + $0x60] sm:$0xff]
    %v516 = vld [vmem:[#allocation9 + $0x68] sm:$0xff]
    %v517 = vld [vmem:[#allocation9 + $0x70] sm:$0xff]
    %v518 = vld [vmem:[#allocation9 + $0x78] sm:$0xff]
    %v519 = vld [vmem:[#allocation9 + $0x80] sm:$0xff]
    %v520 = vld [vmem:[#allocation9 + $0x88] sm:$0xff]
    %v521 = vld [vmem:[#allocation9 + $0x90] sm:$0xff]
    %v522 = vld [vmem:[#allocation9 + $0x98] sm:$0xff]
    %v523 = vld [vmem:[#allocation9 + $0xa0] sm:$0xff]
    %v524 = vld [vmem:[#allocation9 + $0xa8] sm:$0xff]
    %v525 = vld [vmem:[#allocation9 + $0xb0] sm:$0xff]
    %v526 = vld [vmem:[#allocation9 + $0xb8] sm:$0xff]
    %v527 = vld [vmem:[#allocation9 + $0xc0] sm:$0xff]
    %v528 = vld [vmem:[#allocation9 + $0xc8] sm:$0xff]
    %v529 = vld [vmem:[#allocation9 + $0xd0] sm:$0xff]
    %v530 = vld [vmem:[#allocation9 + $0xd8] sm:$0xff]
    %v531 = vld [vmem:[#allocation9 + $0xe0] sm:$0xff]
    %v532 = vld [vmem:[#allocation9 + $0xe8] sm:$0xff]
    %v533 = vld [vmem:[#allocation9 + $0xf0] sm:$0xff]
    %v534 = vld [vmem:[#allocation9 + $0xf8] sm:$0xff]
    %v535 = vld [vmem:[#allocation9 + $0x100] sm:$0xff]
    %v536 = vld [vmem:[#allocation9 + $0x108] sm:$0xff]
    %v537 = vld [vmem:[#allocation9 + $0x110] sm:$0xff]
    %v538 = vld [vmem:[#allocation9 + $0x118] sm:$0xff]
    %v539 = vld [vmem:[#allocation9 + $0x120] sm:$0xff]
    %v540 = vld [vmem:[#allocation9 + $0x128] sm:$0xff]
    %v541 = vld [vmem:[#allocation9 + $0x130] sm:$0xff]
    %v542 = vld [vmem:[#allocation9 + $0x138] sm:$0xff]
    %v543 = vld [vmem:[#allocation9 + $0x140] sm:$0xff]
    %v544 = vld [vmem:[#allocation9 + $0x148] sm:$0xff]
    %v545 = vld [vmem:[#allocation9 + $0x150] sm:$0xff]
    %v546 = vld [vmem:[#allocation9 + $0x158] sm:$0xff]
    %v547 = vld [vmem:[#allocation9 + $0x160] sm:$0xff]
    %v548 = vld [vmem:[#allocation9 + $0x168] sm:$0xff]
    %v549 = vld [vmem:[#allocation9 + $0x170] sm:$0xff]
    %v550 = vld [vmem:[#allocation9 + $0x178] sm:$0xff]
    %v551 = vld [vmem:[#allocation9 + $0x180] sm:$0xff]
    %v552 = vld [vmem:[#allocation9 + $0x188] sm:$0xff]
    %v553 = vld [vmem:[#allocation9 + $0x190] sm:$0xff]
    %v554 = vld [vmem:[#allocation9 + $0x198] sm:$0xff]
    %v555 = vld [vmem:[#allocation9 + $0x1a0] sm:$0xff]
    %v556 = vld [vmem:[#allocation9 + $0x1a8] sm:$0xff]
    %v557 = vld [vmem:[#allocation9 + $0x1b0] sm:$0xff]
    %v558 = vld [vmem:[#allocation9 + $0x1b8] sm:$0xff]
    %v559 = vld [vmem:[#allocation9 + $0x1c0] sm:$0xff]
    %v560 = vld [vmem:[#allocation9 + $0x1c8] sm:$0xff]
    %v561 = vld [vmem:[#allocation9 + $0x1d0] sm:$0xff]
    %v562 = vld [vmem:[#allocation9 + $0x1d8] sm:$0xff]
    %v563 = vld [vmem:[#allocation9 + $0x1e0] sm:$0xff]
    %v564 = vld [vmem:[#allocation9 + $0x1e8] sm:$0xff]
    %v565 = vld [vmem:[#allocation9 + $0x1f0] sm:$0xff]
    %v566 = vld [vmem:[#allocation9 + $0x1f8] sm:$0xff]
    %567 = vmatprep.subr.mxu0 %v504
    %568 = vmatpush1.msra.mxu0 %v503
    %569 = vmatprep.subr.mxu0 %v508
    %570 = vmatpush1.msra.mxu0 %v507
    %571 = vmatprep.subr.mxu0 %v512
    %572 = vmatpush1.msra.mxu0 %v511
    %573 = vmatprep.subr.mxu0 %v516
    %574 = vmatpush1.msra.mxu0 %v515
    %575 = vmatprep.subr.mxu0 %v520
    %576 = vmatpush1.msra.mxu0 %v519
    %577 = vmatprep.subr.mxu0 %v524
    %578 = vmatpush1.msra.mxu0 %v523
    %579 = vmatprep.subr.mxu0 %v528
    %580 = vmatpush1.msra.mxu0 %v527
    %581 = vmatprep.subr.mxu0 %v532
    %582 = vmatpush1.msra.mxu0 %v531
    %583 = vmatprep.subr.mxu0 %v536
    %584 = vmatpush1.msra.mxu0 %v535
    %585 = vmatprep.subr.mxu0 %v540
    %586 = vmatpush1.msra.mxu0 %v539
    %587 = vmatprep.subr.mxu0 %v544
    %588 = vmatpush1.msra.mxu0 %v543
    %589 = vmatprep.subr.mxu0 %v548
    %590 = vmatpush1.msra.mxu0 %v547
    %591 = vmatprep.subr.mxu0 %v552
    %592 = vmatpush1.msra.mxu0 %v551
    %593 = vmatprep.subr.mxu0 %v556
    %594 = vmatpush1.msra.mxu0 %v555
    %595 = vmatprep.subr.mxu0 %v560
    %596 = vmatpush1.msra.mxu0 %v559
    %597 = vmatprep.subr.mxu0 %v564
    %598 = vmatpush1.msra.mxu0 %v563
    %599 = vmatprep.subr.mxu0 0.0
    %600 = vmatpush1.msra.mxu0 0.0
    %601 = vmatprep.subr.mxu0 0.0
    %602 = vmatpush1.msra.mxu0 0.0
    %603 = vmatprep.subr.mxu0 0.0
    %604 = vmatpush1.msra.mxu0 0.0
    %605 = vmatprep.subr.mxu0 0.0
    %606 = vmatpush1.msra.mxu0 0.0
    %607 = vmatprep.subr.mxu0 0.0
    %608 = vmatpush1.msra.mxu0 0.0
    %609 = vmatprep.subr.mxu0 0.0
    %610 = vmatpush1.msra.mxu0 0.0
    %611 = vmatprep.subr.mxu0 0.0
    %612 = vmatpush1.msra.mxu0 0.0
    %613 = vmatprep.subr.mxu0 0.0
    %614 = vmatpush1.msra.mxu0 0.0
    %615 = vmatprep.subr.mxu0 0.0
    %616 = vmatpush1.msra.mxu0 0.0
    %617 = vmatprep.subr.mxu0 0.0
    %618 = vmatpush1.msra.mxu0 0.0
    %619 = vmatprep.subr.mxu0 0.0
    %620 = vmatpush1.msra.mxu0 0.0
    %621 = vmatprep.subr.mxu0 0.0
    %622 = vmatpush1.msra.mxu0 0.0
    %623 = vmatprep.subr.mxu0 0.0
    %624 = vmatpush1.msra.mxu0 0.0
    %625 = vmatprep.subr.mxu0 0.0
    %626 = vmatpush1.msra.mxu0 0.0
    %627 = vmatprep.subr.mxu0 0.0
    %628 = vmatpush1.msra.mxu0 0.0
    %629 = vmatprep.subr.mxu0 0.0
    %630 = vmatpush1.msra.mxu0 0.0
    %631 = vmatprep.mubr.f32.mxu0 0.0
    %632 = vmatmul.mubr.f32.gmra.mrb[0].mxu0 %v238
    %v633 = vpop.f32.mrb[0].mxu0
    %v634 = vadd.f32 %v147, %v633
    %v635 = vpop.f32.mrb[0].mxu0
    %v636 = vadd.f32 %v148, %v635
    %637 = vdwg.mxu0
    %638 = vmatprep.subr.mxu0 %v506
    %639 = vmatpush1.msra.mxu0 %v505
    %640 = vmatprep.subr.mxu0 %v510
    %641 = vmatpush1.msra.mxu0 %v509
    %642 = vmatprep.subr.mxu0 %v514
    %643 = vmatpush1.msra.mxu0 %v513
    %644 = vmatprep.subr.mxu0 %v518
    %645 = vmatpush1.msra.mxu0 %v517
    %646 = vmatprep.subr.mxu0 %v522
    %647 = vmatpush1.msra.mxu0 %v521
    %648 = vmatprep.subr.mxu0 %v526
    %649 = vmatpush1.msra.mxu0 %v525
    %650 = vmatprep.subr.mxu0 %v530
    %651 = vmatpush1.msra.mxu0 %v529
    %652 = vmatprep.subr.mxu0 %v534
    %653 = vmatpush1.msra.mxu0 %v533
    %654 = vmatprep.subr.mxu0 %v538
    %655 = vmatpush1.msra.mxu0 %v537
    %656 = vmatprep.subr.mxu0 %v542
    %657 = vmatpush1.msra.mxu0 %v541
    %658 = vmatprep.subr.mxu0 %v546
    %659 = vmatpush1.msra.mxu0 %v545
    %660 = vmatprep.subr.mxu0 %v550
    %661 = vmatpush1.msra.mxu0 %v549
    %662 = vmatprep.subr.mxu0 %v554
    %663 = vmatpush1.msra.mxu0 %v553
    %664 = vmatprep.subr.mxu0 %v558
    %665 = vmatpush1.msra.mxu0 %v557
    %666 = vmatprep.subr.mxu0 %v562
    %667 = vmatpush1.msra.mxu0 %v561
    %668 = vmatprep.subr.mxu0 %v566
    %669 = vmatpush1.msra.mxu0 %v565
    %670 = vmatprep.subr.mxu0 0.0
    %671 = vmatpush1.msra.mxu0 0.0
    %672 = vmatprep.subr.mxu0 0.0
    %673 = vmatpush1.msra.mxu0 0.0
    %674 = vmatprep.subr.mxu0 0.0
    %675 = vmatpush1.msra.mxu0 0.0
    %676 = vmatprep.subr.mxu0 0.0
    %677 = vmatpush1.msra.mxu0 0.0
    %678 = vmatprep.subr.mxu0 0.0
    %679 = vmatpush1.msra.mxu0 0.0
    %680 = vmatprep.subr.mxu0 0.0
    %681 = vmatpush1.msra.mxu0 0.0
    %682 = vmatprep.subr.mxu0 0.0
    %683 = vmatpush1.msra.mxu0 0.0
    %684 = vmatprep.subr.mxu0 0.0
    %685 = vmatpush1.msra.mxu0 0.0
    %686 = vmatprep.subr.mxu0 0.0
    %687 = vmatpush1.msra.mxu0 0.0
    %688 = vmatprep.subr.mxu0 0.0
    %689 = vmatpush1.msra.mxu0 0.0
    %690 = vmatprep.subr.mxu0 0.0
    %691 = vmatpush1.msra.mxu0 0.0
    %692 = vmatprep.subr.mxu0 0.0
    %693 = vmatpush1.msra.mxu0 0.0
    %694 = vmatprep.subr.mxu0 0.0
    %695 = vmatpush1.msra.mxu0 0.0
    %696 = vmatprep.subr.mxu0 0.0
    %697 = vmatpush1.msra.mxu0 0.0
    %698 = vmatprep.subr.mxu0 0.0
    %699 = vmatpush1.msra.mxu0 0.0
    %700 = vmatprep.subr.mxu0 0.0
    %701 = vmatpush1.msra.mxu0 0.0
    %702 = vmatprep.mubr.f32.mxu0 0.0
    %703 = vmatmul.mubr.f32.gmra.mrb[0].mxu0 %v238
    %v704 = vpop.f32.mrb[0].mxu0
    %v705 = vadd.f32 %v149, %v704
    %v706 = vpop.f32.mrb[0].mxu0
    %v707 = vadd.f32 %v150, %v706
    %708 = vdwg.mxu0
    %v709 = vxor.u32 %v634, 2147483648
    %v710 = vxor.u32 %v636, 2147483648
    %v711 = vxor.u32 %v705, 2147483648
    %v712 = vmul.f32 %v709, 1.442695
    %v713 = vpow.pop %v712
    %v714 = vmul.f32 %v710, 1.442695
    %v715 = vpow.pop %v714
    %v716 = vmul.f32 %v711, 1.442695
    %v717 = vpow.pop %v716
    %v718 = vadd.f32 %v713, 1.0
    %v719 = vadd.f32 %v715, 1.0
    %v720 = vadd.f32 %v717, 1.0
    %v721 = vrcp.pop %v718
    %v722 = vmul.f32 1.0, %v721
    %v723 = vrcp.pop %v719
    %v724 = vmul.f32 1.0, %v723
    %v725 = vrcp.pop %v720
    %v726 = vmul.f32 1.0, %v725
    %v727 = vtanh.pop %v707
    %v728 = vmul.f32 %v724, %v236
    %v729 = vmul.f32 %v722, %v727
    %v730 = vadd.f32 %v728, %v729
    %v731 = vtanh.pop %v730
    %v732 = vmul.f32 %v726, %v731
    %s733 = sshll.u32 %s240, 4
    %734 = dma.done %s68, %s733
    %v735 = vld [vmem:[#allocation2] sm:$0xff]
    %v736 = vld [vmem:[#allocation2 + $0x8] sm:$0xff]
    %v737 = vld [vmem:[#allocation2 + $0x10] sm:$0xff]
    %v738 = vld [vmem:[#allocation2 + $0x18] sm:$0xff]
    %v739 = vld [vmem:[#allocation2 + $0x20] sm:$0xff]
    %v740 = vld [vmem:[#allocation2 + $0x28] sm:$0xff]
    %v741 = vld [vmem:[#allocation2 + $0x30] sm:$0xff]
    %v742 = vld [vmem:[#allocation2 + $0x38] sm:$0xff]
    %v743 = vld [vmem:[#allocation2 + $0x40] sm:$0xff]
    %v744 = vld [vmem:[#allocation2 + $0x48] sm:$0xff]
    %v745 = vld [vmem:[#allocation2 + $0x50] sm:$0xff]
    %v746 = vld [vmem:[#allocation2 + $0x58] sm:$0xff]
    %v747 = vld [vmem:[#allocation2 + $0x60] sm:$0xff]
    %v748 = vld [vmem:[#allocation2 + $0x68] sm:$0xff]
    %v749 = vld [vmem:[#allocation2 + $0x70] sm:$0xff]
    %v750 = vld [vmem:[#allocation2 + $0x78] sm:$0xff]
    %v751 = vld [vmem:[#allocation2 + $0x80] sm:$0xff]
    %v752 = vld [vmem:[#allocation2 + $0x88] sm:$0xff]
    %v753 = vld [vmem:[#allocation2 + $0x90] sm:$0xff]
    %v754 = vld [vmem:[#allocation2 + $0x98] sm:$0xff]
    %v755 = vld [vmem:[#allocation2 + $0xa0] sm:$0xff]
    %v756 = vld [vmem:[#allocation2 + $0xa8] sm:$0xff]
    %v757 = vld [vmem:[#allocation2 + $0xb0] sm:$0xff]
    %v758 = vld [vmem:[#allocation2 + $0xb8] sm:$0xff]
    %v759 = vld [vmem:[#allocation2 + $0xc0] sm:$0xff]
    %v760 = vld [vmem:[#allocation2 + $0xc8] sm:$0xff]
    %v761 = vld [vmem:[#allocation2 + $0xd0] sm:$0xff]
    %v762 = vld [vmem:[#allocation2 + $0xd8] sm:$0xff]
    %v763 = vld [vmem:[#allocation2 + $0xe0] sm:$0xff]
    %v764 = vld [vmem:[#allocation2 + $0xe8] sm:$0xff]
    %v765 = vld [vmem:[#allocation2 + $0xf0] sm:$0xff]
    %v766 = vld [vmem:[#allocation2 + $0xf8] sm:$0xff]
    %v767 = vld [vmem:[#allocation2 + $0x100] sm:$0xff]
    %v768 = vld [vmem:[#allocation2 + $0x108] sm:$0xff]
    %v769 = vld [vmem:[#allocation2 + $0x110] sm:$0xff]
    %v770 = vld [vmem:[#allocation2 + $0x118] sm:$0xff]
    %v771 = vld [vmem:[#allocation2 + $0x120] sm:$0xff]
    %v772 = vld [vmem:[#allocation2 + $0x128] sm:$0xff]
    %v773 = vld [vmem:[#allocation2 + $0x130] sm:$0xff]
    %v774 = vld [vmem:[#allocation2 + $0x138] sm:$0xff]
    %v775 = vld [vmem:[#allocation2 + $0x140] sm:$0xff]
    %v776 = vld [vmem:[#allocation2 + $0x148] sm:$0xff]
    %v777 = vld [vmem:[#allocation2 + $0x150] sm:$0xff]
    %v778 = vld [vmem:[#allocation2 + $0x158] sm:$0xff]
    %v779 = vld [vmem:[#allocation2 + $0x160] sm:$0xff]
    %v780 = vld [vmem:[#allocation2 + $0x168] sm:$0xff]
    %v781 = vld [vmem:[#allocation2 + $0x170] sm:$0xff]
    %v782 = vld [vmem:[#allocation2 + $0x178] sm:$0xff]
    %v783 = vld [vmem:[#allocation2 + $0x180] sm:$0xff]
    %v784 = vld [vmem:[#allocation2 + $0x188] sm:$0xff]
    %v785 = vld [vmem:[#allocation2 + $0x190] sm:$0xff]
    %v786 = vld [vmem:[#allocation2 + $0x198] sm:$0xff]
    %v787 = vld [vmem:[#allocation2 + $0x1a0] sm:$0xff]
    %v788 = vld [vmem:[#allocation2 + $0x1a8] sm:$0xff]
    %v789 = vld [vmem:[#allocation2 + $0x1b0] sm:$0xff]
    %v790 = vld [vmem:[#allocation2 + $0x1b8] sm:$0xff]
    %v791 = vld [vmem:[#allocation2 + $0x1c0] sm:$0xff]
    %v792 = vld [vmem:[#allocation2 + $0x1c8] sm:$0xff]
    %v793 = vld [vmem:[#allocation2 + $0x1d0] sm:$0xff]
    %v794 = vld [vmem:[#allocation2 + $0x1d8] sm:$0xff]
    %v795 = vld [vmem:[#allocation2 + $0x1e0] sm:$0xff]
    %v796 = vld [vmem:[#allocation2 + $0x1e8] sm:$0xff]
    %v797 = vld [vmem:[#allocation2 + $0x1f0] sm:$0xff]
    %v798 = vld [vmem:[#allocation2 + $0x1f8] sm:$0xff]
    %v799 = vld [vmem:[#allocation3] sm:$0xff]
    %v800 = vld [vmem:[#allocation3 + $0x8] sm:$0xff]
    %v801 = vld [vmem:[#allocation3 + $0x10] sm:$0xff]
    %v802 = vld [vmem:[#allocation3 + $0x18] sm:$0xff]
    %v803 = vld [vmem:[#allocation3 + $0x20] sm:$0xff]
    %v804 = vld [vmem:[#allocation3 + $0x28] sm:$0xff]
    %v805 = vld [vmem:[#allocation3 + $0x30] sm:$0xff]
    %v806 = vld [vmem:[#allocation3 + $0x38] sm:$0xff]
    %v807 = vld [vmem:[#allocation3 + $0x40] sm:$0xff]
    %v808 = vld [vmem:[#allocation3 + $0x48] sm:$0xff]
    %v809 = vld [vmem:[#allocation3 + $0x50] sm:$0xff]
    %v810 = vld [vmem:[#allocation3 + $0x58] sm:$0xff]
    %v811 = vld [vmem:[#allocation3 + $0x60] sm:$0xff]
    %v812 = vld [vmem:[#allocation3 + $0x68] sm:$0xff]
    %v813 = vld [vmem:[#allocation3 + $0x70] sm:$0xff]
    %v814 = vld [vmem:[#allocation3 + $0x78] sm:$0xff]
    %v815 = vld [vmem:[#allocation3 + $0x80] sm:$0xff]
    %v816 = vld [vmem:[#allocation3 + $0x88] sm:$0xff]
    %v817 = vld [vmem:[#allocation3 + $0x90] sm:$0xff]
    %v818 = vld [vmem:[#allocation3 + $0x98] sm:$0xff]
    %v819 = vld [vmem:[#allocation3 + $0xa0] sm:$0xff]
    %v820 = vld [vmem:[#allocation3 + $0xa8] sm:$0xff]
    %v821 = vld [vmem:[#allocation3 + $0xb0] sm:$0xff]
    %v822 = vld [vmem:[#allocation3 + $0xb8] sm:$0xff]
    %v823 = vld [vmem:[#allocation3 + $0xc0] sm:$0xff]
    %v824 = vld [vmem:[#allocation3 + $0xc8] sm:$0xff]
    %v825 = vld [vmem:[#allocation3 + $0xd0] sm:$0xff]
    %v826 = vld [vmem:[#allocation3 + $0xd8] sm:$0xff]
    %v827 = vld [vmem:[#allocation3 + $0xe0] sm:$0xff]
    %v828 = vld [vmem:[#allocation3 + $0xe8] sm:$0xff]
    %v829 = vld [vmem:[#allocation3 + $0xf0] sm:$0xff]
    %v830 = vld [vmem:[#allocation3 + $0xf8] sm:$0xff]
    %v831 = vld [vmem:[#allocation3 + $0x100] sm:$0xff]
    %v832 = vld [vmem:[#allocation3 + $0x108] sm:$0xff]
    %v833 = vld [vmem:[#allocation3 + $0x110] sm:$0xff]
    %v834 = vld [vmem:[#allocation3 + $0x118] sm:$0xff]
    %v835 = vld [vmem:[#allocation3 + $0x120] sm:$0xff]
    %v836 = vld [vmem:[#allocation3 + $0x128] sm:$0xff]
    %v837 = vld [vmem:[#allocation3 + $0x130] sm:$0xff]
    %v838 = vld [vmem:[#allocation3 + $0x138] sm:$0xff]
    %v839 = vld [vmem:[#allocation3 + $0x140] sm:$0xff]
    %v840 = vld [vmem:[#allocation3 + $0x148] sm:$0xff]
    %v841 = vld [vmem:[#allocation3 + $0x150] sm:$0xff]
    %v842 = vld [vmem:[#allocation3 + $0x158] sm:$0xff]
    %v843 = vld [vmem:[#allocation3 + $0x160] sm:$0xff]
    %v844 = vld [vmem:[#allocation3 + $0x168] sm:$0xff]
    %v845 = vld [vmem:[#allocation3 + $0x170] sm:$0xff]
    %v846 = vld [vmem:[#allocation3 + $0x178] sm:$0xff]
    %v847 = vld [vmem:[#allocation3 + $0x180] sm:$0xff]
    %v848 = vld [vmem:[#allocation3 + $0x188] sm:$0xff]
    %v849 = vld [vmem:[#allocation3 + $0x190] sm:$0xff]
    %v850 = vld [vmem:[#allocation3 + $0x198] sm:$0xff]
    %v851 = vld [vmem:[#allocation3 + $0x1a0] sm:$0xff]
    %v852 = vld [vmem:[#allocation3 + $0x1a8] sm:$0xff]
    %v853 = vld [vmem:[#allocation3 + $0x1b0] sm:$0xff]
    %v854 = vld [vmem:[#allocation3 + $0x1b8] sm:$0xff]
    %v855 = vld [vmem:[#allocation3 + $0x1c0] sm:$0xff]
    %v856 = vld [vmem:[#allocation3 + $0x1c8] sm:$0xff]
    %v857 = vld [vmem:[#allocation3 + $0x1d0] sm:$0xff]
    %v858 = vld [vmem:[#allocation3 + $0x1d8] sm:$0xff]
    %v859 = vld [vmem:[#allocation3 + $0x1e0] sm:$0xff]
    %v860 = vld [vmem:[#allocation3 + $0x1e8] sm:$0xff]
    %v861 = vld [vmem:[#allocation3 + $0x1f0] sm:$0xff]
    %v862 = vld [vmem:[#allocation3 + $0x1f8] sm:$0xff]
    %863 = vmatprep.subr.mxu0 %v800
    %864 = vmatpush1.msra.mxu0 %v799
    %865 = vmatprep.subr.mxu0 %v804
    %866 = vmatpush1.msra.mxu0 %v803
    %867 = vmatprep.subr.mxu0 %v808
    %868 = vmatpush1.msra.mxu0 %v807
    %869 = vmatprep.subr.mxu0 %v812
    %870 = vmatpush1.msra.mxu0 %v811
    %871 = vmatprep.subr.mxu0 %v816
    %872 = vmatpush1.msra.mxu0 %v815
    %873 = vmatprep.subr.mxu0 %v820
    %874 = vmatpush1.msra.mxu0 %v819
    %875 = vmatprep.subr.mxu0 %v824
    %876 = vmatpush1.msra.mxu0 %v823
    %877 = vmatprep.subr.mxu0 %v828
    %878 = vmatpush1.msra.mxu0 %v827
    %879 = vmatprep.subr.mxu0 %v832
    %880 = vmatpush1.msra.mxu0 %v831
    %881 = vmatprep.subr.mxu0 %v836
    %882 = vmatpush1.msra.mxu0 %v835
    %883 = vmatprep.subr.mxu0 %v840
    %884 = vmatpush1.msra.mxu0 %v839
    %885 = vmatprep.subr.mxu0 %v844
    %886 = vmatpush1.msra.mxu0 %v843
    %887 = vmatprep.subr.mxu0 %v848
    %888 = vmatpush1.msra.mxu0 %v847
    %889 = vmatprep.subr.mxu0 %v852
    %890 = vmatpush1.msra.mxu0 %v851
    %891 = vmatprep.subr.mxu0 %v856
    %892 = vmatpush1.msra.mxu0 %v855
    %893 = vmatprep.subr.mxu0 %v860
    %894 = vmatpush1.msra.mxu0 %v859
    %895 = vmatprep.subr.mxu0 0.0
    %896 = vmatpush1.msra.mxu0 0.0
    %897 = vmatprep.subr.mxu0 0.0
    %898 = vmatpush1.msra.mxu0 0.0
    %899 = vmatprep.subr.mxu0 0.0
    %900 = vmatpush1.msra.mxu0 0.0
    %901 = vmatprep.subr.mxu0 0.0
    %902 = vmatpush1.msra.mxu0 0.0
    %903 = vmatprep.subr.mxu0 0.0
    %904 = vmatpush1.msra.mxu0 0.0
    %905 = vmatprep.subr.mxu0 0.0
    %906 = vmatpush1.msra.mxu0 0.0
    %907 = vmatprep.subr.mxu0 0.0
    %908 = vmatpush1.msra.mxu0 0.0
    %909 = vmatprep.subr.mxu0 0.0
    %910 = vmatpush1.msra.mxu0 0.0
    %911 = vmatprep.subr.mxu0 0.0
    %912 = vmatpush1.msra.mxu0 0.0
    %913 = vmatprep.subr.mxu0 0.0
    %914 = vmatpush1.msra.mxu0 0.0
    %915 = vmatprep.subr.mxu0 0.0
    %916 = vmatpush1.msra.mxu0 0.0
    %917 = vmatprep.subr.mxu0 0.0
    %918 = vmatpush1.msra.mxu0 0.0
    %919 = vmatprep.subr.mxu0 0.0
    %920 = vmatpush1.msra.mxu0 0.0
    %921 = vmatprep.subr.mxu0 0.0
    %922 = vmatpush1.msra.mxu0 0.0
    %923 = vmatprep.subr.mxu0 0.0
    %924 = vmatpush1.msra.mxu0 0.0
    %925 = vmatprep.subr.mxu0 0.0
    %926 = vmatpush1.msra.mxu0 0.0
    %927 = vmatprep.mubr.f32.mxu0 0.0
    %928 = vmatmul.mubr.f32.gmra.mrb[0].mxu0 %v484
    %v929 = vpop.f32.mrb[0].mxu0
    %v930 = vadd.f32 0.0, %v929
    %v931 = vpop.f32.mrb[0].mxu0
    %v932 = vadd.f32 0.0, %v931
    %933 = vdwg.mxu0
    %934 = vmatprep.subr.mxu0 %v802
    %935 = vmatpush1.msra.mxu0 %v801
    %936 = vmatprep.subr.mxu0 %v806
    %937 = vmatpush1.msra.mxu0 %v805
    %938 = vmatprep.subr.mxu0 %v810
    %939 = vmatpush1.msra.mxu0 %v809
    %940 = vmatprep.subr.mxu0 %v814
    %941 = vmatpush1.msra.mxu0 %v813
    %942 = vmatprep.subr.mxu0 %v818
    %943 = vmatpush1.msra.mxu0 %v817
    %944 = vmatprep.subr.mxu0 %v822
    %945 = vmatpush1.msra.mxu0 %v821
    %946 = vmatprep.subr.mxu0 %v826
    %947 = vmatpush1.msra.mxu0 %v825
    %948 = vmatprep.subr.mxu0 %v830
    %949 = vmatpush1.msra.mxu0 %v829
    %950 = vmatprep.subr.mxu0 %v834
    %951 = vmatpush1.msra.mxu0 %v833
    %952 = vmatprep.subr.mxu0 %v838
    %953 = vmatpush1.msra.mxu0 %v837
    %954 = vmatprep.subr.mxu0 %v842
    %955 = vmatpush1.msra.mxu0 %v841
    %956 = vmatprep.subr.mxu0 %v846
    %957 = vmatpush1.msra.mxu0 %v845
    %958 = vmatprep.subr.mxu0 %v850
    %959 = vmatpush1.msra.mxu0 %v849
    %960 = vmatprep.subr.mxu0 %v854
    %961 = vmatpush1.msra.mxu0 %v853
    %962 = vmatprep.subr.mxu0 %v858
    %963 = vmatpush1.msra.mxu0 %v857
    %964 = vmatprep.subr.mxu0 %v862
    %965 = vmatpush1.msra.mxu0 %v861
    %966 = vmatprep.subr.mxu0 0.0
    %967 = vmatpush1.msra.mxu0 0.0
    %968 = vmatprep.subr.mxu0 0.0
    %969 = vmatpush1.msra.mxu0 0.0
    %970 = vmatprep.subr.mxu0 0.0
    %971 = vmatpush1.msra.mxu0 0.0
    %972 = vmatprep.subr.mxu0 0.0
    %973 = vmatpush1.msra.mxu0 0.0
    %974 = vmatprep.subr.mxu0 0.0
    %975 = vmatpush1.msra.mxu0 0.0
    %976 = vmatprep.subr.mxu0 0.0
    %977 = vmatpush1.msra.mxu0 0.0
    %978 = vmatprep.subr.mxu0 0.0
    %979 = vmatpush1.msra.mxu0 0.0
    %980 = vmatprep.subr.mxu0 0.0
    %981 = vmatpush1.msra.mxu0 0.0
    %982 = vmatprep.subr.mxu0 0.0
    %983 = vmatpush1.msra.mxu0 0.0
    %984 = vmatprep.subr.mxu0 0.0
    %985 = vmatpush1.msra.mxu0 0.0
    %986 = vmatprep.subr.mxu0 0.0
    %987 = vmatpush1.msra.mxu0 0.0
    %988 = vmatprep.subr.mxu0 0.0
    %989 = vmatpush1.msra.mxu0 0.0
    %990 = vmatprep.subr.mxu0 0.0
    %991 = vmatpush1.msra.mxu0 0.0
    %992 = vmatprep.subr.mxu0 0.0
    %993 = vmatpush1.msra.mxu0 0.0
    %994 = vmatprep.subr.mxu0 0.0
    %995 = vmatpush1.msra.mxu0 0.0
    %996 = vmatprep.subr.mxu0 0.0
    %997 = vmatpush1.msra.mxu0 0.0
    %998 = vmatprep.mubr.f32.mxu0 0.0
    %999 = vmatmul.mubr.f32.gmra.mrb[0].mxu0 %v484
    %v1000 = vpop.f32.mrb[0].mxu0
    %v1001 = vadd.f32 0.0, %v1000
    %v1002 = vpop.f32.mrb[0].mxu0
    %v1003 = vadd.f32 0.0, %v1002
    %1004 = vdwg.mxu0
    %1005 = vmatprep.subr.mxu0 %v736
    %1006 = vmatpush1.msra.mxu0 %v735
    %1007 = vmatprep.subr.mxu0 %v740
    %1008 = vmatpush1.msra.mxu0 %v739
    %1009 = vmatprep.subr.mxu0 %v744
    %1010 = vmatpush1.msra.mxu0 %v743
    %1011 = vmatprep.subr.mxu0 %v748
    %1012 = vmatpush1.msra.mxu0 %v747
    %1013 = vmatprep.subr.mxu0 %v752
    %1014 = vmatpush1.msra.mxu0 %v751
    %1015 = vmatprep.subr.mxu0 %v756
    %1016 = vmatpush1.msra.mxu0 %v755
    %1017 = vmatprep.subr.mxu0 %v760
    %1018 = vmatpush1.msra.mxu0 %v759
    %1019 = vmatprep.subr.mxu0 %v764
    %1020 = vmatpush1.msra.mxu0 %v763
    %1021 = vmatprep.subr.mxu0 %v768
    %1022 = vmatpush1.msra.mxu0 %v767
    %1023 = vmatprep.subr.mxu0 %v772
    %1024 = vmatpush1.msra.mxu0 %v771
    %1025 = vmatprep.subr.mxu0 %v776
    %1026 = vmatpush1.msra.mxu0 %v775
    %1027 = vmatprep.subr.mxu0 %v780
    %1028 = vmatpush1.msra.mxu0 %v779
    %1029 = vmatprep.subr.mxu0 %v784
    %1030 = vmatpush1.msra.mxu0 %v783
    %1031 = vmatprep.subr.mxu0 %v788
    %1032 = vmatpush1.msra.mxu0 %v787
    %1033 = vmatprep.subr.mxu0 %v792
    %1034 = vmatpush1.msra.mxu0 %v791
    %1035 = vmatprep.subr.mxu0 %v796
    %1036 = vmatpush1.msra.mxu0 %v795
    %1037 = vmatprep.subr.mxu0 0.0
    %1038 = vmatpush1.msra.mxu0 0.0
    %1039 = vmatprep.subr.mxu0 0.0
    %1040 = vmatpush1.msra.mxu0 0.0
    %1041 = vmatprep.subr.mxu0 0.0
    %1042 = vmatpush1.msra.mxu0 0.0
    %1043 = vmatprep.subr.mxu0 0.0
    %1044 = vmatpush1.msra.mxu0 0.0
    %1045 = vmatprep.subr.mxu0 0.0
    %1046 = vmatpush1.msra.mxu0 0.0
    %1047 = vmatprep.subr.mxu0 0.0
    %1048 = vmatpush1.msra.mxu0 0.0
    %1049 = vmatprep.subr.mxu0 0.0
    %1050 = vmatpush1.msra.mxu0 0.0
    %1051 = vmatprep.subr.mxu0 0.0
    %1052 = vmatpush1.msra.mxu0 0.0
    %1053 = vmatprep.subr.mxu0 0.0
    %1054 = vmatpush1.msra.mxu0 0.0
    %1055 = vmatprep.subr.mxu0 0.0
    %1056 = vmatpush1.msra.mxu0 0.0
    %1057 = vmatprep.subr.mxu0 0.0
    %1058 = vmatpush1.msra.mxu0 0.0
    %1059 = vmatprep.subr.mxu0 0.0
    %1060 = vmatpush1.msra.mxu0 0.0
    %1061 = vmatprep.subr.mxu0 0.0
    %1062 = vmatpush1.msra.mxu0 0.0
    %1063 = vmatprep.subr.mxu0 0.0
    %1064 = vmatpush1.msra.mxu0 0.0
    %1065 = vmatprep.subr.mxu0 0.0
    %1066 = vmatpush1.msra.mxu0 0.0
    %1067 = vmatprep.subr.mxu0 0.0
    %1068 = vmatpush1.msra.mxu0 0.0
    %1069 = vmatprep.mubr.f32.mxu0 0.0
    %1070 = vmatmul.mubr.f32.gmra.mrb[0].mxu0 %v732
    %v1071 = vpop.f32.mrb[0].mxu0
    %v1072 = vadd.f32 %v930, %v1071
    %v1073 = vpop.f32.mrb[0].mxu0
    %v1074 = vadd.f32 %v932, %v1073
    %1075 = vdwg.mxu0
    %1076 = vmatprep.subr.mxu0 %v738
    %1077 = vmatpush1.msra.mxu0 %v737
    %1078 = vmatprep.subr.mxu0 %v742
    %1079 = vmatpush1.msra.mxu0 %v741
    %1080 = vmatprep.subr.mxu0 %v746
    %1081 = vmatpush1.msra.mxu0 %v745
    %1082 = vmatprep.subr.mxu0 %v750
    %1083 = vmatpush1.msra.mxu0 %v749
    %1084 = vmatprep.subr.mxu0 %v754
    %1085 = vmatpush1.msra.mxu0 %v753
    %1086 = vmatprep.subr.mxu0 %v758
    %1087 = vmatpush1.msra.mxu0 %v757
    %1088 = vmatprep.subr.mxu0 %v762
    %1089 = vmatpush1.msra.mxu0 %v761
    %1090 = vmatprep.subr.mxu0 %v766
    %1091 = vmatpush1.msra.mxu0 %v765
    %1092 = vmatprep.subr.mxu0 %v770
    %1093 = vmatpush1.msra.mxu0 %v769
    %1094 = vmatprep.subr.mxu0 %v774
    %1095 = vmatpush1.msra.mxu0 %v773
    %1096 = vmatprep.subr.mxu0 %v778
    %1097 = vmatpush1.msra.mxu0 %v777
    %1098 = vmatprep.subr.mxu0 %v782
    %1099 = vmatpush1.msra.mxu0 %v781
    %1100 = vmatprep.subr.mxu0 %v786
    %1101 = vmatpush1.msra.mxu0 %v785
    %1102 = vmatprep.subr.mxu0 %v790
    %1103 = vmatpush1.msra.mxu0 %v789
    %1104 = vmatprep.subr.mxu0 %v794
    %1105 = vmatpush1.msra.mxu0 %v793
    %1106 = vmatprep.subr.mxu0 %v798
    %1107 = vmatpush1.msra.mxu0 %v797
    %1108 = vmatprep.subr.mxu0 0.0
    %1109 = vmatpush1.msra.mxu0 0.0
    %1110 = vmatprep.subr.mxu0 0.0
    %1111 = vmatpush1.msra.mxu0 0.0
    %1112 = vmatprep.subr.mxu0 0.0
    %1113 = vmatpush1.msra.mxu0 0.0
    %1114 = vmatprep.subr.mxu0 0.0
    %1115 = vmatpush1.msra.mxu0 0.0
    %1116 = vmatprep.subr.mxu0 0.0
    %1117 = vmatpush1.msra.mxu0 0.0
    %1118 = vmatprep.subr.mxu0 0.0
    %1119 = vmatpush1.msra.mxu0 0.0
    %1120 = vmatprep.subr.mxu0 0.0
    %1121 = vmatpush1.msra.mxu0 0.0
    %1122 = vmatprep.subr.mxu0 0.0
    %1123 = vmatpush1.msra.mxu0 0.0
    %1124 = vmatprep.subr.mxu0 0.0
    %1125 = vmatpush1.msra.mxu0 0.0
    %1126 = vmatprep.subr.mxu0 0.0
    %1127 = vmatpush1.msra.mxu0 0.0
    %1128 = vmatprep.subr.mxu0 0.0
    %1129 = vmatpush1.msra.mxu0 0.0
    %1130 = vmatprep.subr.mxu0 0.0
    %1131 = vmatpush1.msra.mxu0 0.0
    %1132 = vmatprep.subr.mxu0 0.0
    %1133 = vmatpush1.msra.mxu0 0.0
    %1134 = vmatprep.subr.mxu0 0.0
    %1135 = vmatpush1.msra.mxu0 0.0
    %1136 = vmatprep.subr.mxu0 0.0
    %1137 = vmatpush1.msra.mxu0 0.0
    %1138 = vmatprep.subr.mxu0 0.0
    %1139 = vmatpush1.msra.mxu0 0.0
    %1140 = vmatprep.mubr.f32.mxu0 0.0
    %1141 = vmatmul.mubr.f32.gmra.mrb[0].mxu0 %v732
    %v1142 = vpop.f32.mrb[0].mxu0
    %v1143 = vadd.f32 %v1001, %v1142
    %v1144 = vpop.f32.mrb[0].mxu0
    %v1145 = vadd.f32 %v1003, %v1144
    %1146 = vdwg.mxu0
    %v1147 = vadd.f32 %v1072, %v311
    %v1148 = vadd.f32 %v1074, %v315
    %v1149 = vadd.f32 %v1143, %v319
    %v1150 = vadd.f32 %v1145, %v323
    %v1151 = vxor.u32 %v1147, 2147483648
    %v1152 = vxor.u32 %v1148, 2147483648
    %v1153 = vxor.u32 %v1149, 2147483648
    %v1154 = vmul.f32 %v1151, 1.442695
    %v1155 = vpow.pop %v1154
    %v1156 = vmul.f32 %v1152, 1.442695
    %v1157 = vpow.pop %v1156
    %v1158 = vmul.f32 %v1153, 1.442695
    %v1159 = vpow.pop %v1158
    %v1160 = vadd.f32 %v1155, 1.0
    %v1161 = vadd.f32 %v1157, 1.0
    %v1162 = vadd.f32 %v1159, 1.0
    %v1163 = vrcp.pop %v1160
    %v1164 = vmul.f32 1.0, %v1163
    %v1165 = vrcp.pop %v1161
    %v1166 = vmul.f32 1.0, %v1165
    %v1167 = vrcp.pop %v1162
    %v1168 = vmul.f32 1.0, %v1167
    %v1169 = vtanh.pop %v1150
    %v1170 = vmul.f32 %v1166, %v482
    %v1171 = vmul.f32 %v1164, %v1169
    %v1172 = vadd.f32 %v1170, %v1171
    %v1173 = vtanh.pop %v1172
    %v1174 = vmul.f32 %v1168, %v1173
    %v1175 = vmul.f32 %v1174, %v489
    %1176 = vadd.xlane.f32.xlu0 %v1175
    %v1177 = vpop.xlane.xlu0 %1176
    %v1178 = vadd.f32 %v1177, %v498
    %1180 = vrot.lane.b32.xlu0 %v1178, 1
    %v1181 = vpop.permute.xlu0 %1180
    %vm1183 = vcmask 15368
    %1184 = vst.msk [vmem:[#allocation11] sm:$0xff] %vm1183, %v1181
    %v1185 = vld [vmem:[#allocation9] sm:$0xff]
    %v1186 = vld [vmem:[#allocation9 + $0x8] sm:$0xff]
    %v1187 = vld [vmem:[#allocation9 + $0x10] sm:$0xff]
    %v1188 = vld [vmem:[#allocation9 + $0x18] sm:$0xff]
    %v1189 = vld [vmem:[#allocation9 + $0x20] sm:$0xff]
    %v1190 = vld [vmem:[#allocation9 + $0x28] sm:$0xff]
    %v1191 = vld [vmem:[#allocation9 + $0x30] sm:$0xff]
    %v1192 = vld [vmem:[#allocation9 + $0x38] sm:$0xff]
    %v1193 = vld [vmem:[#allocation9 + $0x40] sm:$0xff]
    %v1194 = vld [vmem:[#allocation9 + $0x48] sm:$0xff]
    %v1195 = vld [vmem:[#allocation9 + $0x50] sm:$0xff]
    %v1196 = vld [vmem:[#allocation9 + $0x58] sm:$0xff]
    %v1197 = vld [vmem:[#allocation9 + $0x60] sm:$0xff]
    %v1198 = vld [vmem:[#allocation9 + $0x68] sm:$0xff]
    %v1199 = vld [vmem:[#allocation9 + $0x70] sm:$0xff]
    %v1200 = vld [vmem:[#allocation9 + $0x78] sm:$0xff]
    %v1201 = vld [vmem:[#allocation9 + $0x80] sm:$0xff]
    %v1202 = vld [vmem:[#allocation9 + $0x88] sm:$0xff]
    %v1203 = vld [vmem:[#allocation9 + $0x90] sm:$0xff]
    %v1204 = vld [vmem:[#allocation9 + $0x98] sm:$0xff]
    %v1205 = vld [vmem:[#allocation9 + $0xa0] sm:$0xff]
    %v1206 = vld [vmem:[#allocation9 + $0xa8] sm:$0xff]
    %v1207 = vld [vmem:[#allocation9 + $0xb0] sm:$0xff]
    %v1208 = vld [vmem:[#allocation9 + $0xb8] sm:$0xff]
    %v1209 = vld [vmem:[#allocation9 + $0xc0] sm:$0xff]
    %v1210 = vld [vmem:[#allocation9 + $0xc8] sm:$0xff]
    %v1211 = vld [vmem:[#allocation9 + $0xd0] sm:$0xff]
    %v1212 = vld [vmem:[#allocation9 + $0xd8] sm:$0xff]
    %v1213 = vld [vmem:[#allocation9 + $0xe0] sm:$0xff]
    %v1214 = vld [vmem:[#allocation9 + $0xe8] sm:$0xff]
    %v1215 = vld [vmem:[#allocation9 + $0xf0] sm:$0xff]
    %v1216 = vld [vmem:[#allocation9 + $0xf8] sm:$0xff]
    %v1217 = vld [vmem:[#allocation9 + $0x100] sm:$0xff]
    %v1218 = vld [vmem:[#allocation9 + $0x108] sm:$0xff]
    %v1219 = vld [vmem:[#allocation9 + $0x110] sm:$0xff]
    %v1220 = vld [vmem:[#allocation9 + $0x118] sm:$0xff]
    %v1221 = vld [vmem:[#allocation9 + $0x120] sm:$0xff]
    %v1222 = vld [vmem:[#allocation9 + $0x128] sm:$0xff]
    %v1223 = vld [vmem:[#allocation9 + $0x130] sm:$0xff]
    %v1224 = vld [vmem:[#allocation9 + $0x138] sm:$0xff]
    %v1225 = vld [vmem:[#allocation9 + $0x140] sm:$0xff]
    %v1226 = vld [vmem:[#allocation9 + $0x148] sm:$0xff]
    %v1227 = vld [vmem:[#allocation9 + $0x150] sm:$0xff]
    %v1228 = vld [vmem:[#allocation9 + $0x158] sm:$0xff]
    %v1229 = vld [vmem:[#allocation9 + $0x160] sm:$0xff]
    %v1230 = vld [vmem:[#allocation9 + $0x168] sm:$0xff]
    %v1231 = vld [vmem:[#allocation9 + $0x170] sm:$0xff]
    %v1232 = vld [vmem:[#allocation9 + $0x178] sm:$0xff]
    %v1233 = vld [vmem:[#allocation9 + $0x180] sm:$0xff]
    %v1234 = vld [vmem:[#allocation9 + $0x188] sm:$0xff]
    %v1235 = vld [vmem:[#allocation9 + $0x190] sm:$0xff]
    %v1236 = vld [vmem:[#allocation9 + $0x198] sm:$0xff]
    %v1237 = vld [vmem:[#allocation9 + $0x1a0] sm:$0xff]
    %v1238 = vld [vmem:[#allocation9 + $0x1a8] sm:$0xff]
    %v1239 = vld [vmem:[#allocation9 + $0x1b0] sm:$0xff]
    %v1240 = vld [vmem:[#allocation9 + $0x1b8] sm:$0xff]
    %v1241 = vld [vmem:[#allocation9 + $0x1c0] sm:$0xff]
    %v1242 = vld [vmem:[#allocation9 + $0x1c8] sm:$0xff]
    %v1243 = vld [vmem:[#allocation9 + $0x1d0] sm:$0xff]
    %v1244 = vld [vmem:[#allocation9 + $0x1d8] sm:$0xff]
    %v1245 = vld [vmem:[#allocation9 + $0x1e0] sm:$0xff]
    %v1246 = vld [vmem:[#allocation9 + $0x1e8] sm:$0xff]
    %v1247 = vld [vmem:[#allocation9 + $0x1f0] sm:$0xff]
    %v1248 = vld [vmem:[#allocation9 + $0x1f8] sm:$0xff]
    %1249 = vmatprep.subr.mxu0 %v1186
    %1250 = vmatpush1.msra.mxu0 %v1185
    %1251 = vmatprep.subr.mxu0 %v1190
    %1252 = vmatpush1.msra.mxu0 %v1189
    %1253 = vmatprep.subr.mxu0 %v1194
    %1254 = vmatpush1.msra.mxu0 %v1193
    %1255 = vmatprep.subr.mxu0 %v1198
    %1256 = vmatpush1.msra.mxu0 %v1197
    %1257 = vmatprep.subr.mxu0 %v1202
    %1258 = vmatpush1.msra.mxu0 %v1201
    %1259 = vmatprep.subr.mxu0 %v1206
    %1260 = vmatpush1.msra.mxu0 %v1205
    %1261 = vmatprep.subr.mxu0 %v1210
    %1262 = vmatpush1.msra.mxu0 %v1209
    %1263 = vmatprep.subr.mxu0 %v1214
    %1264 = vmatpush1.msra.mxu0 %v1213
    %1265 = vmatprep.subr.mxu0 %v1218
    %1266 = vmatpush1.msra.mxu0 %v1217
    %1267 = vmatprep.subr.mxu0 %v1222
    %1268 = vmatpush1.msra.mxu0 %v1221
    %1269 = vmatprep.subr.mxu0 %v1226
    %1270 = vmatpush1.msra.mxu0 %v1225
    %1271 = vmatprep.subr.mxu0 %v1230
    %1272 = vmatpush1.msra.mxu0 %v1229
    %1273 = vmatprep.subr.mxu0 %v1234
    %1274 = vmatpush1.msra.mxu0 %v1233
    %1275 = vmatprep.subr.mxu0 %v1238
    %1276 = vmatpush1.msra.mxu0 %v1237
    %1277 = vmatprep.subr.mxu0 %v1242
    %1278 = vmatpush1.msra.mxu0 %v1241
    %1279 = vmatprep.subr.mxu0 %v1246
    %1280 = vmatpush1.msra.mxu0 %v1245
    %1281 = vmatprep.subr.mxu0 0.0
    %1282 = vmatpush1.msra.mxu0 0.0
    %1283 = vmatprep.subr.mxu0 0.0
    %1284 = vmatpush1.msra.mxu0 0.0
    %1285 = vmatprep.subr.mxu0 0.0
    %1286 = vmatpush1.msra.mxu0 0.0
    %1287 = vmatprep.subr.mxu0 0.0
    %1288 = vmatpush1.msra.mxu0 0.0
    %1289 = vmatprep.subr.mxu0 0.0
    %1290 = vmatpush1.msra.mxu0 0.0
    %1291 = vmatprep.subr.mxu0 0.0
    %1292 = vmatpush1.msra.mxu0 0.0
    %1293 = vmatprep.subr.mxu0 0.0
    %1294 = vmatpush1.msra.mxu0 0.0
    %1295 = vmatprep.subr.mxu0 0.0
    %1296 = vmatpush1.msra.mxu0 0.0
    %1297 = vmatprep.subr.mxu0 0.0
    %1298 = vmatpush1.msra.mxu0 0.0
    %1299 = vmatprep.subr.mxu0 0.0
    %1300 = vmatpush1.msra.mxu0 0.0
    %1301 = vmatprep.subr.mxu0 0.0
    %1302 = vmatpush1.msra.mxu0 0.0
    %1303 = vmatprep.subr.mxu0 0.0
    %1304 = vmatpush1.msra.mxu0 0.0
    %1305 = vmatprep.subr.mxu0 0.0
    %1306 = vmatpush1.msra.mxu0 0.0
    %1307 = vmatprep.subr.mxu0 0.0
    %1308 = vmatpush1.msra.mxu0 0.0
    %1309 = vmatprep.subr.mxu0 0.0
    %1310 = vmatpush1.msra.mxu0 0.0
    %1311 = vmatprep.subr.mxu0 0.0
    %1312 = vmatpush1.msra.mxu0 0.0
    %1313 = vmatprep.mubr.f32.mxu0 0.0
    %1314 = vmatmul.mubr.f32.gmra.mrb[0].mxu0 %v732
    %v1315 = vpop.f32.mrb[0].mxu0
    %v1316 = vadd.f32 %v159, %v1315
    %v1317 = vpop.f32.mrb[0].mxu0
    %v1318 = vadd.f32 %v160, %v1317
    %1319 = vdwg.mxu0
    %1320 = vmatprep.subr.mxu0 %v1188
    %1321 = vmatpush1.msra.mxu0 %v1187
    %1322 = vmatprep.subr.mxu0 %v1192
    %1323 = vmatpush1.msra.mxu0 %v1191
    %1324 = vmatprep.subr.mxu0 %v1196
    %1325 = vmatpush1.msra.mxu0 %v1195
    %1326 = vmatprep.subr.mxu0 %v1200
    %1327 = vmatpush1.msra.mxu0 %v1199
    %1328 = vmatprep.subr.mxu0 %v1204
    %1329 = vmatpush1.msra.mxu0 %v1203
    %1330 = vmatprep.subr.mxu0 %v1208
    %1331 = vmatpush1.msra.mxu0 %v1207
    %1332 = vmatprep.subr.mxu0 %v1212
    %1333 = vmatpush1.msra.mxu0 %v1211
    %1334 = vmatprep.subr.mxu0 %v1216
    %1335 = vmatpush1.msra.mxu0 %v1215
    %1336 = vmatprep.subr.mxu0 %v1220
    %1337 = vmatpush1.msra.mxu0 %v1219
    %1338 = vmatprep.subr.mxu0 %v1224
    %1339 = vmatpush1.msra.mxu0 %v1223
    %1340 = vmatprep.subr.mxu0 %v1228
    %1341 = vmatpush1.msra.mxu0 %v1227
    %1342 = vmatprep.subr.mxu0 %v1232
    %1343 = vmatpush1.msra.mxu0 %v1231
    %1344 = vmatprep.subr.mxu0 %v1236
    %1345 = vmatpush1.msra.mxu0 %v1235
    %1346 = vmatprep.subr.mxu0 %v1240
    %1347 = vmatpush1.msra.mxu0 %v1239
    %1348 = vmatprep.subr.mxu0 %v1244
    %1349 = vmatpush1.msra.mxu0 %v1243
    %1350 = vmatprep.subr.mxu0 %v1248
    %1351 = vmatpush1.msra.mxu0 %v1247
    %1352 = vmatprep.subr.mxu0 0.0
    %1353 = vmatpush1.msra.mxu0 0.0
    %1354 = vmatprep.subr.mxu0 0.0
    %1355 = vmatpush1.msra.mxu0 0.0
    %1356 = vmatprep.subr.mxu0 0.0
    %1357 = vmatpush1.msra.mxu0 0.0
    %1358 = vmatprep.subr.mxu0 0.0
    %1359 = vmatpush1.msra.mxu0 0.0
    %1360 = vmatprep.subr.mxu0 0.0
    %1361 = vmatpush1.msra.mxu0 0.0
    %1362 = vmatprep.subr.mxu0 0.0
    %1363 = vmatpush1.msra.mxu0 0.0
    %1364 = vmatprep.subr.mxu0 0.0
    %1365 = vmatpush1.msra.mxu0 0.0
    %1366 = vmatprep.subr.mxu0 0.0
    %1367 = vmatpush1.msra.mxu0 0.0
    %1368 = vmatprep.subr.mxu0 0.0
    %1369 = vmatpush1.msra.mxu0 0.0
    %1370 = vmatprep.subr.mxu0 0.0
    %1371 = vmatpush1.msra.mxu0 0.0
    %1372 = vmatprep.subr.mxu0 0.0
    %1373 = vmatpush1.msra.mxu0 0.0
    %1374 = vmatprep.subr.mxu0 0.0
    %1375 = vmatpush1.msra.mxu0 0.0
    %1376 = vmatprep.subr.mxu0 0.0
    %1377 = vmatpush1.msra.mxu0 0.0
    %1378 = vmatprep.subr.mxu0 0.0
    %1379 = vmatpush1.msra.mxu0 0.0
    %1380 = vmatprep.subr.mxu0 0.0
    %1381 = vmatpush1.msra.mxu0 0.0
    %1382 = vmatprep.subr.mxu0 0.0
    %1383 = vmatpush1.msra.mxu0 0.0
    %1384 = vmatprep.mubr.f32.mxu0 0.0
    %1385 = vmatmul.mubr.f32.gmra.mrb[0].mxu0 %v732
    %v1386 = vpop.f32.mrb[0].mxu0
    %v1387 = vadd.f32 %v161, %v1386
    %v1388 = vpop.f32.mrb[0].mxu0
    %v1389 = vadd.f32 %v162, %v1388
    %1390 = vdwg.mxu0
    %v1391 = vxor.u32 %v1316, 2147483648
    %v1392 = vxor.u32 %v1318, 2147483648
    %v1393 = vxor.u32 %v1387, 2147483648
    %v1394 = vmul.f32 %v1391, 1.442695
    %v1395 = vpow.pop %v1394
    %v1396 = vmul.f32 %v1392, 1.442695
    %v1397 = vpow.pop %v1396
    %v1398 = vmul.f32 %v1393, 1.442695
    %v1399 = vpow.pop %v1398
    %v1400 = vadd.f32 %v1395, 1.0
    %v1401 = vadd.f32 %v1397, 1.0
    %v1402 = vadd.f32 %v1399, 1.0
    %v1403 = vrcp.pop %v1400
    %v1404 = vmul.f32 1.0, %v1403
    %v1405 = vrcp.pop %v1401
    %v1406 = vmul.f32 1.0, %v1405
    %v1407 = vrcp.pop %v1402
    %v1408 = vmul.f32 1.0, %v1407
    %v1409 = vtanh.pop %v1389
    %v1410 = vmul.f32 %v1406, %v730
    %v1411 = vmul.f32 %v1404, %v1409
    %v1412 = vadd.f32 %v1410, %v1411
    %v1413 = vtanh.pop %v1412
    %v1414 = vmul.f32 %v1408, %v1413
    %v1415 = vld [vmem:[#allocation2] sm:$0xff]
    %v1416 = vld [vmem:[#allocation2 + $0x8] sm:$0xff]
    %v1417 = vld [vmem:[#allocation2 + $0x10] sm:$0xff]
    %v1418 = vld [vmem:[#allocation2 + $0x18] sm:$0xff]
    %v1419 = vld [vmem:[#allocation2 + $0x20] sm:$0xff]
    %v1420 = vld [vmem:[#allocation2 + $0x28] sm:$0xff]
    %v1421 = vld [vmem:[#allocation2 + $0x30] sm:$0xff]
    %v1422 = vld [vmem:[#allocation2 + $0x38] sm:$0xff]
    %v1423 = vld [vmem:[#allocation2 + $0x40] sm:$0xff]
    %v1424 = vld [vmem:[#allocation2 + $0x48] sm:$0xff]
    %v1425 = vld [vmem:[#allocation2 + $0x50] sm:$0xff]
    %v1426 = vld [vmem:[#allocation2 + $0x58] sm:$0xff]
    %v1427 = vld [vmem:[#allocation2 + $0x60] sm:$0xff]
    %v1428 = vld [vmem:[#allocation2 + $0x68] sm:$0xff]
    %v1429 = vld [vmem:[#allocation2 + $0x70] sm:$0xff]
    %v1430 = vld [vmem:[#allocation2 + $0x78] sm:$0xff]
    %v1431 = vld [vmem:[#allocation2 + $0x80] sm:$0xff]
    %v1432 = vld [vmem:[#allocation2 + $0x88] sm:$0xff]
    %v1433 = vld [vmem:[#allocation2 + $0x90] sm:$0xff]
    %v1434 = vld [vmem:[#allocation2 + $0x98] sm:$0xff]
    %v1435 = vld [vmem:[#allocation2 + $0xa0] sm:$0xff]
    %v1436 = vld [vmem:[#allocation2 + $0xa8] sm:$0xff]
    %v1437 = vld [vmem:[#allocation2 + $0xb0] sm:$0xff]
    %v1438 = vld [vmem:[#allocation2 + $0xb8] sm:$0xff]
    %v1439 = vld [vmem:[#allocation2 + $0xc0] sm:$0xff]
    %v1440 = vld [vmem:[#allocation2 + $0xc8] sm:$0xff]
    %v1441 = vld [vmem:[#allocation2 + $0xd0] sm:$0xff]
    %v1442 = vld [vmem:[#allocation2 + $0xd8] sm:$0xff]
    %v1443 = vld [vmem:[#allocation2 + $0xe0] sm:$0xff]
    %v1444 = vld [vmem:[#allocation2 + $0xe8] sm:$0xff]
    %v1445 = vld [vmem:[#allocation2 + $0xf0] sm:$0xff]
    %v1446 = vld [vmem:[#allocation2 + $0xf8] sm:$0xff]
    %v1447 = vld [vmem:[#allocation2 + $0x100] sm:$0xff]
    %v1448 = vld [vmem:[#allocation2 + $0x108] sm:$0xff]
    %v1449 = vld [vmem:[#allocation2 + $0x110] sm:$0xff]
    %v1450 = vld [vmem:[#allocation2 + $0x118] sm:$0xff]
    %v1451 = vld [vmem:[#allocation2 + $0x120] sm:$0xff]
    %v1452 = vld [vmem:[#allocation2 + $0x128] sm:$0xff]
    %v1453 = vld [vmem:[#allocation2 + $0x130] sm:$0xff]
    %v1454 = vld [vmem:[#allocation2 + $0x138] sm:$0xff]
    %v1455 = vld [vmem:[#allocation2 + $0x140] sm:$0xff]
    %v1456 = vld [vmem:[#allocation2 + $0x148] sm:$0xff]
    %v1457 = vld [vmem:[#allocation2 + $0x150] sm:$0xff]
    %v1458 = vld [vmem:[#allocation2 + $0x158] sm:$0xff]
    %v1459 = vld [vmem:[#allocation2 + $0x160] sm:$0xff]
    %v1460 = vld [vmem:[#allocation2 + $0x168] sm:$0xff]
    %v1461 = vld [vmem:[#allocation2 + $0x170] sm:$0xff]
    %v1462 = vld [vmem:[#allocation2 + $0x178] sm:$0xff]
    %v1463 = vld [vmem:[#allocation2 + $0x180] sm:$0xff]
    %v1464 = vld [vmem:[#allocation2 + $0x188] sm:$0xff]
    %v1465 = vld [vmem:[#allocation2 + $0x190] sm:$0xff]
    %v1466 = vld [vmem:[#allocation2 + $0x198] sm:$0xff]
    %v1467 = vld [vmem:[#allocation2 + $0x1a0] sm:$0xff]
    %v1468 = vld [vmem:[#allocation2 + $0x1a8] sm:$0xff]
    %v1469 = vld [vmem:[#allocation2 + $0x1b0] sm:$0xff]
    %v1470 = vld [vmem:[#allocation2 + $0x1b8] sm:$0xff]
    %v1471 = vld [vmem:[#allocation2 + $0x1c0] sm:$0xff]
    %v1472 = vld [vmem:[#allocation2 + $0x1c8] sm:$0xff]
    %v1473 = vld [vmem:[#allocation2 + $0x1d0] sm:$0xff]
    %v1474 = vld [vmem:[#allocation2 + $0x1d8] sm:$0xff]
    %v1475 = vld [vmem:[#allocation2 + $0x1e0] sm:$0xff]
    %v1476 = vld [vmem:[#allocation2 + $0x1e8] sm:$0xff]
    %v1477 = vld [vmem:[#allocation2 + $0x1f0] sm:$0xff]
    %v1478 = vld [vmem:[#allocation2 + $0x1f8] sm:$0xff]
    %v1479 = vld [vmem:[#allocation3] sm:$0xff]
    %v1480 = vld [vmem:[#allocation3 + $0x8] sm:$0xff]
    %v1481 = vld [vmem:[#allocation3 + $0x10] sm:$0xff]
    %v1482 = vld [vmem:[#allocation3 + $0x18] sm:$0xff]
    %v1483 = vld [vmem:[#allocation3 + $0x20] sm:$0xff]
    %v1484 = vld [vmem:[#allocation3 + $0x28] sm:$0xff]
    %v1485 = vld [vmem:[#allocation3 + $0x30] sm:$0xff]
    %v1486 = vld [vmem:[#allocation3 + $0x38] sm:$0xff]
    %v1487 = vld [vmem:[#allocation3 + $0x40] sm:$0xff]
    %v1488 = vld [vmem:[#allocation3 + $0x48] sm:$0xff]
    %v1489 = vld [vmem:[#allocation3 + $0x50] sm:$0xff]
    %v1490 = vld [vmem:[#allocation3 + $0x58] sm:$0xff]
    %v1491 = vld [vmem:[#allocation3 + $0x60] sm:$0xff]
    %v1492 = vld [vmem:[#allocation3 + $0x68] sm:$0xff]
    %v1493 = vld [vmem:[#allocation3 + $0x70] sm:$0xff]
    %v1494 = vld [vmem:[#allocation3 + $0x78] sm:$0xff]
    %v1495 = vld [vmem:[#allocation3 + $0x80] sm:$0xff]
    %v1496 = vld [vmem:[#allocation3 + $0x88] sm:$0xff]
    %v1497 = vld [vmem:[#allocation3 + $0x90] sm:$0xff]
    %v1498 = vld [vmem:[#allocation3 + $0x98] sm:$0xff]
    %v1499 = vld [vmem:[#allocation3 + $0xa0] sm:$0xff]
    %v1500 = vld [vmem:[#allocation3 + $0xa8] sm:$0xff]
    %v1501 = vld [vmem:[#allocation3 + $0xb0] sm:$0xff]
    %v1502 = vld [vmem:[#allocation3 + $0xb8] sm:$0xff]
    %v1503 = vld [vmem:[#allocation3 + $0xc0] sm:$0xff]
    %v1504 = vld [vmem:[#allocation3 + $0xc8] sm:$0xff]
    %v1505 = vld [vmem:[#allocation3 + $0xd0] sm:$0xff]
    %v1506 = vld [vmem:[#allocation3 + $0xd8] sm:$0xff]
    %v1507 = vld [vmem:[#allocation3 + $0xe0] sm:$0xff]
    %v1508 = vld [vmem:[#allocation3 + $0xe8] sm:$0xff]
    %v1509 = vld [vmem:[#allocation3 + $0xf0] sm:$0xff]
    %v1510 = vld [vmem:[#allocation3 + $0xf8] sm:$0xff]
    %v1511 = vld [vmem:[#allocation3 + $0x100] sm:$0xff]
    %v1512 = vld [vmem:[#allocation3 + $0x108] sm:$0xff]
    %v1513 = vld [vmem:[#allocation3 + $0x110] sm:$0xff]
    %v1514 = vld [vmem:[#allocation3 + $0x118] sm:$0xff]
    %v1515 = vld [vmem:[#allocation3 + $0x120] sm:$0xff]
    %v1516 = vld [vmem:[#allocation3 + $0x128] sm:$0xff]
    %v1517 = vld [vmem:[#allocation3 + $0x130] sm:$0xff]
    %v1518 = vld [vmem:[#allocation3 + $0x138] sm:$0xff]
    %v1519 = vld [vmem:[#allocation3 + $0x140] sm:$0xff]
    %v1520 = vld [vmem:[#allocation3 + $0x148] sm:$0xff]
    %v1521 = vld [vmem:[#allocation3 + $0x150] sm:$0xff]
    %v1522 = vld [vmem:[#allocation3 + $0x158] sm:$0xff]
    %v1523 = vld [vmem:[#allocation3 + $0x160] sm:$0xff]
    %v1524 = vld [vmem:[#allocation3 + $0x168] sm:$0xff]
    %v1525 = vld [vmem:[#allocation3 + $0x170] sm:$0xff]
    %v1526 = vld [vmem:[#allocation3 + $0x178] sm:$0xff]
    %v1527 = vld [vmem:[#allocation3 + $0x180] sm:$0xff]
    %v1528 = vld [vmem:[#allocation3 + $0x188] sm:$0xff]
    %v1529 = vld [vmem:[#allocation3 + $0x190] sm:$0xff]
    %v1530 = vld [vmem:[#allocation3 + $0x198] sm:$0xff]
    %v1531 = vld [vmem:[#allocation3 + $0x1a0] sm:$0xff]
    %v1532 = vld [vmem:[#allocation3 + $0x1a8] sm:$0xff]
    %v1533 = vld [vmem:[#allocation3 + $0x1b0] sm:$0xff]
    %v1534 = vld [vmem:[#allocation3 + $0x1b8] sm:$0xff]
    %v1535 = vld [vmem:[#allocation3 + $0x1c0] sm:$0xff]
    %v1536 = vld [vmem:[#allocation3 + $0x1c8] sm:$0xff]
    %v1537 = vld [vmem:[#allocation3 + $0x1d0] sm:$0xff]
    %v1538 = vld [vmem:[#allocation3 + $0x1d8] sm:$0xff]
    %v1539 = vld [vmem:[#allocation3 + $0x1e0] sm:$0xff]
    %v1540 = vld [vmem:[#allocation3 + $0x1e8] sm:$0xff]
    %v1541 = vld [vmem:[#allocation3 + $0x1f0] sm:$0xff]
    %v1542 = vld [vmem:[#allocation3 + $0x1f8] sm:$0xff]
    %1543 = vmatprep.subr.mxu0 %v1480
    %1544 = vmatpush1.msra.mxu0 %v1479
    %1545 = vmatprep.subr.mxu0 %v1484
    %1546 = vmatpush1.msra.mxu0 %v1483
    %1547 = vmatprep.subr.mxu0 %v1488
    %1548 = vmatpush1.msra.mxu0 %v1487
    %1549 = vmatprep.subr.mxu0 %v1492
    %1550 = vmatpush1.msra.mxu0 %v1491
    %1551 = vmatprep.subr.mxu0 %v1496
    %1552 = vmatpush1.msra.mxu0 %v1495
    %1553 = vmatprep.subr.mxu0 %v1500
    %1554 = vmatpush1.msra.mxu0 %v1499
    %1555 = vmatprep.subr.mxu0 %v1504
    %1556 = vmatpush1.msra.mxu0 %v1503
    %1557 = vmatprep.subr.mxu0 %v1508
    %1558 = vmatpush1.msra.mxu0 %v1507
    %1559 = vmatprep.subr.mxu0 %v1512
    %1560 = vmatpush1.msra.mxu0 %v1511
    %1561 = vmatprep.subr.mxu0 %v1516
    %1562 = vmatpush1.msra.mxu0 %v1515
    %1563 = vmatprep.subr.mxu0 %v1520
    %1564 = vmatpush1.msra.mxu0 %v1519
    %1565 = vmatprep.subr.mxu0 %v1524
    %1566 = vmatpush1.msra.mxu0 %v1523
    %1567 = vmatprep.subr.mxu0 %v1528
    %1568 = vmatpush1.msra.mxu0 %v1527
    %1569 = vmatprep.subr.mxu0 %v1532
    %1570 = vmatpush1.msra.mxu0 %v1531
    %1571 = vmatprep.subr.mxu0 %v1536
    %1572 = vmatpush1.msra.mxu0 %v1535
    %1573 = vmatprep.subr.mxu0 %v1540
    %1574 = vmatpush1.msra.mxu0 %v1539
    %1575 = vmatprep.subr.mxu0 0.0
    %1576 = vmatpush1.msra.mxu0 0.0
    %1577 = vmatprep.subr.mxu0 0.0
    %1578 = vmatpush1.msra.mxu0 0.0
    %1579 = vmatprep.subr.mxu0 0.0
    %1580 = vmatpush1.msra.mxu0 0.0
    %1581 = vmatprep.subr.mxu0 0.0
    %1582 = vmatpush1.msra.mxu0 0.0
    %1583 = vmatprep.subr.mxu0 0.0
    %1584 = vmatpush1.msra.mxu0 0.0
    %1585 = vmatprep.subr.mxu0 0.0
    %1586 = vmatpush1.msra.mxu0 0.0
    %1587 = vmatprep.subr.mxu0 0.0
    %1588 = vmatpush1.msra.mxu0 0.0
    %1589 = vmatprep.subr.mxu0 0.0
    %1590 = vmatpush1.msra.mxu0 0.0
    %1591 = vmatprep.subr.mxu0 0.0
    %1592 = vmatpush1.msra.mxu0 0.0
    %1593 = vmatprep.subr.mxu0 0.0
    %1594 = vmatpush1.msra.mxu0 0.0
    %1595 = vmatprep.subr.mxu0 0.0
    %1596 = vmatpush1.msra.mxu0 0.0
    %1597 = vmatprep.subr.mxu0 0.0
    %1598 = vmatpush1.msra.mxu0 0.0
    %1599 = vmatprep.subr.mxu0 0.0
    %1600 = vmatpush1.msra.mxu0 0.0
    %1601 = vmatprep.subr.mxu0 0.0
    %1602 = vmatpush1.msra.mxu0 0.0
    %1603 = vmatprep.subr.mxu0 0.0
    %1604 = vmatpush1.msra.mxu0 0.0
    %1605 = vmatprep.subr.mxu0 0.0
    %1606 = vmatpush1.msra.mxu0 0.0
    %1607 = vmatprep.mubr.f32.mxu0 0.0
    %1608 = vmatmul.mubr.f32.gmra.mrb[0].mxu0 %v1174
    %v1609 = vpop.f32.mrb[0].mxu0
    %v1610 = vadd.f32 0.0, %v1609
    %v1611 = vpop.f32.mrb[0].mxu0
    %v1612 = vadd.f32 0.0, %v1611
    %1613 = vdwg.mxu0
    %1614 = vmatprep.subr.mxu0 %v1482
    %1615 = vmatpush1.msra.mxu0 %v1481
    %1616 = vmatprep.subr.mxu0 %v1486
    %1617 = vmatpush1.msra.mxu0 %v1485
    %1618 = vmatprep.subr.mxu0 %v1490
    %1619 = vmatpush1.msra.mxu0 %v1489
    %1620 = vmatprep.subr.mxu0 %v1494
    %1621 = vmatpush1.msra.mxu0 %v1493
    %1622 = vmatprep.subr.mxu0 %v1498
    %1623 = vmatpush1.msra.mxu0 %v1497
    %1624 = vmatprep.subr.mxu0 %v1502
    %1625 = vmatpush1.msra.mxu0 %v1501
    %1626 = vmatprep.subr.mxu0 %v1506
    %1627 = vmatpush1.msra.mxu0 %v1505
    %1628 = vmatprep.subr.mxu0 %v1510
    %1629 = vmatpush1.msra.mxu0 %v1509
    %1630 = vmatprep.subr.mxu0 %v1514
    %1631 = vmatpush1.msra.mxu0 %v1513
    %1632 = vmatprep.subr.mxu0 %v1518
    %1633 = vmatpush1.msra.mxu0 %v1517
    %1634 = vmatprep.subr.mxu0 %v1522
    %1635 = vmatpush1.msra.mxu0 %v1521
    %1636 = vmatprep.subr.mxu0 %v1526
    %1637 = vmatpush1.msra.mxu0 %v1525
    %1638 = vmatprep.subr.mxu0 %v1530
    %1639 = vmatpush1.msra.mxu0 %v1529
    %1640 = vmatprep.subr.mxu0 %v1534
    %1641 = vmatpush1.msra.mxu0 %v1533
    %1642 = vmatprep.subr.mxu0 %v1538
    %1643 = vmatpush1.msra.mxu0 %v1537
    %1644 = vmatprep.subr.mxu0 %v1542
    %1645 = vmatpush1.msra.mxu0 %v1541
    %1646 = vmatprep.subr.mxu0 0.0
    %1647 = vmatpush1.msra.mxu0 0.0
    %1648 = vmatprep.subr.mxu0 0.0
    %1649 = vmatpush1.msra.mxu0 0.0
    %1650 = vmatprep.subr.mxu0 0.0
    %1651 = vmatpush1.msra.mxu0 0.0
    %1652 = vmatprep.subr.mxu0 0.0
    %1653 = vmatpush1.msra.mxu0 0.0
    %1654 = vmatprep.subr.mxu0 0.0
    %1655 = vmatpush1.msra.mxu0 0.0
    %1656 = vmatprep.subr.mxu0 0.0
    %1657 = vmatpush1.msra.mxu0 0.0
    %1658 = vmatprep.subr.mxu0 0.0
    %1659 = vmatpush1.msra.mxu0 0.0
    %1660 = vmatprep.subr.mxu0 0.0
    %1661 = vmatpush1.msra.mxu0 0.0
    %1662 = vmatprep.subr.mxu0 0.0
    %1663 = vmatpush1.msra.mxu0 0.0
    %1664 = vmatprep.subr.mxu0 0.0
    %1665 = vmatpush1.msra.mxu0 0.0
    %1666 = vmatprep.subr.mxu0 0.0
    %1667 = vmatpush1.msra.mxu0 0.0
    %1668 = vmatprep.subr.mxu0 0.0
    %1669 = vmatpush1.msra.mxu0 0.0
    %1670 = vmatprep.subr.mxu0 0.0
    %1671 = vmatpush1.msra.mxu0 0.0
    %1672 = vmatprep.subr.mxu0 0.0
    %1673 = vmatpush1.msra.mxu0 0.0
    %1674 = vmatprep.subr.mxu0 0.0
    %1675 = vmatpush1.msra.mxu0 0.0
    %1676 = vmatprep.subr.mxu0 0.0
    %1677 = vmatpush1.msra.mxu0 0.0
    %1678 = vmatprep.mubr.f32.mxu0 0.0
    %1679 = vmatmul.mubr.f32.gmra.mrb[0].mxu0 %v1174
    %v1680 = vpop.f32.mrb[0].mxu0
    %v1681 = vadd.f32 0.0, %v1680
    %v1682 = vpop.f32.mrb[0].mxu0
    %v1683 = vadd.f32 0.0, %v1682
    %1684 = vdwg.mxu0
    %1685 = vmatprep.subr.mxu0 %v1416
    %1686 = vmatpush1.msra.mxu0 %v1415
    %1687 = vmatprep.subr.mxu0 %v1420
    %1688 = vmatpush1.msra.mxu0 %v1419
    %1689 = vmatprep.subr.mxu0 %v1424
    %1690 = vmatpush1.msra.mxu0 %v1423
    %1691 = vmatprep.subr.mxu0 %v1428
    %1692 = vmatpush1.msra.mxu0 %v1427
    %1693 = vmatprep.subr.mxu0 %v1432
    %1694 = vmatpush1.msra.mxu0 %v1431
    %1695 = vmatprep.subr.mxu0 %v1436
    %1696 = vmatpush1.msra.mxu0 %v1435
    %1697 = vmatprep.subr.mxu0 %v1440
    %1698 = vmatpush1.msra.mxu0 %v1439
    %1699 = vmatprep.subr.mxu0 %v1444
    %1700 = vmatpush1.msra.mxu0 %v1443
    %1701 = vmatprep.subr.mxu0 %v1448
    %1702 = vmatpush1.msra.mxu0 %v1447
    %1703 = vmatprep.subr.mxu0 %v1452
    %1704 = vmatpush1.msra.mxu0 %v1451
    %1705 = vmatprep.subr.mxu0 %v1456
    %1706 = vmatpush1.msra.mxu0 %v1455
    %1707 = vmatprep.subr.mxu0 %v1460
    %1708 = vmatpush1.msra.mxu0 %v1459
    %1709 = vmatprep.subr.mxu0 %v1464
    %1710 = vmatpush1.msra.mxu0 %v1463
    %1711 = vmatprep.subr.mxu0 %v1468
    %1712 = vmatpush1.msra.mxu0 %v1467
    %1713 = vmatprep.subr.mxu0 %v1472
    %1714 = vmatpush1.msra.mxu0 %v1471
    %1715 = vmatprep.subr.mxu0 %v1476
    %1716 = vmatpush1.msra.mxu0 %v1475
    %1717 = vmatprep.subr.mxu0 0.0
    %1718 = vmatpush1.msra.mxu0 0.0
    %1719 = vmatprep.subr.mxu0 0.0
    %1720 = vmatpush1.msra.mxu0 0.0
    %1721 = vmatprep.subr.mxu0 0.0
    %1722 = vmatpush1.msra.mxu0 0.0
    %1723 = vmatprep.subr.mxu0 0.0
    %1724 = vmatpush1.msra.mxu0 0.0
    %1725 = vmatprep.subr.mxu0 0.0
    %1726 = vmatpush1.msra.mxu0 0.0
    %1727 = vmatprep.subr.mxu0 0.0
    %1728 = vmatpush1.msra.mxu0 0.0
    %1729 = vmatprep.subr.mxu0 0.0
    %1730 = vmatpush1.msra.mxu0 0.0
    %1731 = vmatprep.subr.mxu0 0.0
    %1732 = vmatpush1.msra.mxu0 0.0
    %1733 = vmatprep.subr.mxu0 0.0
    %1734 = vmatpush1.msra.mxu0 0.0
    %1735 = vmatprep.subr.mxu0 0.0
    %1736 = vmatpush1.msra.mxu0 0.0
    %1737 = vmatprep.subr.mxu0 0.0
    %1738 = vmatpush1.msra.mxu0 0.0
    %1739 = vmatprep.subr.mxu0 0.0
    %1740 = vmatpush1.msra.mxu0 0.0
    %1741 = vmatprep.subr.mxu0 0.0
    %1742 = vmatpush1.msra.mxu0 0.0
    %1743 = vmatprep.subr.mxu0 0.0
    %1744 = vmatpush1.msra.mxu0 0.0
    %1745 = vmatprep.subr.mxu0 0.0
    %1746 = vmatpush1.msra.mxu0 0.0
    %1747 = vmatprep.subr.mxu0 0.0
    %1748 = vmatpush1.msra.mxu0 0.0
    %1749 = vmatprep.mubr.f32.mxu0 0.0
    %1750 = vmatmul.mubr.f32.gmra.mrb[0].mxu0 %v1414
    %v1751 = vpop.f32.mrb[0].mxu0
    %v1752 = vadd.f32 %v1610, %v1751
    %v1753 = vpop.f32.mrb[0].mxu0
    %v1754 = vadd.f32 %v1612, %v1753
    %1755 = vdwg.mxu0
    %1756 = vmatprep.subr.mxu0 %v1418
    %1757 = vmatpush1.msra.mxu0 %v1417
    %1758 = vmatprep.subr.mxu0 %v1422
    %1759 = vmatpush1.msra.mxu0 %v1421
    %1760 = vmatprep.subr.mxu0 %v1426
    %1761 = vmatpush1.msra.mxu0 %v1425
    %1762 = vmatprep.subr.mxu0 %v1430
    %1763 = vmatpush1.msra.mxu0 %v1429
    %1764 = vmatprep.subr.mxu0 %v1434
    %1765 = vmatpush1.msra.mxu0 %v1433
    %1766 = vmatprep.subr.mxu0 %v1438
    %1767 = vmatpush1.msra.mxu0 %v1437
    %1768 = vmatprep.subr.mxu0 %v1442
    %1769 = vmatpush1.msra.mxu0 %v1441
    %1770 = vmatprep.subr.mxu0 %v1446
    %1771 = vmatpush1.msra.mxu0 %v1445
    %1772 = vmatprep.subr.mxu0 %v1450
    %1773 = vmatpush1.msra.mxu0 %v1449
    %1774 = vmatprep.subr.mxu0 %v1454
    %1775 = vmatpush1.msra.mxu0 %v1453
    %1776 = vmatprep.subr.mxu0 %v1458
    %1777 = vmatpush1.msra.mxu0 %v1457
    %1778 = vmatprep.subr.mxu0 %v1462
    %1779 = vmatpush1.msra.mxu0 %v1461
    %1780 = vmatprep.subr.mxu0 %v1466
    %1781 = vmatpush1.msra.mxu0 %v1465
    %1782 = vmatprep.subr.mxu0 %v1470
    %1783 = vmatpush1.msra.mxu0 %v1469
    %1784 = vmatprep.subr.mxu0 %v1474
    %1785 = vmatpush1.msra.mxu0 %v1473
    %1786 = vmatprep.subr.mxu0 %v1478
    %1787 = vmatpush1.msra.mxu0 %v1477
    %1788 = vmatprep.subr.mxu0 0.0
    %1789 = vmatpush1.msra.mxu0 0.0
    %1790 = vmatprep.subr.mxu0 0.0
    %1791 = vmatpush1.msra.mxu0 0.0
    %1792 = vmatprep.subr.mxu0 0.0
    %1793 = vmatpush1.msra.mxu0 0.0
    %1794 = vmatprep.subr.mxu0 0.0
    %1795 = vmatpush1.msra.mxu0 0.0
    %1796 = vmatprep.subr.mxu0 0.0
    %1797 = vmatpush1.msra.mxu0 0.0
    %1798 = vmatprep.subr.mxu0 0.0
    %1799 = vmatpush1.msra.mxu0 0.0
    %1800 = vmatprep.subr.mxu0 0.0
    %1801 = vmatpush1.msra.mxu0 0.0
    %1802 = vmatprep.subr.mxu0 0.0
    %1803 = vmatpush1.msra.mxu0 0.0
    %1804 = vmatprep.subr.mxu0 0.0
    %1805 = vmatpush1.msra.mxu0 0.0
    %1806 = vmatprep.subr.mxu0 0.0
    %1807 = vmatpush1.msra.mxu0 0.0
    %1808 = vmatprep.subr.mxu0 0.0
    %1809 = vmatpush1.msra.mxu0 0.0
    %1810 = vmatprep.subr.mxu0 0.0
    %1811 = vmatpush1.msra.mxu0 0.0
    %1812 = vmatprep.subr.mxu0 0.0
    %1813 = vmatpush1.msra.mxu0 0.0
    %1814 = vmatprep.subr.mxu0 0.0
    %1815 = vmatpush1.msra.mxu0 0.0
    %1816 = vmatprep.subr.mxu0 0.0
    %1817 = vmatpush1.msra.mxu0 0.0
    %1818 = vmatprep.subr.mxu0 0.0
    %1819 = vmatpush1.msra.mxu0 0.0
    %1820 = vmatprep.mubr.f32.mxu0 0.0
    %1821 = vmatmul.mubr.f32.gmra.mrb[0].mxu0 %v1414
    %v1822 = vpop.f32.mrb[0].mxu0
    %v1823 = vadd.f32 %v1681, %v1822
    %v1824 = vpop.f32.mrb[0].mxu0
    %v1825 = vadd.f32 %v1683, %v1824
    %1826 = vdwg.mxu0
    %v1827 = vadd.f32 %v1752, %v311
    %v1828 = vadd.f32 %v1754, %v315
    %v1829 = vadd.f32 %v1823, %v319
    %v1830 = vadd.f32 %v1825, %v323
    %v1831 = vxor.u32 %v1827, 2147483648
    %v1832 = vxor.u32 %v1828, 2147483648
    %v1833 = vxor.u32 %v1829, 2147483648
    %v1834 = vmul.f32 %v1831, 1.442695
    %v1835 = vpow.pop %v1834
    %v1836 = vmul.f32 %v1832, 1.442695
    %v1837 = vpow.pop %v1836
    %v1838 = vmul.f32 %v1833, 1.442695
    %v1839 = vpow.pop %v1838
    %v1840 = vadd.f32 %v1835, 1.0
    %v1841 = vadd.f32 %v1837, 1.0
    %v1842 = vadd.f32 %v1839, 1.0
    %v1843 = vrcp.pop %v1840
    %v1844 = vmul.f32 1.0, %v1843
    %v1845 = vrcp.pop %v1841
    %v1846 = vmul.f32 1.0, %v1845
    %v1847 = vrcp.pop %v1842
    %v1848 = vmul.f32 1.0, %v1847
    %v1849 = vtanh.pop %v1830
    %v1850 = vmul.f32 %v1846, %v1172
    %v1851 = vmul.f32 %v1844, %v1849
    %v1852 = vadd.f32 %v1850, %v1851
    %v1853 = vtanh.pop %v1852
    %v1854 = vmul.f32 %v1848, %v1853
    %v1855 = vmul.f32 %v1854, %v489
    %1856 = vadd.xlane.f32.xlu0 %v1855
    %v1857 = vpop.xlane.xlu0 %1856
    %v1858 = vadd.f32 %v1857, %v498
    %1860 = vrot.lane.b32.xlu0 %v1858, 2
    %v1861 = vpop.permute.xlu0 %1860
    %vm1863 = vcmask 23568
    %1864 = vst.msk [vmem:[#allocation11] sm:$0xff] %vm1863, %v1861
    %v1865 = vld [vmem:[#allocation9] sm:$0xff]
    %v1866 = vld [vmem:[#allocation9 + $0x8] sm:$0xff]
    %v1867 = vld [vmem:[#allocation9 + $0x10] sm:$0xff]
    %v1868 = vld [vmem:[#allocation9 + $0x18] sm:$0xff]
    %v1869 = vld [vmem:[#allocation9 + $0x20] sm:$0xff]
    %v1870 = vld [vmem:[#allocation9 + $0x28] sm:$0xff]
    %v1871 = vld [vmem:[#allocation9 + $0x30] sm:$0xff]
    %v1872 = vld [vmem:[#allocation9 + $0x38] sm:$0xff]
    %v1873 = vld [vmem:[#allocation9 + $0x40] sm:$0xff]
    %v1874 = vld [vmem:[#allocation9 + $0x48] sm:$0xff]
    %v1875 = vld [vmem:[#allocation9 + $0x50] sm:$0xff]
    %v1876 = vld [vmem:[#allocation9 + $0x58] sm:$0xff]
    %v1877 = vld [vmem:[#allocation9 + $0x60] sm:$0xff]
    %v1878 = vld [vmem:[#allocation9 + $0x68] sm:$0xff]
    %v1879 = vld [vmem:[#allocation9 + $0x70] sm:$0xff]
    %v1880 = vld [vmem:[#allocation9 + $0x78] sm:$0xff]
    %v1881 = vld [vmem:[#allocation9 + $0x80] sm:$0xff]
    %v1882 = vld [vmem:[#allocation9 + $0x88] sm:$0xff]
    %v1883 = vld [vmem:[#allocation9 + $0x90] sm:$0xff]
    %v1884 = vld [vmem:[#allocation9 + $0x98] sm:$0xff]
    %v1885 = vld [vmem:[#allocation9 + $0xa0] sm:$0xff]
    %v1886 = vld [vmem:[#allocation9 + $0xa8] sm:$0xff]
    %v1887 = vld [vmem:[#allocation9 + $0xb0] sm:$0xff]
    %v1888 = vld [vmem:[#allocation9 + $0xb8] sm:$0xff]
    %v1889 = vld [vmem:[#allocation9 + $0xc0] sm:$0xff]
    %v1890 = vld [vmem:[#allocation9 + $0xc8] sm:$0xff]
    %v1891 = vld [vmem:[#allocation9 + $0xd0] sm:$0xff]
    %v1892 = vld [vmem:[#allocation9 + $0xd8] sm:$0xff]
    %v1893 = vld [vmem:[#allocation9 + $0xe0] sm:$0xff]
    %v1894 = vld [vmem:[#allocation9 + $0xe8] sm:$0xff]
    %v1895 = vld [vmem:[#allocation9 + $0xf0] sm:$0xff]
    %v1896 = vld [vmem:[#allocation9 + $0xf8] sm:$0xff]
    %v1897 = vld [vmem:[#allocation9 + $0x100] sm:$0xff]
    %v1898 = vld [vmem:[#allocation9 + $0x108] sm:$0xff]
    %v1899 = vld [vmem:[#allocation9 + $0x110] sm:$0xff]
    %v1900 = vld [vmem:[#allocation9 + $0x118] sm:$0xff]
    %v1901 = vld [vmem:[#allocation9 + $0x120] sm:$0xff]
    %v1902 = vld [vmem:[#allocation9 + $0x128] sm:$0xff]
    %v1903 = vld [vmem:[#allocation9 + $0x130] sm:$0xff]
    %v1904 = vld [vmem:[#allocation9 + $0x138] sm:$0xff]
    %v1905 = vld [vmem:[#allocation9 + $0x140] sm:$0xff]
    %v1906 = vld [vmem:[#allocation9 + $0x148] sm:$0xff]
    %v1907 = vld [vmem:[#allocation9 + $0x150] sm:$0xff]
    %v1908 = vld [vmem:[#allocation9 + $0x158] sm:$0xff]
    %v1909 = vld [vmem:[#allocation9 + $0x160] sm:$0xff]
    %v1910 = vld [vmem:[#allocation9 + $0x168] sm:$0xff]
    %v1911 = vld [vmem:[#allocation9 + $0x170] sm:$0xff]
    %v1912 = vld [vmem:[#allocation9 + $0x178] sm:$0xff]
    %v1913 = vld [vmem:[#allocation9 + $0x180] sm:$0xff]
    %v1914 = vld [vmem:[#allocation9 + $0x188] sm:$0xff]
    %v1915 = vld [vmem:[#allocation9 + $0x190] sm:$0xff]
    %v1916 = vld [vmem:[#allocation9 + $0x198] sm:$0xff]
    %v1917 = vld [vmem:[#allocation9 + $0x1a0] sm:$0xff]
    %v1918 = vld [vmem:[#allocation9 + $0x1a8] sm:$0xff]
    %v1919 = vld [vmem:[#allocation9 + $0x1b0] sm:$0xff]
    %v1920 = vld [vmem:[#allocation9 + $0x1b8] sm:$0xff]
    %v1921 = vld [vmem:[#allocation9 + $0x1c0] sm:$0xff]
    %v1922 = vld [vmem:[#allocation9 + $0x1c8] sm:$0xff]
    %v1923 = vld [vmem:[#allocation9 + $0x1d0] sm:$0xff]
    %v1924 = vld [vmem:[#allocation9 + $0x1d8] sm:$0xff]
    %v1925 = vld [vmem:[#allocation9 + $0x1e0] sm:$0xff]
    %v1926 = vld [vmem:[#allocation9 + $0x1e8] sm:$0xff]
    %v1927 = vld [vmem:[#allocation9 + $0x1f0] sm:$0xff]
    %v1928 = vld [vmem:[#allocation9 + $0x1f8] sm:$0xff]
    %1929 = vmatprep.subr.mxu0 %v1866
    %1930 = vmatpush1.msra.mxu0 %v1865
    %1931 = vmatprep.subr.mxu0 %v1870
    %1932 = vmatpush1.msra.mxu0 %v1869
    %1933 = vmatprep.subr.mxu0 %v1874
    %1934 = vmatpush1.msra.mxu0 %v1873
    %1935 = vmatprep.subr.mxu0 %v1878
    %1936 = vmatpush1.msra.mxu0 %v1877
    %1937 = vmatprep.subr.mxu0 %v1882
    %1938 = vmatpush1.msra.mxu0 %v1881
    %1939 = vmatprep.subr.mxu0 %v1886
    %1940 = vmatpush1.msra.mxu0 %v1885
    %1941 = vmatprep.subr.mxu0 %v1890
    %1942 = vmatpush1.msra.mxu0 %v1889
    %1943 = vmatprep.subr.mxu0 %v1894
    %1944 = vmatpush1.msra.mxu0 %v1893
    %1945 = vmatprep.subr.mxu0 %v1898
    %1946 = vmatpush1.msra.mxu0 %v1897
    %1947 = vmatprep.subr.mxu0 %v1902
    %1948 = vmatpush1.msra.mxu0 %v1901
    %1949 = vmatprep.subr.mxu0 %v1906
    %1950 = vmatpush1.msra.mxu0 %v1905
    %1951 = vmatprep.subr.mxu0 %v1910
    %1952 = vmatpush1.msra.mxu0 %v1909
    %1953 = vmatprep.subr.mxu0 %v1914
    %1954 = vmatpush1.msra.mxu0 %v1913
    %1955 = vmatprep.subr.mxu0 %v1918
    %1956 = vmatpush1.msra.mxu0 %v1917
    %1957 = vmatprep.subr.mxu0 %v1922
    %1958 = vmatpush1.msra.mxu0 %v1921
    %1959 = vmatprep.subr.mxu0 %v1926
    %1960 = vmatpush1.msra.mxu0 %v1925
    %1961 = vmatprep.subr.mxu0 0.0
    %1962 = vmatpush1.msra.mxu0 0.0
    %1963 = vmatprep.subr.mxu0 0.0
    %1964 = vmatpush1.msra.mxu0 0.0
    %1965 = vmatprep.subr.mxu0 0.0
    %1966 = vmatpush1.msra.mxu0 0.0
    %1967 = vmatprep.subr.mxu0 0.0
    %1968 = vmatpush1.msra.mxu0 0.0
    %1969 = vmatprep.subr.mxu0 0.0
    %1970 = vmatpush1.msra.mxu0 0.0
    %1971 = vmatprep.subr.mxu0 0.0
    %1972 = vmatpush1.msra.mxu0 0.0
    %1973 = vmatprep.subr.mxu0 0.0
    %1974 = vmatpush1.msra.mxu0 0.0
    %1975 = vmatprep.subr.mxu0 0.0
    %1976 = vmatpush1.msra.mxu0 0.0
    %1977 = vmatprep.subr.mxu0 0.0
    %1978 = vmatpush1.msra.mxu0 0.0
    %1979 = vmatprep.subr.mxu0 0.0
    %1980 = vmatpush1.msra.mxu0 0.0
    %1981 = vmatprep.subr.mxu0 0.0
    %1982 = vmatpush1.msra.mxu0 0.0
    %1983 = vmatprep.subr.mxu0 0.0
    %1984 = vmatpush1.msra.mxu0 0.0
    %1985 = vmatprep.subr.mxu0 0.0
    %1986 = vmatpush1.msra.mxu0 0.0
    %1987 = vmatprep.subr.mxu0 0.0
    %1988 = vmatpush1.msra.mxu0 0.0
    %1989 = vmatprep.subr.mxu0 0.0
    %1990 = vmatpush1.msra.mxu0 0.0
    %1991 = vmatprep.subr.mxu0 0.0
    %1992 = vmatpush1.msra.mxu0 0.0
    %1993 = vmatprep.mubr.f32.mxu0 0.0
    %1994 = vmatmul.mubr.f32.gmra.mrb[0].mxu0 %v1414
    %v1995 = vpop.f32.mrb[0].mxu0
    %v1996 = vadd.f32 %v171, %v1995
    %v1997 = vpop.f32.mrb[0].mxu0
    %v1998 = vadd.f32 %v172, %v1997
    %1999 = vdwg.mxu0
    %2000 = vmatprep.subr.mxu0 %v1868
    %2001 = vmatpush1.msra.mxu0 %v1867
    %2002 = vmatprep.subr.mxu0 %v1872
    %2003 = vmatpush1.msra.mxu0 %v1871
    %2004 = vmatprep.subr.mxu0 %v1876
    %2005 = vmatpush1.msra.mxu0 %v1875
    %2006 = vmatprep.subr.mxu0 %v1880
    %2007 = vmatpush1.msra.mxu0 %v1879
    %2008 = vmatprep.subr.mxu0 %v1884
    %2009 = vmatpush1.msra.mxu0 %v1883
    %2010 = vmatprep.subr.mxu0 %v1888
    %2011 = vmatpush1.msra.mxu0 %v1887
    %2012 = vmatprep.subr.mxu0 %v1892
    %2013 = vmatpush1.msra.mxu0 %v1891
    %2014 = vmatprep.subr.mxu0 %v1896
    %2015 = vmatpush1.msra.mxu0 %v1895
    %2016 = vmatprep.subr.mxu0 %v1900
    %2017 = vmatpush1.msra.mxu0 %v1899
    %2018 = vmatprep.subr.mxu0 %v1904
    %2019 = vmatpush1.msra.mxu0 %v1903
    %2020 = vmatprep.subr.mxu0 %v1908
    %2021 = vmatpush1.msra.mxu0 %v1907
    %2022 = vmatprep.subr.mxu0 %v1912
    %2023 = vmatpush1.msra.mxu0 %v1911
    %2024 = vmatprep.subr.mxu0 %v1916
    %2025 = vmatpush1.msra.mxu0 %v1915
    %2026 = vmatprep.subr.mxu0 %v1920
    %2027 = vmatpush1.msra.mxu0 %v1919
    %2028 = vmatprep.subr.mxu0 %v1924
    %2029 = vmatpush1.msra.mxu0 %v1923
    %2030 = vmatprep.subr.mxu0 %v1928
    %2031 = vmatpush1.msra.mxu0 %v1927
    %2032 = vmatprep.subr.mxu0 0.0
    %2033 = vmatpush1.msra.mxu0 0.0
    %2034 = vmatprep.subr.mxu0 0.0
    %2035 = vmatpush1.msra.mxu0 0.0
    %2036 = vmatprep.subr.mxu0 0.0
    %2037 = vmatpush1.msra.mxu0 0.0
    %2038 = vmatprep.subr.mxu0 0.0
    %2039 = vmatpush1.msra.mxu0 0.0
    %2040 = vmatprep.subr.mxu0 0.0
    %2041 = vmatpush1.msra.mxu0 0.0
    %2042 = vmatprep.subr.mxu0 0.0
    %2043 = vmatpush1.msra.mxu0 0.0
    %2044 = vmatprep.subr.mxu0 0.0
    %2045 = vmatpush1.msra.mxu0 0.0
    %2046 = vmatprep.subr.mxu0 0.0
    %2047 = vmatpush1.msra.mxu0 0.0
    %2048 = vmatprep.subr.mxu0 0.0
    %2049 = vmatpush1.msra.mxu0 0.0
    %2050 = vmatprep.subr.mxu0 0.0
    %2051 = vmatpush1.msra.mxu0 0.0
    %2052 = vmatprep.subr.mxu0 0.0
    %2053 = vmatpush1.msra.mxu0 0.0
    %2054 = vmatprep.subr.mxu0 0.0
    %2055 = vmatpush1.msra.mxu0 0.0
    %2056 = vmatprep.subr.mxu0 0.0
    %2057 = vmatpush1.msra.mxu0 0.0
    %2058 = vmatprep.subr.mxu0 0.0
    %2059 = vmatpush1.msra.mxu0 0.0
    %2060 = vmatprep.subr.mxu0 0.0
    %2061 = vmatpush1.msra.mxu0 0.0
    %2062 = vmatprep.subr.mxu0 0.0
    %2063 = vmatpush1.msra.mxu0 0.0
    %2064 = vmatprep.mubr.f32.mxu0 0.0
    %2065 = vmatmul.mubr.f32.gmra.mrb[0].mxu0 %v1414
    %v2066 = vpop.f32.mrb[0].mxu0
    %v2067 = vadd.f32 %v173, %v2066
    %v2068 = vpop.f32.mrb[0].mxu0
    %v2069 = vadd.f32 %v174, %v2068
    %2070 = vdwg.mxu0
    %v2071 = vxor.u32 %v1996, 2147483648
    %v2072 = vxor.u32 %v1998, 2147483648
    %v2073 = vxor.u32 %v2067, 2147483648
    %v2074 = vmul.f32 %v2071, 1.442695
    %v2075 = vpow.pop %v2074
    %v2076 = vmul.f32 %v2072, 1.442695
    %v2077 = vpow.pop %v2076
    %v2078 = vmul.f32 %v2073, 1.442695
    %v2079 = vpow.pop %v2078
    %v2080 = vadd.f32 %v2075, 1.0
    %v2081 = vadd.f32 %v2077, 1.0
    %v2082 = vadd.f32 %v2079, 1.0
    %v2083 = vrcp.pop %v2080
    %v2084 = vmul.f32 1.0, %v2083
    %v2085 = vrcp.pop %v2081
    %v2086 = vmul.f32 1.0, %v2085
    %v2087 = vrcp.pop %v2082
    %v2088 = vmul.f32 1.0, %v2087
    %v2089 = vtanh.pop %v2069
    %v2090 = vmul.f32 %v2086, %v1412
    %v2091 = vmul.f32 %v2084, %v2089
    %v2092 = vadd.f32 %v2090, %v2091
    %v2093 = vtanh.pop %v2092
    %v2094 = vmul.f32 %v2088, %v2093
    %v2095 = vld [vmem:[#allocation2] sm:$0xff]
    %v2096 = vld [vmem:[#allocation2 + $0x8] sm:$0xff]
    %v2097 = vld [vmem:[#allocation2 + $0x10] sm:$0xff]
    %v2098 = vld [vmem:[#allocation2 + $0x18] sm:$0xff]
    %v2099 = vld [vmem:[#allocation2 + $0x20] sm:$0xff]
    %v2100 = vld [vmem:[#allocation2 + $0x28] sm:$0xff]
    %v2101 = vld [vmem:[#allocation2 + $0x30] sm:$0xff]
    %v2102 = vld [vmem:[#allocation2 + $0x38] sm:$0xff]
    %v2103 = vld [vmem:[#allocation2 + $0x40] sm:$0xff]
    %v2104 = vld [vmem:[#allocation2 + $0x48] sm:$0xff]
    %v2105 = vld [vmem:[#allocation2 + $0x50] sm:$0xff]
    %v2106 = vld [vmem:[#allocation2 + $0x58] sm:$0xff]
    %v2107 = vld [vmem:[#allocation2 + $0x60] sm:$0xff]
    %v2108 = vld [vmem:[#allocation2 + $0x68] sm:$0xff]
    %v2109 = vld [vmem:[#allocation2 + $0x70] sm:$0xff]
    %v2110 = vld [vmem:[#allocation2 + $0x78] sm:$0xff]
    %v2111 = vld [vmem:[#allocation2 + $0x80] sm:$0xff]
    %v2112 = vld [vmem:[#allocation2 + $0x88] sm:$0xff]
    %v2113 = vld [vmem:[#allocation2 + $0x90] sm:$0xff]
    %v2114 = vld [vmem:[#allocation2 + $0x98] sm:$0xff]
    %v2115 = vld [vmem:[#allocation2 + $0xa0] sm:$0xff]
    %v2116 = vld [vmem:[#allocation2 + $0xa8] sm:$0xff]
    %v2117 = vld [vmem:[#allocation2 + $0xb0] sm:$0xff]
    %v2118 = vld [vmem:[#allocation2 + $0xb8] sm:$0xff]
    %v2119 = vld [vmem:[#allocation2 + $0xc0] sm:$0xff]
    %v2120 = vld [vmem:[#allocation2 + $0xc8] sm:$0xff]
    %v2121 = vld [vmem:[#allocation2 + $0xd0] sm:$0xff]
    %v2122 = vld [vmem:[#allocation2 + $0xd8] sm:$0xff]
    %v2123 = vld [vmem:[#allocation2 + $0xe0] sm:$0xff]
    %v2124 = vld [vmem:[#allocation2 + $0xe8] sm:$0xff]
    %v2125 = vld [vmem:[#allocation2 + $0xf0] sm:$0xff]
    %v2126 = vld [vmem:[#allocation2 + $0xf8] sm:$0xff]
    %v2127 = vld [vmem:[#allocation2 + $0x100] sm:$0xff]
    %v2128 = vld [vmem:[#allocation2 + $0x108] sm:$0xff]
    %v2129 = vld [vmem:[#allocation2 + $0x110] sm:$0xff]
    %v2130 = vld [vmem:[#allocation2 + $0x118] sm:$0xff]
    %v2131 = vld [vmem:[#allocation2 + $0x120] sm:$0xff]
    %v2132 = vld [vmem:[#allocation2 + $0x128] sm:$0xff]
    %v2133 = vld [vmem:[#allocation2 + $0x130] sm:$0xff]
    %v2134 = vld [vmem:[#allocation2 + $0x138] sm:$0xff]
    %v2135 = vld [vmem:[#allocation2 + $0x140] sm:$0xff]
    %v2136 = vld [vmem:[#allocation2 + $0x148] sm:$0xff]
    %v2137 = vld [vmem:[#allocation2 + $0x150] sm:$0xff]
    %v2138 = vld [vmem:[#allocation2 + $0x158] sm:$0xff]
    %v2139 = vld [vmem:[#allocation2 + $0x160] sm:$0xff]
    %v2140 = vld [vmem:[#allocation2 + $0x168] sm:$0xff]
    %v2141 = vld [vmem:[#allocation2 + $0x170] sm:$0xff]
    %v2142 = vld [vmem:[#allocation2 + $0x178] sm:$0xff]
    %v2143 = vld [vmem:[#allocation2 + $0x180] sm:$0xff]
    %v2144 = vld [vmem:[#allocation2 + $0x188] sm:$0xff]
    %v2145 = vld [vmem:[#allocation2 + $0x190] sm:$0xff]
    %v2146 = vld [vmem:[#allocation2 + $0x198] sm:$0xff]
    %v2147 = vld [vmem:[#allocation2 + $0x1a0] sm:$0xff]
    %v2148 = vld [vmem:[#allocation2 + $0x1a8] sm:$0xff]
    %v2149 = vld [vmem:[#allocation2 + $0x1b0] sm:$0xff]
    %v2150 = vld [vmem:[#allocation2 + $0x1b8] sm:$0xff]
    %v2151 = vld [vmem:[#allocation2 + $0x1c0] sm:$0xff]
    %v2152 = vld [vmem:[#allocation2 + $0x1c8] sm:$0xff]
    %v2153 = vld [vmem:[#allocation2 + $0x1d0] sm:$0xff]
    %v2154 = vld [vmem:[#allocation2 + $0x1d8] sm:$0xff]
    %v2155 = vld [vmem:[#allocation2 + $0x1e0] sm:$0xff]
    %v2156 = vld [vmem:[#allocation2 + $0x1e8] sm:$0xff]
    %v2157 = vld [vmem:[#allocation2 + $0x1f0] sm:$0xff]
    %v2158 = vld [vmem:[#allocation2 + $0x1f8] sm:$0xff]
    %v2159 = vld [vmem:[#allocation3] sm:$0xff]
    %v2160 = vld [vmem:[#allocation3 + $0x8] sm:$0xff]
    %v2161 = vld [vmem:[#allocation3 + $0x10] sm:$0xff]
    %v2162 = vld [vmem:[#allocation3 + $0x18] sm:$0xff]
    %v2163 = vld [vmem:[#allocation3 + $0x20] sm:$0xff]
    %v2164 = vld [vmem:[#allocation3 + $0x28] sm:$0xff]
    %v2165 = vld [vmem:[#allocation3 + $0x30] sm:$0xff]
    %v2166 = vld [vmem:[#allocation3 + $0x38] sm:$0xff]
    %v2167 = vld [vmem:[#allocation3 + $0x40] sm:$0xff]
    %v2168 = vld [vmem:[#allocation3 + $0x48] sm:$0xff]
    %v2169 = vld [vmem:[#allocation3 + $0x50] sm:$0xff]
    %v2170 = vld [vmem:[#allocation3 + $0x58] sm:$0xff]
    %v2171 = vld [vmem:[#allocation3 + $0x60] sm:$0xff]
    %v2172 = vld [vmem:[#allocation3 + $0x68] sm:$0xff]
    %v2173 = vld [vmem:[#allocation3 + $0x70] sm:$0xff]
    %v2174 = vld [vmem:[#allocation3 + $0x78] sm:$0xff]
    %v2175 = vld [vmem:[#allocation3 + $0x80] sm:$0xff]
    %v2176 = vld [vmem:[#allocation3 + $0x88] sm:$0xff]
    %v2177 = vld [vmem:[#allocation3 + $0x90] sm:$0xff]
    %v2178 = vld [vmem:[#allocation3 + $0x98] sm:$0xff]
    %v2179 = vld [vmem:[#allocation3 + $0xa0] sm:$0xff]
    %v2180 = vld [vmem:[#allocation3 + $0xa8] sm:$0xff]
    %v2181 = vld [vmem:[#allocation3 + $0xb0] sm:$0xff]
    %v2182 = vld [vmem:[#allocation3 + $0xb8] sm:$0xff]
    %v2183 = vld [vmem:[#allocation3 + $0xc0] sm:$0xff]
    %v2184 = vld [vmem:[#allocation3 + $0xc8] sm:$0xff]
    %v2185 = vld [vmem:[#allocation3 + $0xd0] sm:$0xff]
    %v2186 = vld [vmem:[#allocation3 + $0xd8] sm:$0xff]
    %v2187 = vld [vmem:[#allocation3 + $0xe0] sm:$0xff]
    %v2188 = vld [vmem:[#allocation3 + $0xe8] sm:$0xff]
    %v2189 = vld [vmem:[#allocation3 + $0xf0] sm:$0xff]
    %v2190 = vld [vmem:[#allocation3 + $0xf8] sm:$0xff]
    %v2191 = vld [vmem:[#allocation3 + $0x100] sm:$0xff]
    %v2192 = vld [vmem:[#allocation3 + $0x108] sm:$0xff]
    %v2193 = vld [vmem:[#allocation3 + $0x110] sm:$0xff]
    %v2194 = vld [vmem:[#allocation3 + $0x118] sm:$0xff]
    %v2195 = vld [vmem:[#allocation3 + $0x120] sm:$0xff]
    %v2196 = vld [vmem:[#allocation3 + $0x128] sm:$0xff]
    %v2197 = vld [vmem:[#allocation3 + $0x130] sm:$0xff]
    %v2198 = vld [vmem:[#allocation3 + $0x138] sm:$0xff]
    %v2199 = vld [vmem:[#allocation3 + $0x140] sm:$0xff]
    %v2200 = vld [vmem:[#allocation3 + $0x148] sm:$0xff]
    %v2201 = vld [vmem:[#allocation3 + $0x150] sm:$0xff]
    %v2202 = vld [vmem:[#allocation3 + $0x158] sm:$0xff]
    %v2203 = vld [vmem:[#allocation3 + $0x160] sm:$0xff]
    %v2204 = vld [vmem:[#allocation3 + $0x168] sm:$0xff]
    %v2205 = vld [vmem:[#allocation3 + $0x170] sm:$0xff]
    %v2206 = vld [vmem:[#allocation3 + $0x178] sm:$0xff]
    %v2207 = vld [vmem:[#allocation3 + $0x180] sm:$0xff]
    %v2208 = vld [vmem:[#allocation3 + $0x188] sm:$0xff]
    %v2209 = vld [vmem:[#allocation3 + $0x190] sm:$0xff]
    %v2210 = vld [vmem:[#allocation3 + $0x198] sm:$0xff]
    %v2211 = vld [vmem:[#allocation3 + $0x1a0] sm:$0xff]
    %v2212 = vld [vmem:[#allocation3 + $0x1a8] sm:$0xff]
    %v2213 = vld [vmem:[#allocation3 + $0x1b0] sm:$0xff]
    %v2214 = vld [vmem:[#allocation3 + $0x1b8] sm:$0xff]
    %v2215 = vld [vmem:[#allocation3 + $0x1c0] sm:$0xff]
    %v2216 = vld [vmem:[#allocation3 + $0x1c8] sm:$0xff]
    %v2217 = vld [vmem:[#allocation3 + $0x1d0] sm:$0xff]
    %v2218 = vld [vmem:[#allocation3 + $0x1d8] sm:$0xff]
    %v2219 = vld [vmem:[#allocation3 + $0x1e0] sm:$0xff]
    %v2220 = vld [vmem:[#allocation3 + $0x1e8] sm:$0xff]
    %v2221 = vld [vmem:[#allocation3 + $0x1f0] sm:$0xff]
    %v2222 = vld [vmem:[#allocation3 + $0x1f8] sm:$0xff]
    %2223 = vmatprep.subr.mxu0 %v2160
    %2224 = vmatpush1.msra.mxu0 %v2159
    %2225 = vmatprep.subr.mxu0 %v2164
    %2226 = vmatpush1.msra.mxu0 %v2163
    %2227 = vmatprep.subr.mxu0 %v2168
    %2228 = vmatpush1.msra.mxu0 %v2167
    %2229 = vmatprep.subr.mxu0 %v2172
    %2230 = vmatpush1.msra.mxu0 %v2171
    %2231 = vmatprep.subr.mxu0 %v2176
    %2232 = vmatpush1.msra.mxu0 %v2175
    %2233 = vmatprep.subr.mxu0 %v2180
    %2234 = vmatpush1.msra.mxu0 %v2179
    %2235 = vmatprep.subr.mxu0 %v2184
    %2236 = vmatpush1.msra.mxu0 %v2183
    %2237 = vmatprep.subr.mxu0 %v2188
    %2238 = vmatpush1.msra.mxu0 %v2187
    %2239 = vmatprep.subr.mxu0 %v2192
    %2240 = vmatpush1.msra.mxu0 %v2191
    %2241 = vmatprep.subr.mxu0 %v2196
    %2242 = vmatpush1.msra.mxu0 %v2195
    %2243 = vmatprep.subr.mxu0 %v2200
    %2244 = vmatpush1.msra.mxu0 %v2199
    %2245 = vmatprep.subr.mxu0 %v2204
    %2246 = vmatpush1.msra.mxu0 %v2203
    %2247 = vmatprep.subr.mxu0 %v2208
    %2248 = vmatpush1.msra.mxu0 %v2207
    %2249 = vmatprep.subr.mxu0 %v2212
    %2250 = vmatpush1.msra.mxu0 %v2211
    %2251 = vmatprep.subr.mxu0 %v2216
    %2252 = vmatpush1.msra.mxu0 %v2215
    %2253 = vmatprep.subr.mxu0 %v2220
    %2254 = vmatpush1.msra.mxu0 %v2219
    %2255 = vmatprep.subr.mxu0 0.0
    %2256 = vmatpush1.msra.mxu0 0.0
    %2257 = vmatprep.subr.mxu0 0.0
    %2258 = vmatpush1.msra.mxu0 0.0
    %2259 = vmatprep.subr.mxu0 0.0
    %2260 = vmatpush1.msra.mxu0 0.0
    %2261 = vmatprep.subr.mxu0 0.0
    %2262 = vmatpush1.msra.mxu0 0.0
    %2263 = vmatprep.subr.mxu0 0.0
    %2264 = vmatpush1.msra.mxu0 0.0
    %2265 = vmatprep.subr.mxu0 0.0
    %2266 = vmatpush1.msra.mxu0 0.0
    %2267 = vmatprep.subr.mxu0 0.0
    %2268 = vmatpush1.msra.mxu0 0.0
    %2269 = vmatprep.subr.mxu0 0.0
    %2270 = vmatpush1.msra.mxu0 0.0
    %2271 = vmatprep.subr.mxu0 0.0
    %2272 = vmatpush1.msra.mxu0 0.0
    %2273 = vmatprep.subr.mxu0 0.0
    %2274 = vmatpush1.msra.mxu0 0.0
    %2275 = vmatprep.subr.mxu0 0.0
    %2276 = vmatpush1.msra.mxu0 0.0
    %2277 = vmatprep.subr.mxu0 0.0
    %2278 = vmatpush1.msra.mxu0 0.0
    %2279 = vmatprep.subr.mxu0 0.0
    %2280 = vmatpush1.msra.mxu0 0.0
    %2281 = vmatprep.subr.mxu0 0.0
    %2282 = vmatpush1.msra.mxu0 0.0
    %2283 = vmatprep.subr.mxu0 0.0
    %2284 = vmatpush1.msra.mxu0 0.0
    %2285 = vmatprep.subr.mxu0 0.0
    %2286 = vmatpush1.msra.mxu0 0.0
    %2287 = vmatprep.mubr.f32.mxu0 0.0
    %2288 = vmatmul.mubr.f32.gmra.mrb[0].mxu0 %v1854
    %v2289 = vpop.f32.mrb[0].mxu0
    %v2290 = vadd.f32 0.0, %v2289
    %v2291 = vpop.f32.mrb[0].mxu0
    %v2292 = vadd.f32 0.0, %v2291
    %2293 = vdwg.mxu0
    %2294 = vmatprep.subr.mxu0 %v2162
    %2295 = vmatpush1.msra.mxu0 %v2161
    %2296 = vmatprep.subr.mxu0 %v2166
    %2297 = vmatpush1.msra.mxu0 %v2165
    %2298 = vmatprep.subr.mxu0 %v2170
    %2299 = vmatpush1.msra.mxu0 %v2169
    %2300 = vmatprep.subr.mxu0 %v2174
    %2301 = vmatpush1.msra.mxu0 %v2173
    %2302 = vmatprep.subr.mxu0 %v2178
    %2303 = vmatpush1.msra.mxu0 %v2177
    %2304 = vmatprep.subr.mxu0 %v2182
    %2305 = vmatpush1.msra.mxu0 %v2181
    %2306 = vmatprep.subr.mxu0 %v2186
    %2307 = vmatpush1.msra.mxu0 %v2185
    %2308 = vmatprep.subr.mxu0 %v2190
    %2309 = vmatpush1.msra.mxu0 %v2189
    %2310 = vmatprep.subr.mxu0 %v2194
    %2311 = vmatpush1.msra.mxu0 %v2193
    %2312 = vmatprep.subr.mxu0 %v2198
    %2313 = vmatpush1.msra.mxu0 %v2197
    %2314 = vmatprep.subr.mxu0 %v2202
    %2315 = vmatpush1.msra.mxu0 %v2201
    %2316 = vmatprep.subr.mxu0 %v2206
    %2317 = vmatpush1.msra.mxu0 %v2205
    %2318 = vmatprep.subr.mxu0 %v2210
    %2319 = vmatpush1.msra.mxu0 %v2209
    %2320 = vmatprep.subr.mxu0 %v2214
    %2321 = vmatpush1.msra.mxu0 %v2213
    %2322 = vmatprep.subr.mxu0 %v2218
    %2323 = vmatpush1.msra.mxu0 %v2217
    %2324 = vmatprep.subr.mxu0 %v2222
    %2325 = vmatpush1.msra.mxu0 %v2221
    %2326 = vmatprep.subr.mxu0 0.0
    %2327 = vmatpush1.msra.mxu0 0.0
    %2328 = vmatprep.subr.mxu0 0.0
    %2329 = vmatpush1.msra.mxu0 0.0
    %2330 = vmatprep.subr.mxu0 0.0
    %2331 = vmatpush1.msra.mxu0 0.0
    %2332 = vmatprep.subr.mxu0 0.0
    %2333 = vmatpush1.msra.mxu0 0.0
    %2334 = vmatprep.subr.mxu0 0.0
    %2335 = vmatpush1.msra.mxu0 0.0
    %2336 = vmatprep.subr.mxu0 0.0
    %2337 = vmatpush1.msra.mxu0 0.0
    %2338 = vmatprep.subr.mxu0 0.0
    %2339 = vmatpush1.msra.mxu0 0.0
    %2340 = vmatprep.subr.mxu0 0.0
    %2341 = vmatpush1.msra.mxu0 0.0
    %2342 = vmatprep.subr.mxu0 0.0
    %2343 = vmatpush1.msra.mxu0 0.0
    %2344 = vmatprep.subr.mxu0 0.0
    %2345 = vmatpush1.msra.mxu0 0.0
    %2346 = vmatprep.subr.mxu0 0.0
    %2347 = vmatpush1.msra.mxu0 0.0
    %2348 = vmatprep.subr.mxu0 0.0
    %2349 = vmatpush1.msra.mxu0 0.0
    %2350 = vmatprep.subr.mxu0 0.0
    %2351 = vmatpush1.msra.mxu0 0.0
    %2352 = vmatprep.subr.mxu0 0.0
    %2353 = vmatpush1.msra.mxu0 0.0
    %2354 = vmatprep.subr.mxu0 0.0
    %2355 = vmatpush1.msra.mxu0 0.0
    %2356 = vmatprep.subr.mxu0 0.0
    %2357 = vmatpush1.msra.mxu0 0.0
    %2358 = vmatprep.mubr.f32.mxu0 0.0
    %2359 = vmatmul.mubr.f32.gmra.mrb[0].mxu0 %v1854
    %v2360 = vpop.f32.mrb[0].mxu0
    %v2361 = vadd.f32 0.0, %v2360
    %v2362 = vpop.f32.mrb[0].mxu0
    %v2363 = vadd.f32 0.0, %v2362
    %2364 = vdwg.mxu0
    %2365 = vmatprep.subr.mxu0 %v2096
    %2366 = vmatpush1.msra.mxu0 %v2095
    %2367 = vmatprep.subr.mxu0 %v2100
    %2368 = vmatpush1.msra.mxu0 %v2099
    %2369 = vmatprep.subr.mxu0 %v2104
    %2370 = vmatpush1.msra.mxu0 %v2103
    %2371 = vmatprep.subr.mxu0 %v2108
    %2372 = vmatpush1.msra.mxu0 %v2107
    %2373 = vmatprep.subr.mxu0 %v2112
    %2374 = vmatpush1.msra.mxu0 %v2111
    %2375 = vmatprep.subr.mxu0 %v2116
    %2376 = vmatpush1.msra.mxu0 %v2115
    %2377 = vmatprep.subr.mxu0 %v2120
    %2378 = vmatpush1.msra.mxu0 %v2119
    %2379 = vmatprep.subr.mxu0 %v2124
    %2380 = vmatpush1.msra.mxu0 %v2123
    %2381 = vmatprep.subr.mxu0 %v2128
    %2382 = vmatpush1.msra.mxu0 %v2127
    %2383 = vmatprep.subr.mxu0 %v2132
    %2384 = vmatpush1.msra.mxu0 %v2131
    %2385 = vmatprep.subr.mxu0 %v2136
    %2386 = vmatpush1.msra.mxu0 %v2135
    %2387 = vmatprep.subr.mxu0 %v2140
    %2388 = vmatpush1.msra.mxu0 %v2139
    %2389 = vmatprep.subr.mxu0 %v2144
    %2390 = vmatpush1.msra.mxu0 %v2143
    %2391 = vmatprep.subr.mxu0 %v2148
    %2392 = vmatpush1.msra.mxu0 %v2147
    %2393 = vmatprep.subr.mxu0 %v2152
    %2394 = vmatpush1.msra.mxu0 %v2151
    %2395 = vmatprep.subr.mxu0 %v2156
    %2396 = vmatpush1.msra.mxu0 %v2155
    %2397 = vmatprep.subr.mxu0 0.0
    %2398 = vmatpush1.msra.mxu0 0.0
    %2399 = vmatprep.subr.mxu0 0.0
    %2400 = vmatpush1.msra.mxu0 0.0
    %2401 = vmatprep.subr.mxu0 0.0
    %2402 = vmatpush1.msra.mxu0 0.0
    %2403 = vmatprep.subr.mxu0 0.0
    %2404 = vmatpush1.msra.mxu0 0.0
    %2405 = vmatprep.subr.mxu0 0.0
    %2406 = vmatpush1.msra.mxu0 0.0
    %2407 = vmatprep.subr.mxu0 0.0
    %2408 = vmatpush1.msra.mxu0 0.0
    %2409 = vmatprep.subr.mxu0 0.0
    %2410 = vmatpush1.msra.mxu0 0.0
    %2411 = vmatprep.subr.mxu0 0.0
    %2412 = vmatpush1.msra.mxu0 0.0
    %2413 = vmatprep.subr.mxu0 0.0
    %2414 = vmatpush1.msra.mxu0 0.0
    %2415 = vmatprep.subr.mxu0 0.0
    %2416 = vmatpush1.msra.mxu0 0.0
    %2417 = vmatprep.subr.mxu0 0.0
    %2418 = vmatpush1.msra.mxu0 0.0
    %2419 = vmatprep.subr.mxu0 0.0
    %2420 = vmatpush1.msra.mxu0 0.0
    %2421 = vmatprep.subr.mxu0 0.0
    %2422 = vmatpush1.msra.mxu0 0.0
    %2423 = vmatprep.subr.mxu0 0.0
    %2424 = vmatpush1.msra.mxu0 0.0
    %2425 = vmatprep.subr.mxu0 0.0
    %2426 = vmatpush1.msra.mxu0 0.0
    %2427 = vmatprep.subr.mxu0 0.0
    %2428 = vmatpush1.msra.mxu0 0.0
    %2429 = vmatprep.mubr.f32.mxu0 0.0
    %2430 = vmatmul.mubr.f32.gmra.mrb[0].mxu0 %v2094
    %v2431 = vpop.f32.mrb[0].mxu0
    %v2432 = vadd.f32 %v2290, %v2431
    %v2433 = vpop.f32.mrb[0].mxu0
    %v2434 = vadd.f32 %v2292, %v2433
    %2435 = vdwg.mxu0
    %2436 = vmatprep.subr.mxu0 %v2098
    %2437 = vmatpush1.msra.mxu0 %v2097
    %2438 = vmatprep.subr.mxu0 %v2102
    %2439 = vmatpush1.msra.mxu0 %v2101
    %2440 = vmatprep.subr.mxu0 %v2106
    %2441 = vmatpush1.msra.mxu0 %v2105
    %2442 = vmatprep.subr.mxu0 %v2110
    %2443 = vmatpush1.msra.mxu0 %v2109
    %2444 = vmatprep.subr.mxu0 %v2114
    %2445 = vmatpush1.msra.mxu0 %v2113
    %2446 = vmatprep.subr.mxu0 %v2118
    %2447 = vmatpush1.msra.mxu0 %v2117
    %2448 = vmatprep.subr.mxu0 %v2122
    %2449 = vmatpush1.msra.mxu0 %v2121
    %2450 = vmatprep.subr.mxu0 %v2126
    %2451 = vmatpush1.msra.mxu0 %v2125
    %2452 = vmatprep.subr.mxu0 %v2130
    %2453 = vmatpush1.msra.mxu0 %v2129
    %2454 = vmatprep.subr.mxu0 %v2134
    %2455 = vmatpush1.msra.mxu0 %v2133
    %2456 = vmatprep.subr.mxu0 %v2138
    %2457 = vmatpush1.msra.mxu0 %v2137
    %2458 = vmatprep.subr.mxu0 %v2142
    %2459 = vmatpush1.msra.mxu0 %v2141
    %2460 = vmatprep.subr.mxu0 %v2146
    %2461 = vmatpush1.msra.mxu0 %v2145
    %2462 = vmatprep.subr.mxu0 %v2150
    %2463 = vmatpush1.msra.mxu0 %v2149
    %2464 = vmatprep.subr.mxu0 %v2154
    %2465 = vmatpush1.msra.mxu0 %v2153
    %2466 = vmatprep.subr.mxu0 %v2158
    %2467 = vmatpush1.msra.mxu0 %v2157
    %2468 = vmatprep.subr.mxu0 0.0
    %2469 = vmatpush1.msra.mxu0 0.0
    %2470 = vmatprep.subr.mxu0 0.0
    %2471 = vmatpush1.msra.mxu0 0.0
    %2472 = vmatprep.subr.mxu0 0.0
    %2473 = vmatpush1.msra.mxu0 0.0
    %2474 = vmatprep.subr.mxu0 0.0
    %2475 = vmatpush1.msra.mxu0 0.0
    %2476 = vmatprep.subr.mxu0 0.0
    %2477 = vmatpush1.msra.mxu0 0.0
    %2478 = vmatprep.subr.mxu0 0.0
    %2479 = vmatpush1.msra.mxu0 0.0
    %2480 = vmatprep.subr.mxu0 0.0
    %2481 = vmatpush1.msra.mxu0 0.0
    %2482 = vmatprep.subr.mxu0 0.0
    %2483 = vmatpush1.msra.mxu0 0.0
    %2484 = vmatprep.subr.mxu0 0.0
    %2485 = vmatpush1.msra.mxu0 0.0
    %2486 = vmatprep.subr.mxu0 0.0
    %2487 = vmatpush1.msra.mxu0 0.0
    %2488 = vmatprep.subr.mxu0 0.0
    %2489 = vmatpush1.msra.mxu0 0.0
    %2490 = vmatprep.subr.mxu0 0.0
    %2491 = vmatpush1.msra.mxu0 0.0
    %2492 = vmatprep.subr.mxu0 0.0
    %2493 = vmatpush1.msra.mxu0 0.0
    %2494 = vmatprep.subr.mxu0 0.0
    %2495 = vmatpush1.msra.mxu0 0.0
    %2496 = vmatprep.subr.mxu0 0.0
    %2497 = vmatpush1.msra.mxu0 0.0
    %2498 = vmatprep.subr.mxu0 0.0
    %2499 = vmatpush1.msra.mxu0 0.0
    %2500 = vmatprep.mubr.f32.mxu0 0.0
    %2501 = vmatmul.mubr.f32.gmra.mrb[0].mxu0 %v2094
    %v2502 = vpop.f32.mrb[0].mxu0
    %v2503 = vadd.f32 %v2361, %v2502
    %v2504 = vpop.f32.mrb[0].mxu0
    %v2505 = vadd.f32 %v2363, %v2504
    %2506 = vdwg.mxu0
    %v2507 = vadd.f32 %v2432, %v311
    %v2508 = vadd.f32 %v2434, %v315
    %v2509 = vadd.f32 %v2503, %v319
    %v2510 = vadd.f32 %v2505, %v323
    %v2511 = vxor.u32 %v2507, 2147483648
    %v2512 = vxor.u32 %v2508, 2147483648
    %v2513 = vxor.u32 %v2509, 2147483648
    %v2514 = vmul.f32 %v2511, 1.442695
    %v2515 = vpow.pop %v2514
    %v2516 = vmul.f32 %v2512, 1.442695
    %v2517 = vpow.pop %v2516
    %v2518 = vmul.f32 %v2513, 1.442695
    %v2519 = vpow.pop %v2518
    %v2520 = vadd.f32 %v2515, 1.0
    %v2521 = vadd.f32 %v2517, 1.0
    %v2522 = vadd.f32 %v2519, 1.0
    %v2523 = vrcp.pop %v2520
    %v2524 = vmul.f32 1.0, %v2523
    %v2525 = vrcp.pop %v2521
    %v2526 = vmul.f32 1.0, %v2525
    %v2527 = vrcp.pop %v2522
    %v2528 = vmul.f32 1.0, %v2527
    %v2529 = vtanh.pop %v2510
    %v2530 = vmul.f32 %v2526, %v1852
    %v2531 = vmul.f32 %v2524, %v2529
    %v2532 = vadd.f32 %v2530, %v2531
    %v2533 = vtanh.pop %v2532
    %v2534 = vmul.f32 %v2528, %v2533
    %v2535 = vmul.f32 %v2534, %v489
    %2536 = vadd.xlane.f32.xlu0 %v2535
    %v2537 = vpop.xlane.xlu0 %2536
    %v2538 = vadd.f32 %v2537, %v498
    %2540 = vrot.lane.b32.xlu0 %v2538, 3
    %v2541 = vpop.permute.xlu0 %2540
    %vm2543 = vcmask 31768
    %2544 = vst.msk [vmem:[#allocation11] sm:$0xff] %vm2543, %v2541
    %v2545 = vld [vmem:[#allocation9] sm:$0xff]
    %v2546 = vld [vmem:[#allocation9 + $0x8] sm:$0xff]
    %v2547 = vld [vmem:[#allocation9 + $0x10] sm:$0xff]
    %v2548 = vld [vmem:[#allocation9 + $0x18] sm:$0xff]
    %v2549 = vld [vmem:[#allocation9 + $0x20] sm:$0xff]
    %v2550 = vld [vmem:[#allocation9 + $0x28] sm:$0xff]
    %v2551 = vld [vmem:[#allocation9 + $0x30] sm:$0xff]
    %v2552 = vld [vmem:[#allocation9 + $0x38] sm:$0xff]
    %v2553 = vld [vmem:[#allocation9 + $0x40] sm:$0xff]
    %v2554 = vld [vmem:[#allocation9 + $0x48] sm:$0xff]
    %v2555 = vld [vmem:[#allocation9 + $0x50] sm:$0xff]
    %v2556 = vld [vmem:[#allocation9 + $0x58] sm:$0xff]
    %v2557 = vld [vmem:[#allocation9 + $0x60] sm:$0xff]
    %v2558 = vld [vmem:[#allocation9 + $0x68] sm:$0xff]
    %v2559 = vld [vmem:[#allocation9 + $0x70] sm:$0xff]
    %v2560 = vld [vmem:[#allocation9 + $0x78] sm:$0xff]
    %v2561 = vld [vmem:[#allocation9 + $0x80] sm:$0xff]
    %v2562 = vld [vmem:[#allocation9 + $0x88] sm:$0xff]
    %v2563 = vld [vmem:[#allocation9 + $0x90] sm:$0xff]
    %v2564 = vld [vmem:[#allocation9 + $0x98] sm:$0xff]
    %v2565 = vld [vmem:[#allocation9 + $0xa0] sm:$0xff]
    %v2566 = vld [vmem:[#allocation9 + $0xa8] sm:$0xff]
    %v2567 = vld [vmem:[#allocation9 + $0xb0] sm:$0xff]
    %v2568 = vld [vmem:[#allocation9 + $0xb8] sm:$0xff]
    %v2569 = vld [vmem:[#allocation9 + $0xc0] sm:$0xff]
    %v2570 = vld [vmem:[#allocation9 + $0xc8] sm:$0xff]
    %v2571 = vld [vmem:[#allocation9 + $0xd0] sm:$0xff]
    %v2572 = vld [vmem:[#allocation9 + $0xd8] sm:$0xff]
    %v2573 = vld [vmem:[#allocation9 + $0xe0] sm:$0xff]
    %v2574 = vld [vmem:[#allocation9 + $0xe8] sm:$0xff]
    %v2575 = vld [vmem:[#allocation9 + $0xf0] sm:$0xff]
    %v2576 = vld [vmem:[#allocation9 + $0xf8] sm:$0xff]
    %v2577 = vld [vmem:[#allocation9 + $0x100] sm:$0xff]
    %v2578 = vld [vmem:[#allocation9 + $0x108] sm:$0xff]
    %v2579 = vld [vmem:[#allocation9 + $0x110] sm:$0xff]
    %v2580 = vld [vmem:[#allocation9 + $0x118] sm:$0xff]
    %v2581 = vld [vmem:[#allocation9 + $0x120] sm:$0xff]
    %v2582 = vld [vmem:[#allocation9 + $0x128] sm:$0xff]
    %v2583 = vld [vmem:[#allocation9 + $0x130] sm:$0xff]
    %v2584 = vld [vmem:[#allocation9 + $0x138] sm:$0xff]
    %v2585 = vld [vmem:[#allocation9 + $0x140] sm:$0xff]
    %v2586 = vld [vmem:[#allocation9 + $0x148] sm:$0xff]
    %v2587 = vld [vmem:[#allocation9 + $0x150] sm:$0xff]
    %v2588 = vld [vmem:[#allocation9 + $0x158] sm:$0xff]
    %v2589 = vld [vmem:[#allocation9 + $0x160] sm:$0xff]
    %v2590 = vld [vmem:[#allocation9 + $0x168] sm:$0xff]
    %v2591 = vld [vmem:[#allocation9 + $0x170] sm:$0xff]
    %v2592 = vld [vmem:[#allocation9 + $0x178] sm:$0xff]
    %v2593 = vld [vmem:[#allocation9 + $0x180] sm:$0xff]
    %v2594 = vld [vmem:[#allocation9 + $0x188] sm:$0xff]
    %v2595 = vld [vmem:[#allocation9 + $0x190] sm:$0xff]
    %v2596 = vld [vmem:[#allocation9 + $0x198] sm:$0xff]
    %v2597 = vld [vmem:[#allocation9 + $0x1a0] sm:$0xff]
    %v2598 = vld [vmem:[#allocation9 + $0x1a8] sm:$0xff]
    %v2599 = vld [vmem:[#allocation9 + $0x1b0] sm:$0xff]
    %v2600 = vld [vmem:[#allocation9 + $0x1b8] sm:$0xff]
    %v2601 = vld [vmem:[#allocation9 + $0x1c0] sm:$0xff]
    %v2602 = vld [vmem:[#allocation9 + $0x1c8] sm:$0xff]
    %v2603 = vld [vmem:[#allocation9 + $0x1d0] sm:$0xff]
    %v2604 = vld [vmem:[#allocation9 + $0x1d8] sm:$0xff]
    %v2605 = vld [vmem:[#allocation9 + $0x1e0] sm:$0xff]
    %v2606 = vld [vmem:[#allocation9 + $0x1e8] sm:$0xff]
    %v2607 = vld [vmem:[#allocation9 + $0x1f0] sm:$0xff]
    %v2608 = vld [vmem:[#allocation9 + $0x1f8] sm:$0xff]
    %2609 = vmatprep.subr.mxu0 %v2546
    %2610 = vmatpush1.msra.mxu0 %v2545
    %2611 = vmatprep.subr.mxu0 %v2550
    %2612 = vmatpush1.msra.mxu0 %v2549
    %2613 = vmatprep.subr.mxu0 %v2554
    %2614 = vmatpush1.msra.mxu0 %v2553
    %2615 = vmatprep.subr.mxu0 %v2558
    %2616 = vmatpush1.msra.mxu0 %v2557
    %2617 = vmatprep.subr.mxu0 %v2562
    %2618 = vmatpush1.msra.mxu0 %v2561
    %2619 = vmatprep.subr.mxu0 %v2566
    %2620 = vmatpush1.msra.mxu0 %v2565
    %2621 = vmatprep.subr.mxu0 %v2570
    %2622 = vmatpush1.msra.mxu0 %v2569
    %2623 = vmatprep.subr.mxu0 %v2574
    %2624 = vmatpush1.msra.mxu0 %v2573
    %2625 = vmatprep.subr.mxu0 %v2578
    %2626 = vmatpush1.msra.mxu0 %v2577
    %2627 = vmatprep.subr.mxu0 %v2582
    %2628 = vmatpush1.msra.mxu0 %v2581
    %2629 = vmatprep.subr.mxu0 %v2586
    %2630 = vmatpush1.msra.mxu0 %v2585
    %2631 = vmatprep.subr.mxu0 %v2590
    %2632 = vmatpush1.msra.mxu0 %v2589
    %2633 = vmatprep.subr.mxu0 %v2594
    %2634 = vmatpush1.msra.mxu0 %v2593
    %2635 = vmatprep.subr.mxu0 %v2598
    %2636 = vmatpush1.msra.mxu0 %v2597
    %2637 = vmatprep.subr.mxu0 %v2602
    %2638 = vmatpush1.msra.mxu0 %v2601
    %2639 = vmatprep.subr.mxu0 %v2606
    %2640 = vmatpush1.msra.mxu0 %v2605
    %2641 = vmatprep.subr.mxu0 0.0
    %2642 = vmatpush1.msra.mxu0 0.0
    %2643 = vmatprep.subr.mxu0 0.0
    %2644 = vmatpush1.msra.mxu0 0.0
    %2645 = vmatprep.subr.mxu0 0.0
    %2646 = vmatpush1.msra.mxu0 0.0
    %2647 = vmatprep.subr.mxu0 0.0
    %2648 = vmatpush1.msra.mxu0 0.0
    %2649 = vmatprep.subr.mxu0 0.0
    %2650 = vmatpush1.msra.mxu0 0.0
    %2651 = vmatprep.subr.mxu0 0.0
    %2652 = vmatpush1.msra.mxu0 0.0
    %2653 = vmatprep.subr.mxu0 0.0
    %2654 = vmatpush1.msra.mxu0 0.0
    %2655 = vmatprep.subr.mxu0 0.0
    %2656 = vmatpush1.msra.mxu0 0.0
    %2657 = vmatprep.subr.mxu0 0.0
    %2658 = vmatpush1.msra.mxu0 0.0
    %2659 = vmatprep.subr.mxu0 0.0
    %2660 = vmatpush1.msra.mxu0 0.0
    %2661 = vmatprep.subr.mxu0 0.0
    %2662 = vmatpush1.msra.mxu0 0.0
    %2663 = vmatprep.subr.mxu0 0.0
    %2664 = vmatpush1.msra.mxu0 0.0
    %2665 = vmatprep.subr.mxu0 0.0
    %2666 = vmatpush1.msra.mxu0 0.0
    %2667 = vmatprep.subr.mxu0 0.0
    %2668 = vmatpush1.msra.mxu0 0.0
    %2669 = vmatprep.subr.mxu0 0.0
    %2670 = vmatpush1.msra.mxu0 0.0
    %2671 = vmatprep.subr.mxu0 0.0
    %2672 = vmatpush1.msra.mxu0 0.0
    %2673 = vmatprep.mubr.f32.mxu0 0.0
    %2674 = vmatmul.mubr.f32.gmra.mrb[0].mxu0 %v2094
    %v2675 = vpop.f32.mrb[0].mxu0
    %v2676 = vadd.f32 %v183, %v2675
    %v2677 = vpop.f32.mrb[0].mxu0
    %v2678 = vadd.f32 %v184, %v2677
    %2679 = vdwg.mxu0
    %2680 = vmatprep.subr.mxu0 %v2548
    %2681 = vmatpush1.msra.mxu0 %v2547
    %2682 = vmatprep.subr.mxu0 %v2552
    %2683 = vmatpush1.msra.mxu0 %v2551
    %2684 = vmatprep.subr.mxu0 %v2556
    %2685 = vmatpush1.msra.mxu0 %v2555
    %2686 = vmatprep.subr.mxu0 %v2560
    %2687 = vmatpush1.msra.mxu0 %v2559
    %2688 = vmatprep.subr.mxu0 %v2564
    %2689 = vmatpush1.msra.mxu0 %v2563
    %2690 = vmatprep.subr.mxu0 %v2568
    %2691 = vmatpush1.msra.mxu0 %v2567
    %2692 = vmatprep.subr.mxu0 %v2572
    %2693 = vmatpush1.msra.mxu0 %v2571
    %2694 = vmatprep.subr.mxu0 %v2576
    %2695 = vmatpush1.msra.mxu0 %v2575
    %2696 = vmatprep.subr.mxu0 %v2580
    %2697 = vmatpush1.msra.mxu0 %v2579
    %2698 = vmatprep.subr.mxu0 %v2584
    %2699 = vmatpush1.msra.mxu0 %v2583
    %2700 = vmatprep.subr.mxu0 %v2588
    %2701 = vmatpush1.msra.mxu0 %v2587
    %2702 = vmatprep.subr.mxu0 %v2592
    %2703 = vmatpush1.msra.mxu0 %v2591
    %2704 = vmatprep.subr.mxu0 %v2596
    %2705 = vmatpush1.msra.mxu0 %v2595
    %2706 = vmatprep.subr.mxu0 %v2600
    %2707 = vmatpush1.msra.mxu0 %v2599
    %2708 = vmatprep.subr.mxu0 %v2604
    %2709 = vmatpush1.msra.mxu0 %v2603
    %2710 = vmatprep.subr.mxu0 %v2608
    %2711 = vmatpush1.msra.mxu0 %v2607
    %2712 = vmatprep.subr.mxu0 0.0
    %2713 = vmatpush1.msra.mxu0 0.0
    %2714 = vmatprep.subr.mxu0 0.0
    %2715 = vmatpush1.msra.mxu0 0.0
    %2716 = vmatprep.subr.mxu0 0.0
    %2717 = vmatpush1.msra.mxu0 0.0
    %2718 = vmatprep.subr.mxu0 0.0
    %2719 = vmatpush1.msra.mxu0 0.0
    %2720 = vmatprep.subr.mxu0 0.0
    %2721 = vmatpush1.msra.mxu0 0.0
    %2722 = vmatprep.subr.mxu0 0.0
    %2723 = vmatpush1.msra.mxu0 0.0
    %2724 = vmatprep.subr.mxu0 0.0
    %2725 = vmatpush1.msra.mxu0 0.0
    %2726 = vmatprep.subr.mxu0 0.0
    %2727 = vmatpush1.msra.mxu0 0.0
    %2728 = vmatprep.subr.mxu0 0.0
    %2729 = vmatpush1.msra.mxu0 0.0
    %2730 = vmatprep.subr.mxu0 0.0
    %2731 = vmatpush1.msra.mxu0 0.0
    %2732 = vmatprep.subr.mxu0 0.0
    %2733 = vmatpush1.msra.mxu0 0.0
    %2734 = vmatprep.subr.mxu0 0.0
    %2735 = vmatpush1.msra.mxu0 0.0
    %2736 = vmatprep.subr.mxu0 0.0
    %2737 = vmatpush1.msra.mxu0 0.0
    %2738 = vmatprep.subr.mxu0 0.0
    %2739 = vmatpush1.msra.mxu0 0.0
    %2740 = vmatprep.subr.mxu0 0.0
    %2741 = vmatpush1.msra.mxu0 0.0
    %2742 = vmatprep.subr.mxu0 0.0
    %2743 = vmatpush1.msra.mxu0 0.0
    %2744 = vmatprep.mubr.f32.mxu0 0.0
    %2745 = vmatmul.mubr.f32.gmra.mrb[0].mxu0 %v2094
    %v2746 = vpop.f32.mrb[0].mxu0
    %v2747 = vadd.f32 %v185, %v2746
    %v2748 = vpop.f32.mrb[0].mxu0
    %v2749 = vadd.f32 %v186, %v2748
    %2750 = vdwg.mxu0
    %v2751 = vxor.u32 %v2676, 2147483648
    %v2752 = vxor.u32 %v2678, 2147483648
    %v2753 = vxor.u32 %v2747, 2147483648
    %v2754 = vmul.f32 %v2751, 1.442695
    %v2755 = vpow.pop %v2754
    %v2756 = vmul.f32 %v2752, 1.442695
    %v2757 = vpow.pop %v2756
    %v2758 = vmul.f32 %v2753, 1.442695
    %v2759 = vpow.pop %v2758
    %v2760 = vadd.f32 %v2755, 1.0
    %v2761 = vadd.f32 %v2757, 1.0
    %v2762 = vadd.f32 %v2759, 1.0
    %v2763 = vrcp.pop %v2760
    %v2764 = vmul.f32 1.0, %v2763
    %v2765 = vrcp.pop %v2761
    %v2766 = vmul.f32 1.0, %v2765
    %v2767 = vrcp.pop %v2762
    %v2768 = vmul.f32 1.0, %v2767
    %v2769 = vtanh.pop %v2749
    %v2770 = vmul.f32 %v2766, %v2092
    %v2771 = vmul.f32 %v2764, %v2769
    %v2772 = vadd.f32 %v2770, %v2771
    %v2773 = vtanh.pop %v2772
    %v2774 = vmul.f32 %v2768, %v2773
    %v2775 = vld [vmem:[#allocation2] sm:$0xff]
    %v2776 = vld [vmem:[#allocation2 + $0x8] sm:$0xff]
    %v2777 = vld [vmem:[#allocation2 + $0x10] sm:$0xff]
    %v2778 = vld [vmem:[#allocation2 + $0x18] sm:$0xff]
    %v2779 = vld [vmem:[#allocation2 + $0x20] sm:$0xff]
    %v2780 = vld [vmem:[#allocation2 + $0x28] sm:$0xff]
    %v2781 = vld [vmem:[#allocation2 + $0x30] sm:$0xff]
    %v2782 = vld [vmem:[#allocation2 + $0x38] sm:$0xff]
    %v2783 = vld [vmem:[#allocation2 + $0x40] sm:$0xff]
    %v2784 = vld [vmem:[#allocation2 + $0x48] sm:$0xff]
    %v2785 = vld [vmem:[#allocation2 + $0x50] sm:$0xff]
    %v2786 = vld [vmem:[#allocation2 + $0x58] sm:$0xff]
    %v2787 = vld [vmem:[#allocation2 + $0x60] sm:$0xff]
    %v2788 = vld [vmem:[#allocation2 + $0x68] sm:$0xff]
    %v2789 = vld [vmem:[#allocation2 + $0x70] sm:$0xff]
    %v2790 = vld [vmem:[#allocation2 + $0x78] sm:$0xff]
    %v2791 = vld [vmem:[#allocation2 + $0x80] sm:$0xff]
    %v2792 = vld [vmem:[#allocation2 + $0x88] sm:$0xff]
    %v2793 = vld [vmem:[#allocation2 + $0x90] sm:$0xff]
    %v2794 = vld [vmem:[#allocation2 + $0x98] sm:$0xff]
    %v2795 = vld [vmem:[#allocation2 + $0xa0] sm:$0xff]
    %v2796 = vld [vmem:[#allocation2 + $0xa8] sm:$0xff]
    %v2797 = vld [vmem:[#allocation2 + $0xb0] sm:$0xff]
    %v2798 = vld [vmem:[#allocation2 + $0xb8] sm:$0xff]
    %v2799 = vld [vmem:[#allocation2 + $0xc0] sm:$0xff]
    %v2800 = vld [vmem:[#allocation2 + $0xc8] sm:$0xff]
    %v2801 = vld [vmem:[#allocation2 + $0xd0] sm:$0xff]
    %v2802 = vld [vmem:[#allocation2 + $0xd8] sm:$0xff]
    %v2803 = vld [vmem:[#allocation2 + $0xe0] sm:$0xff]
    %v2804 = vld [vmem:[#allocation2 + $0xe8] sm:$0xff]
    %v2805 = vld [vmem:[#allocation2 + $0xf0] sm:$0xff]
    %v2806 = vld [vmem:[#allocation2 + $0xf8] sm:$0xff]
    %v2807 = vld [vmem:[#allocation2 + $0x100] sm:$0xff]
    %v2808 = vld [vmem:[#allocation2 + $0x108] sm:$0xff]
    %v2809 = vld [vmem:[#allocation2 + $0x110] sm:$0xff]
    %v2810 = vld [vmem:[#allocation2 + $0x118] sm:$0xff]
    %v2811 = vld [vmem:[#allocation2 + $0x120] sm:$0xff]
    %v2812 = vld [vmem:[#allocation2 + $0x128] sm:$0xff]
    %v2813 = vld [vmem:[#allocation2 + $0x130] sm:$0xff]
    %v2814 = vld [vmem:[#allocation2 + $0x138] sm:$0xff]
    %v2815 = vld [vmem:[#allocation2 + $0x140] sm:$0xff]
    %v2816 = vld [vmem:[#allocation2 + $0x148] sm:$0xff]
    %v2817 = vld [vmem:[#allocation2 + $0x150] sm:$0xff]
    %v2818 = vld [vmem:[#allocation2 + $0x158] sm:$0xff]
    %v2819 = vld [vmem:[#allocation2 + $0x160] sm:$0xff]
    %v2820 = vld [vmem:[#allocation2 + $0x168] sm:$0xff]
    %v2821 = vld [vmem:[#allocation2 + $0x170] sm:$0xff]
    %v2822 = vld [vmem:[#allocation2 + $0x178] sm:$0xff]
    %v2823 = vld [vmem:[#allocation2 + $0x180] sm:$0xff]
    %v2824 = vld [vmem:[#allocation2 + $0x188] sm:$0xff]
    %v2825 = vld [vmem:[#allocation2 + $0x190] sm:$0xff]
    %v2826 = vld [vmem:[#allocation2 + $0x198] sm:$0xff]
    %v2827 = vld [vmem:[#allocation2 + $0x1a0] sm:$0xff]
    %v2828 = vld [vmem:[#allocation2 + $0x1a8] sm:$0xff]
    %v2829 = vld [vmem:[#allocation2 + $0x1b0] sm:$0xff]
    %v2830 = vld [vmem:[#allocation2 + $0x1b8] sm:$0xff]
    %v2831 = vld [vmem:[#allocation2 + $0x1c0] sm:$0xff]
    %v2832 = vld [vmem:[#allocation2 + $0x1c8] sm:$0xff]
    %v2833 = vld [vmem:[#allocation2 + $0x1d0] sm:$0xff]
    %v2834 = vld [vmem:[#allocation2 + $0x1d8] sm:$0xff]
    %v2835 = vld [vmem:[#allocation2 + $0x1e0] sm:$0xff]
    %v2836 = vld [vmem:[#allocation2 + $0x1e8] sm:$0xff]
    %v2837 = vld [vmem:[#allocation2 + $0x1f0] sm:$0xff]
    %v2838 = vld [vmem:[#allocation2 + $0x1f8] sm:$0xff]
    %v2839 = vld [vmem:[#allocation3] sm:$0xff]
    %v2840 = vld [vmem:[#allocation3 + $0x8] sm:$0xff]
    %v2841 = vld [vmem:[#allocation3 + $0x10] sm:$0xff]
    %v2842 = vld [vmem:[#allocation3 + $0x18] sm:$0xff]
    %v2843 = vld [vmem:[#allocation3 + $0x20] sm:$0xff]
    %v2844 = vld [vmem:[#allocation3 + $0x28] sm:$0xff]
    %v2845 = vld [vmem:[#allocation3 + $0x30] sm:$0xff]
    %v2846 = vld [vmem:[#allocation3 + $0x38] sm:$0xff]
    %v2847 = vld [vmem:[#allocation3 + $0x40] sm:$0xff]
    %v2848 = vld [vmem:[#allocation3 + $0x48] sm:$0xff]
    %v2849 = vld [vmem:[#allocation3 + $0x50] sm:$0xff]
    %v2850 = vld [vmem:[#allocation3 + $0x58] sm:$0xff]
    %v2851 = vld [vmem:[#allocation3 + $0x60] sm:$0xff]
    %v2852 = vld [vmem:[#allocation3 + $0x68] sm:$0xff]
    %v2853 = vld [vmem:[#allocation3 + $0x70] sm:$0xff]
    %v2854 = vld [vmem:[#allocation3 + $0x78] sm:$0xff]
    %v2855 = vld [vmem:[#allocation3 + $0x80] sm:$0xff]
    %v2856 = vld [vmem:[#allocation3 + $0x88] sm:$0xff]
    %v2857 = vld [vmem:[#allocation3 + $0x90] sm:$0xff]
    %v2858 = vld [vmem:[#allocation3 + $0x98] sm:$0xff]
    %v2859 = vld [vmem:[#allocation3 + $0xa0] sm:$0xff]
    %v2860 = vld [vmem:[#allocation3 + $0xa8] sm:$0xff]
    %v2861 = vld [vmem:[#allocation3 + $0xb0] sm:$0xff]
    %v2862 = vld [vmem:[#allocation3 + $0xb8] sm:$0xff]
    %v2863 = vld [vmem:[#allocation3 + $0xc0] sm:$0xff]
    %v2864 = vld [vmem:[#allocation3 + $0xc8] sm:$0xff]
    %v2865 = vld [vmem:[#allocation3 + $0xd0] sm:$0xff]
    %v2866 = vld [vmem:[#allocation3 + $0xd8] sm:$0xff]
    %v2867 = vld [vmem:[#allocation3 + $0xe0] sm:$0xff]
    %v2868 = vld [vmem:[#allocation3 + $0xe8] sm:$0xff]
    %v2869 = vld [vmem:[#allocation3 + $0xf0] sm:$0xff]
    %v2870 = vld [vmem:[#allocation3 + $0xf8] sm:$0xff]
    %v2871 = vld [vmem:[#allocation3 + $0x100] sm:$0xff]
    %v2872 = vld [vmem:[#allocation3 + $0x108] sm:$0xff]
    %v2873 = vld [vmem:[#allocation3 + $0x110] sm:$0xff]
    %v2874 = vld [vmem:[#allocation3 + $0x118] sm:$0xff]
    %v2875 = vld [vmem:[#allocation3 + $0x120] sm:$0xff]
    %v2876 = vld [vmem:[#allocation3 + $0x128] sm:$0xff]
    %v2877 = vld [vmem:[#allocation3 + $0x130] sm:$0xff]
    %v2878 = vld [vmem:[#allocation3 + $0x138] sm:$0xff]
    %v2879 = vld [vmem:[#allocation3 + $0x140] sm:$0xff]
    %v2880 = vld [vmem:[#allocation3 + $0x148] sm:$0xff]
    %v2881 = vld [vmem:[#allocation3 + $0x150] sm:$0xff]
    %v2882 = vld [vmem:[#allocation3 + $0x158] sm:$0xff]
    %v2883 = vld [vmem:[#allocation3 + $0x160] sm:$0xff]
    %v2884 = vld [vmem:[#allocation3 + $0x168] sm:$0xff]
    %v2885 = vld [vmem:[#allocation3 + $0x170] sm:$0xff]
    %v2886 = vld [vmem:[#allocation3 + $0x178] sm:$0xff]
    %v2887 = vld [vmem:[#allocation3 + $0x180] sm:$0xff]
    %v2888 = vld [vmem:[#allocation3 + $0x188] sm:$0xff]
    %v2889 = vld [vmem:[#allocation3 + $0x190] sm:$0xff]
    %v2890 = vld [vmem:[#allocation3 + $0x198] sm:$0xff]
    %v2891 = vld [vmem:[#allocation3 + $0x1a0] sm:$0xff]
    %v2892 = vld [vmem:[#allocation3 + $0x1a8] sm:$0xff]
    %v2893 = vld [vmem:[#allocation3 + $0x1b0] sm:$0xff]
    %v2894 = vld [vmem:[#allocation3 + $0x1b8] sm:$0xff]
    %v2895 = vld [vmem:[#allocation3 + $0x1c0] sm:$0xff]
    %v2896 = vld [vmem:[#allocation3 + $0x1c8] sm:$0xff]
    %v2897 = vld [vmem:[#allocation3 + $0x1d0] sm:$0xff]
    %v2898 = vld [vmem:[#allocation3 + $0x1d8] sm:$0xff]
    %v2899 = vld [vmem:[#allocation3 + $0x1e0] sm:$0xff]
    %v2900 = vld [vmem:[#allocation3 + $0x1e8] sm:$0xff]
    %v2901 = vld [vmem:[#allocation3 + $0x1f0] sm:$0xff]
    %v2902 = vld [vmem:[#allocation3 + $0x1f8] sm:$0xff]
    %2903 = vmatprep.subr.mxu0 %v2840
    %2904 = vmatpush1.msra.mxu0 %v2839
    %2905 = vmatprep.subr.mxu0 %v2844
    %2906 = vmatpush1.msra.mxu0 %v2843
    %2907 = vmatprep.subr.mxu0 %v2848
    %2908 = vmatpush1.msra.mxu0 %v2847
    %2909 = vmatprep.subr.mxu0 %v2852
    %2910 = vmatpush1.msra.mxu0 %v2851
    %2911 = vmatprep.subr.mxu0 %v2856
    %2912 = vmatpush1.msra.mxu0 %v2855
    %2913 = vmatprep.subr.mxu0 %v2860
    %2914 = vmatpush1.msra.mxu0 %v2859
    %2915 = vmatprep.subr.mxu0 %v2864
    %2916 = vmatpush1.msra.mxu0 %v2863
    %2917 = vmatprep.subr.mxu0 %v2868
    %2918 = vmatpush1.msra.mxu0 %v2867
    %2919 = vmatprep.subr.mxu0 %v2872
    %2920 = vmatpush1.msra.mxu0 %v2871
    %2921 = vmatprep.subr.mxu0 %v2876
    %2922 = vmatpush1.msra.mxu0 %v2875
    %2923 = vmatprep.subr.mxu0 %v2880
    %2924 = vmatpush1.msra.mxu0 %v2879
    %2925 = vmatprep.subr.mxu0 %v2884
    %2926 = vmatpush1.msra.mxu0 %v2883
    %2927 = vmatprep.subr.mxu0 %v2888
    %2928 = vmatpush1.msra.mxu0 %v2887
    %2929 = vmatprep.subr.mxu0 %v2892
    %2930 = vmatpush1.msra.mxu0 %v2891
    %2931 = vmatprep.subr.mxu0 %v2896
    %2932 = vmatpush1.msra.mxu0 %v2895
    %2933 = vmatprep.subr.mxu0 %v2900
    %2934 = vmatpush1.msra.mxu0 %v2899
    %2935 = vmatprep.subr.mxu0 0.0
    %2936 = vmatpush1.msra.mxu0 0.0
    %2937 = vmatprep.subr.mxu0 0.0
    %2938 = vmatpush1.msra.mxu0 0.0
    %2939 = vmatprep.subr.mxu0 0.0
    %2940 = vmatpush1.msra.mxu0 0.0
    %2941 = vmatprep.subr.mxu0 0.0
    %2942 = vmatpush1.msra.mxu0 0.0
    %2943 = vmatprep.subr.mxu0 0.0
    %2944 = vmatpush1.msra.mxu0 0.0
    %2945 = vmatprep.subr.mxu0 0.0
    %2946 = vmatpush1.msra.mxu0 0.0
    %2947 = vmatprep.subr.mxu0 0.0
    %2948 = vmatpush1.msra.mxu0 0.0
    %2949 = vmatprep.subr.mxu0 0.0
    %2950 = vmatpush1.msra.mxu0 0.0
    %2951 = vmatprep.subr.mxu0 0.0
    %2952 = vmatpush1.msra.mxu0 0.0
    %2953 = vmatprep.subr.mxu0 0.0
    %2954 = vmatpush1.msra.mxu0 0.0
    %2955 = vmatprep.subr.mxu0 0.0
    %2956 = vmatpush1.msra.mxu0 0.0
    %2957 = vmatprep.subr.mxu0 0.0
    %2958 = vmatpush1.msra.mxu0 0.0
    %2959 = vmatprep.subr.mxu0 0.0
    %2960 = vmatpush1.msra.mxu0 0.0
    %2961 = vmatprep.subr.mxu0 0.0
    %2962 = vmatpush1.msra.mxu0 0.0
    %2963 = vmatprep.subr.mxu0 0.0
    %2964 = vmatpush1.msra.mxu0 0.0
    %2965 = vmatprep.subr.mxu0 0.0
    %2966 = vmatpush1.msra.mxu0 0.0
    %2967 = vmatprep.mubr.f32.mxu0 0.0
    %2968 = vmatmul.mubr.f32.gmra.mrb[0].mxu0 %v2534
    %v2969 = vpop.f32.mrb[0].mxu0
    %v2970 = vadd.f32 0.0, %v2969
    %v2971 = vpop.f32.mrb[0].mxu0
    %v2972 = vadd.f32 0.0, %v2971
    %2973 = vdwg.mxu0
    %2974 = vmatprep.subr.mxu0 %v2842
    %2975 = vmatpush1.msra.mxu0 %v2841
    %2976 = vmatprep.subr.mxu0 %v2846
    %2977 = vmatpush1.msra.mxu0 %v2845
    %2978 = vmatprep.subr.mxu0 %v2850
    %2979 = vmatpush1.msra.mxu0 %v2849
    %2980 = vmatprep.subr.mxu0 %v2854
    %2981 = vmatpush1.msra.mxu0 %v2853
    %2982 = vmatprep.subr.mxu0 %v2858
    %2983 = vmatpush1.msra.mxu0 %v2857
    %2984 = vmatprep.subr.mxu0 %v2862
    %2985 = vmatpush1.msra.mxu0 %v2861
    %2986 = vmatprep.subr.mxu0 %v2866
    %2987 = vmatpush1.msra.mxu0 %v2865
    %2988 = vmatprep.subr.mxu0 %v2870
    %2989 = vmatpush1.msra.mxu0 %v2869
    %2990 = vmatprep.subr.mxu0 %v2874
    %2991 = vmatpush1.msra.mxu0 %v2873
    %2992 = vmatprep.subr.mxu0 %v2878
    %2993 = vmatpush1.msra.mxu0 %v2877
    %2994 = vmatprep.subr.mxu0 %v2882
    %2995 = vmatpush1.msra.mxu0 %v2881
    %2996 = vmatprep.subr.mxu0 %v2886
    %2997 = vmatpush1.msra.mxu0 %v2885
    %2998 = vmatprep.subr.mxu0 %v2890
    %2999 = vmatpush1.msra.mxu0 %v2889
    %3000 = vmatprep.subr.mxu0 %v2894
    %3001 = vmatpush1.msra.mxu0 %v2893
    %3002 = vmatprep.subr.mxu0 %v2898
    %3003 = vmatpush1.msra.mxu0 %v2897
    %3004 = vmatprep.subr.mxu0 %v2902
    %3005 = vmatpush1.msra.mxu0 %v2901
    %3006 = vmatprep.subr.mxu0 0.0
    %3007 = vmatpush1.msra.mxu0 0.0
    %3008 = vmatprep.subr.mxu0 0.0
    %3009 = vmatpush1.msra.mxu0 0.0
    %3010 = vmatprep.subr.mxu0 0.0
    %3011 = vmatpush1.msra.mxu0 0.0
    %3012 = vmatprep.subr.mxu0 0.0
    %3013 = vmatpush1.msra.mxu0 0.0
    %3014 = vmatprep.subr.mxu0 0.0
    %3015 = vmatpush1.msra.mxu0 0.0
    %3016 = vmatprep.subr.mxu0 0.0
    %3017 = vmatpush1.msra.mxu0 0.0
    %3018 = vmatprep.subr.mxu0 0.0
    %3019 = vmatpush1.msra.mxu0 0.0
    %3020 = vmatprep.subr.mxu0 0.0
    %3021 = vmatpush1.msra.mxu0 0.0
    %3022 = vmatprep.subr.mxu0 0.0
    %3023 = vmatpush1.msra.mxu0 0.0
    %3024 = vmatprep.subr.mxu0 0.0
    %3025 = vmatpush1.msra.mxu0 0.0
    %3026 = vmatprep.subr.mxu0 0.0
    %3027 = vmatpush1.msra.mxu0 0.0
    %3028 = vmatprep.subr.mxu0 0.0
    %3029 = vmatpush1.msra.mxu0 0.0
    %3030 = vmatprep.subr.mxu0 0.0
    %3031 = vmatpush1.msra.mxu0 0.0
    %3032 = vmatprep.subr.mxu0 0.0
    %3033 = vmatpush1.msra.mxu0 0.0
    %3034 = vmatprep.subr.mxu0 0.0
    %3035 = vmatpush1.msra.mxu0 0.0
    %3036 = vmatprep.subr.mxu0 0.0
    %3037 = vmatpush1.msra.mxu0 0.0
    %3038 = vmatprep.mubr.f32.mxu0 0.0
    %3039 = vmatmul.mubr.f32.gmra.mrb[0].mxu0 %v2534
    %v3040 = vpop.f32.mrb[0].mxu0
    %v3041 = vadd.f32 0.0, %v3040
    %v3042 = vpop.f32.mrb[0].mxu0
    %v3043 = vadd.f32 0.0, %v3042
    %3044 = vdwg.mxu0
    %3045 = vmatprep.subr.mxu0 %v2776
    %3046 = vmatpush1.msra.mxu0 %v2775
    %3047 = vmatprep.subr.mxu0 %v2780
    %3048 = vmatpush1.msra.mxu0 %v2779
    %3049 = vmatprep.subr.mxu0 %v2784
    %3050 = vmatpush1.msra.mxu0 %v2783
    %3051 = vmatprep.subr.mxu0 %v2788
    %3052 = vmatpush1.msra.mxu0 %v2787
    %3053 = vmatprep.subr.mxu0 %v2792
    %3054 = vmatpush1.msra.mxu0 %v2791
    %3055 = vmatprep.subr.mxu0 %v2796
    %3056 = vmatpush1.msra.mxu0 %v2795
    %3057 = vmatprep.subr.mxu0 %v2800
    %3058 = vmatpush1.msra.mxu0 %v2799
    %3059 = vmatprep.subr.mxu0 %v2804
    %3060 = vmatpush1.msra.mxu0 %v2803
    %3061 = vmatprep.subr.mxu0 %v2808
    %3062 = vmatpush1.msra.mxu0 %v2807
    %3063 = vmatprep.subr.mxu0 %v2812
    %3064 = vmatpush1.msra.mxu0 %v2811
    %3065 = vmatprep.subr.mxu0 %v2816
    %3066 = vmatpush1.msra.mxu0 %v2815
    %3067 = vmatprep.subr.mxu0 %v2820
    %3068 = vmatpush1.msra.mxu0 %v2819
    %3069 = vmatprep.subr.mxu0 %v2824
    %3070 = vmatpush1.msra.mxu0 %v2823
    %3071 = vmatprep.subr.mxu0 %v2828
    %3072 = vmatpush1.msra.mxu0 %v2827
    %3073 = vmatprep.subr.mxu0 %v2832
    %3074 = vmatpush1.msra.mxu0 %v2831
    %3075 = vmatprep.subr.mxu0 %v2836
    %3076 = vmatpush1.msra.mxu0 %v2835
    %3077 = vmatprep.subr.mxu0 0.0
    %3078 = vmatpush1.msra.mxu0 0.0
    %3079 = vmatprep.subr.mxu0 0.0
    %3080 = vmatpush1.msra.mxu0 0.0
    %3081 = vmatprep.subr.mxu0 0.0
    %3082 = vmatpush1.msra.mxu0 0.0
    %3083 = vmatprep.subr.mxu0 0.0
    %3084 = vmatpush1.msra.mxu0 0.0
    %3085 = vmatprep.subr.mxu0 0.0
    %3086 = vmatpush1.msra.mxu0 0.0
    %3087 = vmatprep.subr.mxu0 0.0
    %3088 = vmatpush1.msra.mxu0 0.0
    %3089 = vmatprep.subr.mxu0 0.0
    %3090 = vmatpush1.msra.mxu0 0.0
    %3091 = vmatprep.subr.mxu0 0.0
    %3092 = vmatpush1.msra.mxu0 0.0
    %3093 = vmatprep.subr.mxu0 0.0
    %3094 = vmatpush1.msra.mxu0 0.0
    %3095 = vmatprep.subr.mxu0 0.0
    %3096 = vmatpush1.msra.mxu0 0.0
    %3097 = vmatprep.subr.mxu0 0.0
    %3098 = vmatpush1.msra.mxu0 0.0
    %3099 = vmatprep.subr.mxu0 0.0
    %3100 = vmatpush1.msra.mxu0 0.0
    %3101 = vmatprep.subr.mxu0 0.0
    %3102 = vmatpush1.msra.mxu0 0.0
    %3103 = vmatprep.subr.mxu0 0.0
    %3104 = vmatpush1.msra.mxu0 0.0
    %3105 = vmatprep.subr.mxu0 0.0
    %3106 = vmatpush1.msra.mxu0 0.0
    %3107 = vmatprep.subr.mxu0 0.0
    %3108 = vmatpush1.msra.mxu0 0.0
    %3109 = vmatprep.mubr.f32.mxu0 0.0
    %3110 = vmatmul.mubr.f32.gmra.mrb[0].mxu0 %v2774
    %v3111 = vpop.f32.mrb[0].mxu0
    %v3112 = vadd.f32 %v2970, %v3111
    %v3113 = vpop.f32.mrb[0].mxu0
    %v3114 = vadd.f32 %v2972, %v3113
    %3115 = vdwg.mxu0
    %3116 = vmatprep.subr.mxu0 %v2778
    %3117 = vmatpush1.msra.mxu0 %v2777
    %3118 = vmatprep.subr.mxu0 %v2782
    %3119 = vmatpush1.msra.mxu0 %v2781
    %3120 = vmatprep.subr.mxu0 %v2786
    %3121 = vmatpush1.msra.mxu0 %v2785
    %3122 = vmatprep.subr.mxu0 %v2790
    %3123 = vmatpush1.msra.mxu0 %v2789
    %3124 = vmatprep.subr.mxu0 %v2794
    %3125 = vmatpush1.msra.mxu0 %v2793
    %3126 = vmatprep.subr.mxu0 %v2798
    %3127 = vmatpush1.msra.mxu0 %v2797
    %3128 = vmatprep.subr.mxu0 %v2802
    %3129 = vmatpush1.msra.mxu0 %v2801
    %3130 = vmatprep.subr.mxu0 %v2806
    %3131 = vmatpush1.msra.mxu0 %v2805
    %3132 = vmatprep.subr.mxu0 %v2810
    %3133 = vmatpush1.msra.mxu0 %v2809
    %3134 = vmatprep.subr.mxu0 %v2814
    %3135 = vmatpush1.msra.mxu0 %v2813
    %3136 = vmatprep.subr.mxu0 %v2818
    %3137 = vmatpush1.msra.mxu0 %v2817
    %3138 = vmatprep.subr.mxu0 %v2822
    %3139 = vmatpush1.msra.mxu0 %v2821
    %3140 = vmatprep.subr.mxu0 %v2826
    %3141 = vmatpush1.msra.mxu0 %v2825
    %3142 = vmatprep.subr.mxu0 %v2830
    %3143 = vmatpush1.msra.mxu0 %v2829
    %3144 = vmatprep.subr.mxu0 %v2834
    %3145 = vmatpush1.msra.mxu0 %v2833
    %3146 = vmatprep.subr.mxu0 %v2838
    %3147 = vmatpush1.msra.mxu0 %v2837
    %3148 = vmatprep.subr.mxu0 0.0
    %3149 = vmatpush1.msra.mxu0 0.0
    %3150 = vmatprep.subr.mxu0 0.0
    %3151 = vmatpush1.msra.mxu0 0.0
    %3152 = vmatprep.subr.mxu0 0.0
    %3153 = vmatpush1.msra.mxu0 0.0
    %3154 = vmatprep.subr.mxu0 0.0
    %3155 = vmatpush1.msra.mxu0 0.0
    %3156 = vmatprep.subr.mxu0 0.0
    %3157 = vmatpush1.msra.mxu0 0.0
    %3158 = vmatprep.subr.mxu0 0.0
    %3159 = vmatpush1.msra.mxu0 0.0
    %3160 = vmatprep.subr.mxu0 0.0
    %3161 = vmatpush1.msra.mxu0 0.0
    %3162 = vmatprep.subr.mxu0 0.0
    %3163 = vmatpush1.msra.mxu0 0.0
    %3164 = vmatprep.subr.mxu0 0.0
    %3165 = vmatpush1.msra.mxu0 0.0
    %3166 = vmatprep.subr.mxu0 0.0
    %3167 = vmatpush1.msra.mxu0 0.0
    %3168 = vmatprep.subr.mxu0 0.0
    %3169 = vmatpush1.msra.mxu0 0.0
    %3170 = vmatprep.subr.mxu0 0.0
    %3171 = vmatpush1.msra.mxu0 0.0
    %3172 = vmatprep.subr.mxu0 0.0
    %3173 = vmatpush1.msra.mxu0 0.0
    %3174 = vmatprep.subr.mxu0 0.0
    %3175 = vmatpush1.msra.mxu0 0.0
    %3176 = vmatprep.subr.mxu0 0.0
    %3177 = vmatpush1.msra.mxu0 0.0
    %3178 = vmatprep.subr.mxu0 0.0
    %3179 = vmatpush1.msra.mxu0 0.0
    %3180 = vmatprep.mubr.f32.mxu0 0.0
    %3181 = vmatmul.mubr.f32.gmra.mrb[0].mxu0 %v2774
    %v3182 = vpop.f32.mrb[0].mxu0
    %v3183 = vadd.f32 %v3041, %v3182
    %v3184 = vpop.f32.mrb[0].mxu0
    %v3185 = vadd.f32 %v3043, %v3184
    %3186 = vdwg.mxu0
    %v3187 = vadd.f32 %v3112, %v311
    %v3188 = vadd.f32 %v3114, %v315
    %v3189 = vadd.f32 %v3183, %v319
    %v3190 = vadd.f32 %v3185, %v323
    %v3191 = vxor.u32 %v3187, 2147483648
    %v3192 = vxor.u32 %v3188, 2147483648
    %v3193 = vxor.u32 %v3189, 2147483648
    %v3194 = vmul.f32 %v3191, 1.442695
    %v3195 = vpow.pop %v3194
    %v3196 = vmul.f32 %v3192, 1.442695
    %v3197 = vpow.pop %v3196
    %v3198 = vmul.f32 %v3193, 1.442695
    %v3199 = vpow.pop %v3198
    %v3200 = vadd.f32 %v3195, 1.0
    %v3201 = vadd.f32 %v3197, 1.0
    %v3202 = vadd.f32 %v3199, 1.0
    %v3203 = vrcp.pop %v3200
    %v3204 = vmul.f32 1.0, %v3203
    %v3205 = vrcp.pop %v3201
    %v3206 = vmul.f32 1.0, %v3205
    %v3207 = vrcp.pop %v3202
    %v3208 = vmul.f32 1.0, %v3207
    %v3209 = vtanh.pop %v3190
    %v3210 = vmul.f32 %v3206, %v2532
    %v3211 = vmul.f32 %v3204, %v3209
    %v3212 = vadd.f32 %v3210, %v3211
    %v3213 = vtanh.pop %v3212
    %v3214 = vmul.f32 %v3208, %v3213
    %v3215 = vmul.f32 %v3214, %v489
    %3216 = vadd.xlane.f32.xlu0 %v3215
    %v3217 = vpop.xlane.xlu0 %3216
    %v3218 = vadd.f32 %v3217, %v498
    %3220 = vrot.lane.b32.xlu0 %v3218, 4
    %v3221 = vpop.permute.xlu0 %3220
    %vm3223 = vcmask 39968
    %3224 = vst.msk [vmem:[#allocation11] sm:$0xff] %vm3223, %v3221
    %v3225 = vld [vmem:[#allocation9] sm:$0xff]
    %v3226 = vld [vmem:[#allocation9 + $0x8] sm:$0xff]
    %v3227 = vld [vmem:[#allocation9 + $0x10] sm:$0xff]
    %v3228 = vld [vmem:[#allocation9 + $0x18] sm:$0xff]
    %v3229 = vld [vmem:[#allocation9 + $0x20] sm:$0xff]
    %v3230 = vld [vmem:[#allocation9 + $0x28] sm:$0xff]
    %v3231 = vld [vmem:[#allocation9 + $0x30] sm:$0xff]
    %v3232 = vld [vmem:[#allocation9 + $0x38] sm:$0xff]
    %v3233 = vld [vmem:[#allocation9 + $0x40] sm:$0xff]
    %v3234 = vld [vmem:[#allocation9 + $0x48] sm:$0xff]
    %v3235 = vld [vmem:[#allocation9 + $0x50] sm:$0xff]
    %v3236 = vld [vmem:[#allocation9 + $0x58] sm:$0xff]
    %v3237 = vld [vmem:[#allocation9 + $0x60] sm:$0xff]
    %v3238 = vld [vmem:[#allocation9 + $0x68] sm:$0xff]
    %v3239 = vld [vmem:[#allocation9 + $0x70] sm:$0xff]
    %v3240 = vld [vmem:[#allocation9 + $0x78] sm:$0xff]
    %v3241 = vld [vmem:[#allocation9 + $0x80] sm:$0xff]
    %v3242 = vld [vmem:[#allocation9 + $0x88] sm:$0xff]
    %v3243 = vld [vmem:[#allocation9 + $0x90] sm:$0xff]
    %v3244 = vld [vmem:[#allocation9 + $0x98] sm:$0xff]
    %v3245 = vld [vmem:[#allocation9 + $0xa0] sm:$0xff]
    %v3246 = vld [vmem:[#allocation9 + $0xa8] sm:$0xff]
    %v3247 = vld [vmem:[#allocation9 + $0xb0] sm:$0xff]
    %v3248 = vld [vmem:[#allocation9 + $0xb8] sm:$0xff]
    %v3249 = vld [vmem:[#allocation9 + $0xc0] sm:$0xff]
    %v3250 = vld [vmem:[#allocation9 + $0xc8] sm:$0xff]
    %v3251 = vld [vmem:[#allocation9 + $0xd0] sm:$0xff]
    %v3252 = vld [vmem:[#allocation9 + $0xd8] sm:$0xff]
    %v3253 = vld [vmem:[#allocation9 + $0xe0] sm:$0xff]
    %v3254 = vld [vmem:[#allocation9 + $0xe8] sm:$0xff]
    %v3255 = vld [vmem:[#allocation9 + $0xf0] sm:$0xff]
    %v3256 = vld [vmem:[#allocation9 + $0xf8] sm:$0xff]
    %v3257 = vld [vmem:[#allocation9 + $0x100] sm:$0xff]
    %v3258 = vld [vmem:[#allocation9 + $0x108] sm:$0xff]
    %v3259 = vld [vmem:[#allocation9 + $0x110] sm:$0xff]
    %v3260 = vld [vmem:[#allocation9 + $0x118] sm:$0xff]
    %v3261 = vld [vmem:[#allocation9 + $0x120] sm:$0xff]
    %v3262 = vld [vmem:[#allocation9 + $0x128] sm:$0xff]
    %v3263 = vld [vmem:[#allocation9 + $0x130] sm:$0xff]
    %v3264 = vld [vmem:[#allocation9 + $0x138] sm:$0xff]
    %v3265 = vld [vmem:[#allocation9 + $0x140] sm:$0xff]
    %v3266 = vld [vmem:[#allocation9 + $0x148] sm:$0xff]
    %v3267 = vld [vmem:[#allocation9 + $0x150] sm:$0xff]
    %v3268 = vld [vmem:[#allocation9 + $0x158] sm:$0xff]
    %v3269 = vld [vmem:[#allocation9 + $0x160] sm:$0xff]
    %v3270 = vld [vmem:[#allocation9 + $0x168] sm:$0xff]
    %v3271 = vld [vmem:[#allocation9 + $0x170] sm:$0xff]
    %v3272 = vld [vmem:[#allocation9 + $0x178] sm:$0xff]
    %v3273 = vld [vmem:[#allocation9 + $0x180] sm:$0xff]
    %v3274 = vld [vmem:[#allocation9 + $0x188] sm:$0xff]
    %v3275 = vld [vmem:[#allocation9 + $0x190] sm:$0xff]
    %v3276 = vld [vmem:[#allocation9 + $0x198] sm:$0xff]
    %v3277 = vld [vmem:[#allocation9 + $0x1a0] sm:$0xff]
    %v3278 = vld [vmem:[#allocation9 + $0x1a8] sm:$0xff]
    %v3279 = vld [vmem:[#allocation9 + $0x1b0] sm:$0xff]
    %v3280 = vld [vmem:[#allocation9 + $0x1b8] sm:$0xff]
    %v3281 = vld [vmem:[#allocation9 + $0x1c0] sm:$0xff]
    %v3282 = vld [vmem:[#allocation9 + $0x1c8] sm:$0xff]
    %v3283 = vld [vmem:[#allocation9 + $0x1d0] sm:$0xff]
    %v3284 = vld [vmem:[#allocation9 + $0x1d8] sm:$0xff]
    %v3285 = vld [vmem:[#allocation9 + $0x1e0] sm:$0xff]
    %v3286 = vld [vmem:[#allocation9 + $0x1e8] sm:$0xff]
    %v3287 = vld [vmem:[#allocation9 + $0x1f0] sm:$0xff]
    %v3288 = vld [vmem:[#allocation9 + $0x1f8] sm:$0xff]
    %3289 = vmatprep.subr.mxu0 %v3226
    %3290 = vmatpush1.msra.mxu0 %v3225
    %3291 = vmatprep.subr.mxu0 %v3230
    %3292 = vmatpush1.msra.mxu0 %v3229
    %3293 = vmatprep.subr.mxu0 %v3234
    %3294 = vmatpush1.msra.mxu0 %v3233
    %3295 = vmatprep.subr.mxu0 %v3238
    %3296 = vmatpush1.msra.mxu0 %v3237
    %3297 = vmatprep.subr.mxu0 %v3242
    %3298 = vmatpush1.msra.mxu0 %v3241
    %3299 = vmatprep.subr.mxu0 %v3246
    %3300 = vmatpush1.msra.mxu0 %v3245
    %3301 = vmatprep.subr.mxu0 %v3250
    %3302 = vmatpush1.msra.mxu0 %v3249
    %3303 = vmatprep.subr.mxu0 %v3254
    %3304 = vmatpush1.msra.mxu0 %v3253
    %3305 = vmatprep.subr.mxu0 %v3258
    %3306 = vmatpush1.msra.mxu0 %v3257
    %3307 = vmatprep.subr.mxu0 %v3262
    %3308 = vmatpush1.msra.mxu0 %v3261
    %3309 = vmatprep.subr.mxu0 %v3266
    %3310 = vmatpush1.msra.mxu0 %v3265
    %3311 = vmatprep.subr.mxu0 %v3270
    %3312 = vmatpush1.msra.mxu0 %v3269
    %3313 = vmatprep.subr.mxu0 %v3274
    %3314 = vmatpush1.msra.mxu0 %v3273
    %3315 = vmatprep.subr.mxu0 %v3278
    %3316 = vmatpush1.msra.mxu0 %v3277
    %3317 = vmatprep.subr.mxu0 %v3282
    %3318 = vmatpush1.msra.mxu0 %v3281
    %3319 = vmatprep.subr.mxu0 %v3286
    %3320 = vmatpush1.msra.mxu0 %v3285
    %3321 = vmatprep.subr.mxu0 0.0
    %3322 = vmatpush1.msra.mxu0 0.0
    %3323 = vmatprep.subr.mxu0 0.0
    %3324 = vmatpush1.msra.mxu0 0.0
    %3325 = vmatprep.subr.mxu0 0.0
    %3326 = vmatpush1.msra.mxu0 0.0
    %3327 = vmatprep.subr.mxu0 0.0
    %3328 = vmatpush1.msra.mxu0 0.0
    %3329 = vmatprep.subr.mxu0 0.0
    %3330 = vmatpush1.msra.mxu0 0.0
    %3331 = vmatprep.subr.mxu0 0.0
    %3332 = vmatpush1.msra.mxu0 0.0
    %3333 = vmatprep.subr.mxu0 0.0
    %3334 = vmatpush1.msra.mxu0 0.0
    %3335 = vmatprep.subr.mxu0 0.0
    %3336 = vmatpush1.msra.mxu0 0.0
    %3337 = vmatprep.subr.mxu0 0.0
    %3338 = vmatpush1.msra.mxu0 0.0
    %3339 = vmatprep.subr.mxu0 0.0
    %3340 = vmatpush1.msra.mxu0 0.0
    %3341 = vmatprep.subr.mxu0 0.0
    %3342 = vmatpush1.msra.mxu0 0.0
    %3343 = vmatprep.subr.mxu0 0.0
    %3344 = vmatpush1.msra.mxu0 0.0
    %3345 = vmatprep.subr.mxu0 0.0
    %3346 = vmatpush1.msra.mxu0 0.0
    %3347 = vmatprep.subr.mxu0 0.0
    %3348 = vmatpush1.msra.mxu0 0.0
    %3349 = vmatprep.subr.mxu0 0.0
    %3350 = vmatpush1.msra.mxu0 0.0
    %3351 = vmatprep.subr.mxu0 0.0
    %3352 = vmatpush1.msra.mxu0 0.0
    %3353 = vmatprep.mubr.f32.mxu0 0.0
    %3354 = vmatmul.mubr.f32.gmra.mrb[0].mxu0 %v2774
    %v3355 = vpop.f32.mrb[0].mxu0
    %v3356 = vadd.f32 %v195, %v3355
    %v3357 = vpop.f32.mrb[0].mxu0
    %v3358 = vadd.f32 %v196, %v3357
    %3359 = vdwg.mxu0
    %3360 = vmatprep.subr.mxu0 %v3228
    %3361 = vmatpush1.msra.mxu0 %v3227
    %3362 = vmatprep.subr.mxu0 %v3232
    %3363 = vmatpush1.msra.mxu0 %v3231
    %3364 = vmatprep.subr.mxu0 %v3236
    %3365 = vmatpush1.msra.mxu0 %v3235
    %3366 = vmatprep.subr.mxu0 %v3240
    %3367 = vmatpush1.msra.mxu0 %v3239
    %3368 = vmatprep.subr.mxu0 %v3244
    %3369 = vmatpush1.msra.mxu0 %v3243
    %3370 = vmatprep.subr.mxu0 %v3248
    %3371 = vmatpush1.msra.mxu0 %v3247
    %3372 = vmatprep.subr.mxu0 %v3252
    %3373 = vmatpush1.msra.mxu0 %v3251
    %3374 = vmatprep.subr.mxu0 %v3256
    %3375 = vmatpush1.msra.mxu0 %v3255
    %3376 = vmatprep.subr.mxu0 %v3260
    %3377 = vmatpush1.msra.mxu0 %v3259
    %3378 = vmatprep.subr.mxu0 %v3264
    %3379 = vmatpush1.msra.mxu0 %v3263
    %3380 = vmatprep.subr.mxu0 %v3268
    %3381 = vmatpush1.msra.mxu0 %v3267
    %3382 = vmatprep.subr.mxu0 %v3272
    %3383 = vmatpush1.msra.mxu0 %v3271
    %3384 = vmatprep.subr.mxu0 %v3276
    %3385 = vmatpush1.msra.mxu0 %v3275
    %3386 = vmatprep.subr.mxu0 %v3280
    %3387 = vmatpush1.msra.mxu0 %v3279
    %3388 = vmatprep.subr.mxu0 %v3284
    %3389 = vmatpush1.msra.mxu0 %v3283
    %3390 = vmatprep.subr.mxu0 %v3288
    %3391 = vmatpush1.msra.mxu0 %v3287
    %3392 = vmatprep.subr.mxu0 0.0
    %3393 = vmatpush1.msra.mxu0 0.0
    %3394 = vmatprep.subr.mxu0 0.0
    %3395 = vmatpush1.msra.mxu0 0.0
    %3396 = vmatprep.subr.mxu0 0.0
    %3397 = vmatpush1.msra.mxu0 0.0
    %3398 = vmatprep.subr.mxu0 0.0
    %3399 = vmatpush1.msra.mxu0 0.0
    %3400 = vmatprep.subr.mxu0 0.0
    %3401 = vmatpush1.msra.mxu0 0.0
    %3402 = vmatprep.subr.mxu0 0.0
    %3403 = vmatpush1.msra.mxu0 0.0
    %3404 = vmatprep.subr.mxu0 0.0
    %3405 = vmatpush1.msra.mxu0 0.0
    %3406 = vmatprep.subr.mxu0 0.0
    %3407 = vmatpush1.msra.mxu0 0.0
    %3408 = vmatprep.subr.mxu0 0.0
    %3409 = vmatpush1.msra.mxu0 0.0
    %3410 = vmatprep.subr.mxu0 0.0
    %3411 = vmatpush1.msra.mxu0 0.0
    %3412 = vmatprep.subr.mxu0 0.0
    %3413 = vmatpush1.msra.mxu0 0.0
    %3414 = vmatprep.subr.mxu0 0.0
    %3415 = vmatpush1.msra.mxu0 0.0
    %3416 = vmatprep.subr.mxu0 0.0
    %3417 = vmatpush1.msra.mxu0 0.0
    %3418 = vmatprep.subr.mxu0 0.0
    %3419 = vmatpush1.msra.mxu0 0.0
    %3420 = vmatprep.subr.mxu0 0.0
    %3421 = vmatpush1.msra.mxu0 0.0
    %3422 = vmatprep.subr.mxu0 0.0
    %3423 = vmatpush1.msra.mxu0 0.0
    %3424 = vmatprep.mubr.f32.mxu0 0.0
    %3425 = vmatmul.mubr.f32.gmra.mrb[0].mxu0 %v2774
    %v3426 = vpop.f32.mrb[0].mxu0
    %v3427 = vadd.f32 %v197, %v3426
    %v3428 = vpop.f32.mrb[0].mxu0
    %v3429 = vadd.f32 %v198, %v3428
    %3430 = vdwg.mxu0
    %v3431 = vxor.u32 %v3356, 2147483648
    %v3432 = vxor.u32 %v3358, 2147483648
    %v3433 = vxor.u32 %v3427, 2147483648
    %v3434 = vmul.f32 %v3431, 1.442695
    %v3435 = vpow.pop %v3434
    %v3436 = vmul.f32 %v3432, 1.442695
    %v3437 = vpow.pop %v3436
    %v3438 = vmul.f32 %v3433, 1.442695
    %v3439 = vpow.pop %v3438
    %v3440 = vadd.f32 %v3435, 1.0
    %v3441 = vadd.f32 %v3437, 1.0
    %v3442 = vadd.f32 %v3439, 1.0
    %v3443 = vrcp.pop %v3440
    %v3444 = vmul.f32 1.0, %v3443
    %v3445 = vrcp.pop %v3441
    %v3446 = vmul.f32 1.0, %v3445
    %v3447 = vrcp.pop %v3442
    %v3448 = vmul.f32 1.0, %v3447
    %v3449 = vtanh.pop %v3429
    %v3450 = vmul.f32 %v3446, %v2772
    %v3451 = vmul.f32 %v3444, %v3449
    %v3452 = vadd.f32 %v3450, %v3451
    %v3453 = vtanh.pop %v3452
    %v3454 = vmul.f32 %v3448, %v3453
    %v3455 = vld [vmem:[#allocation2] sm:$0xff]
    %v3456 = vld [vmem:[#allocation2 + $0x8] sm:$0xff]
    %v3457 = vld [vmem:[#allocation2 + $0x10] sm:$0xff]
    %v3458 = vld [vmem:[#allocation2 + $0x18] sm:$0xff]
    %v3459 = vld [vmem:[#allocation2 + $0x20] sm:$0xff]
    %v3460 = vld [vmem:[#allocation2 + $0x28] sm:$0xff]
    %v3461 = vld [vmem:[#allocation2 + $0x30] sm:$0xff]
    %v3462 = vld [vmem:[#allocation2 + $0x38] sm:$0xff]
    %v3463 = vld [vmem:[#allocation2 + $0x40] sm:$0xff]
    %v3464 = vld [vmem:[#allocation2 + $0x48] sm:$0xff]
    %v3465 = vld [vmem:[#allocation2 + $0x50] sm:$0xff]
    %v3466 = vld [vmem:[#allocation2 + $0x58] sm:$0xff]
    %v3467 = vld [vmem:[#allocation2 + $0x60] sm:$0xff]
    %v3468 = vld [vmem:[#allocation2 + $0x68] sm:$0xff]
    %v3469 = vld [vmem:[#allocation2 + $0x70] sm:$0xff]
    %v3470 = vld [vmem:[#allocation2 + $0x78] sm:$0xff]
    %v3471 = vld [vmem:[#allocation2 + $0x80] sm:$0xff]
    %v3472 = vld [vmem:[#allocation2 + $0x88] sm:$0xff]
    %v3473 = vld [vmem:[#allocation2 + $0x90] sm:$0xff]
    %v3474 = vld [vmem:[#allocation2 + $0x98] sm:$0xff]
    %v3475 = vld [vmem:[#allocation2 + $0xa0] sm:$0xff]
    %v3476 = vld [vmem:[#allocation2 + $0xa8] sm:$0xff]
    %v3477 = vld [vmem:[#allocation2 + $0xb0] sm:$0xff]
    %v3478 = vld [vmem:[#allocation2 + $0xb8] sm:$0xff]
    %v3479 = vld [vmem:[#allocation2 + $0xc0] sm:$0xff]
    %v3480 = vld [vmem:[#allocation2 + $0xc8] sm:$0xff]
    %v3481 = vld [vmem:[#allocation2 + $0xd0] sm:$0xff]
    %v3482 = vld [vmem:[#allocation2 + $0xd8] sm:$0xff]
    %v3483 = vld [vmem:[#allocation2 + $0xe0] sm:$0xff]
    %v3484 = vld [vmem:[#allocation2 + $0xe8] sm:$0xff]
    %v3485 = vld [vmem:[#allocation2 + $0xf0] sm:$0xff]
    %v3486 = vld [vmem:[#allocation2 + $0xf8] sm:$0xff]
    %v3487 = vld [vmem:[#allocation2 + $0x100] sm:$0xff]
    %v3488 = vld [vmem:[#allocation2 + $0x108] sm:$0xff]
    %v3489 = vld [vmem:[#allocation2 + $0x110] sm:$0xff]
    %v3490 = vld [vmem:[#allocation2 + $0x118] sm:$0xff]
    %v3491 = vld [vmem:[#allocation2 + $0x120] sm:$0xff]
    %v3492 = vld [vmem:[#allocation2 + $0x128] sm:$0xff]
    %v3493 = vld [vmem:[#allocation2 + $0x130] sm:$0xff]
    %v3494 = vld [vmem:[#allocation2 + $0x138] sm:$0xff]
    %v3495 = vld [vmem:[#allocation2 + $0x140] sm:$0xff]
    %v3496 = vld [vmem:[#allocation2 + $0x148] sm:$0xff]
    %v3497 = vld [vmem:[#allocation2 + $0x150] sm:$0xff]
    %v3498 = vld [vmem:[#allocation2 + $0x158] sm:$0xff]
    %v3499 = vld [vmem:[#allocation2 + $0x160] sm:$0xff]
    %v3500 = vld [vmem:[#allocation2 + $0x168] sm:$0xff]
    %v3501 = vld [vmem:[#allocation2 + $0x170] sm:$0xff]
    %v3502 = vld [vmem:[#allocation2 + $0x178] sm:$0xff]
    %v3503 = vld [vmem:[#allocation2 + $0x180] sm:$0xff]
    %v3504 = vld [vmem:[#allocation2 + $0x188] sm:$0xff]
    %v3505 = vld [vmem:[#allocation2 + $0x190] sm:$0xff]
    %v3506 = vld [vmem:[#allocation2 + $0x198] sm:$0xff]
    %v3507 = vld [vmem:[#allocation2 + $0x1a0] sm:$0xff]
    %v3508 = vld [vmem:[#allocation2 + $0x1a8] sm:$0xff]
    %v3509 = vld [vmem:[#allocation2 + $0x1b0] sm:$0xff]
    %v3510 = vld [vmem:[#allocation2 + $0x1b8] sm:$0xff]
    %v3511 = vld [vmem:[#allocation2 + $0x1c0] sm:$0xff]
    %v3512 = vld [vmem:[#allocation2 + $0x1c8] sm:$0xff]
    %v3513 = vld [vmem:[#allocation2 + $0x1d0] sm:$0xff]
    %v3514 = vld [vmem:[#allocation2 + $0x1d8] sm:$0xff]
    %v3515 = vld [vmem:[#allocation2 + $0x1e0] sm:$0xff]
    %v3516 = vld [vmem:[#allocation2 + $0x1e8] sm:$0xff]
    %v3517 = vld [vmem:[#allocation2 + $0x1f0] sm:$0xff]
    %v3518 = vld [vmem:[#allocation2 + $0x1f8] sm:$0xff]
    %v3519 = vld [vmem:[#allocation3] sm:$0xff]
    %v3520 = vld [vmem:[#allocation3 + $0x8] sm:$0xff]
    %v3521 = vld [vmem:[#allocation3 + $0x10] sm:$0xff]
    %v3522 = vld [vmem:[#allocation3 + $0x18] sm:$0xff]
    %v3523 = vld [vmem:[#allocation3 + $0x20] sm:$0xff]
    %v3524 = vld [vmem:[#allocation3 + $0x28] sm:$0xff]
    %v3525 = vld [vmem:[#allocation3 + $0x30] sm:$0xff]
    %v3526 = vld [vmem:[#allocation3 + $0x38] sm:$0xff]
    %v3527 = vld [vmem:[#allocation3 + $0x40] sm:$0xff]
    %v3528 = vld [vmem:[#allocation3 + $0x48] sm:$0xff]
    %v3529 = vld [vmem:[#allocation3 + $0x50] sm:$0xff]
    %v3530 = vld [vmem:[#allocation3 + $0x58] sm:$0xff]
    %v3531 = vld [vmem:[#allocation3 + $0x60] sm:$0xff]
    %v3532 = vld [vmem:[#allocation3 + $0x68] sm:$0xff]
    %v3533 = vld [vmem:[#allocation3 + $0x70] sm:$0xff]
    %v3534 = vld [vmem:[#allocation3 + $0x78] sm:$0xff]
    %v3535 = vld [vmem:[#allocation3 + $0x80] sm:$0xff]
    %v3536 = vld [vmem:[#allocation3 + $0x88] sm:$0xff]
    %v3537 = vld [vmem:[#allocation3 + $0x90] sm:$0xff]
    %v3538 = vld [vmem:[#allocation3 + $0x98] sm:$0xff]
    %v3539 = vld [vmem:[#allocation3 + $0xa0] sm:$0xff]
    %v3540 = vld [vmem:[#allocation3 + $0xa8] sm:$0xff]
    %v3541 = vld [vmem:[#allocation3 + $0xb0] sm:$0xff]
    %v3542 = vld [vmem:[#allocation3 + $0xb8] sm:$0xff]
    %v3543 = vld [vmem:[#allocation3 + $0xc0] sm:$0xff]
    %v3544 = vld [vmem:[#allocation3 + $0xc8] sm:$0xff]
    %v3545 = vld [vmem:[#allocation3 + $0xd0] sm:$0xff]
    %v3546 = vld [vmem:[#allocation3 + $0xd8] sm:$0xff]
    %v3547 = vld [vmem:[#allocation3 + $0xe0] sm:$0xff]
    %v3548 = vld [vmem:[#allocation3 + $0xe8] sm:$0xff]
    %v3549 = vld [vmem:[#allocation3 + $0xf0] sm:$0xff]
    %v3550 = vld [vmem:[#allocation3 + $0xf8] sm:$0xff]
    %v3551 = vld [vmem:[#allocation3 + $0x100] sm:$0xff]
    %v3552 = vld [vmem:[#allocation3 + $0x108] sm:$0xff]
    %v3553 = vld [vmem:[#allocation3 + $0x110] sm:$0xff]
    %v3554 = vld [vmem:[#allocation3 + $0x118] sm:$0xff]
    %v3555 = vld [vmem:[#allocation3 + $0x120] sm:$0xff]
    %v3556 = vld [vmem:[#allocation3 + $0x128] sm:$0xff]
    %v3557 = vld [vmem:[#allocation3 + $0x130] sm:$0xff]
    %v3558 = vld [vmem:[#allocation3 + $0x138] sm:$0xff]
    %v3559 = vld [vmem:[#allocation3 + $0x140] sm:$0xff]
    %v3560 = vld [vmem:[#allocation3 + $0x148] sm:$0xff]
    %v3561 = vld [vmem:[#allocation3 + $0x150] sm:$0xff]
    %v3562 = vld [vmem:[#allocation3 + $0x158] sm:$0xff]
    %v3563 = vld [vmem:[#allocation3 + $0x160] sm:$0xff]
    %v3564 = vld [vmem:[#allocation3 + $0x168] sm:$0xff]
    %v3565 = vld [vmem:[#allocation3 + $0x170] sm:$0xff]
    %v3566 = vld [vmem:[#allocation3 + $0x178] sm:$0xff]
    %v3567 = vld [vmem:[#allocation3 + $0x180] sm:$0xff]
    %v3568 = vld [vmem:[#allocation3 + $0x188] sm:$0xff]
    %v3569 = vld [vmem:[#allocation3 + $0x190] sm:$0xff]
    %v3570 = vld [vmem:[#allocation3 + $0x198] sm:$0xff]
    %v3571 = vld [vmem:[#allocation3 + $0x1a0] sm:$0xff]
    %v3572 = vld [vmem:[#allocation3 + $0x1a8] sm:$0xff]
    %v3573 = vld [vmem:[#allocation3 + $0x1b0] sm:$0xff]
    %v3574 = vld [vmem:[#allocation3 + $0x1b8] sm:$0xff]
    %v3575 = vld [vmem:[#allocation3 + $0x1c0] sm:$0xff]
    %v3576 = vld [vmem:[#allocation3 + $0x1c8] sm:$0xff]
    %v3577 = vld [vmem:[#allocation3 + $0x1d0] sm:$0xff]
    %v3578 = vld [vmem:[#allocation3 + $0x1d8] sm:$0xff]
    %v3579 = vld [vmem:[#allocation3 + $0x1e0] sm:$0xff]
    %v3580 = vld [vmem:[#allocation3 + $0x1e8] sm:$0xff]
    %v3581 = vld [vmem:[#allocation3 + $0x1f0] sm:$0xff]
    %v3582 = vld [vmem:[#allocation3 + $0x1f8] sm:$0xff]
    %3583 = vmatprep.subr.mxu0 %v3520
    %3584 = vmatpush1.msra.mxu0 %v3519
    %3585 = vmatprep.subr.mxu0 %v3524
    %3586 = vmatpush1.msra.mxu0 %v3523
    %3587 = vmatprep.subr.mxu0 %v3528
    %3588 = vmatpush1.msra.mxu0 %v3527
    %3589 = vmatprep.subr.mxu0 %v3532
    %3590 = vmatpush1.msra.mxu0 %v3531
    %3591 = vmatprep.subr.mxu0 %v3536
    %3592 = vmatpush1.msra.mxu0 %v3535
    %3593 = vmatprep.subr.mxu0 %v3540
    %3594 = vmatpush1.msra.mxu0 %v3539
    %3595 = vmatprep.subr.mxu0 %v3544
    %3596 = vmatpush1.msra.mxu0 %v3543
    %3597 = vmatprep.subr.mxu0 %v3548
    %3598 = vmatpush1.msra.mxu0 %v3547
    %3599 = vmatprep.subr.mxu0 %v3552
    %3600 = vmatpush1.msra.mxu0 %v3551
    %3601 = vmatprep.subr.mxu0 %v3556
    %3602 = vmatpush1.msra.mxu0 %v3555
    %3603 = vmatprep.subr.mxu0 %v3560
    %3604 = vmatpush1.msra.mxu0 %v3559
    %3605 = vmatprep.subr.mxu0 %v3564
    %3606 = vmatpush1.msra.mxu0 %v3563
    %3607 = vmatprep.subr.mxu0 %v3568
    %3608 = vmatpush1.msra.mxu0 %v3567
    %3609 = vmatprep.subr.mxu0 %v3572
    %3610 = vmatpush1.msra.mxu0 %v3571
    %3611 = vmatprep.subr.mxu0 %v3576
    %3612 = vmatpush1.msra.mxu0 %v3575
    %3613 = vmatprep.subr.mxu0 %v3580
    %3614 = vmatpush1.msra.mxu0 %v3579
    %3615 = vmatprep.subr.mxu0 0.0
    %3616 = vmatpush1.msra.mxu0 0.0
    %3617 = vmatprep.subr.mxu0 0.0
    %3618 = vmatpush1.msra.mxu0 0.0
    %3619 = vmatprep.subr.mxu0 0.0
    %3620 = vmatpush1.msra.mxu0 0.0
    %3621 = vmatprep.subr.mxu0 0.0
    %3622 = vmatpush1.msra.mxu0 0.0
    %3623 = vmatprep.subr.mxu0 0.0
    %3624 = vmatpush1.msra.mxu0 0.0
    %3625 = vmatprep.subr.mxu0 0.0
    %3626 = vmatpush1.msra.mxu0 0.0
    %3627 = vmatprep.subr.mxu0 0.0
    %3628 = vmatpush1.msra.mxu0 0.0
    %3629 = vmatprep.subr.mxu0 0.0
    %3630 = vmatpush1.msra.mxu0 0.0
    %3631 = vmatprep.subr.mxu0 0.0
    %3632 = vmatpush1.msra.mxu0 0.0
    %3633 = vmatprep.subr.mxu0 0.0
    %3634 = vmatpush1.msra.mxu0 0.0
    %3635 = vmatprep.subr.mxu0 0.0
    %3636 = vmatpush1.msra.mxu0 0.0
    %3637 = vmatprep.subr.mxu0 0.0
    %3638 = vmatpush1.msra.mxu0 0.0
    %3639 = vmatprep.subr.mxu0 0.0
    %3640 = vmatpush1.msra.mxu0 0.0
    %3641 = vmatprep.subr.mxu0 0.0
    %3642 = vmatpush1.msra.mxu0 0.0
    %3643 = vmatprep.subr.mxu0 0.0
    %3644 = vmatpush1.msra.mxu0 0.0
    %3645 = vmatprep.subr.mxu0 0.0
    %3646 = vmatpush1.msra.mxu0 0.0
    %3647 = vmatprep.mubr.f32.mxu0 0.0
    %3648 = vmatmul.mubr.f32.gmra.mrb[0].mxu0 %v3214
    %v3649 = vpop.f32.mrb[0].mxu0
    %v3650 = vadd.f32 0.0, %v3649
    %v3651 = vpop.f32.mrb[0].mxu0
    %v3652 = vadd.f32 0.0, %v3651
    %3653 = vdwg.mxu0
    %3654 = vmatprep.subr.mxu0 %v3522
    %3655 = vmatpush1.msra.mxu0 %v3521
    %3656 = vmatprep.subr.mxu0 %v3526
    %3657 = vmatpush1.msra.mxu0 %v3525
    %3658 = vmatprep.subr.mxu0 %v3530
    %3659 = vmatpush1.msra.mxu0 %v3529
    %3660 = vmatprep.subr.mxu0 %v3534
    %3661 = vmatpush1.msra.mxu0 %v3533
    %3662 = vmatprep.subr.mxu0 %v3538
    %3663 = vmatpush1.msra.mxu0 %v3537
    %3664 = vmatprep.subr.mxu0 %v3542
    %3665 = vmatpush1.msra.mxu0 %v3541
    %3666 = vmatprep.subr.mxu0 %v3546
    %3667 = vmatpush1.msra.mxu0 %v3545
    %3668 = vmatprep.subr.mxu0 %v3550
    %3669 = vmatpush1.msra.mxu0 %v3549
    %3670 = vmatprep.subr.mxu0 %v3554
    %3671 = vmatpush1.msra.mxu0 %v3553
    %3672 = vmatprep.subr.mxu0 %v3558
    %3673 = vmatpush1.msra.mxu0 %v3557
    %3674 = vmatprep.subr.mxu0 %v3562
    %3675 = vmatpush1.msra.mxu0 %v3561
    %3676 = vmatprep.subr.mxu0 %v3566
    %3677 = vmatpush1.msra.mxu0 %v3565
    %3678 = vmatprep.subr.mxu0 %v3570
    %3679 = vmatpush1.msra.mxu0 %v3569
    %3680 = vmatprep.subr.mxu0 %v3574
    %3681 = vmatpush1.msra.mxu0 %v3573
    %3682 = vmatprep.subr.mxu0 %v3578
    %3683 = vmatpush1.msra.mxu0 %v3577
    %3684 = vmatprep.subr.mxu0 %v3582
    %3685 = vmatpush1.msra.mxu0 %v3581
    %3686 = vmatprep.subr.mxu0 0.0
    %3687 = vmatpush1.msra.mxu0 0.0
    %3688 = vmatprep.subr.mxu0 0.0
    %3689 = vmatpush1.msra.mxu0 0.0
    %3690 = vmatprep.subr.mxu0 0.0
    %3691 = vmatpush1.msra.mxu0 0.0
    %3692 = vmatprep.subr.mxu0 0.0
    %3693 = vmatpush1.msra.mxu0 0.0
    %3694 = vmatprep.subr.mxu0 0.0
    %3695 = vmatpush1.msra.mxu0 0.0
    %3696 = vmatprep.subr.mxu0 0.0
    %3697 = vmatpush1.msra.mxu0 0.0
    %3698 = vmatprep.subr.mxu0 0.0
    %3699 = vmatpush1.msra.mxu0 0.0
    %3700 = vmatprep.subr.mxu0 0.0
    %3701 = vmatpush1.msra.mxu0 0.0
    %3702 = vmatprep.subr.mxu0 0.0
    %3703 = vmatpush1.msra.mxu0 0.0
    %3704 = vmatprep.subr.mxu0 0.0
    %3705 = vmatpush1.msra.mxu0 0.0
    %3706 = vmatprep.subr.mxu0 0.0
    %3707 = vmatpush1.msra.mxu0 0.0
    %3708 = vmatprep.subr.mxu0 0.0
    %3709 = vmatpush1.msra.mxu0 0.0
    %3710 = vmatprep.subr.mxu0 0.0
    %3711 = vmatpush1.msra.mxu0 0.0
    %3712 = vmatprep.subr.mxu0 0.0
    %3713 = vmatpush1.msra.mxu0 0.0
    %3714 = vmatprep.subr.mxu0 0.0
    %3715 = vmatpush1.msra.mxu0 0.0
    %3716 = vmatprep.subr.mxu0 0.0
    %3717 = vmatpush1.msra.mxu0 0.0
    %3718 = vmatprep.mubr.f32.mxu0 0.0
    %3719 = vmatmul.mubr.f32.gmra.mrb[0].mxu0 %v3214
    %v3720 = vpop.f32.mrb[0].mxu0
    %v3721 = vadd.f32 0.0, %v3720
    %v3722 = vpop.f32.mrb[0].mxu0
    %v3723 = vadd.f32 0.0, %v3722
    %3724 = vdwg.mxu0
    %3725 = vmatprep.subr.mxu0 %v3456
    %3726 = vmatpush1.msra.mxu0 %v3455
    %3727 = vmatprep.subr.mxu0 %v3460
    %3728 = vmatpush1.msra.mxu0 %v3459
    %3729 = vmatprep.subr.mxu0 %v3464
    %3730 = vmatpush1.msra.mxu0 %v3463
    %3731 = vmatprep.subr.mxu0 %v3468
    %3732 = vmatpush1.msra.mxu0 %v3467
    %3733 = vmatprep.subr.mxu0 %v3472
    %3734 = vmatpush1.msra.mxu0 %v3471
    %3735 = vmatprep.subr.mxu0 %v3476
    %3736 = vmatpush1.msra.mxu0 %v3475
    %3737 = vmatprep.subr.mxu0 %v3480
    %3738 = vmatpush1.msra.mxu0 %v3479
    %3739 = vmatprep.subr.mxu0 %v3484
    %3740 = vmatpush1.msra.mxu0 %v3483
    %3741 = vmatprep.subr.mxu0 %v3488
    %3742 = vmatpush1.msra.mxu0 %v3487
    %3743 = vmatprep.subr.mxu0 %v3492
    %3744 = vmatpush1.msra.mxu0 %v3491
    %3745 = vmatprep.subr.mxu0 %v3496
    %3746 = vmatpush1.msra.mxu0 %v3495
    %3747 = vmatprep.subr.mxu0 %v3500
    %3748 = vmatpush1.msra.mxu0 %v3499
    %3749 = vmatprep.subr.mxu0 %v3504
    %3750 = vmatpush1.msra.mxu0 %v3503
    %3751 = vmatprep.subr.mxu0 %v3508
    %3752 = vmatpush1.msra.mxu0 %v3507
    %3753 = vmatprep.subr.mxu0 %v3512
    %3754 = vmatpush1.msra.mxu0 %v3511
    %3755 = vmatprep.subr.mxu0 %v3516
    %3756 = vmatpush1.msra.mxu0 %v3515
    %3757 = vmatprep.subr.mxu0 0.0
    %3758 = vmatpush1.msra.mxu0 0.0
    %3759 = vmatprep.subr.mxu0 0.0
    %3760 = vmatpush1.msra.mxu0 0.0
    %3761 = vmatprep.subr.mxu0 0.0
    %3762 = vmatpush1.msra.mxu0 0.0
    %3763 = vmatprep.subr.mxu0 0.0
    %3764 = vmatpush1.msra.mxu0 0.0
    %3765 = vmatprep.subr.mxu0 0.0
    %3766 = vmatpush1.msra.mxu0 0.0
    %3767 = vmatprep.subr.mxu0 0.0
    %3768 = vmatpush1.msra.mxu0 0.0
    %3769 = vmatprep.subr.mxu0 0.0
    %3770 = vmatpush1.msra.mxu0 0.0
    %3771 = vmatprep.subr.mxu0 0.0
    %3772 = vmatpush1.msra.mxu0 0.0
    %3773 = vmatprep.subr.mxu0 0.0
    %3774 = vmatpush1.msra.mxu0 0.0
    %3775 = vmatprep.subr.mxu0 0.0
    %3776 = vmatpush1.msra.mxu0 0.0
    %3777 = vmatprep.subr.mxu0 0.0
    %3778 = vmatpush1.msra.mxu0 0.0
    %3779 = vmatprep.subr.mxu0 0.0
    %3780 = vmatpush1.msra.mxu0 0.0
    %3781 = vmatprep.subr.mxu0 0.0
    %3782 = vmatpush1.msra.mxu0 0.0
    %3783 = vmatprep.subr.mxu0 0.0
    %3784 = vmatpush1.msra.mxu0 0.0
    %3785 = vmatprep.subr.mxu0 0.0
    %3786 = vmatpush1.msra.mxu0 0.0
    %3787 = vmatprep.subr.mxu0 0.0
    %3788 = vmatpush1.msra.mxu0 0.0
    %3789 = vmatprep.mubr.f32.mxu0 0.0
    %3790 = vmatmul.mubr.f32.gmra.mrb[0].mxu0 %v3454
    %v3791 = vpop.f32.mrb[0].mxu0
    %v3792 = vadd.f32 %v3650, %v3791
    %v3793 = vpop.f32.mrb[0].mxu0
    %v3794 = vadd.f32 %v3652, %v3793
    %3795 = vdwg.mxu0
    %3796 = vmatprep.subr.mxu0 %v3458
    %3797 = vmatpush1.msra.mxu0 %v3457
    %3798 = vmatprep.subr.mxu0 %v3462
    %3799 = vmatpush1.msra.mxu0 %v3461
    %3800 = vmatprep.subr.mxu0 %v3466
    %3801 = vmatpush1.msra.mxu0 %v3465
    %3802 = vmatprep.subr.mxu0 %v3470
    %3803 = vmatpush1.msra.mxu0 %v3469
    %3804 = vmatprep.subr.mxu0 %v3474
    %3805 = vmatpush1.msra.mxu0 %v3473
    %3806 = vmatprep.subr.mxu0 %v3478
    %3807 = vmatpush1.msra.mxu0 %v3477
    %3808 = vmatprep.subr.mxu0 %v3482
    %3809 = vmatpush1.msra.mxu0 %v3481
    %3810 = vmatprep.subr.mxu0 %v3486
    %3811 = vmatpush1.msra.mxu0 %v3485
    %3812 = vmatprep.subr.mxu0 %v3490
    %3813 = vmatpush1.msra.mxu0 %v3489
    %3814 = vmatprep.subr.mxu0 %v3494
    %3815 = vmatpush1.msra.mxu0 %v3493
    %3816 = vmatprep.subr.mxu0 %v3498
    %3817 = vmatpush1.msra.mxu0 %v3497
    %3818 = vmatprep.subr.mxu0 %v3502
    %3819 = vmatpush1.msra.mxu0 %v3501
    %3820 = vmatprep.subr.mxu0 %v3506
    %3821 = vmatpush1.msra.mxu0 %v3505
    %3822 = vmatprep.subr.mxu0 %v3510
    %3823 = vmatpush1.msra.mxu0 %v3509
    %3824 = vmatprep.subr.mxu0 %v3514
    %3825 = vmatpush1.msra.mxu0 %v3513
    %3826 = vmatprep.subr.mxu0 %v3518
    %3827 = vmatpush1.msra.mxu0 %v3517
    %3828 = vmatprep.subr.mxu0 0.0
    %3829 = vmatpush1.msra.mxu0 0.0
    %3830 = vmatprep.subr.mxu0 0.0
    %3831 = vmatpush1.msra.mxu0 0.0
    %3832 = vmatprep.subr.mxu0 0.0
    %3833 = vmatpush1.msra.mxu0 0.0
    %3834 = vmatprep.subr.mxu0 0.0
    %3835 = vmatpush1.msra.mxu0 0.0
    %3836 = vmatprep.subr.mxu0 0.0
    %3837 = vmatpush1.msra.mxu0 0.0
    %3838 = vmatprep.subr.mxu0 0.0
    %3839 = vmatpush1.msra.mxu0 0.0
    %3840 = vmatprep.subr.mxu0 0.0
    %3841 = vmatpush1.msra.mxu0 0.0
    %3842 = vmatprep.subr.mxu0 0.0
    %3843 = vmatpush1.msra.mxu0 0.0
    %3844 = vmatprep.subr.mxu0 0.0
    %3845 = vmatpush1.msra.mxu0 0.0
    %3846 = vmatprep.subr.mxu0 0.0
    %3847 = vmatpush1.msra.mxu0 0.0
    %3848 = vmatprep.subr.mxu0 0.0
    %3849 = vmatpush1.msra.mxu0 0.0
    %3850 = vmatprep.subr.mxu0 0.0
    %3851 = vmatpush1.msra.mxu0 0.0
    %3852 = vmatprep.subr.mxu0 0.0
    %3853 = vmatpush1.msra.mxu0 0.0
    %3854 = vmatprep.subr.mxu0 0.0
    %3855 = vmatpush1.msra.mxu0 0.0
    %3856 = vmatprep.subr.mxu0 0.0
    %3857 = vmatpush1.msra.mxu0 0.0
    %3858 = vmatprep.subr.mxu0 0.0
    %3859 = vmatpush1.msra.mxu0 0.0
    %3860 = vmatprep.mubr.f32.mxu0 0.0
    %3861 = vmatmul.mubr.f32.gmra.mrb[0].mxu0 %v3454
    %v3862 = vpop.f32.mrb[0].mxu0
    %v3863 = vadd.f32 %v3721, %v3862
    %v3864 = vpop.f32.mrb[0].mxu0
    %v3865 = vadd.f32 %v3723, %v3864
    %3866 = vdwg.mxu0
    %v3867 = vadd.f32 %v3792, %v311
    %v3868 = vadd.f32 %v3794, %v315
    %v3869 = vadd.f32 %v3863, %v319
    %v3870 = vadd.f32 %v3865, %v323
    %v3871 = vxor.u32 %v3867, 2147483648
    %v3872 = vxor.u32 %v3868, 2147483648
    %v3873 = vxor.u32 %v3869, 2147483648
    %v3874 = vmul.f32 %v3871, 1.442695
    %v3875 = vpow.pop %v3874
    %v3876 = vmul.f32 %v3872, 1.442695
    %v3877 = vpow.pop %v3876
    %v3878 = vmul.f32 %v3873, 1.442695
    %v3879 = vpow.pop %v3878
    %v3880 = vadd.f32 %v3875, 1.0
    %v3881 = vadd.f32 %v3877, 1.0
    %v3882 = vadd.f32 %v3879, 1.0
    %v3883 = vrcp.pop %v3880
    %v3884 = vmul.f32 1.0, %v3883
    %v3885 = vrcp.pop %v3881
    %v3886 = vmul.f32 1.0, %v3885
    %v3887 = vrcp.pop %v3882
    %v3888 = vmul.f32 1.0, %v3887
    %v3889 = vtanh.pop %v3870
    %v3890 = vmul.f32 %v3886, %v3212
    %v3891 = vmul.f32 %v3884, %v3889
    %v3892 = vadd.f32 %v3890, %v3891
    %v3893 = vtanh.pop %v3892
    %v3894 = vmul.f32 %v3888, %v3893
    %v3895 = vmul.f32 %v3894, %v489
    %3896 = vadd.xlane.f32.xlu0 %v3895
    %v3897 = vpop.xlane.xlu0 %3896
    %v3898 = vadd.f32 %v3897, %v498
    %3900 = vrot.lane.b32.xlu0 %v3898, 5
    %v3901 = vpop.permute.xlu0 %3900
    %vm3903 = vcmask 48168
    %3904 = vst.msk [vmem:[#allocation11] sm:$0xff] %vm3903, %v3901
    %v3905 = vld [vmem:[#allocation9] sm:$0xff]
    %v3906 = vld [vmem:[#allocation9 + $0x8] sm:$0xff]
    %v3907 = vld [vmem:[#allocation9 + $0x10] sm:$0xff]
    %v3908 = vld [vmem:[#allocation9 + $0x18] sm:$0xff]
    %v3909 = vld [vmem:[#allocation9 + $0x20] sm:$0xff]
    %v3910 = vld [vmem:[#allocation9 + $0x28] sm:$0xff]
    %v3911 = vld [vmem:[#allocation9 + $0x30] sm:$0xff]
    %v3912 = vld [vmem:[#allocation9 + $0x38] sm:$0xff]
    %v3913 = vld [vmem:[#allocation9 + $0x40] sm:$0xff]
    %v3914 = vld [vmem:[#allocation9 + $0x48] sm:$0xff]
    %v3915 = vld [vmem:[#allocation9 + $0x50] sm:$0xff]
    %v3916 = vld [vmem:[#allocation9 + $0x58] sm:$0xff]
    %v3917 = vld [vmem:[#allocation9 + $0x60] sm:$0xff]
    %v3918 = vld [vmem:[#allocation9 + $0x68] sm:$0xff]
    %v3919 = vld [vmem:[#allocation9 + $0x70] sm:$0xff]
    %v3920 = vld [vmem:[#allocation9 + $0x78] sm:$0xff]
    %v3921 = vld [vmem:[#allocation9 + $0x80] sm:$0xff]
    %v3922 = vld [vmem:[#allocation9 + $0x88] sm:$0xff]
    %v3923 = vld [vmem:[#allocation9 + $0x90] sm:$0xff]
    %v3924 = vld [vmem:[#allocation9 + $0x98] sm:$0xff]
    %v3925 = vld [vmem:[#allocation9 + $0xa0] sm:$0xff]
    %v3926 = vld [vmem:[#allocation9 + $0xa8] sm:$0xff]
    %v3927 = vld [vmem:[#allocation9 + $0xb0] sm:$0xff]
    %v3928 = vld [vmem:[#allocation9 + $0xb8] sm:$0xff]
    %v3929 = vld [vmem:[#allocation9 + $0xc0] sm:$0xff]
    %v3930 = vld [vmem:[#allocation9 + $0xc8] sm:$0xff]
    %v3931 = vld [vmem:[#allocation9 + $0xd0] sm:$0xff]
    %v3932 = vld [vmem:[#allocation9 + $0xd8] sm:$0xff]
    %v3933 = vld [vmem:[#allocation9 + $0xe0] sm:$0xff]
    %v3934 = vld [vmem:[#allocation9 + $0xe8] sm:$0xff]
    %v3935 = vld [vmem:[#allocation9 + $0xf0] sm:$0xff]
    %v3936 = vld [vmem:[#allocation9 + $0xf8] sm:$0xff]
    %v3937 = vld [vmem:[#allocation9 + $0x100] sm:$0xff]
    %v3938 = vld [vmem:[#allocation9 + $0x108] sm:$0xff]
    %v3939 = vld [vmem:[#allocation9 + $0x110] sm:$0xff]
    %v3940 = vld [vmem:[#allocation9 + $0x118] sm:$0xff]
    %v3941 = vld [vmem:[#allocation9 + $0x120] sm:$0xff]
    %v3942 = vld [vmem:[#allocation9 + $0x128] sm:$0xff]
    %v3943 = vld [vmem:[#allocation9 + $0x130] sm:$0xff]
    %v3944 = vld [vmem:[#allocation9 + $0x138] sm:$0xff]
    %v3945 = vld [vmem:[#allocation9 + $0x140] sm:$0xff]
    %v3946 = vld [vmem:[#allocation9 + $0x148] sm:$0xff]
    %v3947 = vld [vmem:[#allocation9 + $0x150] sm:$0xff]
    %v3948 = vld [vmem:[#allocation9 + $0x158] sm:$0xff]
    %v3949 = vld [vmem:[#allocation9 + $0x160] sm:$0xff]
    %v3950 = vld [vmem:[#allocation9 + $0x168] sm:$0xff]
    %v3951 = vld [vmem:[#allocation9 + $0x170] sm:$0xff]
    %v3952 = vld [vmem:[#allocation9 + $0x178] sm:$0xff]
    %v3953 = vld [vmem:[#allocation9 + $0x180] sm:$0xff]
    %v3954 = vld [vmem:[#allocation9 + $0x188] sm:$0xff]
    %v3955 = vld [vmem:[#allocation9 + $0x190] sm:$0xff]
    %v3956 = vld [vmem:[#allocation9 + $0x198] sm:$0xff]
    %v3957 = vld [vmem:[#allocation9 + $0x1a0] sm:$0xff]
    %v3958 = vld [vmem:[#allocation9 + $0x1a8] sm:$0xff]
    %v3959 = vld [vmem:[#allocation9 + $0x1b0] sm:$0xff]
    %v3960 = vld [vmem:[#allocation9 + $0x1b8] sm:$0xff]
    %v3961 = vld [vmem:[#allocation9 + $0x1c0] sm:$0xff]
    %v3962 = vld [vmem:[#allocation9 + $0x1c8] sm:$0xff]
    %v3963 = vld [vmem:[#allocation9 + $0x1d0] sm:$0xff]
    %v3964 = vld [vmem:[#allocation9 + $0x1d8] sm:$0xff]
    %v3965 = vld [vmem:[#allocation9 + $0x1e0] sm:$0xff]
    %v3966 = vld [vmem:[#allocation9 + $0x1e8] sm:$0xff]
    %v3967 = vld [vmem:[#allocation9 + $0x1f0] sm:$0xff]
    %v3968 = vld [vmem:[#allocation9 + $0x1f8] sm:$0xff]
    %3969 = vmatprep.subr.mxu0 %v3906
    %3970 = vmatpush1.msra.mxu0 %v3905
    %3971 = vmatprep.subr.mxu0 %v3910
    %3972 = vmatpush1.msra.mxu0 %v3909
    %3973 = vmatprep.subr.mxu0 %v3914
    %3974 = vmatpush1.msra.mxu0 %v3913
    %3975 = vmatprep.subr.mxu0 %v3918
    %3976 = vmatpush1.msra.mxu0 %v3917
    %3977 = vmatprep.subr.mxu0 %v3922
    %3978 = vmatpush1.msra.mxu0 %v3921
    %3979 = vmatprep.subr.mxu0 %v3926
    %3980 = vmatpush1.msra.mxu0 %v3925
    %3981 = vmatprep.subr.mxu0 %v3930
    %3982 = vmatpush1.msra.mxu0 %v3929
    %3983 = vmatprep.subr.mxu0 %v3934
    %3984 = vmatpush1.msra.mxu0 %v3933
    %3985 = vmatprep.subr.mxu0 %v3938
    %3986 = vmatpush1.msra.mxu0 %v3937
    %3987 = vmatprep.subr.mxu0 %v3942
    %3988 = vmatpush1.msra.mxu0 %v3941
    %3989 = vmatprep.subr.mxu0 %v3946
    %3990 = vmatpush1.msra.mxu0 %v3945
    %3991 = vmatprep.subr.mxu0 %v3950
    %3992 = vmatpush1.msra.mxu0 %v3949
    %3993 = vmatprep.subr.mxu0 %v3954
    %3994 = vmatpush1.msra.mxu0 %v3953
    %3995 = vmatprep.subr.mxu0 %v3958
    %3996 = vmatpush1.msra.mxu0 %v3957
    %3997 = vmatprep.subr.mxu0 %v3962
    %3998 = vmatpush1.msra.mxu0 %v3961
    %3999 = vmatprep.subr.mxu0 %v3966
    %4000 = vmatpush1.msra.mxu0 %v3965
    %4001 = vmatprep.subr.mxu0 0.0
    %4002 = vmatpush1.msra.mxu0 0.0
    %4003 = vmatprep.subr.mxu0 0.0
    %4004 = vmatpush1.msra.mxu0 0.0
    %4005 = vmatprep.subr.mxu0 0.0
    %4006 = vmatpush1.msra.mxu0 0.0
    %4007 = vmatprep.subr.mxu0 0.0
    %4008 = vmatpush1.msra.mxu0 0.0
    %4009 = vmatprep.subr.mxu0 0.0
    %4010 = vmatpush1.msra.mxu0 0.0
    %4011 = vmatprep.subr.mxu0 0.0
    %4012 = vmatpush1.msra.mxu0 0.0
    %4013 = vmatprep.subr.mxu0 0.0
    %4014 = vmatpush1.msra.mxu0 0.0
    %4015 = vmatprep.subr.mxu0 0.0
    %4016 = vmatpush1.msra.mxu0 0.0
    %4017 = vmatprep.subr.mxu0 0.0
    %4018 = vmatpush1.msra.mxu0 0.0
    %4019 = vmatprep.subr.mxu0 0.0
    %4020 = vmatpush1.msra.mxu0 0.0
    %4021 = vmatprep.subr.mxu0 0.0
    %4022 = vmatpush1.msra.mxu0 0.0
    %4023 = vmatprep.subr.mxu0 0.0
    %4024 = vmatpush1.msra.mxu0 0.0
    %4025 = vmatprep.subr.mxu0 0.0
    %4026 = vmatpush1.msra.mxu0 0.0
    %4027 = vmatprep.subr.mxu0 0.0
    %4028 = vmatpush1.msra.mxu0 0.0
    %4029 = vmatprep.subr.mxu0 0.0
    %4030 = vmatpush1.msra.mxu0 0.0
    %4031 = vmatprep.subr.mxu0 0.0
    %4032 = vmatpush1.msra.mxu0 0.0
    %4033 = vmatprep.mubr.f32.mxu0 0.0
    %4034 = vmatmul.mubr.f32.gmra.mrb[0].mxu0 %v3454
    %v4035 = vpop.f32.mrb[0].mxu0
    %v4036 = vadd.f32 %v207, %v4035
    %v4037 = vpop.f32.mrb[0].mxu0
    %v4038 = vadd.f32 %v208, %v4037
    %4039 = vdwg.mxu0
    %4040 = vmatprep.subr.mxu0 %v3908
    %4041 = vmatpush1.msra.mxu0 %v3907
    %4042 = vmatprep.subr.mxu0 %v3912
    %4043 = vmatpush1.msra.mxu0 %v3911
    %4044 = vmatprep.subr.mxu0 %v3916
    %4045 = vmatpush1.msra.mxu0 %v3915
    %4046 = vmatprep.subr.mxu0 %v3920
    %4047 = vmatpush1.msra.mxu0 %v3919
    %4048 = vmatprep.subr.mxu0 %v3924
    %4049 = vmatpush1.msra.mxu0 %v3923
    %4050 = vmatprep.subr.mxu0 %v3928
    %4051 = vmatpush1.msra.mxu0 %v3927
    %4052 = vmatprep.subr.mxu0 %v3932
    %4053 = vmatpush1.msra.mxu0 %v3931
    %4054 = vmatprep.subr.mxu0 %v3936
    %4055 = vmatpush1.msra.mxu0 %v3935
    %4056 = vmatprep.subr.mxu0 %v3940
    %4057 = vmatpush1.msra.mxu0 %v3939
    %4058 = vmatprep.subr.mxu0 %v3944
    %4059 = vmatpush1.msra.mxu0 %v3943
    %4060 = vmatprep.subr.mxu0 %v3948
    %4061 = vmatpush1.msra.mxu0 %v3947
    %4062 = vmatprep.subr.mxu0 %v3952
    %4063 = vmatpush1.msra.mxu0 %v3951
    %4064 = vmatprep.subr.mxu0 %v3956
    %4065 = vmatpush1.msra.mxu0 %v3955
    %4066 = vmatprep.subr.mxu0 %v3960
    %4067 = vmatpush1.msra.mxu0 %v3959
    %4068 = vmatprep.subr.mxu0 %v3964
    %4069 = vmatpush1.msra.mxu0 %v3963
    %4070 = vmatprep.subr.mxu0 %v3968
    %4071 = vmatpush1.msra.mxu0 %v3967
    %4072 = vmatprep.subr.mxu0 0.0
    %4073 = vmatpush1.msra.mxu0 0.0
    %4074 = vmatprep.subr.mxu0 0.0
    %4075 = vmatpush1.msra.mxu0 0.0
    %4076 = vmatprep.subr.mxu0 0.0
    %4077 = vmatpush1.msra.mxu0 0.0
    %4078 = vmatprep.subr.mxu0 0.0
    %4079 = vmatpush1.msra.mxu0 0.0
    %4080 = vmatprep.subr.mxu0 0.0
    %4081 = vmatpush1.msra.mxu0 0.0
    %4082 = vmatprep.subr.mxu0 0.0
    %4083 = vmatpush1.msra.mxu0 0.0
    %4084 = vmatprep.subr.mxu0 0.0
    %4085 = vmatpush1.msra.mxu0 0.0
    %4086 = vmatprep.subr.mxu0 0.0
    %4087 = vmatpush1.msra.mxu0 0.0
    %4088 = vmatprep.subr.mxu0 0.0
    %4089 = vmatpush1.msra.mxu0 0.0
    %4090 = vmatprep.subr.mxu0 0.0
    %4091 = vmatpush1.msra.mxu0 0.0
    %4092 = vmatprep.subr.mxu0 0.0
    %4093 = vmatpush1.msra.mxu0 0.0
    %4094 = vmatprep.subr.mxu0 0.0
    %4095 = vmatpush1.msra.mxu0 0.0
    %4096 = vmatprep.subr.mxu0 0.0
    %4097 = vmatpush1.msra.mxu0 0.0
    %4098 = vmatprep.subr.mxu0 0.0
    %4099 = vmatpush1.msra.mxu0 0.0
    %4100 = vmatprep.subr.mxu0 0.0
    %4101 = vmatpush1.msra.mxu0 0.0
    %4102 = vmatprep.subr.mxu0 0.0
    %4103 = vmatpush1.msra.mxu0 0.0
    %4104 = vmatprep.mubr.f32.mxu0 0.0
    %4105 = vmatmul.mubr.f32.gmra.mrb[0].mxu0 %v3454
    %v4106 = vpop.f32.mrb[0].mxu0
    %v4107 = vadd.f32 %v209, %v4106
    %v4108 = vpop.f32.mrb[0].mxu0
    %v4109 = vadd.f32 %v210, %v4108
    %4110 = vdwg.mxu0
    %v4111 = vxor.u32 %v4036, 2147483648
    %v4112 = vxor.u32 %v4038, 2147483648
    %v4113 = vxor.u32 %v4107, 2147483648
    %v4114 = vmul.f32 %v4111, 1.442695
    %v4115 = vpow.pop %v4114
    %v4116 = vmul.f32 %v4112, 1.442695
    %v4117 = vpow.pop %v4116
    %v4118 = vmul.f32 %v4113, 1.442695
    %v4119 = vpow.pop %v4118
    %v4120 = vadd.f32 %v4115, 1.0
    %v4121 = vadd.f32 %v4117, 1.0
    %v4122 = vadd.f32 %v4119, 1.0
    %v4123 = vrcp.pop %v4120
    %v4124 = vmul.f32 1.0, %v4123
    %v4125 = vrcp.pop %v4121
    %v4126 = vmul.f32 1.0, %v4125
    %v4127 = vrcp.pop %v4122
    %v4128 = vmul.f32 1.0, %v4127
    %v4129 = vtanh.pop %v4109
    %v4130 = vmul.f32 %v4126, %v3452
    %v4131 = vmul.f32 %v4124, %v4129
    %v4132 = vadd.f32 %v4130, %v4131
    %v4133 = vtanh.pop %v4132
    %v4134 = vmul.f32 %v4128, %v4133
    %v4135 = vld [vmem:[#allocation2] sm:$0xff]
    %v4136 = vld [vmem:[#allocation2 + $0x8] sm:$0xff]
    %v4137 = vld [vmem:[#allocation2 + $0x10] sm:$0xff]
    %v4138 = vld [vmem:[#allocation2 + $0x18] sm:$0xff]
    %v4139 = vld [vmem:[#allocation2 + $0x20] sm:$0xff]
    %v4140 = vld [vmem:[#allocation2 + $0x28] sm:$0xff]
    %v4141 = vld [vmem:[#allocation2 + $0x30] sm:$0xff]
    %v4142 = vld [vmem:[#allocation2 + $0x38] sm:$0xff]
    %v4143 = vld [vmem:[#allocation2 + $0x40] sm:$0xff]
    %v4144 = vld [vmem:[#allocation2 + $0x48] sm:$0xff]
    %v4145 = vld [vmem:[#allocation2 + $0x50] sm:$0xff]
    %v4146 = vld [vmem:[#allocation2 + $0x58] sm:$0xff]
    %v4147 = vld [vmem:[#allocation2 + $0x60] sm:$0xff]
    %v4148 = vld [vmem:[#allocation2 + $0x68] sm:$0xff]
    %v4149 = vld [vmem:[#allocation2 + $0x70] sm:$0xff]
    %v4150 = vld [vmem:[#allocation2 + $0x78] sm:$0xff]
    %v4151 = vld [vmem:[#allocation2 + $0x80] sm:$0xff]
    %v4152 = vld [vmem:[#allocation2 + $0x88] sm:$0xff]
    %v4153 = vld [vmem:[#allocation2 + $0x90] sm:$0xff]
    %v4154 = vld [vmem:[#allocation2 + $0x98] sm:$0xff]
    %v4155 = vld [vmem:[#allocation2 + $0xa0] sm:$0xff]
    %v4156 = vld [vmem:[#allocation2 + $0xa8] sm:$0xff]
    %v4157 = vld [vmem:[#allocation2 + $0xb0] sm:$0xff]
    %v4158 = vld [vmem:[#allocation2 + $0xb8] sm:$0xff]
    %v4159 = vld [vmem:[#allocation2 + $0xc0] sm:$0xff]
    %v4160 = vld [vmem:[#allocation2 + $0xc8] sm:$0xff]
    %v4161 = vld [vmem:[#allocation2 + $0xd0] sm:$0xff]
    %v4162 = vld [vmem:[#allocation2 + $0xd8] sm:$0xff]
    %v4163 = vld [vmem:[#allocation2 + $0xe0] sm:$0xff]
    %v4164 = vld [vmem:[#allocation2 + $0xe8] sm:$0xff]
    %v4165 = vld [vmem:[#allocation2 + $0xf0] sm:$0xff]
    %v4166 = vld [vmem:[#allocation2 + $0xf8] sm:$0xff]
    %v4167 = vld [vmem:[#allocation2 + $0x100] sm:$0xff]
    %v4168 = vld [vmem:[#allocation2 + $0x108] sm:$0xff]
    %v4169 = vld [vmem:[#allocation2 + $0x110] sm:$0xff]
    %v4170 = vld [vmem:[#allocation2 + $0x118] sm:$0xff]
    %v4171 = vld [vmem:[#allocation2 + $0x120] sm:$0xff]
    %v4172 = vld [vmem:[#allocation2 + $0x128] sm:$0xff]
    %v4173 = vld [vmem:[#allocation2 + $0x130] sm:$0xff]
    %v4174 = vld [vmem:[#allocation2 + $0x138] sm:$0xff]
    %v4175 = vld [vmem:[#allocation2 + $0x140] sm:$0xff]
    %v4176 = vld [vmem:[#allocation2 + $0x148] sm:$0xff]
    %v4177 = vld [vmem:[#allocation2 + $0x150] sm:$0xff]
    %v4178 = vld [vmem:[#allocation2 + $0x158] sm:$0xff]
    %v4179 = vld [vmem:[#allocation2 + $0x160] sm:$0xff]
    %v4180 = vld [vmem:[#allocation2 + $0x168] sm:$0xff]
    %v4181 = vld [vmem:[#allocation2 + $0x170] sm:$0xff]
    %v4182 = vld [vmem:[#allocation2 + $0x178] sm:$0xff]
    %v4183 = vld [vmem:[#allocation2 + $0x180] sm:$0xff]
    %v4184 = vld [vmem:[#allocation2 + $0x188] sm:$0xff]
    %v4185 = vld [vmem:[#allocation2 + $0x190] sm:$0xff]
    %v4186 = vld [vmem:[#allocation2 + $0x198] sm:$0xff]
    %v4187 = vld [vmem:[#allocation2 + $0x1a0] sm:$0xff]
    %v4188 = vld [vmem:[#allocation2 + $0x1a8] sm:$0xff]
    %v4189 = vld [vmem:[#allocation2 + $0x1b0] sm:$0xff]
    %v4190 = vld [vmem:[#allocation2 + $0x1b8] sm:$0xff]
    %v4191 = vld [vmem:[#allocation2 + $0x1c0] sm:$0xff]
    %v4192 = vld [vmem:[#allocation2 + $0x1c8] sm:$0xff]
    %v4193 = vld [vmem:[#allocation2 + $0x1d0] sm:$0xff]
    %v4194 = vld [vmem:[#allocation2 + $0x1d8] sm:$0xff]
    %v4195 = vld [vmem:[#allocation2 + $0x1e0] sm:$0xff]
    %v4196 = vld [vmem:[#allocation2 + $0x1e8] sm:$0xff]
    %v4197 = vld [vmem:[#allocation2 + $0x1f0] sm:$0xff]
    %v4198 = vld [vmem:[#allocation2 + $0x1f8] sm:$0xff]
    %v4199 = vld [vmem:[#allocation3] sm:$0xff]
    %v4200 = vld [vmem:[#allocation3 + $0x8] sm:$0xff]
    %v4201 = vld [vmem:[#allocation3 + $0x10] sm:$0xff]
    %v4202 = vld [vmem:[#allocation3 + $0x18] sm:$0xff]
    %v4203 = vld [vmem:[#allocation3 + $0x20] sm:$0xff]
    %v4204 = vld [vmem:[#allocation3 + $0x28] sm:$0xff]
    %v4205 = vld [vmem:[#allocation3 + $0x30] sm:$0xff]
    %v4206 = vld [vmem:[#allocation3 + $0x38] sm:$0xff]
    %v4207 = vld [vmem:[#allocation3 + $0x40] sm:$0xff]
    %v4208 = vld [vmem:[#allocation3 + $0x48] sm:$0xff]
    %v4209 = vld [vmem:[#allocation3 + $0x50] sm:$0xff]
    %v4210 = vld [vmem:[#allocation3 + $0x58] sm:$0xff]
    %v4211 = vld [vmem:[#allocation3 + $0x60] sm:$0xff]
    %v4212 = vld [vmem:[#allocation3 + $0x68] sm:$0xff]
    %v4213 = vld [vmem:[#allocation3 + $0x70] sm:$0xff]
    %v4214 = vld [vmem:[#allocation3 + $0x78] sm:$0xff]
    %v4215 = vld [vmem:[#allocation3 + $0x80] sm:$0xff]
    %v4216 = vld [vmem:[#allocation3 + $0x88] sm:$0xff]
    %v4217 = vld [vmem:[#allocation3 + $0x90] sm:$0xff]
    %v4218 = vld [vmem:[#allocation3 + $0x98] sm:$0xff]
    %v4219 = vld [vmem:[#allocation3 + $0xa0] sm:$0xff]
    %v4220 = vld [vmem:[#allocation3 + $0xa8] sm:$0xff]
    %v4221 = vld [vmem:[#allocation3 + $0xb0] sm:$0xff]
    %v4222 = vld [vmem:[#allocation3 + $0xb8] sm:$0xff]
    %v4223 = vld [vmem:[#allocation3 + $0xc0] sm:$0xff]
    %v4224 = vld [vmem:[#allocation3 + $0xc8] sm:$0xff]
    %v4225 = vld [vmem:[#allocation3 + $0xd0] sm:$0xff]
    %v4226 = vld [vmem:[#allocation3 + $0xd8] sm:$0xff]
    %v4227 = vld [vmem:[#allocation3 + $0xe0] sm:$0xff]
    %v4228 = vld [vmem:[#allocation3 + $0xe8] sm:$0xff]
    %v4229 = vld [vmem:[#allocation3 + $0xf0] sm:$0xff]
    %v4230 = vld [vmem:[#allocation3 + $0xf8] sm:$0xff]
    %v4231 = vld [vmem:[#allocation3 + $0x100] sm:$0xff]
    %v4232 = vld [vmem:[#allocation3 + $0x108] sm:$0xff]
    %v4233 = vld [vmem:[#allocation3 + $0x110] sm:$0xff]
    %v4234 = vld [vmem:[#allocation3 + $0x118] sm:$0xff]
    %v4235 = vld [vmem:[#allocation3 + $0x120] sm:$0xff]
    %v4236 = vld [vmem:[#allocation3 + $0x128] sm:$0xff]
    %v4237 = vld [vmem:[#allocation3 + $0x130] sm:$0xff]
    %v4238 = vld [vmem:[#allocation3 + $0x138] sm:$0xff]
    %v4239 = vld [vmem:[#allocation3 + $0x140] sm:$0xff]
    %v4240 = vld [vmem:[#allocation3 + $0x148] sm:$0xff]
    %v4241 = vld [vmem:[#allocation3 + $0x150] sm:$0xff]
    %v4242 = vld [vmem:[#allocation3 + $0x158] sm:$0xff]
    %v4243 = vld [vmem:[#allocation3 + $0x160] sm:$0xff]
    %v4244 = vld [vmem:[#allocation3 + $0x168] sm:$0xff]
    %v4245 = vld [vmem:[#allocation3 + $0x170] sm:$0xff]
    %v4246 = vld [vmem:[#allocation3 + $0x178] sm:$0xff]
    %v4247 = vld [vmem:[#allocation3 + $0x180] sm:$0xff]
    %v4248 = vld [vmem:[#allocation3 + $0x188] sm:$0xff]
    %v4249 = vld [vmem:[#allocation3 + $0x190] sm:$0xff]
    %v4250 = vld [vmem:[#allocation3 + $0x198] sm:$0xff]
    %v4251 = vld [vmem:[#allocation3 + $0x1a0] sm:$0xff]
    %v4252 = vld [vmem:[#allocation3 + $0x1a8] sm:$0xff]
    %v4253 = vld [vmem:[#allocation3 + $0x1b0] sm:$0xff]
    %v4254 = vld [vmem:[#allocation3 + $0x1b8] sm:$0xff]
    %v4255 = vld [vmem:[#allocation3 + $0x1c0] sm:$0xff]
    %v4256 = vld [vmem:[#allocation3 + $0x1c8] sm:$0xff]
    %v4257 = vld [vmem:[#allocation3 + $0x1d0] sm:$0xff]
    %v4258 = vld [vmem:[#allocation3 + $0x1d8] sm:$0xff]
    %v4259 = vld [vmem:[#allocation3 + $0x1e0] sm:$0xff]
    %v4260 = vld [vmem:[#allocation3 + $0x1e8] sm:$0xff]
    %v4261 = vld [vmem:[#allocation3 + $0x1f0] sm:$0xff]
    %v4262 = vld [vmem:[#allocation3 + $0x1f8] sm:$0xff]
    %4263 = vmatprep.subr.mxu0 %v4200
    %4264 = vmatpush1.msra.mxu0 %v4199
    %4265 = vmatprep.subr.mxu0 %v4204
    %4266 = vmatpush1.msra.mxu0 %v4203
    %4267 = vmatprep.subr.mxu0 %v4208
    %4268 = vmatpush1.msra.mxu0 %v4207
    %4269 = vmatprep.subr.mxu0 %v4212
    %4270 = vmatpush1.msra.mxu0 %v4211
    %4271 = vmatprep.subr.mxu0 %v4216
    %4272 = vmatpush1.msra.mxu0 %v4215
    %4273 = vmatprep.subr.mxu0 %v4220
    %4274 = vmatpush1.msra.mxu0 %v4219
    %4275 = vmatprep.subr.mxu0 %v4224
    %4276 = vmatpush1.msra.mxu0 %v4223
    %4277 = vmatprep.subr.mxu0 %v4228
    %4278 = vmatpush1.msra.mxu0 %v4227
    %4279 = vmatprep.subr.mxu0 %v4232
    %4280 = vmatpush1.msra.mxu0 %v4231
    %4281 = vmatprep.subr.mxu0 %v4236
    %4282 = vmatpush1.msra.mxu0 %v4235
    %4283 = vmatprep.subr.mxu0 %v4240
    %4284 = vmatpush1.msra.mxu0 %v4239
    %4285 = vmatprep.subr.mxu0 %v4244
    %4286 = vmatpush1.msra.mxu0 %v4243
    %4287 = vmatprep.subr.mxu0 %v4248
    %4288 = vmatpush1.msra.mxu0 %v4247
    %4289 = vmatprep.subr.mxu0 %v4252
    %4290 = vmatpush1.msra.mxu0 %v4251
    %4291 = vmatprep.subr.mxu0 %v4256
    %4292 = vmatpush1.msra.mxu0 %v4255
    %4293 = vmatprep.subr.mxu0 %v4260
    %4294 = vmatpush1.msra.mxu0 %v4259
    %4295 = vmatprep.subr.mxu0 0.0
    %4296 = vmatpush1.msra.mxu0 0.0
    %4297 = vmatprep.subr.mxu0 0.0
    %4298 = vmatpush1.msra.mxu0 0.0
    %4299 = vmatprep.subr.mxu0 0.0
    %4300 = vmatpush1.msra.mxu0 0.0
    %4301 = vmatprep.subr.mxu0 0.0
    %4302 = vmatpush1.msra.mxu0 0.0
    %4303 = vmatprep.subr.mxu0 0.0
    %4304 = vmatpush1.msra.mxu0 0.0
    %4305 = vmatprep.subr.mxu0 0.0
    %4306 = vmatpush1.msra.mxu0 0.0
    %4307 = vmatprep.subr.mxu0 0.0
    %4308 = vmatpush1.msra.mxu0 0.0
    %4309 = vmatprep.subr.mxu0 0.0
    %4310 = vmatpush1.msra.mxu0 0.0
    %4311 = vmatprep.subr.mxu0 0.0
    %4312 = vmatpush1.msra.mxu0 0.0
    %4313 = vmatprep.subr.mxu0 0.0
    %4314 = vmatpush1.msra.mxu0 0.0
    %4315 = vmatprep.subr.mxu0 0.0
    %4316 = vmatpush1.msra.mxu0 0.0
    %4317 = vmatprep.subr.mxu0 0.0
    %4318 = vmatpush1.msra.mxu0 0.0
    %4319 = vmatprep.subr.mxu0 0.0
    %4320 = vmatpush1.msra.mxu0 0.0
    %4321 = vmatprep.subr.mxu0 0.0
    %4322 = vmatpush1.msra.mxu0 0.0
    %4323 = vmatprep.subr.mxu0 0.0
    %4324 = vmatpush1.msra.mxu0 0.0
    %4325 = vmatprep.subr.mxu0 0.0
    %4326 = vmatpush1.msra.mxu0 0.0
    %4327 = vmatprep.mubr.f32.mxu0 0.0
    %4328 = vmatmul.mubr.f32.gmra.mrb[0].mxu0 %v3894
    %v4329 = vpop.f32.mrb[0].mxu0
    %v4330 = vadd.f32 0.0, %v4329
    %v4331 = vpop.f32.mrb[0].mxu0
    %v4332 = vadd.f32 0.0, %v4331
    %4333 = vdwg.mxu0
    %4334 = vmatprep.subr.mxu0 %v4202
    %4335 = vmatpush1.msra.mxu0 %v4201
    %4336 = vmatprep.subr.mxu0 %v4206
    %4337 = vmatpush1.msra.mxu0 %v4205
    %4338 = vmatprep.subr.mxu0 %v4210
    %4339 = vmatpush1.msra.mxu0 %v4209
    %4340 = vmatprep.subr.mxu0 %v4214
    %4341 = vmatpush1.msra.mxu0 %v4213
    %4342 = vmatprep.subr.mxu0 %v4218
    %4343 = vmatpush1.msra.mxu0 %v4217
    %4344 = vmatprep.subr.mxu0 %v4222
    %4345 = vmatpush1.msra.mxu0 %v4221
    %4346 = vmatprep.subr.mxu0 %v4226
    %4347 = vmatpush1.msra.mxu0 %v4225
    %4348 = vmatprep.subr.mxu0 %v4230
    %4349 = vmatpush1.msra.mxu0 %v4229
    %4350 = vmatprep.subr.mxu0 %v4234
    %4351 = vmatpush1.msra.mxu0 %v4233
    %4352 = vmatprep.subr.mxu0 %v4238
    %4353 = vmatpush1.msra.mxu0 %v4237
    %4354 = vmatprep.subr.mxu0 %v4242
    %4355 = vmatpush1.msra.mxu0 %v4241
    %4356 = vmatprep.subr.mxu0 %v4246
    %4357 = vmatpush1.msra.mxu0 %v4245
    %4358 = vmatprep.subr.mxu0 %v4250
    %4359 = vmatpush1.msra.mxu0 %v4249
    %4360 = vmatprep.subr.mxu0 %v4254
    %4361 = vmatpush1.msra.mxu0 %v4253
    %4362 = vmatprep.subr.mxu0 %v4258
    %4363 = vmatpush1.msra.mxu0 %v4257
    %4364 = vmatprep.subr.mxu0 %v4262
    %4365 = vmatpush1.msra.mxu0 %v4261
    %4366 = vmatprep.subr.mxu0 0.0
    %4367 = vmatpush1.msra.mxu0 0.0
    %4368 = vmatprep.subr.mxu0 0.0
    %4369 = vmatpush1.msra.mxu0 0.0
    %4370 = vmatprep.subr.mxu0 0.0
    %4371 = vmatpush1.msra.mxu0 0.0
    %4372 = vmatprep.subr.mxu0 0.0
    %4373 = vmatpush1.msra.mxu0 0.0
    %4374 = vmatprep.subr.mxu0 0.0
    %4375 = vmatpush1.msra.mxu0 0.0
    %4376 = vmatprep.subr.mxu0 0.0
    %4377 = vmatpush1.msra.mxu0 0.0
    %4378 = vmatprep.subr.mxu0 0.0
    %4379 = vmatpush1.msra.mxu0 0.0
    %4380 = vmatprep.subr.mxu0 0.0
    %4381 = vmatpush1.msra.mxu0 0.0
    %4382 = vmatprep.subr.mxu0 0.0
    %4383 = vmatpush1.msra.mxu0 0.0
    %4384 = vmatprep.subr.mxu0 0.0
    %4385 = vmatpush1.msra.mxu0 0.0
    %4386 = vmatprep.subr.mxu0 0.0
    %4387 = vmatpush1.msra.mxu0 0.0
    %4388 = vmatprep.subr.mxu0 0.0
    %4389 = vmatpush1.msra.mxu0 0.0
    %4390 = vmatprep.subr.mxu0 0.0
    %4391 = vmatpush1.msra.mxu0 0.0
    %4392 = vmatprep.subr.mxu0 0.0
    %4393 = vmatpush1.msra.mxu0 0.0
    %4394 = vmatprep.subr.mxu0 0.0
    %4395 = vmatpush1.msra.mxu0 0.0
    %4396 = vmatprep.subr.mxu0 0.0
    %4397 = vmatpush1.msra.mxu0 0.0
    %4398 = vmatprep.mubr.f32.mxu0 0.0
    %4399 = vmatmul.mubr.f32.gmra.mrb[0].mxu0 %v3894
    %v4400 = vpop.f32.mrb[0].mxu0
    %v4401 = vadd.f32 0.0, %v4400
    %v4402 = vpop.f32.mrb[0].mxu0
    %v4403 = vadd.f32 0.0, %v4402
    %4404 = vdwg.mxu0
    %4405 = vmatprep.subr.mxu0 %v4136
    %4406 = vmatpush1.msra.mxu0 %v4135
    %4407 = vmatprep.subr.mxu0 %v4140
    %4408 = vmatpush1.msra.mxu0 %v4139
    %4409 = vmatprep.subr.mxu0 %v4144
    %4410 = vmatpush1.msra.mxu0 %v4143
    %4411 = vmatprep.subr.mxu0 %v4148
    %4412 = vmatpush1.msra.mxu0 %v4147
    %4413 = vmatprep.subr.mxu0 %v4152
    %4414 = vmatpush1.msra.mxu0 %v4151
    %4415 = vmatprep.subr.mxu0 %v4156
    %4416 = vmatpush1.msra.mxu0 %v4155
    %4417 = vmatprep.subr.mxu0 %v4160
    %4418 = vmatpush1.msra.mxu0 %v4159
    %4419 = vmatprep.subr.mxu0 %v4164
    %4420 = vmatpush1.msra.mxu0 %v4163
    %4421 = vmatprep.subr.mxu0 %v4168
    %4422 = vmatpush1.msra.mxu0 %v4167
    %4423 = vmatprep.subr.mxu0 %v4172
    %4424 = vmatpush1.msra.mxu0 %v4171
    %4425 = vmatprep.subr.mxu0 %v4176
    %4426 = vmatpush1.msra.mxu0 %v4175
    %4427 = vmatprep.subr.mxu0 %v4180
    %4428 = vmatpush1.msra.mxu0 %v4179
    %4429 = vmatprep.subr.mxu0 %v4184
    %4430 = vmatpush1.msra.mxu0 %v4183
    %4431 = vmatprep.subr.mxu0 %v4188
    %4432 = vmatpush1.msra.mxu0 %v4187
    %4433 = vmatprep.subr.mxu0 %v4192
    %4434 = vmatpush1.msra.mxu0 %v4191
    %4435 = vmatprep.subr.mxu0 %v4196
    %4436 = vmatpush1.msra.mxu0 %v4195
    %4437 = vmatprep.subr.mxu0 0.0
    %4438 = vmatpush1.msra.mxu0 0.0
    %4439 = vmatprep.subr.mxu0 0.0
    %4440 = vmatpush1.msra.mxu0 0.0
    %4441 = vmatprep.subr.mxu0 0.0
    %4442 = vmatpush1.msra.mxu0 0.0
    %4443 = vmatprep.subr.mxu0 0.0
    %4444 = vmatpush1.msra.mxu0 0.0
    %4445 = vmatprep.subr.mxu0 0.0
    %4446 = vmatpush1.msra.mxu0 0.0
    %4447 = vmatprep.subr.mxu0 0.0
    %4448 = vmatpush1.msra.mxu0 0.0
    %4449 = vmatprep.subr.mxu0 0.0
    %4450 = vmatpush1.msra.mxu0 0.0
    %4451 = vmatprep.subr.mxu0 0.0
    %4452 = vmatpush1.msra.mxu0 0.0
    %4453 = vmatprep.subr.mxu0 0.0
    %4454 = vmatpush1.msra.mxu0 0.0
    %4455 = vmatprep.subr.mxu0 0.0
    %4456 = vmatpush1.msra.mxu0 0.0
    %4457 = vmatprep.subr.mxu0 0.0
    %4458 = vmatpush1.msra.mxu0 0.0
    %4459 = vmatprep.subr.mxu0 0.0
    %4460 = vmatpush1.msra.mxu0 0.0
    %4461 = vmatprep.subr.mxu0 0.0
    %4462 = vmatpush1.msra.mxu0 0.0
    %4463 = vmatprep.subr.mxu0 0.0
    %4464 = vmatpush1.msra.mxu0 0.0
    %4465 = vmatprep.subr.mxu0 0.0
    %4466 = vmatpush1.msra.mxu0 0.0
    %4467 = vmatprep.subr.mxu0 0.0
    %4468 = vmatpush1.msra.mxu0 0.0
    %4469 = vmatprep.mubr.f32.mxu0 0.0
    %4470 = vmatmul.mubr.f32.gmra.mrb[0].mxu0 %v4134
    %v4471 = vpop.f32.mrb[0].mxu0
    %v4472 = vadd.f32 %v4330, %v4471
    %v4473 = vpop.f32.mrb[0].mxu0
    %v4474 = vadd.f32 %v4332, %v4473
    %4475 = vdwg.mxu0
    %4476 = vmatprep.subr.mxu0 %v4138
    %4477 = vmatpush1.msra.mxu0 %v4137
    %4478 = vmatprep.subr.mxu0 %v4142
    %4479 = vmatpush1.msra.mxu0 %v4141
    %4480 = vmatprep.subr.mxu0 %v4146
    %4481 = vmatpush1.msra.mxu0 %v4145
    %4482 = vmatprep.subr.mxu0 %v4150
    %4483 = vmatpush1.msra.mxu0 %v4149
    %4484 = vmatprep.subr.mxu0 %v4154
    %4485 = vmatpush1.msra.mxu0 %v4153
    %4486 = vmatprep.subr.mxu0 %v4158
    %4487 = vmatpush1.msra.mxu0 %v4157
    %4488 = vmatprep.subr.mxu0 %v4162
    %4489 = vmatpush1.msra.mxu0 %v4161
    %4490 = vmatprep.subr.mxu0 %v4166
    %4491 = vmatpush1.msra.mxu0 %v4165
    %4492 = vmatprep.subr.mxu0 %v4170
    %4493 = vmatpush1.msra.mxu0 %v4169
    %4494 = vmatprep.subr.mxu0 %v4174
    %4495 = vmatpush1.msra.mxu0 %v4173
    %4496 = vmatprep.subr.mxu0 %v4178
    %4497 = vmatpush1.msra.mxu0 %v4177
    %4498 = vmatprep.subr.mxu0 %v4182
    %4499 = vmatpush1.msra.mxu0 %v4181
    %4500 = vmatprep.subr.mxu0 %v4186
    %4501 = vmatpush1.msra.mxu0 %v4185
    %4502 = vmatprep.subr.mxu0 %v4190
    %4503 = vmatpush1.msra.mxu0 %v4189
    %4504 = vmatprep.subr.mxu0 %v4194
    %4505 = vmatpush1.msra.mxu0 %v4193
    %4506 = vmatprep.subr.mxu0 %v4198
    %4507 = vmatpush1.msra.mxu0 %v4197
    %4508 = vmatprep.subr.mxu0 0.0
    %4509 = vmatpush1.msra.mxu0 0.0
    %4510 = vmatprep.subr.mxu0 0.0
    %4511 = vmatpush1.msra.mxu0 0.0
    %4512 = vmatprep.subr.mxu0 0.0
    %4513 = vmatpush1.msra.mxu0 0.0
    %4514 = vmatprep.subr.mxu0 0.0
    %4515 = vmatpush1.msra.mxu0 0.0
    %4516 = vmatprep.subr.mxu0 0.0
    %4517 = vmatpush1.msra.mxu0 0.0
    %4518 = vmatprep.subr.mxu0 0.0
    %4519 = vmatpush1.msra.mxu0 0.0
    %4520 = vmatprep.subr.mxu0 0.0
    %4521 = vmatpush1.msra.mxu0 0.0
    %4522 = vmatprep.subr.mxu0 0.0
    %4523 = vmatpush1.msra.mxu0 0.0
    %4524 = vmatprep.subr.mxu0 0.0
    %4525 = vmatpush1.msra.mxu0 0.0
    %4526 = vmatprep.subr.mxu0 0.0
    %4527 = vmatpush1.msra.mxu0 0.0
    %4528 = vmatprep.subr.mxu0 0.0
    %4529 = vmatpush1.msra.mxu0 0.0
    %4530 = vmatprep.subr.mxu0 0.0
    %4531 = vmatpush1.msra.mxu0 0.0
    %4532 = vmatprep.subr.mxu0 0.0
    %4533 = vmatpush1.msra.mxu0 0.0
    %4534 = vmatprep.subr.mxu0 0.0
    %4535 = vmatpush1.msra.mxu0 0.0
    %4536 = vmatprep.subr.mxu0 0.0
    %4537 = vmatpush1.msra.mxu0 0.0
    %4538 = vmatprep.subr.mxu0 0.0
    %4539 = vmatpush1.msra.mxu0 0.0
    %4540 = vmatprep.mubr.f32.mxu0 0.0
    %4541 = vmatmul.mubr.f32.gmra.mrb[0].mxu0 %v4134
    %v4542 = vpop.f32.mrb[0].mxu0
    %v4543 = vadd.f32 %v4401, %v4542
    %v4544 = vpop.f32.mrb[0].mxu0
    %v4545 = vadd.f32 %v4403, %v4544
    %4546 = vdwg.mxu0
    %v4547 = vadd.f32 %v4472, %v311
    %v4548 = vadd.f32 %v4474, %v315
    %v4549 = vadd.f32 %v4543, %v319
    %v4550 = vadd.f32 %v4545, %v323
    %v4551 = vxor.u32 %v4547, 2147483648
    %v4552 = vxor.u32 %v4548, 2147483648
    %v4553 = vxor.u32 %v4549, 2147483648
    %v4554 = vmul.f32 %v4551, 1.442695
    %v4555 = vpow.pop %v4554
    %v4556 = vmul.f32 %v4552, 1.442695
    %v4557 = vpow.pop %v4556
    %v4558 = vmul.f32 %v4553, 1.442695
    %v4559 = vpow.pop %v4558
    %v4560 = vadd.f32 %v4555, 1.0
    %v4561 = vadd.f32 %v4557, 1.0
    %v4562 = vadd.f32 %v4559, 1.0
    %v4563 = vrcp.pop %v4560
    %v4564 = vmul.f32 1.0, %v4563
    %v4565 = vrcp.pop %v4561
    %v4566 = vmul.f32 1.0, %v4565
    %v4567 = vrcp.pop %v4562
    %v4568 = vmul.f32 1.0, %v4567
    %v4569 = vtanh.pop %v4550
    %v4570 = vmul.f32 %v4566, %v3892
    %v4571 = vmul.f32 %v4564, %v4569
    %v4572 = vadd.f32 %v4570, %v4571
    %v4573 = vtanh.pop %v4572
    %v4574 = vmul.f32 %v4568, %v4573
    %v4575 = vmul.f32 %v4574, %v489
    %4576 = vadd.xlane.f32.xlu0 %v4575
    %v4577 = vpop.xlane.xlu0 %4576
    %v4578 = vadd.f32 %v4577, %v498
    %4580 = vrot.lane.b32.xlu0 %v4578, 6
    %v4581 = vpop.permute.xlu0 %4580
    %vm4583 = vcmask 56368
    %4584 = vst.msk [vmem:[#allocation11] sm:$0xff] %vm4583, %v4581
    %v4585 = vld [vmem:[#allocation9] sm:$0xff]
    %v4586 = vld [vmem:[#allocation9 + $0x8] sm:$0xff]
    %v4587 = vld [vmem:[#allocation9 + $0x10] sm:$0xff]
    %v4588 = vld [vmem:[#allocation9 + $0x18] sm:$0xff]
    %v4589 = vld [vmem:[#allocation9 + $0x20] sm:$0xff]
    %v4590 = vld [vmem:[#allocation9 + $0x28] sm:$0xff]
    %v4591 = vld [vmem:[#allocation9 + $0x30] sm:$0xff]
    %v4592 = vld [vmem:[#allocation9 + $0x38] sm:$0xff]
    %v4593 = vld [vmem:[#allocation9 + $0x40] sm:$0xff]
    %v4594 = vld [vmem:[#allocation9 + $0x48] sm:$0xff]
    %v4595 = vld [vmem:[#allocation9 + $0x50] sm:$0xff]
    %v4596 = vld [vmem:[#allocation9 + $0x58] sm:$0xff]
    %v4597 = vld [vmem:[#allocation9 + $0x60] sm:$0xff]
    %v4598 = vld [vmem:[#allocation9 + $0x68] sm:$0xff]
    %v4599 = vld [vmem:[#allocation9 + $0x70] sm:$0xff]
    %v4600 = vld [vmem:[#allocation9 + $0x78] sm:$0xff]
    %v4601 = vld [vmem:[#allocation9 + $0x80] sm:$0xff]
    %v4602 = vld [vmem:[#allocation9 + $0x88] sm:$0xff]
    %v4603 = vld [vmem:[#allocation9 + $0x90] sm:$0xff]
    %v4604 = vld [vmem:[#allocation9 + $0x98] sm:$0xff]
    %v4605 = vld [vmem:[#allocation9 + $0xa0] sm:$0xff]
    %v4606 = vld [vmem:[#allocation9 + $0xa8] sm:$0xff]
    %v4607 = vld [vmem:[#allocation9 + $0xb0] sm:$0xff]
    %v4608 = vld [vmem:[#allocation9 + $0xb8] sm:$0xff]
    %v4609 = vld [vmem:[#allocation9 + $0xc0] sm:$0xff]
    %v4610 = vld [vmem:[#allocation9 + $0xc8] sm:$0xff]
    %v4611 = vld [vmem:[#allocation9 + $0xd0] sm:$0xff]
    %v4612 = vld [vmem:[#allocation9 + $0xd8] sm:$0xff]
    %v4613 = vld [vmem:[#allocation9 + $0xe0] sm:$0xff]
    %v4614 = vld [vmem:[#allocation9 + $0xe8] sm:$0xff]
    %v4615 = vld [vmem:[#allocation9 + $0xf0] sm:$0xff]
    %v4616 = vld [vmem:[#allocation9 + $0xf8] sm:$0xff]
    %v4617 = vld [vmem:[#allocation9 + $0x100] sm:$0xff]
    %v4618 = vld [vmem:[#allocation9 + $0x108] sm:$0xff]
    %v4619 = vld [vmem:[#allocation9 + $0x110] sm:$0xff]
    %v4620 = vld [vmem:[#allocation9 + $0x118] sm:$0xff]
    %v4621 = vld [vmem:[#allocation9 + $0x120] sm:$0xff]
    %v4622 = vld [vmem:[#allocation9 + $0x128] sm:$0xff]
    %v4623 = vld [vmem:[#allocation9 + $0x130] sm:$0xff]
    %v4624 = vld [vmem:[#allocation9 + $0x138] sm:$0xff]
    %v4625 = vld [vmem:[#allocation9 + $0x140] sm:$0xff]
    %v4626 = vld [vmem:[#allocation9 + $0x148] sm:$0xff]
    %v4627 = vld [vmem:[#allocation9 + $0x150] sm:$0xff]
    %v4628 = vld [vmem:[#allocation9 + $0x158] sm:$0xff]
    %v4629 = vld [vmem:[#allocation9 + $0x160] sm:$0xff]
    %v4630 = vld [vmem:[#allocation9 + $0x168] sm:$0xff]
    %v4631 = vld [vmem:[#allocation9 + $0x170] sm:$0xff]
    %v4632 = vld [vmem:[#allocation9 + $0x178] sm:$0xff]
    %v4633 = vld [vmem:[#allocation9 + $0x180] sm:$0xff]
    %v4634 = vld [vmem:[#allocation9 + $0x188] sm:$0xff]
    %v4635 = vld [vmem:[#allocation9 + $0x190] sm:$0xff]
    %v4636 = vld [vmem:[#allocation9 + $0x198] sm:$0xff]
    %v4637 = vld [vmem:[#allocation9 + $0x1a0] sm:$0xff]
    %v4638 = vld [vmem:[#allocation9 + $0x1a8] sm:$0xff]
    %v4639 = vld [vmem:[#allocation9 + $0x1b0] sm:$0xff]
    %v4640 = vld [vmem:[#allocation9 + $0x1b8] sm:$0xff]
    %v4641 = vld [vmem:[#allocation9 + $0x1c0] sm:$0xff]
    %v4642 = vld [vmem:[#allocation9 + $0x1c8] sm:$0xff]
    %v4643 = vld [vmem:[#allocation9 + $0x1d0] sm:$0xff]
    %v4644 = vld [vmem:[#allocation9 + $0x1d8] sm:$0xff]
    %v4645 = vld [vmem:[#allocation9 + $0x1e0] sm:$0xff]
    %v4646 = vld [vmem:[#allocation9 + $0x1e8] sm:$0xff]
    %v4647 = vld [vmem:[#allocation9 + $0x1f0] sm:$0xff]
    %v4648 = vld [vmem:[#allocation9 + $0x1f8] sm:$0xff]
    %4649 = vmatprep.subr.mxu0 %v4586
    %4650 = vmatpush1.msra.mxu0 %v4585
    %4651 = vmatprep.subr.mxu0 %v4590
    %4652 = vmatpush1.msra.mxu0 %v4589
    %4653 = vmatprep.subr.mxu0 %v4594
    %4654 = vmatpush1.msra.mxu0 %v4593
    %4655 = vmatprep.subr.mxu0 %v4598
    %4656 = vmatpush1.msra.mxu0 %v4597
    %4657 = vmatprep.subr.mxu0 %v4602
    %4658 = vmatpush1.msra.mxu0 %v4601
    %4659 = vmatprep.subr.mxu0 %v4606
    %4660 = vmatpush1.msra.mxu0 %v4605
    %4661 = vmatprep.subr.mxu0 %v4610
    %4662 = vmatpush1.msra.mxu0 %v4609
    %4663 = vmatprep.subr.mxu0 %v4614
    %4664 = vmatpush1.msra.mxu0 %v4613
    %4665 = vmatprep.subr.mxu0 %v4618
    %4666 = vmatpush1.msra.mxu0 %v4617
    %4667 = vmatprep.subr.mxu0 %v4622
    %4668 = vmatpush1.msra.mxu0 %v4621
    %4669 = vmatprep.subr.mxu0 %v4626
    %4670 = vmatpush1.msra.mxu0 %v4625
    %4671 = vmatprep.subr.mxu0 %v4630
    %4672 = vmatpush1.msra.mxu0 %v4629
    %4673 = vmatprep.subr.mxu0 %v4634
    %4674 = vmatpush1.msra.mxu0 %v4633
    %4675 = vmatprep.subr.mxu0 %v4638
    %4676 = vmatpush1.msra.mxu0 %v4637
    %4677 = vmatprep.subr.mxu0 %v4642
    %4678 = vmatpush1.msra.mxu0 %v4641
    %4679 = vmatprep.subr.mxu0 %v4646
    %4680 = vmatpush1.msra.mxu0 %v4645
    %4681 = vmatprep.subr.mxu0 0.0
    %4682 = vmatpush1.msra.mxu0 0.0
    %4683 = vmatprep.subr.mxu0 0.0
    %4684 = vmatpush1.msra.mxu0 0.0
    %4685 = vmatprep.subr.mxu0 0.0
    %4686 = vmatpush1.msra.mxu0 0.0
    %4687 = vmatprep.subr.mxu0 0.0
    %4688 = vmatpush1.msra.mxu0 0.0
    %4689 = vmatprep.subr.mxu0 0.0
    %4690 = vmatpush1.msra.mxu0 0.0
    %4691 = vmatprep.subr.mxu0 0.0
    %4692 = vmatpush1.msra.mxu0 0.0
    %4693 = vmatprep.subr.mxu0 0.0
    %4694 = vmatpush1.msra.mxu0 0.0
    %4695 = vmatprep.subr.mxu0 0.0
    %4696 = vmatpush1.msra.mxu0 0.0
    %4697 = vmatprep.subr.mxu0 0.0
    %4698 = vmatpush1.msra.mxu0 0.0
    %4699 = vmatprep.subr.mxu0 0.0
    %4700 = vmatpush1.msra.mxu0 0.0
    %4701 = vmatprep.subr.mxu0 0.0
    %4702 = vmatpush1.msra.mxu0 0.0
    %4703 = vmatprep.subr.mxu0 0.0
    %4704 = vmatpush1.msra.mxu0 0.0
    %4705 = vmatprep.subr.mxu0 0.0
    %4706 = vmatpush1.msra.mxu0 0.0
    %4707 = vmatprep.subr.mxu0 0.0
    %4708 = vmatpush1.msra.mxu0 0.0
    %4709 = vmatprep.subr.mxu0 0.0
    %4710 = vmatpush1.msra.mxu0 0.0
    %4711 = vmatprep.subr.mxu0 0.0
    %4712 = vmatpush1.msra.mxu0 0.0
    %4713 = vmatprep.mubr.f32.mxu0 0.0
    %4714 = vmatmul.mubr.f32.gmra.mrb[0].mxu0 %v4134
    %v4715 = vpop.f32.mrb[0].mxu0
    %v4716 = vadd.f32 %v219, %v4715
    %v4717 = vpop.f32.mrb[0].mxu0
    %v4718 = vadd.f32 %v220, %v4717
    %4719 = vdwg.mxu0
    %4720 = vmatprep.subr.mxu0 %v4588
    %4721 = vmatpush1.msra.mxu0 %v4587
    %4722 = vmatprep.subr.mxu0 %v4592
    %4723 = vmatpush1.msra.mxu0 %v4591
    %4724 = vmatprep.subr.mxu0 %v4596
    %4725 = vmatpush1.msra.mxu0 %v4595
    %4726 = vmatprep.subr.mxu0 %v4600
    %4727 = vmatpush1.msra.mxu0 %v4599
    %4728 = vmatprep.subr.mxu0 %v4604
    %4729 = vmatpush1.msra.mxu0 %v4603
    %4730 = vmatprep.subr.mxu0 %v4608
    %4731 = vmatpush1.msra.mxu0 %v4607
    %4732 = vmatprep.subr.mxu0 %v4612
    %4733 = vmatpush1.msra.mxu0 %v4611
    %4734 = vmatprep.subr.mxu0 %v4616
    %4735 = vmatpush1.msra.mxu0 %v4615
    %4736 = vmatprep.subr.mxu0 %v4620
    %4737 = vmatpush1.msra.mxu0 %v4619
    %4738 = vmatprep.subr.mxu0 %v4624
    %4739 = vmatpush1.msra.mxu0 %v4623
    %4740 = vmatprep.subr.mxu0 %v4628
    %4741 = vmatpush1.msra.mxu0 %v4627
    %4742 = vmatprep.subr.mxu0 %v4632
    %4743 = vmatpush1.msra.mxu0 %v4631
    %4744 = vmatprep.subr.mxu0 %v4636
    %4745 = vmatpush1.msra.mxu0 %v4635
    %4746 = vmatprep.subr.mxu0 %v4640
    %4747 = vmatpush1.msra.mxu0 %v4639
    %4748 = vmatprep.subr.mxu0 %v4644
    %4749 = vmatpush1.msra.mxu0 %v4643
    %4750 = vmatprep.subr.mxu0 %v4648
    %4751 = vmatpush1.msra.mxu0 %v4647
    %4752 = vmatprep.subr.mxu0 0.0
    %4753 = vmatpush1.msra.mxu0 0.0
    %4754 = vmatprep.subr.mxu0 0.0
    %4755 = vmatpush1.msra.mxu0 0.0
    %4756 = vmatprep.subr.mxu0 0.0
    %4757 = vmatpush1.msra.mxu0 0.0
    %4758 = vmatprep.subr.mxu0 0.0
    %4759 = vmatpush1.msra.mxu0 0.0
    %4760 = vmatprep.subr.mxu0 0.0
    %4761 = vmatpush1.msra.mxu0 0.0
    %4762 = vmatprep.subr.mxu0 0.0
    %4763 = vmatpush1.msra.mxu0 0.0
    %4764 = vmatprep.subr.mxu0 0.0
    %4765 = vmatpush1.msra.mxu0 0.0
    %4766 = vmatprep.subr.mxu0 0.0
    %4767 = vmatpush1.msra.mxu0 0.0
    %4768 = vmatprep.subr.mxu0 0.0
    %4769 = vmatpush1.msra.mxu0 0.0
    %4770 = vmatprep.subr.mxu0 0.0
    %4771 = vmatpush1.msra.mxu0 0.0
    %4772 = vmatprep.subr.mxu0 0.0
    %4773 = vmatpush1.msra.mxu0 0.0
    %4774 = vmatprep.subr.mxu0 0.0
    %4775 = vmatpush1.msra.mxu0 0.0
    %4776 = vmatprep.subr.mxu0 0.0
    %4777 = vmatpush1.msra.mxu0 0.0
    %4778 = vmatprep.subr.mxu0 0.0
    %4779 = vmatpush1.msra.mxu0 0.0
    %4780 = vmatprep.subr.mxu0 0.0
    %4781 = vmatpush1.msra.mxu0 0.0
    %4782 = vmatprep.subr.mxu0 0.0
    %4783 = vmatpush1.msra.mxu0 0.0
    %4784 = vmatprep.mubr.f32.mxu0 0.0
    %4785 = vmatmul.mubr.f32.gmra.mrb[0].mxu0 %v4134
    %v4786 = vpop.f32.mrb[0].mxu0
    %v4787 = vadd.f32 %v221, %v4786
    %v4788 = vpop.f32.mrb[0].mxu0
    %v4789 = vadd.f32 %v222, %v4788
    %4790 = vdwg.mxu0
    %v4791 = vxor.u32 %v4716, 2147483648
    %v4792 = vxor.u32 %v4718, 2147483648
    %v4793 = vxor.u32 %v4787, 2147483648
    %v4794 = vmul.f32 %v4791, 1.442695
    %v4795 = vpow.pop %v4794
    %v4796 = vmul.f32 %v4792, 1.442695
    %v4797 = vpow.pop %v4796
    %v4798 = vmul.f32 %v4793, 1.442695
    %v4799 = vpow.pop %v4798
    %v4800 = vadd.f32 %v4795, 1.0
    %v4801 = vadd.f32 %v4797, 1.0
    %v4802 = vadd.f32 %v4799, 1.0
    %v4803 = vrcp.pop %v4800
    %v4804 = vmul.f32 1.0, %v4803
    %v4805 = vrcp.pop %v4801
    %v4806 = vmul.f32 1.0, %v4805
    %v4807 = vrcp.pop %v4802
    %v4808 = vmul.f32 1.0, %v4807
    %v4809 = vtanh.pop %v4789
    %v4810 = vmul.f32 %v4806, %v4132
    %v4811 = vmul.f32 %v4804, %v4809
    %v4812 = vadd.f32 %v4810, %v4811
    %v4813 = vtanh.pop %v4812
    %v4814 = vmul.f32 %v4808, %v4813
    %v4815 = vld [vmem:[#allocation2] sm:$0xff]
    %v4816 = vld [vmem:[#allocation2 + $0x8] sm:$0xff]
    %v4817 = vld [vmem:[#allocation2 + $0x10] sm:$0xff]
    %v4818 = vld [vmem:[#allocation2 + $0x18] sm:$0xff]
    %v4819 = vld [vmem:[#allocation2 + $0x20] sm:$0xff]
    %v4820 = vld [vmem:[#allocation2 + $0x28] sm:$0xff]
    %v4821 = vld [vmem:[#allocation2 + $0x30] sm:$0xff]
    %v4822 = vld [vmem:[#allocation2 + $0x38] sm:$0xff]
    %v4823 = vld [vmem:[#allocation2 + $0x40] sm:$0xff]
    %v4824 = vld [vmem:[#allocation2 + $0x48] sm:$0xff]
    %v4825 = vld [vmem:[#allocation2 + $0x50] sm:$0xff]
    %v4826 = vld [vmem:[#allocation2 + $0x58] sm:$0xff]
    %v4827 = vld [vmem:[#allocation2 + $0x60] sm:$0xff]
    %v4828 = vld [vmem:[#allocation2 + $0x68] sm:$0xff]
    %v4829 = vld [vmem:[#allocation2 + $0x70] sm:$0xff]
    %v4830 = vld [vmem:[#allocation2 + $0x78] sm:$0xff]
    %v4831 = vld [vmem:[#allocation2 + $0x80] sm:$0xff]
    %v4832 = vld [vmem:[#allocation2 + $0x88] sm:$0xff]
    %v4833 = vld [vmem:[#allocation2 + $0x90] sm:$0xff]
    %v4834 = vld [vmem:[#allocation2 + $0x98] sm:$0xff]
    %v4835 = vld [vmem:[#allocation2 + $0xa0] sm:$0xff]
    %v4836 = vld [vmem:[#allocation2 + $0xa8] sm:$0xff]
    %v4837 = vld [vmem:[#allocation2 + $0xb0] sm:$0xff]
    %v4838 = vld [vmem:[#allocation2 + $0xb8] sm:$0xff]
    %v4839 = vld [vmem:[#allocation2 + $0xc0] sm:$0xff]
    %v4840 = vld [vmem:[#allocation2 + $0xc8] sm:$0xff]
    %v4841 = vld [vmem:[#allocation2 + $0xd0] sm:$0xff]
    %v4842 = vld [vmem:[#allocation2 + $0xd8] sm:$0xff]
    %v4843 = vld [vmem:[#allocation2 + $0xe0] sm:$0xff]
    %v4844 = vld [vmem:[#allocation2 + $0xe8] sm:$0xff]
    %v4845 = vld [vmem:[#allocation2 + $0xf0] sm:$0xff]
    %v4846 = vld [vmem:[#allocation2 + $0xf8] sm:$0xff]
    %v4847 = vld [vmem:[#allocation2 + $0x100] sm:$0xff]
    %v4848 = vld [vmem:[#allocation2 + $0x108] sm:$0xff]
    %v4849 = vld [vmem:[#allocation2 + $0x110] sm:$0xff]
    %v4850 = vld [vmem:[#allocation2 + $0x118] sm:$0xff]
    %v4851 = vld [vmem:[#allocation2 + $0x120] sm:$0xff]
    %v4852 = vld [vmem:[#allocation2 + $0x128] sm:$0xff]
    %v4853 = vld [vmem:[#allocation2 + $0x130] sm:$0xff]
    %v4854 = vld [vmem:[#allocation2 + $0x138] sm:$0xff]
    %v4855 = vld [vmem:[#allocation2 + $0x140] sm:$0xff]
    %v4856 = vld [vmem:[#allocation2 + $0x148] sm:$0xff]
    %v4857 = vld [vmem:[#allocation2 + $0x150] sm:$0xff]
    %v4858 = vld [vmem:[#allocation2 + $0x158] sm:$0xff]
    %v4859 = vld [vmem:[#allocation2 + $0x160] sm:$0xff]
    %v4860 = vld [vmem:[#allocation2 + $0x168] sm:$0xff]
    %v4861 = vld [vmem:[#allocation2 + $0x170] sm:$0xff]
    %v4862 = vld [vmem:[#allocation2 + $0x178] sm:$0xff]
    %v4863 = vld [vmem:[#allocation2 + $0x180] sm:$0xff]
    %v4864 = vld [vmem:[#allocation2 + $0x188] sm:$0xff]
    %v4865 = vld [vmem:[#allocation2 + $0x190] sm:$0xff]
    %v4866 = vld [vmem:[#allocation2 + $0x198] sm:$0xff]
    %v4867 = vld [vmem:[#allocation2 + $0x1a0] sm:$0xff]
    %v4868 = vld [vmem:[#allocation2 + $0x1a8] sm:$0xff]
    %v4869 = vld [vmem:[#allocation2 + $0x1b0] sm:$0xff]
    %v4870 = vld [vmem:[#allocation2 + $0x1b8] sm:$0xff]
    %v4871 = vld [vmem:[#allocation2 + $0x1c0] sm:$0xff]
    %v4872 = vld [vmem:[#allocation2 + $0x1c8] sm:$0xff]
    %v4873 = vld [vmem:[#allocation2 + $0x1d0] sm:$0xff]
    %v4874 = vld [vmem:[#allocation2 + $0x1d8] sm:$0xff]
    %v4875 = vld [vmem:[#allocation2 + $0x1e0] sm:$0xff]
    %v4876 = vld [vmem:[#allocation2 + $0x1e8] sm:$0xff]
    %v4877 = vld [vmem:[#allocation2 + $0x1f0] sm:$0xff]
    %v4878 = vld [vmem:[#allocation2 + $0x1f8] sm:$0xff]
    %v4879 = vld [vmem:[#allocation3] sm:$0xff]
    %v4880 = vld [vmem:[#allocation3 + $0x8] sm:$0xff]
    %v4881 = vld [vmem:[#allocation3 + $0x10] sm:$0xff]
    %v4882 = vld [vmem:[#allocation3 + $0x18] sm:$0xff]
    %v4883 = vld [vmem:[#allocation3 + $0x20] sm:$0xff]
    %v4884 = vld [vmem:[#allocation3 + $0x28] sm:$0xff]
    %v4885 = vld [vmem:[#allocation3 + $0x30] sm:$0xff]
    %v4886 = vld [vmem:[#allocation3 + $0x38] sm:$0xff]
    %v4887 = vld [vmem:[#allocation3 + $0x40] sm:$0xff]
    %v4888 = vld [vmem:[#allocation3 + $0x48] sm:$0xff]
    %v4889 = vld [vmem:[#allocation3 + $0x50] sm:$0xff]
    %v4890 = vld [vmem:[#allocation3 + $0x58] sm:$0xff]
    %v4891 = vld [vmem:[#allocation3 + $0x60] sm:$0xff]
    %v4892 = vld [vmem:[#allocation3 + $0x68] sm:$0xff]
    %v4893 = vld [vmem:[#allocation3 + $0x70] sm:$0xff]
    %v4894 = vld [vmem:[#allocation3 + $0x78] sm:$0xff]
    %v4895 = vld [vmem:[#allocation3 + $0x80] sm:$0xff]
    %v4896 = vld [vmem:[#allocation3 + $0x88] sm:$0xff]
    %v4897 = vld [vmem:[#allocation3 + $0x90] sm:$0xff]
    %v4898 = vld [vmem:[#allocation3 + $0x98] sm:$0xff]
    %v4899 = vld [vmem:[#allocation3 + $0xa0] sm:$0xff]
    %v4900 = vld [vmem:[#allocation3 + $0xa8] sm:$0xff]
    %v4901 = vld [vmem:[#allocation3 + $0xb0] sm:$0xff]
    %v4902 = vld [vmem:[#allocation3 + $0xb8] sm:$0xff]
    %v4903 = vld [vmem:[#allocation3 + $0xc0] sm:$0xff]
    %v4904 = vld [vmem:[#allocation3 + $0xc8] sm:$0xff]
    %v4905 = vld [vmem:[#allocation3 + $0xd0] sm:$0xff]
    %v4906 = vld [vmem:[#allocation3 + $0xd8] sm:$0xff]
    %v4907 = vld [vmem:[#allocation3 + $0xe0] sm:$0xff]
    %v4908 = vld [vmem:[#allocation3 + $0xe8] sm:$0xff]
    %v4909 = vld [vmem:[#allocation3 + $0xf0] sm:$0xff]
    %v4910 = vld [vmem:[#allocation3 + $0xf8] sm:$0xff]
    %v4911 = vld [vmem:[#allocation3 + $0x100] sm:$0xff]
    %v4912 = vld [vmem:[#allocation3 + $0x108] sm:$0xff]
    %v4913 = vld [vmem:[#allocation3 + $0x110] sm:$0xff]
    %v4914 = vld [vmem:[#allocation3 + $0x118] sm:$0xff]
    %v4915 = vld [vmem:[#allocation3 + $0x120] sm:$0xff]
    %v4916 = vld [vmem:[#allocation3 + $0x128] sm:$0xff]
    %v4917 = vld [vmem:[#allocation3 + $0x130] sm:$0xff]
    %v4918 = vld [vmem:[#allocation3 + $0x138] sm:$0xff]
    %v4919 = vld [vmem:[#allocation3 + $0x140] sm:$0xff]
    %v4920 = vld [vmem:[#allocation3 + $0x148] sm:$0xff]
    %v4921 = vld [vmem:[#allocation3 + $0x150] sm:$0xff]
    %v4922 = vld [vmem:[#allocation3 + $0x158] sm:$0xff]
    %v4923 = vld [vmem:[#allocation3 + $0x160] sm:$0xff]
    %v4924 = vld [vmem:[#allocation3 + $0x168] sm:$0xff]
    %v4925 = vld [vmem:[#allocation3 + $0x170] sm:$0xff]
    %v4926 = vld [vmem:[#allocation3 + $0x178] sm:$0xff]
    %v4927 = vld [vmem:[#allocation3 + $0x180] sm:$0xff]
    %v4928 = vld [vmem:[#allocation3 + $0x188] sm:$0xff]
    %v4929 = vld [vmem:[#allocation3 + $0x190] sm:$0xff]
    %v4930 = vld [vmem:[#allocation3 + $0x198] sm:$0xff]
    %v4931 = vld [vmem:[#allocation3 + $0x1a0] sm:$0xff]
    %v4932 = vld [vmem:[#allocation3 + $0x1a8] sm:$0xff]
    %v4933 = vld [vmem:[#allocation3 + $0x1b0] sm:$0xff]
    %v4934 = vld [vmem:[#allocation3 + $0x1b8] sm:$0xff]
    %v4935 = vld [vmem:[#allocation3 + $0x1c0] sm:$0xff]
    %v4936 = vld [vmem:[#allocation3 + $0x1c8] sm:$0xff]
    %v4937 = vld [vmem:[#allocation3 + $0x1d0] sm:$0xff]
    %v4938 = vld [vmem:[#allocation3 + $0x1d8] sm:$0xff]
    %v4939 = vld [vmem:[#allocation3 + $0x1e0] sm:$0xff]
    %v4940 = vld [vmem:[#allocation3 + $0x1e8] sm:$0xff]
    %v4941 = vld [vmem:[#allocation3 + $0x1f0] sm:$0xff]
    %v4942 = vld [vmem:[#allocation3 + $0x1f8] sm:$0xff]
    %4943 = vmatprep.subr.mxu0 %v4880
    %4944 = vmatpush1.msra.mxu0 %v4879
    %4945 = vmatprep.subr.mxu0 %v4884
    %4946 = vmatpush1.msra.mxu0 %v4883
    %4947 = vmatprep.subr.mxu0 %v4888
    %4948 = vmatpush1.msra.mxu0 %v4887
    %4949 = vmatprep.subr.mxu0 %v4892
    %4950 = vmatpush1.msra.mxu0 %v4891
    %4951 = vmatprep.subr.mxu0 %v4896
    %4952 = vmatpush1.msra.mxu0 %v4895
    %4953 = vmatprep.subr.mxu0 %v4900
    %4954 = vmatpush1.msra.mxu0 %v4899
    %4955 = vmatprep.subr.mxu0 %v4904
    %4956 = vmatpush1.msra.mxu0 %v4903
    %4957 = vmatprep.subr.mxu0 %v4908
    %4958 = vmatpush1.msra.mxu0 %v4907
    %4959 = vmatprep.subr.mxu0 %v4912
    %4960 = vmatpush1.msra.mxu0 %v4911
    %4961 = vmatprep.subr.mxu0 %v4916
    %4962 = vmatpush1.msra.mxu0 %v4915
    %4963 = vmatprep.subr.mxu0 %v4920
    %4964 = vmatpush1.msra.mxu0 %v4919
    %4965 = vmatprep.subr.mxu0 %v4924
    %4966 = vmatpush1.msra.mxu0 %v4923
    %4967 = vmatprep.subr.mxu0 %v4928
    %4968 = vmatpush1.msra.mxu0 %v4927
    %4969 = vmatprep.subr.mxu0 %v4932
    %4970 = vmatpush1.msra.mxu0 %v4931
    %4971 = vmatprep.subr.mxu0 %v4936
    %4972 = vmatpush1.msra.mxu0 %v4935
    %4973 = vmatprep.subr.mxu0 %v4940
    %4974 = vmatpush1.msra.mxu0 %v4939
    %4975 = vmatprep.subr.mxu0 0.0
    %4976 = vmatpush1.msra.mxu0 0.0
    %4977 = vmatprep.subr.mxu0 0.0
    %4978 = vmatpush1.msra.mxu0 0.0
    %4979 = vmatprep.subr.mxu0 0.0
    %4980 = vmatpush1.msra.mxu0 0.0
    %4981 = vmatprep.subr.mxu0 0.0
    %4982 = vmatpush1.msra.mxu0 0.0
    %4983 = vmatprep.subr.mxu0 0.0
    %4984 = vmatpush1.msra.mxu0 0.0
    %4985 = vmatprep.subr.mxu0 0.0
    %4986 = vmatpush1.msra.mxu0 0.0
    %4987 = vmatprep.subr.mxu0 0.0
    %4988 = vmatpush1.msra.mxu0 0.0
    %4989 = vmatprep.subr.mxu0 0.0
    %4990 = vmatpush1.msra.mxu0 0.0
    %4991 = vmatprep.subr.mxu0 0.0
    %4992 = vmatpush1.msra.mxu0 0.0
    %4993 = vmatprep.subr.mxu0 0.0
    %4994 = vmatpush1.msra.mxu0 0.0
    %4995 = vmatprep.subr.mxu0 0.0
    %4996 = vmatpush1.msra.mxu0 0.0
    %4997 = vmatprep.subr.mxu0 0.0
    %4998 = vmatpush1.msra.mxu0 0.0
    %4999 = vmatprep.subr.mxu0 0.0
    %5000 = vmatpush1.msra.mxu0 0.0
    %5001 = vmatprep.subr.mxu0 0.0
    %5002 = vmatpush1.msra.mxu0 0.0
    %5003 = vmatprep.subr.mxu0 0.0
    %5004 = vmatpush1.msra.mxu0 0.0
    %5005 = vmatprep.subr.mxu0 0.0
    %5006 = vmatpush1.msra.mxu0 0.0
    %5007 = vmatprep.mubr.f32.mxu0 0.0
    %5008 = vmatmul.mubr.f32.gmra.mrb[0].mxu0 %v4574
    %v5009 = vpop.f32.mrb[0].mxu0
    %v5010 = vadd.f32 0.0, %v5009
    %v5011 = vpop.f32.mrb[0].mxu0
    %v5012 = vadd.f32 0.0, %v5011
    %5013 = vdwg.mxu0
    %5014 = vmatprep.subr.mxu0 %v4882
    %5015 = vmatpush1.msra.mxu0 %v4881
    %5016 = vmatprep.subr.mxu0 %v4886
    %5017 = vmatpush1.msra.mxu0 %v4885
    %5018 = vmatprep.subr.mxu0 %v4890
    %5019 = vmatpush1.msra.mxu0 %v4889
    %5020 = vmatprep.subr.mxu0 %v4894
    %5021 = vmatpush1.msra.mxu0 %v4893
    %5022 = vmatprep.subr.mxu0 %v4898
    %5023 = vmatpush1.msra.mxu0 %v4897
    %5024 = vmatprep.subr.mxu0 %v4902
    %5025 = vmatpush1.msra.mxu0 %v4901
    %5026 = vmatprep.subr.mxu0 %v4906
    %5027 = vmatpush1.msra.mxu0 %v4905
    %5028 = vmatprep.subr.mxu0 %v4910
    %5029 = vmatpush1.msra.mxu0 %v4909
    %5030 = vmatprep.subr.mxu0 %v4914
    %5031 = vmatpush1.msra.mxu0 %v4913
    %5032 = vmatprep.subr.mxu0 %v4918
    %5033 = vmatpush1.msra.mxu0 %v4917
    %5034 = vmatprep.subr.mxu0 %v4922
    %5035 = vmatpush1.msra.mxu0 %v4921
    %5036 = vmatprep.subr.mxu0 %v4926
    %5037 = vmatpush1.msra.mxu0 %v4925
    %5038 = vmatprep.subr.mxu0 %v4930
    %5039 = vmatpush1.msra.mxu0 %v4929
    %5040 = vmatprep.subr.mxu0 %v4934
    %5041 = vmatpush1.msra.mxu0 %v4933
    %5042 = vmatprep.subr.mxu0 %v4938
    %5043 = vmatpush1.msra.mxu0 %v4937
    %5044 = vmatprep.subr.mxu0 %v4942
    %5045 = vmatpush1.msra.mxu0 %v4941
    %5046 = vmatprep.subr.mxu0 0.0
    %5047 = vmatpush1.msra.mxu0 0.0
    %5048 = vmatprep.subr.mxu0 0.0
    %5049 = vmatpush1.msra.mxu0 0.0
    %5050 = vmatprep.subr.mxu0 0.0
    %5051 = vmatpush1.msra.mxu0 0.0
    %5052 = vmatprep.subr.mxu0 0.0
    %5053 = vmatpush1.msra.mxu0 0.0
    %5054 = vmatprep.subr.mxu0 0.0
    %5055 = vmatpush1.msra.mxu0 0.0
    %5056 = vmatprep.subr.mxu0 0.0
    %5057 = vmatpush1.msra.mxu0 0.0
    %5058 = vmatprep.subr.mxu0 0.0
    %5059 = vmatpush1.msra.mxu0 0.0
    %5060 = vmatprep.subr.mxu0 0.0
    %5061 = vmatpush1.msra.mxu0 0.0
    %5062 = vmatprep.subr.mxu0 0.0
    %5063 = vmatpush1.msra.mxu0 0.0
    %5064 = vmatprep.subr.mxu0 0.0
    %5065 = vmatpush1.msra.mxu0 0.0
    %5066 = vmatprep.subr.mxu0 0.0
    %5067 = vmatpush1.msra.mxu0 0.0
    %5068 = vmatprep.subr.mxu0 0.0
    %5069 = vmatpush1.msra.mxu0 0.0
    %5070 = vmatprep.subr.mxu0 0.0
    %5071 = vmatpush1.msra.mxu0 0.0
    %5072 = vmatprep.subr.mxu0 0.0
    %5073 = vmatpush1.msra.mxu0 0.0
    %5074 = vmatprep.subr.mxu0 0.0
    %5075 = vmatpush1.msra.mxu0 0.0
    %5076 = vmatprep.subr.mxu0 0.0
    %5077 = vmatpush1.msra.mxu0 0.0
    %5078 = vmatprep.mubr.f32.mxu0 0.0
    %5079 = vmatmul.mubr.f32.gmra.mrb[0].mxu0 %v4574
    %v5080 = vpop.f32.mrb[0].mxu0
    %v5081 = vadd.f32 0.0, %v5080
    %v5082 = vpop.f32.mrb[0].mxu0
    %v5083 = vadd.f32 0.0, %v5082
    %5084 = vdwg.mxu0
    %5085 = vmatprep.subr.mxu0 %v4816
    %5086 = vmatpush1.msra.mxu0 %v4815
    %5087 = vmatprep.subr.mxu0 %v4820
    %5088 = vmatpush1.msra.mxu0 %v4819
    %5089 = vmatprep.subr.mxu0 %v4824
    %5090 = vmatpush1.msra.mxu0 %v4823
    %5091 = vmatprep.subr.mxu0 %v4828
    %5092 = vmatpush1.msra.mxu0 %v4827
    %5093 = vmatprep.subr.mxu0 %v4832
    %5094 = vmatpush1.msra.mxu0 %v4831
    %5095 = vmatprep.subr.mxu0 %v4836
    %5096 = vmatpush1.msra.mxu0 %v4835
    %5097 = vmatprep.subr.mxu0 %v4840
    %5098 = vmatpush1.msra.mxu0 %v4839
    %5099 = vmatprep.subr.mxu0 %v4844
    %5100 = vmatpush1.msra.mxu0 %v4843
    %5101 = vmatprep.subr.mxu0 %v4848
    %5102 = vmatpush1.msra.mxu0 %v4847
    %5103 = vmatprep.subr.mxu0 %v4852
    %5104 = vmatpush1.msra.mxu0 %v4851
    %5105 = vmatprep.subr.mxu0 %v4856
    %5106 = vmatpush1.msra.mxu0 %v4855
    %5107 = vmatprep.subr.mxu0 %v4860
    %5108 = vmatpush1.msra.mxu0 %v4859
    %5109 = vmatprep.subr.mxu0 %v4864
    %5110 = vmatpush1.msra.mxu0 %v4863
    %5111 = vmatprep.subr.mxu0 %v4868
    %5112 = vmatpush1.msra.mxu0 %v4867
    %5113 = vmatprep.subr.mxu0 %v4872
    %5114 = vmatpush1.msra.mxu0 %v4871
    %5115 = vmatprep.subr.mxu0 %v4876
    %5116 = vmatpush1.msra.mxu0 %v4875
    %5117 = vmatprep.subr.mxu0 0.0
    %5118 = vmatpush1.msra.mxu0 0.0
    %5119 = vmatprep.subr.mxu0 0.0
    %5120 = vmatpush1.msra.mxu0 0.0
    %5121 = vmatprep.subr.mxu0 0.0
    %5122 = vmatpush1.msra.mxu0 0.0
    %5123 = vmatprep.subr.mxu0 0.0
    %5124 = vmatpush1.msra.mxu0 0.0
    %5125 = vmatprep.subr.mxu0 0.0
    %5126 = vmatpush1.msra.mxu0 0.0
    %5127 = vmatprep.subr.mxu0 0.0
    %5128 = vmatpush1.msra.mxu0 0.0
    %5129 = vmatprep.subr.mxu0 0.0
    %5130 = vmatpush1.msra.mxu0 0.0
    %5131 = vmatprep.subr.mxu0 0.0
    %5132 = vmatpush1.msra.mxu0 0.0
    %5133 = vmatprep.subr.mxu0 0.0
    %5134 = vmatpush1.msra.mxu0 0.0
    %5135 = vmatprep.subr.mxu0 0.0
    %5136 = vmatpush1.msra.mxu0 0.0
    %5137 = vmatprep.subr.mxu0 0.0
    %5138 = vmatpush1.msra.mxu0 0.0
    %5139 = vmatprep.subr.mxu0 0.0
    %5140 = vmatpush1.msra.mxu0 0.0
    %5141 = vmatprep.subr.mxu0 0.0
    %5142 = vmatpush1.msra.mxu0 0.0
    %5143 = vmatprep.subr.mxu0 0.0
    %5144 = vmatpush1.msra.mxu0 0.0
    %5145 = vmatprep.subr.mxu0 0.0
    %5146 = vmatpush1.msra.mxu0 0.0
    %5147 = vmatprep.subr.mxu0 0.0
    %5148 = vmatpush1.msra.mxu0 0.0
    %5149 = vmatprep.mubr.f32.mxu0 0.0
    %5150 = vmatmul.mubr.f32.gmra.mrb[0].mxu0 %v4814
    %v5151 = vpop.f32.mrb[0].mxu0
    %v5152 = vadd.f32 %v5010, %v5151
    %v5153 = vpop.f32.mrb[0].mxu0
    %v5154 = vadd.f32 %v5012, %v5153
    %5155 = vdwg.mxu0
    %5156 = vmatprep.subr.mxu0 %v4818
    %5157 = vmatpush1.msra.mxu0 %v4817
    %5158 = vmatprep.subr.mxu0 %v4822
    %5159 = vmatpush1.msra.mxu0 %v4821
    %5160 = vmatprep.subr.mxu0 %v4826
    %5161 = vmatpush1.msra.mxu0 %v4825
    %5162 = vmatprep.subr.mxu0 %v4830
    %5163 = vmatpush1.msra.mxu0 %v4829
    %5164 = vmatprep.subr.mxu0 %v4834
    %5165 = vmatpush1.msra.mxu0 %v4833
    %5166 = vmatprep.subr.mxu0 %v4838
    %5167 = vmatpush1.msra.mxu0 %v4837
    %5168 = vmatprep.subr.mxu0 %v4842
    %5169 = vmatpush1.msra.mxu0 %v4841
    %5170 = vmatprep.subr.mxu0 %v4846
    %5171 = vmatpush1.msra.mxu0 %v4845
    %5172 = vmatprep.subr.mxu0 %v4850
    %5173 = vmatpush1.msra.mxu0 %v4849
    %5174 = vmatprep.subr.mxu0 %v4854
    %5175 = vmatpush1.msra.mxu0 %v4853
    %5176 = vmatprep.subr.mxu0 %v4858
    %5177 = vmatpush1.msra.mxu0 %v4857
    %5178 = vmatprep.subr.mxu0 %v4862
    %5179 = vmatpush1.msra.mxu0 %v4861
    %5180 = vmatprep.subr.mxu0 %v4866
    %5181 = vmatpush1.msra.mxu0 %v4865
    %5182 = vmatprep.subr.mxu0 %v4870
    %5183 = vmatpush1.msra.mxu0 %v4869
    %5184 = vmatprep.subr.mxu0 %v4874
    %5185 = vmatpush1.msra.mxu0 %v4873
    %5186 = vmatprep.subr.mxu0 %v4878
    %5187 = vmatpush1.msra.mxu0 %v4877
    %5188 = vmatprep.subr.mxu0 0.0
    %5189 = vmatpush1.msra.mxu0 0.0
    %5190 = vmatprep.subr.mxu0 0.0
    %5191 = vmatpush1.msra.mxu0 0.0
    %5192 = vmatprep.subr.mxu0 0.0
    %5193 = vmatpush1.msra.mxu0 0.0
    %5194 = vmatprep.subr.mxu0 0.0
    %5195 = vmatpush1.msra.mxu0 0.0
    %5196 = vmatprep.subr.mxu0 0.0
    %5197 = vmatpush1.msra.mxu0 0.0
    %5198 = vmatprep.subr.mxu0 0.0
    %5199 = vmatpush1.msra.mxu0 0.0
    %5200 = vmatprep.subr.mxu0 0.0
    %5201 = vmatpush1.msra.mxu0 0.0
    %5202 = vmatprep.subr.mxu0 0.0
    %5203 = vmatpush1.msra.mxu0 0.0
    %5204 = vmatprep.subr.mxu0 0.0
    %5205 = vmatpush1.msra.mxu0 0.0
    %5206 = vmatprep.subr.mxu0 0.0
    %5207 = vmatpush1.msra.mxu0 0.0
    %5208 = vmatprep.subr.mxu0 0.0
    %5209 = vmatpush1.msra.mxu0 0.0
    %5210 = vmatprep.subr.mxu0 0.0
    %5211 = vmatpush1.msra.mxu0 0.0
    %5212 = vmatprep.subr.mxu0 0.0
    %5213 = vmatpush1.msra.mxu0 0.0
    %5214 = vmatprep.subr.mxu0 0.0
    %5215 = vmatpush1.msra.mxu0 0.0
    %5216 = vmatprep.subr.mxu0 0.0
    %5217 = vmatpush1.msra.mxu0 0.0
    %5218 = vmatprep.subr.mxu0 0.0
    %5219 = vmatpush1.msra.mxu0 0.0
    %5220 = vmatprep.mubr.f32.mxu0 0.0
    %5221 = vmatmul.mubr.f32.gmra.mrb[0].mxu0 %v4814
    %v5222 = vpop.f32.mrb[0].mxu0
    %v5223 = vadd.f32 %v5081, %v5222
    %v5224 = vpop.f32.mrb[0].mxu0
    %v5225 = vadd.f32 %v5083, %v5224
    %5226 = vdwg.mxu0
    %v5227 = vadd.f32 %v5152, %v311
    %v5228 = vadd.f32 %v5154, %v315
    %v5229 = vadd.f32 %v5223, %v319
    %v5230 = vadd.f32 %v5225, %v323
    %v5231 = vxor.u32 %v5227, 2147483648
    %v5232 = vxor.u32 %v5228, 2147483648
    %v5233 = vxor.u32 %v5229, 2147483648
    %v5234 = vmul.f32 %v5231, 1.442695
    %v5235 = vpow.pop %v5234
    %v5236 = vmul.f32 %v5232, 1.442695
    %v5237 = vpow.pop %v5236
    %v5238 = vmul.f32 %v5233, 1.442695
    %v5239 = vpow.pop %v5238
    %v5240 = vadd.f32 %v5235, 1.0
    %v5241 = vadd.f32 %v5237, 1.0
    %v5242 = vadd.f32 %v5239, 1.0
    %v5243 = vrcp.pop %v5240
    %v5244 = vmul.f32 1.0, %v5243
    %v5245 = vrcp.pop %v5241
    %v5246 = vmul.f32 1.0, %v5245
    %v5247 = vrcp.pop %v5242
    %v5248 = vmul.f32 1.0, %v5247
    %v5249 = vtanh.pop %v5230
    %v5250 = vmul.f32 %v5246, %v4572
    %v5251 = vmul.f32 %v5244, %v5249
    %v5252 = vadd.f32 %v5250, %v5251
    %v5253 = vtanh.pop %v5252
    %v5254 = vmul.f32 %v5248, %v5253
    %v5255 = vmul.f32 %v5254, %v489
    %5256 = vadd.xlane.f32.xlu0 %v5255
    %v5257 = vpop.xlane.xlu0 %5256
    %v5258 = vadd.f32 %v5257, %v498
    %5260 = vrot.lane.b32.xlu0 %v5258, 7
    %v5261 = vpop.permute.xlu0 %5260
    %vm5263 = vcmask 64568
    %5264 = vst.msk [vmem:[#allocation11] sm:$0xff] %vm5263, %v5261
    // Predicated region
    $region46: #{tpu_custom_call.1} parent=1 // pred_check
      _
    $region47: #{tpu_custom_call.1} parent=1 // pred_check_branch
      %5266 = sbr.rel (0) target = $region49
    $region48: #{tpu_custom_call.1} parent=1 // pred_region
      %s5268 = ssub.s32 128, 128
      %5269 = vsyncadd [#allocation8], %s5268
      %s5271 = sshll.u32 [#allocation11], 4
      %s5272 = int_to_ptr.vmem [resolvable:$true] %s5271
      %5274 = dma.vmem_to_hbm [thread:$0]  %s5272, 128, %s9, [#allocation8]
    $region49: #{tpu_custom_call.1} parent=1 // pred_fallthru
      _
    // Predicated region
    $region50: #{tpu_custom_call.1} parent=1 // pred_check
      _
    $region51: #{tpu_custom_call.1} parent=1 // pred_check_branch
      %5276 = sbr.rel (0) target = $region53
    $region52: #{tpu_custom_call.1} parent=1 // pred_region
      %5277 = dma.done [#allocation8], 128
    $region53: #{tpu_custom_call.1} parent=1 // pred_fallthru
      _
    %5278 = vsyncpa [#allocation7], 1
    %5279 = vsyncpa [#allocation10], 1
    %5280 = vsyncpa [#allocation8], 1
  %5281 = vsyncmov [#allocation4]
  %s5282 = vpop.sfrf %5281
  %p5283 = scmp.eq.s32.totalorder %s5282, 0
  %p5284 = pneg %p5283
  %5286 = shalt.err (%p5284)
  %s5287 = scalar_lea.sflag [#allocation4], 1
  %5288 = vsyncmov %s5287
  %s5289 = vpop.sfrf %5288
  %p5290 = scmp.eq.s32.totalorder %s5289, 0
  %p5291 = pneg %p5290
  %5293 = shalt.err (%p5291)

</llo_original>
